<compile_context>
chip_gen: v6e
topology: v6e:2x2x1
jax: 0.10.0
libtpu: 0.0.40
codegen_flags: <defaults>
</compile_context>

<pallas_src>
import functools

import jax
import jax.numpy as jnp
import numpy as np
from jax.experimental import pallas as pl
from jax.experimental.pallas import tpu as pltpu

_LANES = 128


def _round_up(x, m):
    return ((x + m - 1) // m) * m


def _finer_kernel(x_ref, wt_ref, b_ref, o_ref, *, omega_0, activation, is_last):
    # Linear part on the MXU, f32 accumulation regardless of input dtype.
    z = jnp.dot(x_ref[...], wt_ref[...], preferred_element_type=jnp.float32)
    z = z + b_ref[...]                       # [1, d_out] broadcast over rows (f32)

    if is_last:
        o_ref[...] = z.astype(o_ref.dtype)
    elif activation == "finer":
        alpha = jnp.abs(z) + 1.0             # VALU
        o_ref[...] = jnp.sin(omega_0 * alpha * z).astype(o_ref.dtype)  # EUP
    else:  # 'sine' / SIREN
        o_ref[...] = jnp.sin(omega_0 * z).astype(o_ref.dtype)


def prepare_finer_params(weight, bias, *, param_dtype=None):
    """One-time param prep (hoisted out of the forward pass).

    weight: [out_features, in_features] (PyTorch nn.Linear layout)
    bias:   [out_features]
    Returns (wt, b2): wt is [in, out] (optionally cast), b2 is [1, out] f32.
    No lane padding: the kernel's output block uses the full d_out as its last
    dim, which is legal and keeps HBM traffic minimal.
    """
    d_out, d_in = weight.shape
    wt = weight.T                             # [in, out]
    b2 = bias.reshape(1, d_out).astype(jnp.float32)
    if param_dtype is not None:
        wt = wt.astype(param_dtype)
    return wt, b2


def _pick_row_tile(n, tile_n, min_steps=2):
    """Row tile: as big as practical, multiple of 8, and (when possible) small
    enough that the grid has >= min_steps steps so v7x's 2 TCs both get work."""
    tile = min(tile_n, n)
    if n > 8:
        cap = max(8, _round_up(pl.cdiv(n, min_steps), 8))
        tile = min(tile, cap)
    if tile < n:
        tile = max(8, (tile // 8) * 8)        # must be a multiple of 8 when tiling
    return tile


def finer_layer_forward(x, wt, b2, *, omega_0=30.0, activation="finer",
                        is_last=False, tile_n=4096, out_dtype=None):
    """x: [N, in_features]; (wt, b2) from prepare_finer_params.

    Returns [N, out_features] in `out_dtype` (default: x.dtype).
    """
    n, d_in = x.shape
    d_in_w, d_out = wt.shape
    assert d_in == d_in_w, (d_in, d_in_w)
    out_dtype = x.dtype if out_dtype is None else jnp.dtype(out_dtype)

    tile = _pick_row_tile(n, tile_n)
    grid = (pl.cdiv(n, tile),)

    # Conservative VMEM footprint (lane dims padded to 128 inside VMEM,
    # double-buffered x/out tiles + resident weight/bias), with headroom.
    lane = lambda d: _round_up(d, _LANES)
    x_bytes = tile * lane(d_in) * max(x.dtype.itemsize, 2)
    o_bytes = tile * lane(d_out) * max(np.dtype(out_dtype).itemsize, 2)
    w_bytes = _round_up(d_in, 8) * lane(d_out) * 4
    b_bytes = 8 * lane(d_out) * 4
    est = 2 * (x_bytes + o_bytes + w_bytes + b_bytes)
    vmem_limit = int(min(48 << 20, max(est + (2 << 20), 16 << 20)))

    cost = pl.CostEstimate(
        flops=2 * n * d_in * d_out + (0 if is_last else 4 * n * d_out),
        transcendentals=0 if is_last else n * d_out,
        bytes_accessed=int(n * d_in * x.dtype.itemsize
                           + n * d_out * np.dtype(out_dtype).itemsize
                           + d_in * d_out * wt.dtype.itemsize
                           + d_out * 4),
    )

    kernel = functools.partial(
        _finer_kernel,
        omega_0=float(omega_0),
        activation=activation.lower(),
        is_last=is_last,
    )

    return pl.pallas_call(
        kernel,
        out_shape=jax.ShapeDtypeStruct((n, d_out), out_dtype),
        grid=grid,
        in_specs=[
            # x tile marches down the rows; weight/bias stay VMEM-resident.
            # (If widths grow to 512-1024, give wt/b2 pipeline_mode=pl.Buffered(1)
            #  to drop the redundant second buffer; negligible at 32-wide.)
            pl.BlockSpec((tile, d_in), lambda i: (i, 0)),
            pl.BlockSpec((d_in, d_out), lambda i: (0, 0)),
            pl.BlockSpec((1, d_out), lambda i: (0, 0)),
        ],
        out_specs=pl.BlockSpec((tile, d_out), lambda i: (i, 0)),
        compiler_params=pltpu.CompilerParams(
            dimension_semantics=("parallel",),
            vmem_limit_bytes=vmem_limit),
        cost_estimate=cost,
    )(x, wt, b2)


def init_finer_params(key, in_features, out_features, *, omega_0=30.0,
                      is_first=False, dtype=jnp.float32):
    """Matches FinerLayer.init_weights (weights) + nn.Linear default bias init."""
    kw, kb = jax.random.split(key)
    if is_first:
        w_bound = 1.0 / in_features
    else:
        w_bound = float(np.sqrt(6.0 / in_features) / omega_0)
    weight = jax.random.uniform(kw, (out_features, in_features), dtype=dtype,
                                minval=-w_bound, maxval=w_bound)
    b_bound = 1.0 / float(np.sqrt(in_features))
    bias = jax.random.uniform(kb, (out_features,), dtype=dtype,
                              minval=-b_bound, maxval=b_bound)
    return weight, bias


if __name__ == "__main__":
    key = jax.random.PRNGKey(0)
    k_x, k_p1, k_p2 = jax.random.split(key, 3)

    # Small INR-style problem: N coordinate points, hidden width 32.
    N, IN_F, OUT_F = 2048, 32, 32
    OMEGA = 30.0
    TILE_N = 512          # -> grid of 4 steps, exercises the pipeline / megacore

    x = jax.random.uniform(k_x, (N, IN_F), dtype=jnp.float32,
                           minval=-1.0, maxval=1.0)

    # --- hidden layer, FINER activation (f32 I/O) ---
    w1, b1 = init_finer_params(k_p1, IN_F, OUT_F, omega_0=OMEGA, is_first=True)
    wt1, bb1 = prepare_finer_params(w1, b1)
    out1 = jax.block_until_ready(finer_layer_forward(
        x, wt1, bb1, omega_0=OMEGA, activation="finer",
        is_last=False, tile_n=TILE_N))
    assert out1.shape == (N, OUT_F)

    z_ref = x @ w1.T + b1
    ref1 = jnp.sin(OMEGA * (jnp.abs(z_ref) + 1.0) * z_ref)
    np.testing.assert_allclose(np.asarray(out1), np.asarray(ref1),
                               rtol=5e-4, atol=5e-4)

    # --- same layer, SIREN activation ---
    out1s = jax.block_until_ready(finer_layer_forward(
        x, wt1, bb1, omega_0=OMEGA, activation="sine",
        is_last=False, tile_n=TILE_N))
    ref1s = jnp.sin(OMEGA * z_ref)
    np.testing.assert_allclose(np.asarray(out1s), np.asarray(ref1s),
                               rtol=5e-4, atol=5e-4)

    # --- last layer (no activation) ---
    w2, b2 = init_finer_params(k_p2, IN_F, OUT_F, omega_0=OMEGA, is_first=False)
    wt2, bb2 = prepare_finer_params(w2, b2)
    out2 = jax.block_until_ready(finer_layer_forward(
        x, wt2, bb2, omega_0=OMEGA, activation="finer",
        is_last=True, tile_n=TILE_N))
    ref2 = x @ w2.T + b2
    np.testing.assert_allclose(np.asarray(out2), np.asarray(ref2),
                               rtol=5e-4, atol=5e-4)

    # --- bf16 I/O path (halves HBM traffic; internal math stays f32) ---
    x_bf = x.astype(jnp.bfloat16)
    wt1_bf, bb1_bf = prepare_finer_params(w1, b1, param_dtype=jnp.bfloat16)
    out_bf = jax.block_until_ready(finer_layer_forward(
        x_bf, wt1_bf, bb1_bf, omega_0=OMEGA, activation="finer",
        is_last=False, tile_n=TILE_N))
    assert out_bf.dtype == jnp.bfloat16 and out_bf.shape == (N, OUT_F)
    z_bf_ref = x_bf.astype(jnp.float32) @ wt1_bf.astype(jnp.float32) + bb1_bf
    ref_bf = jnp.sin(OMEGA * (jnp.abs(z_bf_ref) + 1.0) * z_bf_ref)
    np.testing.assert_allclose(np.asarray(out_bf, dtype=np.float32),
                               np.asarray(ref_bf), rtol=2e-2, atol=2e-2)

    print("KERNEL_OK")
</pallas_src>

<mosaic_0001>
module attributes {stable_mosaic.version = 11 : i64} {
  func.func @_finer_kernel(%arg0: i32, %arg1: memref<512x32xf32, #tpu.memory_space<vmem>>, %arg2: memref<32x32xf32, #tpu.memory_space<vmem>>, %arg3: memref<1x32xf32, #tpu.memory_space<vmem>>, %arg4: memref<512x32xf32, #tpu.memory_space<vmem>>) attributes {dimension_semantics = [#tpu.dimension_semantics<parallel>], iteration_bounds = array<i64: 4>, scalar_prefetch = 0 : i64, scratch_operands = 0 : i64, tpu.core_type = #tpu.core_type<tc>, window_params = [{transform_indices = @transform_0, window_bounds = array<i64: 512, 32>}, {pipeline_mode = #tpu.pipeline_mode<synchronous>, transform_indices = @transform_1, window_bounds = array<i64: 32, 32>}, {pipeline_mode = #tpu.pipeline_mode<synchronous>, transform_indices = @transform_2, window_bounds = array<i64: 1, 32>}, {transform_indices = @transform_3, window_bounds = array<i64: 512, 32>}]} {
    %c0 = arith.constant 0 : index
    %c0_0 = arith.constant 0 : index
    %0 = vector.load %arg1[%c0, %c0_0] : memref<512x32xf32, #tpu.memory_space<vmem>>, vector<512x32xf32>
    %c0_1 = arith.constant 0 : index
    %c0_2 = arith.constant 0 : index
    %1 = vector.load %arg2[%c0_1, %c0_2] : memref<32x32xf32, #tpu.memory_space<vmem>>, vector<32x32xf32>
    %cst = arith.constant dense<0.000000e+00> : vector<512x32xf32>
    %2 = tpu.matmul %0, %1, %cst {dimension_numbers = #tpu.dot_dimension_numbers<[1], [0], [0], [1], [0, 0, 1, 1], [], []>} : vector<512x32xf32>, vector<32x32xf32>, vector<512x32xf32> -> vector<512x32xf32>
    %c0_3 = arith.constant 0 : index
    %c0_4 = arith.constant 0 : index
    %3 = vector.load %arg3[%c0_3, %c0_4] : memref<1x32xf32, #tpu.memory_space<vmem>>, vector<1x32xf32>
    %4 = vector.broadcast %3 : vector<1x32xf32> to vector<512x32xf32>
    %5 = arith.addf %2, %4 : vector<512x32xf32>
    %6 = math.absf %5 : vector<512x32xf32>
    %cst_5 = arith.constant 1.000000e+00 : f32
    %7 = vector.broadcast %cst_5 : f32 to vector<512x32xf32>
    %8 = arith.addf %6, %7 : vector<512x32xf32>
    %cst_6 = arith.constant 3.000000e+01 : f32
    %9 = vector.broadcast %cst_6 : f32 to vector<512x32xf32>
    %10 = arith.mulf %9, %8 : vector<512x32xf32>
    %11 = arith.mulf %10, %5 : vector<512x32xf32>
    %12 = math.sin %11 : vector<512x32xf32>
    %c0_7 = arith.constant 0 : index
    %c0_8 = arith.constant 0 : index
    %13 = vector.load %arg4[%c0_7, %c0_8] : memref<512x32xf32, #tpu.memory_space<vmem>>, vector<512x32xf32>
    tpu.vector_store %arg4[%c0_7, %c0_8], %12 {strides = array<i32>} : memref<512x32xf32, #tpu.memory_space<vmem>>, vector<512x32xf32>,
    return
  }
  func.func @transform_0(%arg0: i32) -> (i32, i32) {
    %c0_i32 = arith.constant 0 : i32
    %c0_i32_0 = arith.constant 0 : i32
    return %arg0, %c0_i32 : i32, i32
  }
  func.func @transform_1(%arg0: i32) -> (i32, i32) {
    %c0_i32 = arith.constant 0 : i32
    %c0_i32_0 = arith.constant 0 : i32
    %c0_i32_1 = arith.constant 0 : i32
    return %c0_i32, %c0_i32_0 : i32, i32
  }
  func.func @transform_2(%arg0: i32) -> (i32, i32) {
    %c0_i32 = arith.constant 0 : i32
    %c0_i32_0 = arith.constant 0 : i32
    %c0_i32_1 = arith.constant 0 : i32
    return %c0_i32, %c0_i32_0 : i32, i32
  }
  func.func @transform_3(%arg0: i32) -> (i32, i32) {
    %c0_i32 = arith.constant 0 : i32
    %c0_i32_0 = arith.constant 0 : i32
    return %arg0, %c0_i32 : i32, i32
  }
}

</mosaic_0001>

<llo_original>
// kernel: tpu_custom_call.1
$region0: #{tpu_custom_call.1}
  #allocation0 [shape = 'u32[]', space=smem, size = 0x4, offset = 0x4, fixed_abs, tag = 'smem constant byte address 0x4 - core index']
  #allocation1 [shape = 'u32[144,128]{1,0:T(1,128)}', space=vmem, size = 0x12000, scoped, tag = 'internal scratch']
  %s0 = inlined_call_operand.vmem [shape: f32[2048,32], index: 0, kind: input, shape index: {}]
  %s1 = inlined_call_operand.vmem [shape: f32[32,32], index: 1, kind: input, shape index: {}]
  %s2 = inlined_call_operand.vmem [shape: f32[1,32], index: 2, kind: input, shape index: {}]
  %s3 = inlined_call_operand.vmem [shape: f32[2048,32], index: 3, kind: output, shape index: {}]
  %s4 = sld [smem:[#allocation0]]
  $region45: #{tpu_custom_call.1} parent=0
    _
  %s6 = ssub.s32 1, %s4
  %s7 = scalar_select 0, %s6, %s4
  loop: start=0, step=1, limit=6
  $region2: #{tpu_custom_call.1} parent=0 // loop_pre_header
    _
  $region3: #{tpu_custom_call.1} parent=0 // loop_header
    %s9 = sphi 0, %s13
    %p10 = scmp.ge.s32.totalorder %s9, 6
    %s19 = sphi 0, %s21
    %s22 = sphi 0, %s19
    %s23 = sphi 0, %s22
    %s39 = sphi 0, %s23
    %s43 = sphi 0, %s43
    %s45 = sphi 0, %s43
    %s46 = sphi 0, %s45
    %s60 = sphi 0, %s46
    %s64 = sphi 0, %s64
    %s66 = sphi 0, %s64
    %s67 = sphi 0, %s66
    %s81 = sphi 0, %s67
    %s87 = sphi 0, %s89
    %s90 = sphi 0, %s87
    %s91 = sphi 0, %s90
    %s107 = sphi 0, %s91
  $region4: #{tpu_custom_call.1} parent=0 // loop_header_branch
    %12 = sbr.rel (%p10) target = $region8
  $region5: #{tpu_custom_call.1} parent=0 // loop_body
    %s14 = ssub.s32 %s9, 1
    %s15 = ssub.s32 %s9, 2
    %s16 = sadd.s32 %s9, 1
    %s17 = ssub.s32 %s9, %s16
    %p18 = scmp.eq.s32.totalorder %s17, 0
    %s20 = sadd.s32 %s19, 1
    %s21 = scalar_select %p18, %s19, %s20
    %p24 = pneg %p18
    %p25 = scmp.eq.s32.totalorder %s9, 3
    %p26 = por %p24, %p25
    %p27 = scmp.ne.s32.totalorder %s19, %s22
    %p28 = scmp.eq.s32.totalorder %s9, 0
    %p29 = por %p27, %p28
    %p30 = scmp.ne.s32.totalorder %s19, %s22
    %p31 = scmp.eq.s32.totalorder %s14, 3
    %p32 = por %p30, %p31
    %p33 = scmp.ne.s32.totalorder %s22, %s23
    %p34 = scmp.eq.s32.totalorder %s14, 0
    %p35 = por %p33, %p34
    %p36 = scmp.ne.s32.totalorder %s22, %s23
    %p37 = scmp.eq.s32.totalorder %s15, 3
    %p38 = por %p36, %p37
    %p40 = scmp.ne.s32.totalorder %s23, %s39
    %p41 = scmp.eq.s32.totalorder %s15, 0
    %p42 = por %p40, %p41
    %s44 = sadd.s32 %s43, 1
    %p47 = scmp.eq.s32.totalorder %s9, 3
    %p48 = scmp.ne.s32.totalorder %s43, %s45
    %p49 = scmp.eq.s32.totalorder %s9, 0
    %p50 = por %p48, %p49
    %p51 = scmp.ne.s32.totalorder %s43, %s45
    %p52 = scmp.eq.s32.totalorder %s14, 3
    %p53 = por %p51, %p52
    %p54 = scmp.ne.s32.totalorder %s45, %s46
    %p55 = scmp.eq.s32.totalorder %s14, 0
    %p56 = por %p54, %p55
    %p57 = scmp.ne.s32.totalorder %s45, %s46
    %p58 = scmp.eq.s32.totalorder %s15, 3
    %p59 = por %p57, %p58
    %p61 = scmp.ne.s32.totalorder %s46, %s60
    %p62 = scmp.eq.s32.totalorder %s15, 0
    %p63 = por %p61, %p62
    %s65 = sadd.s32 %s64, 1
    %p68 = scmp.eq.s32.totalorder %s9, 3
    %p69 = scmp.ne.s32.totalorder %s64, %s66
    %p70 = scmp.eq.s32.totalorder %s9, 0
    %p71 = por %p69, %p70
    %p72 = scmp.ne.s32.totalorder %s64, %s66
    %p73 = scmp.eq.s32.totalorder %s14, 3
    %p74 = por %p72, %p73
    %p75 = scmp.ne.s32.totalorder %s66, %s67
    %p76 = scmp.eq.s32.totalorder %s14, 0
    %p77 = por %p75, %p76
    %p78 = scmp.ne.s32.totalorder %s66, %s67
    %p79 = scmp.eq.s32.totalorder %s15, 3
    %p80 = por %p78, %p79
    %p82 = scmp.ne.s32.totalorder %s67, %s81
    %p83 = scmp.eq.s32.totalorder %s15, 0
    %p84 = por %p82, %p83
    %s85 = ssub.s32 %s9, %s16
    %p86 = scmp.eq.s32.totalorder %s85, 0
    %s88 = sadd.s32 %s87, 1
    %s89 = scalar_select %p86, %s87, %s88
    %p92 = pneg %p86
    %p93 = scmp.eq.s32.totalorder %s9, 3
    %p94 = por %p92, %p93
    %p95 = scmp.ne.s32.totalorder %s87, %s90
    %p96 = scmp.eq.s32.totalorder %s9, 0
    %p97 = por %p95, %p96
    %p98 = scmp.ne.s32.totalorder %s87, %s90
    %p99 = scmp.eq.s32.totalorder %s14, 3
    %p100 = por %p98, %p99
    %p101 = scmp.ne.s32.totalorder %s90, %s91
    %p102 = scmp.eq.s32.totalorder %s14, 0
    %p103 = por %p101, %p102
    %p104 = scmp.ne.s32.totalorder %s90, %s91
    %p105 = scmp.eq.s32.totalorder %s15, 3
    %p106 = por %p104, %p105
    %p108 = scmp.ne.s32.totalorder %s91, %s107
    %p109 = scmp.eq.s32.totalorder %s15, 0
    %p110 = por %p108, %p109
    %p111 = scmp.le.s32.totalorder 1, %s9
    %p112 = scmp.lt.s32.totalorder %s9, 5
    %p113 = pnand %p111, %p112
    %p114 = pneg %p113
    // Predicated region
    $region9: #{tpu_custom_call.1} parent=5 // pred_check
      _
    $region10: #{tpu_custom_call.1} parent=5 // pred_check_branch
      %116 = sbr.rel (%p113) target = $region12
    $region11: #{tpu_custom_call.1} parent=5 // pred_region
      %s117 = ssub.s32 %s9, 1
      // Predicated region
      $region13: #{tpu_custom_call.1} parent=11 // pred_check
        %p118 = pneg %p56
      $region14: #{tpu_custom_call.1} parent=11 // pred_check_branch
        %120 = sbr.rel (%p118) target = $region16
      $region15: #{tpu_custom_call.1} parent=11 // pred_region
        _
      $region16: #{tpu_custom_call.1} parent=11 // pred_fallthru
        _
      // Predicated region
      $region17: #{tpu_custom_call.1} parent=11 // pred_check
        %p121 = pneg %p77
      $region18: #{tpu_custom_call.1} parent=11 // pred_check_branch
        %123 = sbr.rel (%p121) target = $region20
      $region19: #{tpu_custom_call.1} parent=11 // pred_region
        _
      $region20: #{tpu_custom_call.1} parent=11 // pred_fallthru
        _
    $region12: #{tpu_custom_call.1} parent=5 // pred_fallthru
      _
    %p124 = scmp.lt.s32.totalorder %s9, 4
    // Predicated region
    $region21: #{tpu_custom_call.1} parent=5 // pred_check
      %p125 = pneg %p124
    $region22: #{tpu_custom_call.1} parent=5 // pred_check_branch
      %127 = sbr.rel (%p125) target = $region24
    $region23: #{tpu_custom_call.1} parent=5 // pred_region
      // Predicated region
      $region25: #{tpu_custom_call.1} parent=23 // pred_check
        %p128 = pneg %p29
      $region26: #{tpu_custom_call.1} parent=23 // pred_check_branch
        %130 = sbr.rel (%p128) target = $region28
      $region27: #{tpu_custom_call.1} parent=23 // pred_region
        %s131 = smul.u32 64, %s9
        %p132 = scmp.lt.s32.totalorder %s131, 255
        %s133 = scalar_select %p132, %s131, 255
        %s134 = smul.addr %s133, 8
        %s135 = scalar_lea.vmem %s0, %s134
        %s136 = smul.u32 64, %s9
      $region28: #{tpu_custom_call.1} parent=23 // pred_fallthru
        _
    $region24: #{tpu_custom_call.1} parent=5 // pred_fallthru
      _
    %p137 = scmp.le.s32.totalorder 1, %s9
    %p138 = scmp.lt.s32.totalorder %s9, 5
    %p139 = pnand %p137, %p138
    %p140 = pneg %p139
    // Predicated region
    $region29: #{tpu_custom_call.1} parent=5 // pred_check
      _
    $region30: #{tpu_custom_call.1} parent=5 // pred_check_branch
      %142 = sbr.rel (%p139) target = $region32
    $region31: #{tpu_custom_call.1} parent=5 // pred_region
      %s143 = ssub.s32 %s9, 1
      %s144 = smul.u32 64, %s14
      %p145 = scmp.lt.s32.totalorder %s144, 255
      %s146 = scalar_select %p145, %s144, 255
      %s147 = smul.addr %s146, 8
      %s148 = scalar_lea.vmem %s0, %s147
      %p149 = pneg %p35
      %p150 = pneg %p32
      %p151 = pneg %p56
      %p152 = pneg %p53
      %p153 = pneg %p77
      %p154 = pneg %p74
      %p155 = pneg %p103
      %p156 = pneg %p100
      %s157 = smul.u32 64, %s14
      %p158 = scmp.lt.s32.totalorder %s157, 255
      %s159 = scalar_select %p158, %s157, 255
      %s160 = smul.addr %s159, 8
      %s161 = scalar_lea.vmem %s3, %s160
      %s162 = smul.u32 64, %s14
      %p163 = scmp.lt.s32.totalorder %s162, 255
      %s164 = scalar_select %p163, %s162, 255
      %s165 = smul.addr %s164, 8
      %s166 = scalar_lea.vmem %s0, %s165
      %s167 = smul.u32 64, %s14
      %s168 = smul.u32 64, %s14
      %p169 = scmp.lt.s32.totalorder %s168, 255
      %s170 = scalar_select %p169, %s168, 255
      %s171 = smul.addr %s170, 8
      %s172 = scalar_lea.vmem %s3, %s171
      %s173 = smul.u32 64, %s14
      %v174 = vld [vmem:[%s166] sm:$0xff]
      %v175 = vld [vmem:[%s166 + $0x8] sm:$0xff]
      %v176 = vld [vmem:[%s166 + $0x10] sm:$0xff]
      %v177 = vld [vmem:[%s166 + $0x18] sm:$0xff]
      %v178 = vld [vmem:[%s166 + $0x20] sm:$0xff]
      %v179 = vld [vmem:[%s166 + $0x28] sm:$0xff]
      %v180 = vld [vmem:[%s166 + $0x30] sm:$0xff]
      %v181 = vld [vmem:[%s166 + $0x38] sm:$0xff]
      %v182 = vld [vmem:[%s166 + $0x40] sm:$0xff]
      %v183 = vld [vmem:[%s166 + $0x48] sm:$0xff]
      %v184 = vld [vmem:[%s166 + $0x50] sm:$0xff]
      %v185 = vld [vmem:[%s166 + $0x58] sm:$0xff]
      %v186 = vld [vmem:[%s166 + $0x60] sm:$0xff]
      %v187 = vld [vmem:[%s166 + $0x68] sm:$0xff]
      %v188 = vld [vmem:[%s166 + $0x70] sm:$0xff]
      %v189 = vld [vmem:[%s166 + $0x78] sm:$0xff]
      %v190 = vld [vmem:[%s166 + $0x80] sm:$0xff]
      %v191 = vld [vmem:[%s166 + $0x88] sm:$0xff]
      %v192 = vld [vmem:[%s166 + $0x90] sm:$0xff]
      %v193 = vld [vmem:[%s166 + $0x98] sm:$0xff]
      %v194 = vld [vmem:[%s166 + $0xa0] sm:$0xff]
      %v195 = vld [vmem:[%s166 + $0xa8] sm:$0xff]
      %v196 = vld [vmem:[%s166 + $0xb0] sm:$0xff]
      %v197 = vld [vmem:[%s166 + $0xb8] sm:$0xff]
      %v198 = vld [vmem:[%s166 + $0xc0] sm:$0xff]
      %v199 = vld [vmem:[%s166 + $0xc8] sm:$0xff]
      %v200 = vld [vmem:[%s166 + $0xd0] sm:$0xff]
      %v201 = vld [vmem:[%s166 + $0xd8] sm:$0xff]
      %v202 = vld [vmem:[%s166 + $0xe0] sm:$0xff]
      %v203 = vld [vmem:[%s166 + $0xe8] sm:$0xff]
      %v204 = vld [vmem:[%s166 + $0xf0] sm:$0xff]
      %v205 = vld [vmem:[%s166 + $0xf8] sm:$0xff]
      %v206 = vld [vmem:[%s166 + $0x100] sm:$0xff]
      %v207 = vld [vmem:[%s166 + $0x108] sm:$0xff]
      %v208 = vld [vmem:[%s166 + $0x110] sm:$0xff]
      %v209 = vld [vmem:[%s166 + $0x118] sm:$0xff]
      %v210 = vld [vmem:[%s166 + $0x120] sm:$0xff]
      %v211 = vld [vmem:[%s166 + $0x128] sm:$0xff]
      %v212 = vld [vmem:[%s166 + $0x130] sm:$0xff]
      %v213 = vld [vmem:[%s166 + $0x138] sm:$0xff]
      %v214 = vld [vmem:[%s166 + $0x140] sm:$0xff]
      %v215 = vld [vmem:[%s166 + $0x148] sm:$0xff]
      %v216 = vld [vmem:[%s166 + $0x150] sm:$0xff]
      %v217 = vld [vmem:[%s166 + $0x158] sm:$0xff]
      %v218 = vld [vmem:[%s166 + $0x160] sm:$0xff]
      %v219 = vld [vmem:[%s166 + $0x168] sm:$0xff]
      %v220 = vld [vmem:[%s166 + $0x170] sm:$0xff]
      %v221 = vld [vmem:[%s166 + $0x178] sm:$0xff]
      %v222 = vld [vmem:[%s166 + $0x180] sm:$0xff]
      %v223 = vld [vmem:[%s166 + $0x188] sm:$0xff]
      %v224 = vld [vmem:[%s166 + $0x190] sm:$0xff]
      %v225 = vld [vmem:[%s166 + $0x198] sm:$0xff]
      %v226 = vld [vmem:[%s166 + $0x1a0] sm:$0xff]
      %v227 = vld [vmem:[%s166 + $0x1a8] sm:$0xff]
      %v228 = vld [vmem:[%s166 + $0x1b0] sm:$0xff]
      %v229 = vld [vmem:[%s166 + $0x1b8] sm:$0xff]
      %v230 = vld [vmem:[%s166 + $0x1c0] sm:$0xff]
      %v231 = vld [vmem:[%s166 + $0x1c8] sm:$0xff]
      %v232 = vld [vmem:[%s166 + $0x1d0] sm:$0xff]
      %v233 = vld [vmem:[%s166 + $0x1d8] sm:$0xff]
      %v234 = vld [vmem:[%s166 + $0x1e0] sm:$0xff]
      %v235 = vld [vmem:[%s166 + $0x1e8] sm:$0xff]
      %v236 = vld [vmem:[%s166 + $0x1f0] sm:$0xff]
      %v237 = vld [vmem:[%s166 + $0x1f8] sm:$0xff]
      %v238 = vld [vmem:[%s1] sm:$0xff]
      %v239 = vld [vmem:[%s1 + $0x8] sm:$0xff]
      %v240 = vld [vmem:[%s1 + $0x10] sm:$0xff]
      %v241 = vld [vmem:[%s1 + $0x18] sm:$0xff]
      %v242 = vld [vmem:[%s2] sm:$0x1]
      %v244 = vlaneseq
      %v245 = vshrl.u32 %v244, 7
      %v246 = vsub.s32 0, %v245
      %v247 = vrot.slane %v242, %v246
      %vm249 = vcmask 261120
      %v251 = vsel %vm249, %v174, 0
      %v254 = vsel %vm249, %v175, 0
      %v257 = vsel %vm249, %v176, 0
      %v260 = vsel %vm249, %v177, 0
      %v263 = vsel %vm249, %v178, 0
      %v266 = vsel %vm249, %v179, 0
      %v269 = vsel %vm249, %v180, 0
      %v272 = vsel %vm249, %v181, 0
      %v275 = vsel %vm249, %v182, 0
      %v278 = vsel %vm249, %v183, 0
      %v281 = vsel %vm249, %v184, 0
      %v284 = vsel %vm249, %v185, 0
      %v287 = vsel %vm249, %v186, 0
      %v290 = vsel %vm249, %v187, 0
      %v293 = vsel %vm249, %v188, 0
      %v296 = vsel %vm249, %v189, 0
      %v299 = vsel %vm249, %v190, 0
      %v302 = vsel %vm249, %v191, 0
      %v305 = vsel %vm249, %v192, 0
      %v308 = vsel %vm249, %v193, 0
      %v311 = vsel %vm249, %v194, 0
      %v314 = vsel %vm249, %v195, 0
      %v317 = vsel %vm249, %v196, 0
      %v320 = vsel %vm249, %v197, 0
      %v323 = vsel %vm249, %v198, 0
      %v326 = vsel %vm249, %v199, 0
      %v329 = vsel %vm249, %v200, 0
      %v332 = vsel %vm249, %v201, 0
      %v335 = vsel %vm249, %v202, 0
      %v338 = vsel %vm249, %v203, 0
      %v341 = vsel %vm249, %v204, 0
      %v344 = vsel %vm249, %v205, 0
      %v347 = vsel %vm249, %v206, 0
      %v350 = vsel %vm249, %v207, 0
      %v353 = vsel %vm249, %v208, 0
      %v356 = vsel %vm249, %v209, 0
      %v359 = vsel %vm249, %v210, 0
      %v362 = vsel %vm249, %v211, 0
      %v365 = vsel %vm249, %v212, 0
      %v368 = vsel %vm249, %v213, 0
      %v371 = vsel %vm249, %v214, 0
      %v374 = vsel %vm249, %v215, 0
      %v377 = vsel %vm249, %v216, 0
      %v380 = vsel %vm249, %v217, 0
      %v383 = vsel %vm249, %v218, 0
      %v386 = vsel %vm249, %v219, 0
      %v389 = vsel %vm249, %v220, 0
      %v392 = vsel %vm249, %v221, 0
      %v395 = vsel %vm249, %v222, 0
      %v398 = vsel %vm249, %v223, 0
      %v401 = vsel %vm249, %v224, 0
      %v404 = vsel %vm249, %v225, 0
      %v407 = vsel %vm249, %v226, 0
      %v410 = vsel %vm249, %v227, 0
      %v413 = vsel %vm249, %v228, 0
      %v416 = vsel %vm249, %v229, 0
      %v419 = vsel %vm249, %v230, 0
      %v422 = vsel %vm249, %v231, 0
      %v425 = vsel %vm249, %v232, 0
      %v428 = vsel %vm249, %v233, 0
      %v431 = vsel %vm249, %v234, 0
      %v434 = vsel %vm249, %v235, 0
      %v437 = vsel %vm249, %v236, 0
      %v440 = vsel %vm249, %v237, 0
      %442 = vmatprep.subr.mxu0 0.0
      %443 = vmatpush1.msra.mxu0 0.0
      %444 = vmatprep.subr.mxu0 0.0
      %445 = vmatpush1.msra.mxu0 0.0
      %446 = vmatprep.subr.mxu0 0.0
      %447 = vmatpush1.msra.mxu0 0.0
      %448 = vmatprep.subr.mxu0 0.0
      %449 = vmatpush1.msra.mxu0 0.0
      %450 = vmatprep.subr.mxu0 0.0
      %451 = vmatpush1.msra.mxu0 0.0
      %452 = vmatprep.subr.mxu0 0.0
      %453 = vmatpush1.msra.mxu0 0.0
      %454 = vmatprep.subr.mxu0 0.0
      %455 = vmatpush1.msra.mxu0 0.0
      %456 = vmatprep.subr.mxu0 0.0
      %457 = vmatpush1.msra.mxu0 0.0
      %458 = vmatprep.subr.mxu0 0.0
      %459 = vmatpush1.msra.mxu0 0.0
      %460 = vmatprep.subr.mxu0 0.0
      %461 = vmatpush1.msra.mxu0 0.0
      %462 = vmatprep.subr.mxu0 0.0
      %463 = vmatpush1.msra.mxu0 0.0
      %464 = vmatprep.subr.mxu0 0.0
      %465 = vmatpush1.msra.mxu0 0.0
      %466 = vmatprep.subr.mxu0 0.0
      %467 = vmatpush1.msra.mxu0 %v241
      %468 = vmatprep.subr.mxu0 0.0
      %469 = vmatpush1.msra.mxu0 %v240
      %470 = vmatprep.subr.mxu0 0.0
      %471 = vmatpush1.msra.mxu0 %v239
      %472 = vmatprep.subr.mxu0 0.0
      %473 = vmatpush1.msra.mxu0 %v238
      %474 = vmatprep.subr.mxu0 0.0
      %475 = vmatpush2.msra.mxu0 0.0
      %476 = vmatprep.subr.mxu0 0.0
      %477 = vmatpush2.msra.mxu0 0.0
      %478 = vmatprep.subr.mxu0 0.0
      %479 = vmatpush2.msra.mxu0 0.0
      %480 = vmatprep.subr.mxu0 0.0
      %481 = vmatpush2.msra.mxu0 0.0
      %482 = vmatprep.subr.mxu0 0.0
      %483 = vmatpush2.msra.mxu0 0.0
      %484 = vmatprep.subr.mxu0 0.0
      %485 = vmatpush2.msra.mxu0 0.0
      %486 = vmatprep.subr.mxu0 0.0
      %487 = vmatpush2.msra.mxu0 0.0
      %488 = vmatprep.subr.mxu0 0.0
      %489 = vmatpush2.msra.mxu0 0.0
      %490 = vmatprep.subr.mxu0 0.0
      %491 = vmatpush2.msra.mxu0 0.0
      %492 = vmatprep.subr.mxu0 0.0
      %493 = vmatpush2.msra.mxu0 0.0
      %494 = vmatprep.subr.mxu0 0.0
      %495 = vmatpush2.msra.mxu0 0.0
      %496 = vmatprep.subr.mxu0 0.0
      %497 = vmatpush2.msra.mxu0 0.0
      %498 = vmatprep.subr.mxu0 0.0
      %499 = vmatpush2.msra.mxu0 0.0
      %500 = vmatprep.subr.mxu0 0.0
      %501 = vmatpush2.msra.mxu0 0.0
      %502 = vmatprep.subr.mxu0 0.0
      %503 = vmatpush2.msra.mxu0 0.0
      %504 = vmatprep.subr.mxu0 0.0
      %505 = vmatpush2.msra.mxu0 0.0
      %506 = vmatprep.mubr.f32.mxu0 0.0
      %507 = vmatmul.mubr.f32.gmra.mxu0 %v251
      %v508 = vpop.f32.mrf.mxu0
      %v509 = vadd.f32 %v247, %v508
      %v510 = vpop.f32.mrf.mxu0
      %511 = vmatprep.mubr.f32.mxu0 0.0
      %512 = vmatmul.mubr.f32.gmra.mxu0 %v254
      %v513 = vpop.f32.mrf.mxu0
      %v514 = vadd.f32 %v247, %v513
      %v515 = vpop.f32.mrf.mxu0
      %516 = vmatprep.mubr.f32.mxu0 0.0
      %517 = vmatmul.mubr.f32.gmra.mxu0 %v257
      %v518 = vpop.f32.mrf.mxu0
      %v519 = vadd.f32 %v247, %v518
      %v520 = vpop.f32.mrf.mxu0
      %521 = vmatprep.mubr.f32.mxu0 0.0
      %522 = vmatmul.mubr.f32.gmra.mxu0 %v260
      %v523 = vpop.f32.mrf.mxu0
      %v524 = vadd.f32 %v247, %v523
      %v525 = vpop.f32.mrf.mxu0
      %526 = vmatprep.mubr.f32.mxu0 0.0
      %527 = vmatmul.mubr.f32.gmra.mxu0 %v263
      %v528 = vpop.f32.mrf.mxu0
      %v529 = vadd.f32 %v247, %v528
      %v530 = vpop.f32.mrf.mxu0
      %531 = vmatprep.mubr.f32.mxu0 0.0
      %532 = vmatmul.mubr.f32.gmra.mxu0 %v266
      %v533 = vpop.f32.mrf.mxu0
      %v534 = vadd.f32 %v247, %v533
      %v535 = vpop.f32.mrf.mxu0
      %536 = vmatprep.mubr.f32.mxu0 0.0
      %537 = vmatmul.mubr.f32.gmra.mxu0 %v269
      %v538 = vpop.f32.mrf.mxu0
      %v539 = vadd.f32 %v247, %v538
      %v540 = vpop.f32.mrf.mxu0
      %541 = vmatprep.mubr.f32.mxu0 0.0
      %542 = vmatmul.mubr.f32.gmra.mxu0 %v272
      %v543 = vpop.f32.mrf.mxu0
      %v544 = vadd.f32 %v247, %v543
      %v545 = vpop.f32.mrf.mxu0
      %546 = vmatprep.mubr.f32.mxu0 0.0
      %547 = vmatmul.mubr.f32.gmra.mxu0 %v275
      %v548 = vpop.f32.mrf.mxu0
      %v549 = vadd.f32 %v247, %v548
      %v550 = vpop.f32.mrf.mxu0
      %551 = vmatprep.mubr.f32.mxu0 0.0
      %552 = vmatmul.mubr.f32.gmra.mxu0 %v278
      %v553 = vpop.f32.mrf.mxu0
      %v554 = vadd.f32 %v247, %v553
      %v555 = vpop.f32.mrf.mxu0
      %556 = vmatprep.mubr.f32.mxu0 0.0
      %557 = vmatmul.mubr.f32.gmra.mxu0 %v281
      %v558 = vpop.f32.mrf.mxu0
      %v559 = vadd.f32 %v247, %v558
      %v560 = vpop.f32.mrf.mxu0
      %561 = vmatprep.mubr.f32.mxu0 0.0
      %562 = vmatmul.mubr.f32.gmra.mxu0 %v284
      %v563 = vpop.f32.mrf.mxu0
      %v564 = vadd.f32 %v247, %v563
      %v565 = vpop.f32.mrf.mxu0
      %566 = vmatprep.mubr.f32.mxu0 0.0
      %567 = vmatmul.mubr.f32.gmra.mxu0 %v287
      %v568 = vpop.f32.mrf.mxu0
      %v569 = vadd.f32 %v247, %v568
      %v570 = vpop.f32.mrf.mxu0
      %571 = vmatprep.mubr.f32.mxu0 0.0
      %572 = vmatmul.mubr.f32.gmra.mxu0 %v290
      %v573 = vpop.f32.mrf.mxu0
      %v574 = vadd.f32 %v247, %v573
      %v575 = vpop.f32.mrf.mxu0
      %576 = vmatprep.mubr.f32.mxu0 0.0
      %577 = vmatmul.mubr.f32.gmra.mxu0 %v293
      %v578 = vpop.f32.mrf.mxu0
      %v579 = vadd.f32 %v247, %v578
      %v580 = vpop.f32.mrf.mxu0
      %581 = vmatprep.mubr.f32.mxu0 0.0
      %582 = vmatmul.mubr.f32.gmra.mxu0 %v296
      %v583 = vpop.f32.mrf.mxu0
      %v584 = vadd.f32 %v247, %v583
      %v585 = vpop.f32.mrf.mxu0
      %586 = vmatprep.mubr.f32.mxu0 0.0
      %587 = vmatmul.mubr.f32.gmra.mxu0 %v299
      %v588 = vpop.f32.mrf.mxu0
      %v589 = vadd.f32 %v247, %v588
      %v590 = vpop.f32.mrf.mxu0
      %591 = vmatprep.mubr.f32.mxu0 0.0
      %592 = vmatmul.mubr.f32.gmra.mxu0 %v302
      %v593 = vpop.f32.mrf.mxu0
      %v594 = vadd.f32 %v247, %v593
      %v595 = vpop.f32.mrf.mxu0
      %596 = vmatprep.mubr.f32.mxu0 0.0
      %597 = vmatmul.mubr.f32.gmra.mxu0 %v305
      %v598 = vpop.f32.mrf.mxu0
      %v599 = vadd.f32 %v247, %v598
      %v600 = vpop.f32.mrf.mxu0
      %601 = vmatprep.mubr.f32.mxu0 0.0
      %602 = vmatmul.mubr.f32.gmra.mxu0 %v308
      %v603 = vpop.f32.mrf.mxu0
      %v604 = vadd.f32 %v247, %v603
      %v605 = vpop.f32.mrf.mxu0
      %606 = vmatprep.mubr.f32.mxu0 0.0
      %607 = vmatmul.mubr.f32.gmra.mxu0 %v311
      %v608 = vpop.f32.mrf.mxu0
      %v609 = vadd.f32 %v247, %v608
      %v610 = vpop.f32.mrf.mxu0
      %611 = vmatprep.mubr.f32.mxu0 0.0
      %612 = vmatmul.mubr.f32.gmra.mxu0 %v314
      %v613 = vpop.f32.mrf.mxu0
      %v614 = vadd.f32 %v247, %v613
      %v615 = vpop.f32.mrf.mxu0
      %616 = vmatprep.mubr.f32.mxu0 0.0
      %617 = vmatmul.mubr.f32.gmra.mxu0 %v317
      %v618 = vpop.f32.mrf.mxu0
      %v619 = vadd.f32 %v247, %v618
      %v620 = vpop.f32.mrf.mxu0
      %621 = vmatprep.mubr.f32.mxu0 0.0
      %622 = vmatmul.mubr.f32.gmra.mxu0 %v320
      %v623 = vpop.f32.mrf.mxu0
      %v624 = vadd.f32 %v247, %v623
      %v625 = vpop.f32.mrf.mxu0
      %626 = vmatprep.mubr.f32.mxu0 0.0
      %627 = vmatmul.mubr.f32.gmra.mxu0 %v323
      %v628 = vpop.f32.mrf.mxu0
      %v629 = vadd.f32 %v247, %v628
      %v630 = vpop.f32.mrf.mxu0
      %631 = vmatprep.mubr.f32.mxu0 0.0
      %632 = vmatmul.mubr.f32.gmra.mxu0 %v326
      %v633 = vpop.f32.mrf.mxu0
      %v634 = vadd.f32 %v247, %v633
      %v635 = vpop.f32.mrf.mxu0
      %636 = vmatprep.mubr.f32.mxu0 0.0
      %637 = vmatmul.mubr.f32.gmra.mxu0 %v329
      %v638 = vpop.f32.mrf.mxu0
      %v639 = vadd.f32 %v247, %v638
      %v640 = vpop.f32.mrf.mxu0
      %641 = vmatprep.mubr.f32.mxu0 0.0
      %642 = vmatmul.mubr.f32.gmra.mxu0 %v332
      %v643 = vpop.f32.mrf.mxu0
      %v644 = vadd.f32 %v247, %v643
      %v645 = vpop.f32.mrf.mxu0
      %646 = vmatprep.mubr.f32.mxu0 0.0
      %647 = vmatmul.mubr.f32.gmra.mxu0 %v335
      %v648 = vpop.f32.mrf.mxu0
      %v649 = vadd.f32 %v247, %v648
      %v650 = vpop.f32.mrf.mxu0
      %651 = vmatprep.mubr.f32.mxu0 0.0
      %652 = vmatmul.mubr.f32.gmra.mxu0 %v338
      %v653 = vpop.f32.mrf.mxu0
      %v654 = vadd.f32 %v247, %v653
      %v655 = vpop.f32.mrf.mxu0
      %656 = vmatprep.mubr.f32.mxu0 0.0
      %657 = vmatmul.mubr.f32.gmra.mxu0 %v341
      %v658 = vpop.f32.mrf.mxu0
      %v659 = vadd.f32 %v247, %v658
      %v660 = vpop.f32.mrf.mxu0
      %661 = vmatprep.mubr.f32.mxu0 0.0
      %662 = vmatmul.mubr.f32.gmra.mxu0 %v344
      %v663 = vpop.f32.mrf.mxu0
      %v664 = vadd.f32 %v247, %v663
      %v665 = vpop.f32.mrf.mxu0
      %666 = vmatprep.mubr.f32.mxu0 0.0
      %667 = vmatmul.mubr.f32.gmra.mxu0 %v347
      %v668 = vpop.f32.mrf.mxu0
      %v669 = vadd.f32 %v247, %v668
      %v670 = vpop.f32.mrf.mxu0
      %671 = vmatprep.mubr.f32.mxu0 0.0
      %672 = vmatmul.mubr.f32.gmra.mxu0 %v350
      %v673 = vpop.f32.mrf.mxu0
      %v674 = vadd.f32 %v247, %v673
      %v675 = vpop.f32.mrf.mxu0
      %676 = vmatprep.mubr.f32.mxu0 0.0
      %677 = vmatmul.mubr.f32.gmra.mxu0 %v353
      %v678 = vpop.f32.mrf.mxu0
      %v679 = vadd.f32 %v247, %v678
      %v680 = vpop.f32.mrf.mxu0
      %681 = vmatprep.mubr.f32.mxu0 0.0
      %682 = vmatmul.mubr.f32.gmra.mxu0 %v356
      %v683 = vpop.f32.mrf.mxu0
      %v684 = vadd.f32 %v247, %v683
      %v685 = vpop.f32.mrf.mxu0
      %686 = vmatprep.mubr.f32.mxu0 0.0
      %687 = vmatmul.mubr.f32.gmra.mxu0 %v359
      %v688 = vpop.f32.mrf.mxu0
      %v689 = vadd.f32 %v247, %v688
      %v690 = vpop.f32.mrf.mxu0
      %691 = vmatprep.mubr.f32.mxu0 0.0
      %692 = vmatmul.mubr.f32.gmra.mxu0 %v362
      %v693 = vpop.f32.mrf.mxu0
      %v694 = vadd.f32 %v247, %v693
      %v695 = vpop.f32.mrf.mxu0
      %696 = vmatprep.mubr.f32.mxu0 0.0
      %697 = vmatmul.mubr.f32.gmra.mxu0 %v365
      %v698 = vpop.f32.mrf.mxu0
      %v699 = vadd.f32 %v247, %v698
      %v700 = vpop.f32.mrf.mxu0
      %701 = vmatprep.mubr.f32.mxu0 0.0
      %702 = vmatmul.mubr.f32.gmra.mxu0 %v368
      %v703 = vpop.f32.mrf.mxu0
      %v704 = vadd.f32 %v247, %v703
      %v705 = vpop.f32.mrf.mxu0
      %706 = vmatprep.mubr.f32.mxu0 0.0
      %707 = vmatmul.mubr.f32.gmra.mxu0 %v371
      %v708 = vpop.f32.mrf.mxu0
      %v709 = vadd.f32 %v247, %v708
      %v710 = vpop.f32.mrf.mxu0
      %711 = vmatprep.mubr.f32.mxu0 0.0
      %712 = vmatmul.mubr.f32.gmra.mxu0 %v374
      %v713 = vpop.f32.mrf.mxu0
      %v714 = vadd.f32 %v247, %v713
      %v715 = vpop.f32.mrf.mxu0
      %716 = vmatprep.mubr.f32.mxu0 0.0
      %717 = vmatmul.mubr.f32.gmra.mxu0 %v377
      %v718 = vpop.f32.mrf.mxu0
      %v719 = vadd.f32 %v247, %v718
      %v720 = vpop.f32.mrf.mxu0
      %721 = vmatprep.mubr.f32.mxu0 0.0
      %722 = vmatmul.mubr.f32.gmra.mxu0 %v380
      %v723 = vpop.f32.mrf.mxu0
      %v724 = vadd.f32 %v247, %v723
      %v725 = vpop.f32.mrf.mxu0
      %726 = vmatprep.mubr.f32.mxu0 0.0
      %727 = vmatmul.mubr.f32.gmra.mxu0 %v383
      %v728 = vpop.f32.mrf.mxu0
      %v729 = vadd.f32 %v247, %v728
      %v730 = vpop.f32.mrf.mxu0
      %731 = vmatprep.mubr.f32.mxu0 0.0
      %732 = vmatmul.mubr.f32.gmra.mxu0 %v386
      %v733 = vpop.f32.mrf.mxu0
      %v734 = vadd.f32 %v247, %v733
      %v735 = vpop.f32.mrf.mxu0
      %736 = vmatprep.mubr.f32.mxu0 0.0
      %737 = vmatmul.mubr.f32.gmra.mxu0 %v389
      %v738 = vpop.f32.mrf.mxu0
      %v739 = vadd.f32 %v247, %v738
      %v740 = vpop.f32.mrf.mxu0
      %741 = vmatprep.mubr.f32.mxu0 0.0
      %742 = vmatmul.mubr.f32.gmra.mxu0 %v392
      %v743 = vpop.f32.mrf.mxu0
      %v744 = vadd.f32 %v247, %v743
      %v745 = vpop.f32.mrf.mxu0
      %746 = vmatprep.mubr.f32.mxu0 0.0
      %747 = vmatmul.mubr.f32.gmra.mxu0 %v395
      %v748 = vpop.f32.mrf.mxu0
      %v749 = vadd.f32 %v247, %v748
      %v750 = vpop.f32.mrf.mxu0
      %751 = vmatprep.mubr.f32.mxu0 0.0
      %752 = vmatmul.mubr.f32.gmra.mxu0 %v398
      %v753 = vpop.f32.mrf.mxu0
      %v754 = vadd.f32 %v247, %v753
      %v755 = vpop.f32.mrf.mxu0
      %756 = vmatprep.mubr.f32.mxu0 0.0
      %757 = vmatmul.mubr.f32.gmra.mxu0 %v401
      %v758 = vpop.f32.mrf.mxu0
      %v759 = vadd.f32 %v247, %v758
      %v760 = vpop.f32.mrf.mxu0
      %761 = vmatprep.mubr.f32.mxu0 0.0
      %762 = vmatmul.mubr.f32.gmra.mxu0 %v404
      %v763 = vpop.f32.mrf.mxu0
      %v764 = vadd.f32 %v247, %v763
      %v765 = vpop.f32.mrf.mxu0
      %766 = vmatprep.mubr.f32.mxu0 0.0
      %767 = vmatmul.mubr.f32.gmra.mxu0 %v407
      %v768 = vpop.f32.mrf.mxu0
      %v769 = vadd.f32 %v247, %v768
      %v770 = vpop.f32.mrf.mxu0
      %771 = vmatprep.mubr.f32.mxu0 0.0
      %772 = vmatmul.mubr.f32.gmra.mxu0 %v410
      %v773 = vpop.f32.mrf.mxu0
      %v774 = vadd.f32 %v247, %v773
      %v775 = vpop.f32.mrf.mxu0
      %776 = vmatprep.mubr.f32.mxu0 0.0
      %777 = vmatmul.mubr.f32.gmra.mxu0 %v413
      %v778 = vpop.f32.mrf.mxu0
      %v779 = vadd.f32 %v247, %v778
      %v780 = vpop.f32.mrf.mxu0
      %781 = vmatprep.mubr.f32.mxu0 0.0
      %782 = vmatmul.mubr.f32.gmra.mxu0 %v416
      %v783 = vpop.f32.mrf.mxu0
      %v784 = vadd.f32 %v247, %v783
      %v785 = vpop.f32.mrf.mxu0
      %786 = vmatprep.mubr.f32.mxu0 0.0
      %787 = vmatmul.mubr.f32.gmra.mxu0 %v419
      %v788 = vpop.f32.mrf.mxu0
      %v789 = vadd.f32 %v247, %v788
      %v790 = vpop.f32.mrf.mxu0
      %791 = vmatprep.mubr.f32.mxu0 0.0
      %792 = vmatmul.mubr.f32.gmra.mxu0 %v422
      %v793 = vpop.f32.mrf.mxu0
      %v794 = vadd.f32 %v247, %v793
      %v795 = vpop.f32.mrf.mxu0
      %796 = vmatprep.mubr.f32.mxu0 0.0
      %797 = vmatmul.mubr.f32.gmra.mxu0 %v425
      %v798 = vpop.f32.mrf.mxu0
      %v799 = vadd.f32 %v247, %v798
      %v800 = vpop.f32.mrf.mxu0
      %801 = vmatprep.mubr.f32.mxu0 0.0
      %802 = vmatmul.mubr.f32.gmra.mxu0 %v428
      %v803 = vpop.f32.mrf.mxu0
      %v804 = vadd.f32 %v247, %v803
      %v805 = vpop.f32.mrf.mxu0
      %806 = vmatprep.mubr.f32.mxu0 0.0
      %807 = vmatmul.mubr.f32.gmra.mxu0 %v431
      %v808 = vpop.f32.mrf.mxu0
      %v809 = vadd.f32 %v247, %v808
      %v810 = vpop.f32.mrf.mxu0
      %811 = vmatprep.mubr.f32.mxu0 0.0
      %812 = vmatmul.mubr.f32.gmra.mxu0 %v434
      %v813 = vpop.f32.mrf.mxu0
      %v814 = vadd.f32 %v247, %v813
      %v815 = vpop.f32.mrf.mxu0
      %816 = vmatprep.mubr.f32.mxu0 0.0
      %817 = vmatmul.mubr.f32.gmra.mxu0 %v437
      %v818 = vpop.f32.mrf.mxu0
      %v819 = vadd.f32 %v247, %v818
      %v820 = vpop.f32.mrf.mxu0
      %821 = vmatprep.mubr.f32.mxu0 0.0
      %822 = vmatmul.mubr.f32.gmra.mxu0 %v440
      %v823 = vpop.f32.mrf.mxu0
      %v824 = vadd.f32 %v247, %v823
      %v825 = vpop.f32.mrf.mxu0
      %826 = vdwg.mxu0
      %v827 = vand.u32 2147483647, %v509
      %v828 = vand.u32 2147483647, %v514
      %v829 = vand.u32 2147483647, %v519
      %v830 = vand.u32 2147483647, %v524
      %v831 = vand.u32 2147483647, %v529
      %v832 = vand.u32 2147483647, %v534
      %v833 = vand.u32 2147483647, %v539
      %v834 = vand.u32 2147483647, %v544
      %v835 = vand.u32 2147483647, %v549
      %v836 = vand.u32 2147483647, %v554
      %v837 = vand.u32 2147483647, %v559
      %v838 = vand.u32 2147483647, %v564
      %v839 = vand.u32 2147483647, %v569
      %v840 = vand.u32 2147483647, %v574
      %v841 = vand.u32 2147483647, %v579
      %v842 = vand.u32 2147483647, %v584
      %v843 = vand.u32 2147483647, %v589
      %v844 = vand.u32 2147483647, %v594
      %v845 = vand.u32 2147483647, %v599
      %v846 = vand.u32 2147483647, %v604
      %v847 = vand.u32 2147483647, %v609
      %v848 = vand.u32 2147483647, %v614
      %v849 = vand.u32 2147483647, %v619
      %v850 = vand.u32 2147483647, %v624
      %v851 = vand.u32 2147483647, %v629
      %v852 = vand.u32 2147483647, %v634
      %v853 = vand.u32 2147483647, %v639
      %v854 = vand.u32 2147483647, %v644
      %v855 = vand.u32 2147483647, %v649
      %v856 = vand.u32 2147483647, %v654
      %v857 = vand.u32 2147483647, %v659
      %v858 = vand.u32 2147483647, %v664
      %v859 = vand.u32 2147483647, %v669
      %v860 = vand.u32 2147483647, %v674
      %v861 = vand.u32 2147483647, %v679
      %v862 = vand.u32 2147483647, %v684
      %v863 = vand.u32 2147483647, %v689
      %v864 = vand.u32 2147483647, %v694
      %v865 = vand.u32 2147483647, %v699
      %v866 = vand.u32 2147483647, %v704
      %v867 = vand.u32 2147483647, %v709
      %v868 = vand.u32 2147483647, %v714
      %v869 = vand.u32 2147483647, %v719
      %v870 = vand.u32 2147483647, %v724
      %v871 = vand.u32 2147483647, %v729
      %v872 = vand.u32 2147483647, %v734
      %v873 = vand.u32 2147483647, %v739
      %v874 = vand.u32 2147483647, %v744
      %v875 = vand.u32 2147483647, %v749
      %v876 = vand.u32 2147483647, %v754
      %v877 = vand.u32 2147483647, %v759
      %v878 = vand.u32 2147483647, %v764
      %v879 = vand.u32 2147483647, %v769
      %v880 = vand.u32 2147483647, %v774
      %v881 = vand.u32 2147483647, %v779
      %v882 = vand.u32 2147483647, %v784
      %v883 = vand.u32 2147483647, %v789
      %v884 = vand.u32 2147483647, %v794
      %v885 = vand.u32 2147483647, %v799
      %v886 = vand.u32 2147483647, %v804
      %v887 = vand.u32 2147483647, %v809
      %v888 = vand.u32 2147483647, %v814
      %v889 = vand.u32 2147483647, %v819
      %v890 = vand.u32 2147483647, %v824
      %v891 = vadd.f32 %v827, 1.0
      %v892 = vadd.f32 %v828, 1.0
      %v893 = vadd.f32 %v829, 1.0
      %v894 = vadd.f32 %v830, 1.0
      %v895 = vadd.f32 %v831, 1.0
      %v896 = vadd.f32 %v832, 1.0
      %v897 = vadd.f32 %v833, 1.0
      %v898 = vadd.f32 %v834, 1.0
      %v899 = vadd.f32 %v835, 1.0
      %v900 = vadd.f32 %v836, 1.0
      %v901 = vadd.f32 %v837, 1.0
      %v902 = vadd.f32 %v838, 1.0
      %v903 = vadd.f32 %v839, 1.0
      %v904 = vadd.f32 %v840, 1.0
      %v905 = vadd.f32 %v841, 1.0
      %v906 = vadd.f32 %v842, 1.0
      %v907 = vadd.f32 %v843, 1.0
      %v908 = vadd.f32 %v844, 1.0
      %v909 = vadd.f32 %v845, 1.0
      %v910 = vadd.f32 %v846, 1.0
      %v911 = vadd.f32 %v847, 1.0
      %v912 = vadd.f32 %v848, 1.0
      %v913 = vadd.f32 %v849, 1.0
      %v914 = vadd.f32 %v850, 1.0
      %v915 = vadd.f32 %v851, 1.0
      %v916 = vadd.f32 %v852, 1.0
      %v917 = vadd.f32 %v853, 1.0
      %v918 = vadd.f32 %v854, 1.0
      %v919 = vadd.f32 %v855, 1.0
      %v920 = vadd.f32 %v856, 1.0
      %v921 = vadd.f32 %v857, 1.0
      %v922 = vadd.f32 %v858, 1.0
      %v923 = vadd.f32 %v859, 1.0
      %v924 = vadd.f32 %v860, 1.0
      %v925 = vadd.f32 %v861, 1.0
      %v926 = vadd.f32 %v862, 1.0
      %v927 = vadd.f32 %v863, 1.0
      %v928 = vadd.f32 %v864, 1.0
      %v929 = vadd.f32 %v865, 1.0
      %v930 = vadd.f32 %v866, 1.0
      %v931 = vadd.f32 %v867, 1.0
      %v932 = vadd.f32 %v868, 1.0
      %v933 = vadd.f32 %v869, 1.0
      %v934 = vadd.f32 %v870, 1.0
      %v935 = vadd.f32 %v871, 1.0
      %v936 = vadd.f32 %v872, 1.0
      %v937 = vadd.f32 %v873, 1.0
      %v938 = vadd.f32 %v874, 1.0
      %v939 = vadd.f32 %v875, 1.0
      %v940 = vadd.f32 %v876, 1.0
      %v941 = vadd.f32 %v877, 1.0
      %v942 = vadd.f32 %v878, 1.0
      %v943 = vadd.f32 %v879, 1.0
      %v944 = vadd.f32 %v880, 1.0
      %v945 = vadd.f32 %v881, 1.0
      %v946 = vadd.f32 %v882, 1.0
      %v947 = vadd.f32 %v883, 1.0
      %v948 = vadd.f32 %v884, 1.0
      %v949 = vadd.f32 %v885, 1.0
      %v950 = vadd.f32 %v886, 1.0
      %v951 = vadd.f32 %v887, 1.0
      %v952 = vadd.f32 %v888, 1.0
      %v953 = vadd.f32 %v889, 1.0
      %v954 = vadd.f32 %v890, 1.0
      %v955 = vmul.f32 %v891, 30.0
      %v956 = vmul.f32 %v892, 30.0
      %v957 = vmul.f32 %v893, 30.0
      %v958 = vmul.f32 %v894, 30.0
      %v959 = vmul.f32 %v895, 30.0
      %v960 = vmul.f32 %v896, 30.0
      %v961 = vmul.f32 %v897, 30.0
      %v962 = vmul.f32 %v898, 30.0
      %v963 = vmul.f32 %v899, 30.0
      %v964 = vmul.f32 %v900, 30.0
      %v965 = vmul.f32 %v901, 30.0
      %v966 = vmul.f32 %v902, 30.0
      %v967 = vmul.f32 %v903, 30.0
      %v968 = vmul.f32 %v904, 30.0
      %v969 = vmul.f32 %v905, 30.0
      %v970 = vmul.f32 %v906, 30.0
      %v971 = vmul.f32 %v907, 30.0
      %v972 = vmul.f32 %v908, 30.0
      %v973 = vmul.f32 %v909, 30.0
      %v974 = vmul.f32 %v910, 30.0
      %v975 = vmul.f32 %v911, 30.0
      %v976 = vmul.f32 %v912, 30.0
      %v977 = vmul.f32 %v913, 30.0
      %v978 = vmul.f32 %v914, 30.0
      %v979 = vmul.f32 %v915, 30.0
      %v980 = vmul.f32 %v916, 30.0
      %v981 = vmul.f32 %v917, 30.0
      %v982 = vmul.f32 %v918, 30.0
      %v983 = vmul.f32 %v919, 30.0
      %v984 = vmul.f32 %v920, 30.0
      %v985 = vmul.f32 %v921, 30.0
      %v986 = vmul.f32 %v922, 30.0
      %v987 = vmul.f32 %v923, 30.0
      %v988 = vmul.f32 %v924, 30.0
      %v989 = vmul.f32 %v925, 30.0
      %v990 = vmul.f32 %v926, 30.0
      %v991 = vmul.f32 %v927, 30.0
      %v992 = vmul.f32 %v928, 30.0
      %v993 = vmul.f32 %v929, 30.0
      %v994 = vmul.f32 %v930, 30.0
      %v995 = vmul.f32 %v931, 30.0
      %v996 = vmul.f32 %v932, 30.0
      %v997 = vmul.f32 %v933, 30.0
      %v998 = vmul.f32 %v934, 30.0
      %v999 = vmul.f32 %v935, 30.0
      %v1000 = vmul.f32 %v936, 30.0
      %v1001 = vmul.f32 %v937, 30.0
      %v1002 = vmul.f32 %v938, 30.0
      %v1003 = vmul.f32 %v939, 30.0
      %v1004 = vmul.f32 %v940, 30.0
      %v1005 = vmul.f32 %v941, 30.0
      %v1006 = vmul.f32 %v942, 30.0
      %v1007 = vmul.f32 %v943, 30.0
      %v1008 = vmul.f32 %v944, 30.0
      %v1009 = vmul.f32 %v945, 30.0
      %v1010 = vmul.f32 %v946, 30.0
      %v1011 = vmul.f32 %v947, 30.0
      %v1012 = vmul.f32 %v948, 30.0
      %v1013 = vmul.f32 %v949, 30.0
      %v1014 = vmul.f32 %v950, 30.0
      %v1015 = vmul.f32 %v951, 30.0
      %v1016 = vmul.f32 %v952, 30.0
      %v1017 = vmul.f32 %v953, 30.0
      %v1018 = vmul.f32 %v954, 30.0
      %v1019 = vmul.f32 %v955, %v509
      %v1020 = vmul.f32 %v956, %v514
      %v1021 = vmul.f32 %v957, %v519
      %v1022 = vmul.f32 %v958, %v524
      %v1023 = vmul.f32 %v959, %v529
      %v1024 = vmul.f32 %v960, %v534
      %v1025 = vmul.f32 %v961, %v539
      %v1026 = vmul.f32 %v962, %v544
      %v1027 = vmul.f32 %v963, %v549
      %v1028 = vmul.f32 %v964, %v554
      %v1029 = vmul.f32 %v965, %v559
      %v1030 = vmul.f32 %v966, %v564
      %v1031 = vmul.f32 %v967, %v569
      %v1032 = vmul.f32 %v968, %v574
      %v1033 = vmul.f32 %v969, %v579
      %v1034 = vmul.f32 %v970, %v584
      %v1035 = vmul.f32 %v971, %v589
      %v1036 = vmul.f32 %v972, %v594
      %v1037 = vmul.f32 %v973, %v599
      %v1038 = vmul.f32 %v974, %v604
      %v1039 = vmul.f32 %v975, %v609
      %v1040 = vmul.f32 %v976, %v614
      %v1041 = vmul.f32 %v977, %v619
      %v1042 = vmul.f32 %v978, %v624
      %v1043 = vmul.f32 %v979, %v629
      %v1044 = vmul.f32 %v980, %v634
      %v1045 = vmul.f32 %v981, %v639
      %v1046 = vmul.f32 %v982, %v644
      %v1047 = vmul.f32 %v983, %v649
      %v1048 = vmul.f32 %v984, %v654
      %v1049 = vmul.f32 %v985, %v659
      %v1050 = vmul.f32 %v986, %v664
      %v1051 = vmul.f32 %v987, %v669
      %v1052 = vmul.f32 %v988, %v674
      %v1053 = vmul.f32 %v989, %v679
      %v1054 = vmul.f32 %v990, %v684
      %v1055 = vmul.f32 %v991, %v689
      %v1056 = vmul.f32 %v992, %v694
      %v1057 = vmul.f32 %v993, %v699
      %v1058 = vmul.f32 %v994, %v704
      %v1059 = vmul.f32 %v995, %v709
      %v1060 = vmul.f32 %v996, %v714
      %v1061 = vmul.f32 %v997, %v719
      %v1062 = vmul.f32 %v998, %v724
      %v1063 = vmul.f32 %v999, %v729
      %v1064 = vmul.f32 %v1000, %v734
      %v1065 = vmul.f32 %v1001, %v739
      %v1066 = vmul.f32 %v1002, %v744
      %v1067 = vmul.f32 %v1003, %v749
      %v1068 = vmul.f32 %v1004, %v754
      %v1069 = vmul.f32 %v1005, %v759
      %v1070 = vmul.f32 %v1006, %v764
      %v1071 = vmul.f32 %v1007, %v769
      %v1072 = vmul.f32 %v1008, %v774
      %v1073 = vmul.f32 %v1009, %v779
      %v1074 = vmul.f32 %v1010, %v784
      %v1075 = vmul.f32 %v1011, %v789
      %v1076 = vmul.f32 %v1012, %v794
      %v1077 = vmul.f32 %v1013, %v799
      %v1078 = vmul.f32 %v1014, %v804
      %v1079 = vmul.f32 %v1015, %v809
      %v1080 = vmul.f32 %v1016, %v814
      %v1081 = vmul.f32 %v1017, %v819
      %v1082 = vmul.f32 %v1018, %v824
      %v1083 = vand.u32 2147483647, %v1019
      %vm1084 = vcmp.le.f32.partialorder %v1083, 0.7853982
      %vm1085 = vcmp.lt.s32.totalorder %v1019, 0
      %v1086 = vand.u32 %v1019, 2139095040
      %v1087 = vshrl.u32 %v1086, 23
      %v1088 = vsub.s32 %v1087, 127
      %v1089 = vand.u32 2147483647, %v1019
      %v1090 = vand.u32 %v1089, 8388607
      %v1091 = vor.u32 %v1090, 8388608
      %v1092 = vsub.s32 0, %v1091
      %v1093 = vadd.s32 %v1088, 1
      %vm1094 = vcmp.gt.s32.totalorder %v1093, 0
      %v1095 = vsel %vm1094, %v1093, 0
      %v1096 = vshrl.u32 %v1095, 5
      %v1097 = vand.u32 %v1095, 31
      %v1098 = vsub.s32 32, %v1097
      %v1099 = vshrl.u32 683565275, %v1098
      %v1100 = vshll.u32 683565275, %v1097
      %v1101 = vshrl.u32 2475754826, %v1098
      %v1102 = vor.u32 %v1100, %v1101
      %v1103 = vshll.u32 2475754826, %v1097
      %v1104 = vshrl.u32 2131351028, %v1098
      %v1105 = vor.u32 %v1103, %v1104
      %v1106 = vshll.u32 2131351028, %v1097
      %v1107 = vshrl.u32 2102212464, %v1098
      %v1108 = vor.u32 %v1106, %v1107
      %v1109 = vshll.u32 2102212464, %v1097
      %v1110 = vshrl.u32 920167782, %v1098
      %v1111 = vor.u32 %v1109, %v1110
      %v1112 = vshll.u32 920167782, %v1097
      %v1113 = vshrl.u32 1326507024, %v1098
      %v1114 = vor.u32 %v1112, %v1113
      %vm1115 = vcmp.lt.s32.totalorder %v1096, 1
      %vm1116 = vcmp.lt.s32.totalorder %v1096, 2
      %vm1117 = vcmp.lt.s32.totalorder %v1096, 3
      %vm1118 = vcmp.lt.s32.totalorder %v1096, 4
      %v1119 = vsel %vm1115, %v1099, %v1102
      %v1120 = vsel %vm1118, %v1108, 2102212464
      %v1121 = vsel %vm1117, %v1105, %v1120
      %v1122 = vsel %vm1116, %v1119, %v1121
      %v1123 = vsel %vm1115, %v1102, %v1105
      %v1124 = vsel %vm1118, %v1111, 920167782
      %v1125 = vsel %vm1117, %v1108, %v1124
      %v1126 = vsel %vm1116, %v1123, %v1125
      %v1127 = vsel %vm1115, %v1105, %v1108
      %v1128 = vsel %vm1118, %v1114, 1326507024
      %v1129 = vsel %vm1117, %v1111, %v1128
      %v1130 = vsel %vm1116, %v1127, %v1129
      %v1131 = vshll.u32 %v1091, 8
      %v1132 = vmul.u32.u64.compose %v1131, %v1130
      %v1133 = vextract.low.u32 %v1132
      %v1134 = vextract.high.u32 %v1132
      %v1135 = vmul.u32.u64.compose %v1131, %v1126
      %v1136 = vextract.low.u32 %v1135
      %v1137 = vextract.high.u32 %v1135
      %v1138 = vmul.u32 %v1131, %v1122
      %v1139 = vadd.s32 %v1134, %v1136
      %vm1140 = vc.u32 %v1134, %v1136
      %v1141 = vadd.s32 %v1137, 1
      %v1142 = vsel %vm1140, %v1141, %v1137
      %v1143 = vadd.s32 %v1138, %v1142
      %v1144 = vadd.s32 %v1143, 536870912
      %v1145 = vshrl.u32 %v1144, 30
      %v1146 = vshll.u32 %v1145, 30
      %v1147 = vsub.s32 %v1143, %v1146
      %vm1148 = vcmp.lt.s32.totalorder %v1147, 0
      %v1149 = vsub.s32 0, %v1147
      %v1150 = vsel %vm1148, %v1149, %v1147
      %v1151 = vclz %v1150
      %v1152 = vsub.s32 %v1151, 2
      %vm1153 = vcmp.gt.s32.totalorder 0, %v1152
      %v1154 = vsel %vm1153, 0, %v1152
      %v1155 = vsub.s32 32, %v1154
      %v1156 = vshll.u32 %v1147, %v1154
      %v1157 = vshrl.u32 %v1139, %v1155
      %v1158 = vor.u32 %v1156, %v1157
      %v1159 = vsub.s32 4294967266, %v1154
      %v1160 = vadd.s32 %v1159, 127
      %v1161 = vshll.u32 %v1160, 23
      %v1162 = vor.u32 4788187, %v1161
      %v1163 = vand.u32 2147483647, %v1162
      %v1165 = vcvt.s32.f32 %v1158
      %v1166 = vmul.f32 %v1165, %v1163
      %v1167 = vxor.u32 %v1166, 2147483648
      %v1168 = vsel %vm1085, %v1167, %v1166
      %v1169 = vsub.s32 4, %v1145
      %v1170 = vsel %vm1085, %v1169, %v1145
      %v1171 = vsel %vm1084, %v1019, %v1168
      %v1172 = vsel %vm1084, 0, %v1170
      %v1173 = vcosq.f32.pop %v1171
      %v1174 = vsinq.f32.pop %v1171
      %vm1175 = vweird.f32 %v1019
      %v1176 = vadd.s32 %v1172, 3
      %v1177 = vand.u32 %v1176, 3
      %vm1178 = vcmp.lt.s32.totalorder %v1177, 2
      %vm1179 = vcmp.eq.s32.totalorder %v1177, 0
      %v1180 = vxor.u32 %v1174, 2147483648
      %v1181 = vsel %vm1179, %v1173, %v1180
      %vm1182 = vcmp.eq.s32.totalorder %v1177, 2
      %v1183 = vxor.u32 %v1173, 2147483648
      %v1184 = vsel %vm1182, %v1183, %v1174
      %v1185 = vsel %vm1178, %v1181, %v1184
      %v1186 = vsel %vm1175, nan, %v1185
      %v1187 = vand.u32 2147483647, %v1020
      %vm1188 = vcmp.le.f32.partialorder %v1187, 0.7853982
      %vm1189 = vcmp.lt.s32.totalorder %v1020, 0
      %v1190 = vand.u32 %v1020, 2139095040
      %v1191 = vshrl.u32 %v1190, 23
      %v1192 = vsub.s32 %v1191, 127
      %v1193 = vand.u32 2147483647, %v1020
      %v1194 = vand.u32 %v1193, 8388607
      %v1195 = vor.u32 %v1194, 8388608
      %v1196 = vsub.s32 0, %v1195
      %v1197 = vadd.s32 %v1192, 1
      %vm1198 = vcmp.gt.s32.totalorder %v1197, 0
      %v1199 = vsel %vm1198, %v1197, 0
      %v1200 = vshrl.u32 %v1199, 5
      %v1201 = vand.u32 %v1199, 31
      %v1202 = vsub.s32 32, %v1201
      %v1203 = vshrl.u32 683565275, %v1202
      %v1204 = vshll.u32 683565275, %v1201
      %v1205 = vshrl.u32 2475754826, %v1202
      %v1206 = vor.u32 %v1204, %v1205
      %v1207 = vshll.u32 2475754826, %v1201
      %v1208 = vshrl.u32 2131351028, %v1202
      %v1209 = vor.u32 %v1207, %v1208
      %v1210 = vshll.u32 2131351028, %v1201
      %v1211 = vshrl.u32 2102212464, %v1202
      %v1212 = vor.u32 %v1210, %v1211
      %v1213 = vshll.u32 2102212464, %v1201
      %v1214 = vshrl.u32 920167782, %v1202
      %v1215 = vor.u32 %v1213, %v1214
      %v1216 = vshll.u32 920167782, %v1201
      %v1217 = vshrl.u32 1326507024, %v1202
      %v1218 = vor.u32 %v1216, %v1217
      %vm1219 = vcmp.lt.s32.totalorder %v1200, 1
      %vm1220 = vcmp.lt.s32.totalorder %v1200, 2
      %vm1221 = vcmp.lt.s32.totalorder %v1200, 3
      %vm1222 = vcmp.lt.s32.totalorder %v1200, 4
      %v1223 = vsel %vm1219, %v1203, %v1206
      %v1224 = vsel %vm1222, %v1212, 2102212464
      %v1225 = vsel %vm1221, %v1209, %v1224
      %v1226 = vsel %vm1220, %v1223, %v1225
      %v1227 = vsel %vm1219, %v1206, %v1209
      %v1228 = vsel %vm1222, %v1215, 920167782
      %v1229 = vsel %vm1221, %v1212, %v1228
      %v1230 = vsel %vm1220, %v1227, %v1229
      %v1231 = vsel %vm1219, %v1209, %v1212
      %v1232 = vsel %vm1222, %v1218, 1326507024
      %v1233 = vsel %vm1221, %v1215, %v1232
      %v1234 = vsel %vm1220, %v1231, %v1233
      %v1235 = vshll.u32 %v1195, 8
      %v1236 = vmul.u32.u64.compose %v1235, %v1234
      %v1237 = vextract.low.u32 %v1236
      %v1238 = vextract.high.u32 %v1236
      %v1239 = vmul.u32.u64.compose %v1235, %v1230
      %v1240 = vextract.low.u32 %v1239
      %v1241 = vextract.high.u32 %v1239
      %v1242 = vmul.u32 %v1235, %v1226
      %v1243 = vadd.s32 %v1238, %v1240
      %vm1244 = vc.u32 %v1238, %v1240
      %v1245 = vadd.s32 %v1241, 1
      %v1246 = vsel %vm1244, %v1245, %v1241
      %v1247 = vadd.s32 %v1242, %v1246
      %v1248 = vadd.s32 %v1247, 536870912
      %v1249 = vshrl.u32 %v1248, 30
      %v1250 = vshll.u32 %v1249, 30
      %v1251 = vsub.s32 %v1247, %v1250
      %vm1252 = vcmp.lt.s32.totalorder %v1251, 0
      %v1253 = vsub.s32 0, %v1251
      %v1254 = vsel %vm1252, %v1253, %v1251
      %v1255 = vclz %v1254
      %v1256 = vsub.s32 %v1255, 2
      %vm1257 = vcmp.gt.s32.totalorder 0, %v1256
      %v1258 = vsel %vm1257, 0, %v1256
      %v1259 = vsub.s32 32, %v1258
      %v1260 = vshll.u32 %v1251, %v1258
      %v1261 = vshrl.u32 %v1243, %v1259
      %v1262 = vor.u32 %v1260, %v1261
      %v1263 = vsub.s32 4294967266, %v1258
      %v1264 = vadd.s32 %v1263, 127
      %v1265 = vshll.u32 %v1264, 23
      %v1266 = vor.u32 4788187, %v1265
      %v1267 = vand.u32 2147483647, %v1266
      %v1269 = vcvt.s32.f32 %v1262
      %v1270 = vmul.f32 %v1269, %v1267
      %v1271 = vxor.u32 %v1270, 2147483648
      %v1272 = vsel %vm1189, %v1271, %v1270
      %v1273 = vsub.s32 4, %v1249
      %v1274 = vsel %vm1189, %v1273, %v1249
      %v1275 = vsel %vm1188, %v1020, %v1272
      %v1276 = vsel %vm1188, 0, %v1274
      %v1277 = vcosq.f32.pop %v1275
      %v1278 = vsinq.f32.pop %v1275
      %vm1279 = vweird.f32 %v1020
      %v1280 = vadd.s32 %v1276, 3
      %v1281 = vand.u32 %v1280, 3
      %vm1282 = vcmp.lt.s32.totalorder %v1281, 2
      %vm1283 = vcmp.eq.s32.totalorder %v1281, 0
      %v1284 = vxor.u32 %v1278, 2147483648
      %v1285 = vsel %vm1283, %v1277, %v1284
      %vm1286 = vcmp.eq.s32.totalorder %v1281, 2
      %v1287 = vxor.u32 %v1277, 2147483648
      %v1288 = vsel %vm1286, %v1287, %v1278
      %v1289 = vsel %vm1282, %v1285, %v1288
      %v1290 = vsel %vm1279, nan, %v1289
      %v1291 = vand.u32 2147483647, %v1021
      %vm1292 = vcmp.le.f32.partialorder %v1291, 0.7853982
      %vm1293 = vcmp.lt.s32.totalorder %v1021, 0
      %v1294 = vand.u32 %v1021, 2139095040
      %v1295 = vshrl.u32 %v1294, 23
      %v1296 = vsub.s32 %v1295, 127
      %v1297 = vand.u32 2147483647, %v1021
      %v1298 = vand.u32 %v1297, 8388607
      %v1299 = vor.u32 %v1298, 8388608
      %v1300 = vsub.s32 0, %v1299
      %v1301 = vadd.s32 %v1296, 1
      %vm1302 = vcmp.gt.s32.totalorder %v1301, 0
      %v1303 = vsel %vm1302, %v1301, 0
      %v1304 = vshrl.u32 %v1303, 5
      %v1305 = vand.u32 %v1303, 31
      %v1306 = vsub.s32 32, %v1305
      %v1307 = vshrl.u32 683565275, %v1306
      %v1308 = vshll.u32 683565275, %v1305
      %v1309 = vshrl.u32 2475754826, %v1306
      %v1310 = vor.u32 %v1308, %v1309
      %v1311 = vshll.u32 2475754826, %v1305
      %v1312 = vshrl.u32 2131351028, %v1306
      %v1313 = vor.u32 %v1311, %v1312
      %v1314 = vshll.u32 2131351028, %v1305
      %v1315 = vshrl.u32 2102212464, %v1306
      %v1316 = vor.u32 %v1314, %v1315
      %v1317 = vshll.u32 2102212464, %v1305
      %v1318 = vshrl.u32 920167782, %v1306
      %v1319 = vor.u32 %v1317, %v1318
      %v1320 = vshll.u32 920167782, %v1305
      %v1321 = vshrl.u32 1326507024, %v1306
      %v1322 = vor.u32 %v1320, %v1321
      %vm1323 = vcmp.lt.s32.totalorder %v1304, 1
      %vm1324 = vcmp.lt.s32.totalorder %v1304, 2
      %vm1325 = vcmp.lt.s32.totalorder %v1304, 3
      %vm1326 = vcmp.lt.s32.totalorder %v1304, 4
      %v1327 = vsel %vm1323, %v1307, %v1310
      %v1328 = vsel %vm1326, %v1316, 2102212464
      %v1329 = vsel %vm1325, %v1313, %v1328
      %v1330 = vsel %vm1324, %v1327, %v1329
      %v1331 = vsel %vm1323, %v1310, %v1313
      %v1332 = vsel %vm1326, %v1319, 920167782
      %v1333 = vsel %vm1325, %v1316, %v1332
      %v1334 = vsel %vm1324, %v1331, %v1333
      %v1335 = vsel %vm1323, %v1313, %v1316
      %v1336 = vsel %vm1326, %v1322, 1326507024
      %v1337 = vsel %vm1325, %v1319, %v1336
      %v1338 = vsel %vm1324, %v1335, %v1337
      %v1339 = vshll.u32 %v1299, 8
      %v1340 = vmul.u32.u64.compose %v1339, %v1338
      %v1341 = vextract.low.u32 %v1340
      %v1342 = vextract.high.u32 %v1340
      %v1343 = vmul.u32.u64.compose %v1339, %v1334
      %v1344 = vextract.low.u32 %v1343
      %v1345 = vextract.high.u32 %v1343
      %v1346 = vmul.u32 %v1339, %v1330
      %v1347 = vadd.s32 %v1342, %v1344
      %vm1348 = vc.u32 %v1342, %v1344
      %v1349 = vadd.s32 %v1345, 1
      %v1350 = vsel %vm1348, %v1349, %v1345
      %v1351 = vadd.s32 %v1346, %v1350
      %v1352 = vadd.s32 %v1351, 536870912
      %v1353 = vshrl.u32 %v1352, 30
      %v1354 = vshll.u32 %v1353, 30
      %v1355 = vsub.s32 %v1351, %v1354
      %vm1356 = vcmp.lt.s32.totalorder %v1355, 0
      %v1357 = vsub.s32 0, %v1355
      %v1358 = vsel %vm1356, %v1357, %v1355
      %v1359 = vclz %v1358
      %v1360 = vsub.s32 %v1359, 2
      %vm1361 = vcmp.gt.s32.totalorder 0, %v1360
      %v1362 = vsel %vm1361, 0, %v1360
      %v1363 = vsub.s32 32, %v1362
      %v1364 = vshll.u32 %v1355, %v1362
      %v1365 = vshrl.u32 %v1347, %v1363
      %v1366 = vor.u32 %v1364, %v1365
      %v1367 = vsub.s32 4294967266, %v1362
      %v1368 = vadd.s32 %v1367, 127
      %v1369 = vshll.u32 %v1368, 23
      %v1370 = vor.u32 4788187, %v1369
      %v1371 = vand.u32 2147483647, %v1370
      %v1373 = vcvt.s32.f32 %v1366
      %v1374 = vmul.f32 %v1373, %v1371
      %v1375 = vxor.u32 %v1374, 2147483648
      %v1376 = vsel %vm1293, %v1375, %v1374
      %v1377 = vsub.s32 4, %v1353
      %v1378 = vsel %vm1293, %v1377, %v1353
      %v1379 = vsel %vm1292, %v1021, %v1376
      %v1380 = vsel %vm1292, 0, %v1378
      %v1381 = vcosq.f32.pop %v1379
      %v1382 = vsinq.f32.pop %v1379
      %vm1383 = vweird.f32 %v1021
      %v1384 = vadd.s32 %v1380, 3
      %v1385 = vand.u32 %v1384, 3
      %vm1386 = vcmp.lt.s32.totalorder %v1385, 2
      %vm1387 = vcmp.eq.s32.totalorder %v1385, 0
      %v1388 = vxor.u32 %v1382, 2147483648
      %v1389 = vsel %vm1387, %v1381, %v1388
      %vm1390 = vcmp.eq.s32.totalorder %v1385, 2
      %v1391 = vxor.u32 %v1381, 2147483648
      %v1392 = vsel %vm1390, %v1391, %v1382
      %v1393 = vsel %vm1386, %v1389, %v1392
      %v1394 = vsel %vm1383, nan, %v1393
      %v1395 = vand.u32 2147483647, %v1022
      %vm1396 = vcmp.le.f32.partialorder %v1395, 0.7853982
      %vm1397 = vcmp.lt.s32.totalorder %v1022, 0
      %v1398 = vand.u32 %v1022, 2139095040
      %v1399 = vshrl.u32 %v1398, 23
      %v1400 = vsub.s32 %v1399, 127
      %v1401 = vand.u32 2147483647, %v1022
      %v1402 = vand.u32 %v1401, 8388607
      %v1403 = vor.u32 %v1402, 8388608
      %v1404 = vsub.s32 0, %v1403
      %v1405 = vadd.s32 %v1400, 1
      %vm1406 = vcmp.gt.s32.totalorder %v1405, 0
      %v1407 = vsel %vm1406, %v1405, 0
      %v1408 = vshrl.u32 %v1407, 5
      %v1409 = vand.u32 %v1407, 31
      %v1410 = vsub.s32 32, %v1409
      %v1411 = vshrl.u32 683565275, %v1410
      %v1412 = vshll.u32 683565275, %v1409
      %v1413 = vshrl.u32 2475754826, %v1410
      %v1414 = vor.u32 %v1412, %v1413
      %v1415 = vshll.u32 2475754826, %v1409
      %v1416 = vshrl.u32 2131351028, %v1410
      %v1417 = vor.u32 %v1415, %v1416
      %v1418 = vshll.u32 2131351028, %v1409
      %v1419 = vshrl.u32 2102212464, %v1410
      %v1420 = vor.u32 %v1418, %v1419
      %v1421 = vshll.u32 2102212464, %v1409
      %v1422 = vshrl.u32 920167782, %v1410
      %v1423 = vor.u32 %v1421, %v1422
      %v1424 = vshll.u32 920167782, %v1409
      %v1425 = vshrl.u32 1326507024, %v1410
      %v1426 = vor.u32 %v1424, %v1425
      %vm1427 = vcmp.lt.s32.totalorder %v1408, 1
      %vm1428 = vcmp.lt.s32.totalorder %v1408, 2
      %vm1429 = vcmp.lt.s32.totalorder %v1408, 3
      %vm1430 = vcmp.lt.s32.totalorder %v1408, 4
      %v1431 = vsel %vm1427, %v1411, %v1414
      %v1432 = vsel %vm1430, %v1420, 2102212464
      %v1433 = vsel %vm1429, %v1417, %v1432
      %v1434 = vsel %vm1428, %v1431, %v1433
      %v1435 = vsel %vm1427, %v1414, %v1417
      %v1436 = vsel %vm1430, %v1423, 920167782
      %v1437 = vsel %vm1429, %v1420, %v1436
      %v1438 = vsel %vm1428, %v1435, %v1437
      %v1439 = vsel %vm1427, %v1417, %v1420
      %v1440 = vsel %vm1430, %v1426, 1326507024
      %v1441 = vsel %vm1429, %v1423, %v1440
      %v1442 = vsel %vm1428, %v1439, %v1441
      %v1443 = vshll.u32 %v1403, 8
      %v1444 = vmul.u32.u64.compose %v1443, %v1442
      %v1445 = vextract.low.u32 %v1444
      %v1446 = vextract.high.u32 %v1444
      %v1447 = vmul.u32.u64.compose %v1443, %v1438
      %v1448 = vextract.low.u32 %v1447
      %v1449 = vextract.high.u32 %v1447
      %v1450 = vmul.u32 %v1443, %v1434
      %v1451 = vadd.s32 %v1446, %v1448
      %vm1452 = vc.u32 %v1446, %v1448
      %v1453 = vadd.s32 %v1449, 1
      %v1454 = vsel %vm1452, %v1453, %v1449
      %v1455 = vadd.s32 %v1450, %v1454
      %v1456 = vadd.s32 %v1455, 536870912
      %v1457 = vshrl.u32 %v1456, 30
      %v1458 = vshll.u32 %v1457, 30
      %v1459 = vsub.s32 %v1455, %v1458
      %vm1460 = vcmp.lt.s32.totalorder %v1459, 0
      %v1461 = vsub.s32 0, %v1459
      %v1462 = vsel %vm1460, %v1461, %v1459
      %v1463 = vclz %v1462
      %v1464 = vsub.s32 %v1463, 2
      %vm1465 = vcmp.gt.s32.totalorder 0, %v1464
      %v1466 = vsel %vm1465, 0, %v1464
      %v1467 = vsub.s32 32, %v1466
      %v1468 = vshll.u32 %v1459, %v1466
      %v1469 = vshrl.u32 %v1451, %v1467
      %v1470 = vor.u32 %v1468, %v1469
      %v1471 = vsub.s32 4294967266, %v1466
      %v1472 = vadd.s32 %v1471, 127
      %v1473 = vshll.u32 %v1472, 23
      %v1474 = vor.u32 4788187, %v1473
      %v1475 = vand.u32 2147483647, %v1474
      %v1477 = vcvt.s32.f32 %v1470
      %v1478 = vmul.f32 %v1477, %v1475
      %v1479 = vxor.u32 %v1478, 2147483648
      %v1480 = vsel %vm1397, %v1479, %v1478
      %v1481 = vsub.s32 4, %v1457
      %v1482 = vsel %vm1397, %v1481, %v1457
      %v1483 = vsel %vm1396, %v1022, %v1480
      %v1484 = vsel %vm1396, 0, %v1482
      %v1485 = vcosq.f32.pop %v1483
      %v1486 = vsinq.f32.pop %v1483
      %vm1487 = vweird.f32 %v1022
      %v1488 = vadd.s32 %v1484, 3
      %v1489 = vand.u32 %v1488, 3
      %vm1490 = vcmp.lt.s32.totalorder %v1489, 2
      %vm1491 = vcmp.eq.s32.totalorder %v1489, 0
      %v1492 = vxor.u32 %v1486, 2147483648
      %v1493 = vsel %vm1491, %v1485, %v1492
      %vm1494 = vcmp.eq.s32.totalorder %v1489, 2
      %v1495 = vxor.u32 %v1485, 2147483648
      %v1496 = vsel %vm1494, %v1495, %v1486
      %v1497 = vsel %vm1490, %v1493, %v1496
      %v1498 = vsel %vm1487, nan, %v1497
      %v1499 = vand.u32 2147483647, %v1023
      %vm1500 = vcmp.le.f32.partialorder %v1499, 0.7853982
      %vm1501 = vcmp.lt.s32.totalorder %v1023, 0
      %v1502 = vand.u32 %v1023, 2139095040
      %v1503 = vshrl.u32 %v1502, 23
      %v1504 = vsub.s32 %v1503, 127
      %v1505 = vand.u32 2147483647, %v1023
      %v1506 = vand.u32 %v1505, 8388607
      %v1507 = vor.u32 %v1506, 8388608
      %v1508 = vsub.s32 0, %v1507
      %v1509 = vadd.s32 %v1504, 1
      %vm1510 = vcmp.gt.s32.totalorder %v1509, 0
      %v1511 = vsel %vm1510, %v1509, 0
      %v1512 = vshrl.u32 %v1511, 5
      %v1513 = vand.u32 %v1511, 31
      %v1514 = vsub.s32 32, %v1513
      %v1515 = vshrl.u32 683565275, %v1514
      %v1516 = vshll.u32 683565275, %v1513
      %v1517 = vshrl.u32 2475754826, %v1514
      %v1518 = vor.u32 %v1516, %v1517
      %v1519 = vshll.u32 2475754826, %v1513
      %v1520 = vshrl.u32 2131351028, %v1514
      %v1521 = vor.u32 %v1519, %v1520
      %v1522 = vshll.u32 2131351028, %v1513
      %v1523 = vshrl.u32 2102212464, %v1514
      %v1524 = vor.u32 %v1522, %v1523
      %v1525 = vshll.u32 2102212464, %v1513
      %v1526 = vshrl.u32 920167782, %v1514
      %v1527 = vor.u32 %v1525, %v1526
      %v1528 = vshll.u32 920167782, %v1513
      %v1529 = vshrl.u32 1326507024, %v1514
      %v1530 = vor.u32 %v1528, %v1529
      %vm1531 = vcmp.lt.s32.totalorder %v1512, 1
      %vm1532 = vcmp.lt.s32.totalorder %v1512, 2
      %vm1533 = vcmp.lt.s32.totalorder %v1512, 3
      %vm1534 = vcmp.lt.s32.totalorder %v1512, 4
      %v1535 = vsel %vm1531, %v1515, %v1518
      %v1536 = vsel %vm1534, %v1524, 2102212464
      %v1537 = vsel %vm1533, %v1521, %v1536
      %v1538 = vsel %vm1532, %v1535, %v1537
      %v1539 = vsel %vm1531, %v1518, %v1521
      %v1540 = vsel %vm1534, %v1527, 920167782
      %v1541 = vsel %vm1533, %v1524, %v1540
      %v1542 = vsel %vm1532, %v1539, %v1541
      %v1543 = vsel %vm1531, %v1521, %v1524
      %v1544 = vsel %vm1534, %v1530, 1326507024
      %v1545 = vsel %vm1533, %v1527, %v1544
      %v1546 = vsel %vm1532, %v1543, %v1545
      %v1547 = vshll.u32 %v1507, 8
      %v1548 = vmul.u32.u64.compose %v1547, %v1546
      %v1549 = vextract.low.u32 %v1548
      %v1550 = vextract.high.u32 %v1548
      %v1551 = vmul.u32.u64.compose %v1547, %v1542
      %v1552 = vextract.low.u32 %v1551
      %v1553 = vextract.high.u32 %v1551
      %v1554 = vmul.u32 %v1547, %v1538
      %v1555 = vadd.s32 %v1550, %v1552
      %vm1556 = vc.u32 %v1550, %v1552
      %v1557 = vadd.s32 %v1553, 1
      %v1558 = vsel %vm1556, %v1557, %v1553
      %v1559 = vadd.s32 %v1554, %v1558
      %v1560 = vadd.s32 %v1559, 536870912
      %v1561 = vshrl.u32 %v1560, 30
      %v1562 = vshll.u32 %v1561, 30
      %v1563 = vsub.s32 %v1559, %v1562
      %vm1564 = vcmp.lt.s32.totalorder %v1563, 0
      %v1565 = vsub.s32 0, %v1563
      %v1566 = vsel %vm1564, %v1565, %v1563
      %v1567 = vclz %v1566
      %v1568 = vsub.s32 %v1567, 2
      %vm1569 = vcmp.gt.s32.totalorder 0, %v1568
      %v1570 = vsel %vm1569, 0, %v1568
      %v1571 = vsub.s32 32, %v1570
      %v1572 = vshll.u32 %v1563, %v1570
      %v1573 = vshrl.u32 %v1555, %v1571
      %v1574 = vor.u32 %v1572, %v1573
      %v1575 = vsub.s32 4294967266, %v1570
      %v1576 = vadd.s32 %v1575, 127
      %v1577 = vshll.u32 %v1576, 23
      %v1578 = vor.u32 4788187, %v1577
      %v1579 = vand.u32 2147483647, %v1578
      %v1581 = vcvt.s32.f32 %v1574
      %v1582 = vmul.f32 %v1581, %v1579
      %v1583 = vxor.u32 %v1582, 2147483648
      %v1584 = vsel %vm1501, %v1583, %v1582
      %v1585 = vsub.s32 4, %v1561
      %v1586 = vsel %vm1501, %v1585, %v1561
      %v1587 = vsel %vm1500, %v1023, %v1584
      %v1588 = vsel %vm1500, 0, %v1586
      %v1589 = vcosq.f32.pop %v1587
      %v1590 = vsinq.f32.pop %v1587
      %vm1591 = vweird.f32 %v1023
      %v1592 = vadd.s32 %v1588, 3
      %v1593 = vand.u32 %v1592, 3
      %vm1594 = vcmp.lt.s32.totalorder %v1593, 2
      %vm1595 = vcmp.eq.s32.totalorder %v1593, 0
      %v1596 = vxor.u32 %v1590, 2147483648
      %v1597 = vsel %vm1595, %v1589, %v1596
      %vm1598 = vcmp.eq.s32.totalorder %v1593, 2
      %v1599 = vxor.u32 %v1589, 2147483648
      %v1600 = vsel %vm1598, %v1599, %v1590
      %v1601 = vsel %vm1594, %v1597, %v1600
      %v1602 = vsel %vm1591, nan, %v1601
      %v1603 = vand.u32 2147483647, %v1024
      %vm1604 = vcmp.le.f32.partialorder %v1603, 0.7853982
      %vm1605 = vcmp.lt.s32.totalorder %v1024, 0
      %v1606 = vand.u32 %v1024, 2139095040
      %v1607 = vshrl.u32 %v1606, 23
      %v1608 = vsub.s32 %v1607, 127
      %v1609 = vand.u32 2147483647, %v1024
      %v1610 = vand.u32 %v1609, 8388607
      %v1611 = vor.u32 %v1610, 8388608
      %v1612 = vsub.s32 0, %v1611
      %v1613 = vadd.s32 %v1608, 1
      %vm1614 = vcmp.gt.s32.totalorder %v1613, 0
      %v1615 = vsel %vm1614, %v1613, 0
      %v1616 = vshrl.u32 %v1615, 5
      %v1617 = vand.u32 %v1615, 31
      %v1618 = vsub.s32 32, %v1617
      %v1619 = vshrl.u32 683565275, %v1618
      %v1620 = vshll.u32 683565275, %v1617
      %v1621 = vshrl.u32 2475754826, %v1618
      %v1622 = vor.u32 %v1620, %v1621
      %v1623 = vshll.u32 2475754826, %v1617
      %v1624 = vshrl.u32 2131351028, %v1618
      %v1625 = vor.u32 %v1623, %v1624
      %v1626 = vshll.u32 2131351028, %v1617
      %v1627 = vshrl.u32 2102212464, %v1618
      %v1628 = vor.u32 %v1626, %v1627
      %v1629 = vshll.u32 2102212464, %v1617
      %v1630 = vshrl.u32 920167782, %v1618
      %v1631 = vor.u32 %v1629, %v1630
      %v1632 = vshll.u32 920167782, %v1617
      %v1633 = vshrl.u32 1326507024, %v1618
      %v1634 = vor.u32 %v1632, %v1633
      %vm1635 = vcmp.lt.s32.totalorder %v1616, 1
      %vm1636 = vcmp.lt.s32.totalorder %v1616, 2
      %vm1637 = vcmp.lt.s32.totalorder %v1616, 3
      %vm1638 = vcmp.lt.s32.totalorder %v1616, 4
      %v1639 = vsel %vm1635, %v1619, %v1622
      %v1640 = vsel %vm1638, %v1628, 2102212464
      %v1641 = vsel %vm1637, %v1625, %v1640
      %v1642 = vsel %vm1636, %v1639, %v1641
      %v1643 = vsel %vm1635, %v1622, %v1625
      %v1644 = vsel %vm1638, %v1631, 920167782
      %v1645 = vsel %vm1637, %v1628, %v1644
      %v1646 = vsel %vm1636, %v1643, %v1645
      %v1647 = vsel %vm1635, %v1625, %v1628
      %v1648 = vsel %vm1638, %v1634, 1326507024
      %v1649 = vsel %vm1637, %v1631, %v1648
      %v1650 = vsel %vm1636, %v1647, %v1649
      %v1651 = vshll.u32 %v1611, 8
      %v1652 = vmul.u32.u64.compose %v1651, %v1650
      %v1653 = vextract.low.u32 %v1652
      %v1654 = vextract.high.u32 %v1652
      %v1655 = vmul.u32.u64.compose %v1651, %v1646
      %v1656 = vextract.low.u32 %v1655
      %v1657 = vextract.high.u32 %v1655
      %v1658 = vmul.u32 %v1651, %v1642
      %v1659 = vadd.s32 %v1654, %v1656
      %vm1660 = vc.u32 %v1654, %v1656
      %v1661 = vadd.s32 %v1657, 1
      %v1662 = vsel %vm1660, %v1661, %v1657
      %v1663 = vadd.s32 %v1658, %v1662
      %v1664 = vadd.s32 %v1663, 536870912
      %v1665 = vshrl.u32 %v1664, 30
      %v1666 = vshll.u32 %v1665, 30
      %v1667 = vsub.s32 %v1663, %v1666
      %vm1668 = vcmp.lt.s32.totalorder %v1667, 0
      %v1669 = vsub.s32 0, %v1667
      %v1670 = vsel %vm1668, %v1669, %v1667
      %v1671 = vclz %v1670
      %v1672 = vsub.s32 %v1671, 2
      %vm1673 = vcmp.gt.s32.totalorder 0, %v1672
      %v1674 = vsel %vm1673, 0, %v1672
      %v1675 = vsub.s32 32, %v1674
      %v1676 = vshll.u32 %v1667, %v1674
      %v1677 = vshrl.u32 %v1659, %v1675
      %v1678 = vor.u32 %v1676, %v1677
      %v1679 = vsub.s32 4294967266, %v1674
      %v1680 = vadd.s32 %v1679, 127
      %v1681 = vshll.u32 %v1680, 23
      %v1682 = vor.u32 4788187, %v1681
      %v1683 = vand.u32 2147483647, %v1682
      %v1685 = vcvt.s32.f32 %v1678
      %v1686 = vmul.f32 %v1685, %v1683
      %v1687 = vxor.u32 %v1686, 2147483648
      %v1688 = vsel %vm1605, %v1687, %v1686
      %v1689 = vsub.s32 4, %v1665
      %v1690 = vsel %vm1605, %v1689, %v1665
      %v1691 = vsel %vm1604, %v1024, %v1688
      %v1692 = vsel %vm1604, 0, %v1690
      %v1693 = vcosq.f32.pop %v1691
      %v1694 = vsinq.f32.pop %v1691
      %vm1695 = vweird.f32 %v1024
      %v1696 = vadd.s32 %v1692, 3
      %v1697 = vand.u32 %v1696, 3
      %vm1698 = vcmp.lt.s32.totalorder %v1697, 2
      %vm1699 = vcmp.eq.s32.totalorder %v1697, 0
      %v1700 = vxor.u32 %v1694, 2147483648
      %v1701 = vsel %vm1699, %v1693, %v1700
      %vm1702 = vcmp.eq.s32.totalorder %v1697, 2
      %v1703 = vxor.u32 %v1693, 2147483648
      %v1704 = vsel %vm1702, %v1703, %v1694
      %v1705 = vsel %vm1698, %v1701, %v1704
      %v1706 = vsel %vm1695, nan, %v1705
      %v1707 = vand.u32 2147483647, %v1025
      %vm1708 = vcmp.le.f32.partialorder %v1707, 0.7853982
      %vm1709 = vcmp.lt.s32.totalorder %v1025, 0
      %v1710 = vand.u32 %v1025, 2139095040
      %v1711 = vshrl.u32 %v1710, 23
      %v1712 = vsub.s32 %v1711, 127
      %v1713 = vand.u32 2147483647, %v1025
      %v1714 = vand.u32 %v1713, 8388607
      %v1715 = vor.u32 %v1714, 8388608
      %v1716 = vsub.s32 0, %v1715
      %v1717 = vadd.s32 %v1712, 1
      %vm1718 = vcmp.gt.s32.totalorder %v1717, 0
      %v1719 = vsel %vm1718, %v1717, 0
      %v1720 = vshrl.u32 %v1719, 5
      %v1721 = vand.u32 %v1719, 31
      %v1722 = vsub.s32 32, %v1721
      %v1723 = vshrl.u32 683565275, %v1722
      %v1724 = vshll.u32 683565275, %v1721
      %v1725 = vshrl.u32 2475754826, %v1722
      %v1726 = vor.u32 %v1724, %v1725
      %v1727 = vshll.u32 2475754826, %v1721
      %v1728 = vshrl.u32 2131351028, %v1722
      %v1729 = vor.u32 %v1727, %v1728
      %v1730 = vshll.u32 2131351028, %v1721
      %v1731 = vshrl.u32 2102212464, %v1722
      %v1732 = vor.u32 %v1730, %v1731
      %v1733 = vshll.u32 2102212464, %v1721
      %v1734 = vshrl.u32 920167782, %v1722
      %v1735 = vor.u32 %v1733, %v1734
      %v1736 = vshll.u32 920167782, %v1721
      %v1737 = vshrl.u32 1326507024, %v1722
      %v1738 = vor.u32 %v1736, %v1737
      %vm1739 = vcmp.lt.s32.totalorder %v1720, 1
      %vm1740 = vcmp.lt.s32.totalorder %v1720, 2
      %vm1741 = vcmp.lt.s32.totalorder %v1720, 3
      %vm1742 = vcmp.lt.s32.totalorder %v1720, 4
      %v1743 = vsel %vm1739, %v1723, %v1726
      %v1744 = vsel %vm1742, %v1732, 2102212464
      %v1745 = vsel %vm1741, %v1729, %v1744
      %v1746 = vsel %vm1740, %v1743, %v1745
      %v1747 = vsel %vm1739, %v1726, %v1729
      %v1748 = vsel %vm1742, %v1735, 920167782
      %v1749 = vsel %vm1741, %v1732, %v1748
      %v1750 = vsel %vm1740, %v1747, %v1749
      %v1751 = vsel %vm1739, %v1729, %v1732
      %v1752 = vsel %vm1742, %v1738, 1326507024
      %v1753 = vsel %vm1741, %v1735, %v1752
      %v1754 = vsel %vm1740, %v1751, %v1753
      %v1755 = vshll.u32 %v1715, 8
      %v1756 = vmul.u32.u64.compose %v1755, %v1754
      %v1757 = vextract.low.u32 %v1756
      %v1758 = vextract.high.u32 %v1756
      %v1759 = vmul.u32.u64.compose %v1755, %v1750
      %v1760 = vextract.low.u32 %v1759
      %v1761 = vextract.high.u32 %v1759
      %v1762 = vmul.u32 %v1755, %v1746
      %v1763 = vadd.s32 %v1758, %v1760
      %vm1764 = vc.u32 %v1758, %v1760
      %v1765 = vadd.s32 %v1761, 1
      %v1766 = vsel %vm1764, %v1765, %v1761
      %v1767 = vadd.s32 %v1762, %v1766
      %v1768 = vadd.s32 %v1767, 536870912
      %v1769 = vshrl.u32 %v1768, 30
      %v1770 = vshll.u32 %v1769, 30
      %v1771 = vsub.s32 %v1767, %v1770
      %vm1772 = vcmp.lt.s32.totalorder %v1771, 0
      %v1773 = vsub.s32 0, %v1771
      %v1774 = vsel %vm1772, %v1773, %v1771
      %v1775 = vclz %v1774
      %v1776 = vsub.s32 %v1775, 2
      %vm1777 = vcmp.gt.s32.totalorder 0, %v1776
      %v1778 = vsel %vm1777, 0, %v1776
      %v1779 = vsub.s32 32, %v1778
      %v1780 = vshll.u32 %v1771, %v1778
      %v1781 = vshrl.u32 %v1763, %v1779
      %v1782 = vor.u32 %v1780, %v1781
      %v1783 = vsub.s32 4294967266, %v1778
      %v1784 = vadd.s32 %v1783, 127
      %v1785 = vshll.u32 %v1784, 23
      %v1786 = vor.u32 4788187, %v1785
      %v1787 = vand.u32 2147483647, %v1786
      %v1789 = vcvt.s32.f32 %v1782
      %v1790 = vmul.f32 %v1789, %v1787
      %v1791 = vxor.u32 %v1790, 2147483648
      %v1792 = vsel %vm1709, %v1791, %v1790
      %v1793 = vsub.s32 4, %v1769
      %v1794 = vsel %vm1709, %v1793, %v1769
      %v1795 = vsel %vm1708, %v1025, %v1792
      %v1796 = vsel %vm1708, 0, %v1794
      %v1797 = vcosq.f32.pop %v1795
      %v1798 = vsinq.f32.pop %v1795
      %vm1799 = vweird.f32 %v1025
      %v1800 = vadd.s32 %v1796, 3
      %v1801 = vand.u32 %v1800, 3
      %vm1802 = vcmp.lt.s32.totalorder %v1801, 2
      %vm1803 = vcmp.eq.s32.totalorder %v1801, 0
      %v1804 = vxor.u32 %v1798, 2147483648
      %v1805 = vsel %vm1803, %v1797, %v1804
      %vm1806 = vcmp.eq.s32.totalorder %v1801, 2
      %v1807 = vxor.u32 %v1797, 2147483648
      %v1808 = vsel %vm1806, %v1807, %v1798
      %v1809 = vsel %vm1802, %v1805, %v1808
      %v1810 = vsel %vm1799, nan, %v1809
      %v1811 = vand.u32 2147483647, %v1026
      %vm1812 = vcmp.le.f32.partialorder %v1811, 0.7853982
      %vm1813 = vcmp.lt.s32.totalorder %v1026, 0
      %v1814 = vand.u32 %v1026, 2139095040
      %v1815 = vshrl.u32 %v1814, 23
      %v1816 = vsub.s32 %v1815, 127
      %v1817 = vand.u32 2147483647, %v1026
      %v1818 = vand.u32 %v1817, 8388607
      %v1819 = vor.u32 %v1818, 8388608
      %v1820 = vsub.s32 0, %v1819
      %v1821 = vadd.s32 %v1816, 1
      %vm1822 = vcmp.gt.s32.totalorder %v1821, 0
      %v1823 = vsel %vm1822, %v1821, 0
      %v1824 = vshrl.u32 %v1823, 5
      %v1825 = vand.u32 %v1823, 31
      %v1826 = vsub.s32 32, %v1825
      %v1827 = vshrl.u32 683565275, %v1826
      %v1828 = vshll.u32 683565275, %v1825
      %v1829 = vshrl.u32 2475754826, %v1826
      %v1830 = vor.u32 %v1828, %v1829
      %v1831 = vshll.u32 2475754826, %v1825
      %v1832 = vshrl.u32 2131351028, %v1826
      %v1833 = vor.u32 %v1831, %v1832
      %v1834 = vshll.u32 2131351028, %v1825
      %v1835 = vshrl.u32 2102212464, %v1826
      %v1836 = vor.u32 %v1834, %v1835
      %v1837 = vshll.u32 2102212464, %v1825
      %v1838 = vshrl.u32 920167782, %v1826
      %v1839 = vor.u32 %v1837, %v1838
      %v1840 = vshll.u32 920167782, %v1825
      %v1841 = vshrl.u32 1326507024, %v1826
      %v1842 = vor.u32 %v1840, %v1841
      %vm1843 = vcmp.lt.s32.totalorder %v1824, 1
      %vm1844 = vcmp.lt.s32.totalorder %v1824, 2
      %vm1845 = vcmp.lt.s32.totalorder %v1824, 3
      %vm1846 = vcmp.lt.s32.totalorder %v1824, 4
      %v1847 = vsel %vm1843, %v1827, %v1830
      %v1848 = vsel %vm1846, %v1836, 2102212464
      %v1849 = vsel %vm1845, %v1833, %v1848
      %v1850 = vsel %vm1844, %v1847, %v1849
      %v1851 = vsel %vm1843, %v1830, %v1833
      %v1852 = vsel %vm1846, %v1839, 920167782
      %v1853 = vsel %vm1845, %v1836, %v1852
      %v1854 = vsel %vm1844, %v1851, %v1853
      %v1855 = vsel %vm1843, %v1833, %v1836
      %v1856 = vsel %vm1846, %v1842, 1326507024
      %v1857 = vsel %vm1845, %v1839, %v1856
      %v1858 = vsel %vm1844, %v1855, %v1857
      %v1859 = vshll.u32 %v1819, 8
      %v1860 = vmul.u32.u64.compose %v1859, %v1858
      %v1861 = vextract.low.u32 %v1860
      %v1862 = vextract.high.u32 %v1860
      %v1863 = vmul.u32.u64.compose %v1859, %v1854
      %v1864 = vextract.low.u32 %v1863
      %v1865 = vextract.high.u32 %v1863
      %v1866 = vmul.u32 %v1859, %v1850
      %v1867 = vadd.s32 %v1862, %v1864
      %vm1868 = vc.u32 %v1862, %v1864
      %v1869 = vadd.s32 %v1865, 1
      %v1870 = vsel %vm1868, %v1869, %v1865
      %v1871 = vadd.s32 %v1866, %v1870
      %v1872 = vadd.s32 %v1871, 536870912
      %v1873 = vshrl.u32 %v1872, 30
      %v1874 = vshll.u32 %v1873, 30
      %v1875 = vsub.s32 %v1871, %v1874
      %vm1876 = vcmp.lt.s32.totalorder %v1875, 0
      %v1877 = vsub.s32 0, %v1875
      %v1878 = vsel %vm1876, %v1877, %v1875
      %v1879 = vclz %v1878
      %v1880 = vsub.s32 %v1879, 2
      %vm1881 = vcmp.gt.s32.totalorder 0, %v1880
      %v1882 = vsel %vm1881, 0, %v1880
      %v1883 = vsub.s32 32, %v1882
      %v1884 = vshll.u32 %v1875, %v1882
      %v1885 = vshrl.u32 %v1867, %v1883
      %v1886 = vor.u32 %v1884, %v1885
      %v1887 = vsub.s32 4294967266, %v1882
      %v1888 = vadd.s32 %v1887, 127
      %v1889 = vshll.u32 %v1888, 23
      %v1890 = vor.u32 4788187, %v1889
      %v1891 = vand.u32 2147483647, %v1890
      %v1893 = vcvt.s32.f32 %v1886
      %v1894 = vmul.f32 %v1893, %v1891
      %v1895 = vxor.u32 %v1894, 2147483648
      %v1896 = vsel %vm1813, %v1895, %v1894
      %v1897 = vsub.s32 4, %v1873
      %v1898 = vsel %vm1813, %v1897, %v1873
      %v1899 = vsel %vm1812, %v1026, %v1896
      %v1900 = vsel %vm1812, 0, %v1898
      %v1901 = vcosq.f32.pop %v1899
      %v1902 = vsinq.f32.pop %v1899
      %vm1903 = vweird.f32 %v1026
      %v1904 = vadd.s32 %v1900, 3
      %v1905 = vand.u32 %v1904, 3
      %vm1906 = vcmp.lt.s32.totalorder %v1905, 2
      %vm1907 = vcmp.eq.s32.totalorder %v1905, 0
      %v1908 = vxor.u32 %v1902, 2147483648
      %v1909 = vsel %vm1907, %v1901, %v1908
      %vm1910 = vcmp.eq.s32.totalorder %v1905, 2
      %v1911 = vxor.u32 %v1901, 2147483648
      %v1912 = vsel %vm1910, %v1911, %v1902
      %v1913 = vsel %vm1906, %v1909, %v1912
      %v1914 = vsel %vm1903, nan, %v1913
      %v1915 = vand.u32 2147483647, %v1027
      %vm1916 = vcmp.le.f32.partialorder %v1915, 0.7853982
      %vm1917 = vcmp.lt.s32.totalorder %v1027, 0
      %v1918 = vand.u32 %v1027, 2139095040
      %v1919 = vshrl.u32 %v1918, 23
      %v1920 = vsub.s32 %v1919, 127
      %v1921 = vand.u32 2147483647, %v1027
      %v1922 = vand.u32 %v1921, 8388607
      %v1923 = vor.u32 %v1922, 8388608
      %v1924 = vsub.s32 0, %v1923
      %v1925 = vadd.s32 %v1920, 1
      %vm1926 = vcmp.gt.s32.totalorder %v1925, 0
      %v1927 = vsel %vm1926, %v1925, 0
      %v1928 = vshrl.u32 %v1927, 5
      %v1929 = vand.u32 %v1927, 31
      %v1930 = vsub.s32 32, %v1929
      %v1931 = vshrl.u32 683565275, %v1930
      %v1932 = vshll.u32 683565275, %v1929
      %v1933 = vshrl.u32 2475754826, %v1930
      %v1934 = vor.u32 %v1932, %v1933
      %v1935 = vshll.u32 2475754826, %v1929
      %v1936 = vshrl.u32 2131351028, %v1930
      %v1937 = vor.u32 %v1935, %v1936
      %v1938 = vshll.u32 2131351028, %v1929
      %v1939 = vshrl.u32 2102212464, %v1930
      %v1940 = vor.u32 %v1938, %v1939
      %v1941 = vshll.u32 2102212464, %v1929
      %v1942 = vshrl.u32 920167782, %v1930
      %v1943 = vor.u32 %v1941, %v1942
      %v1944 = vshll.u32 920167782, %v1929
      %v1945 = vshrl.u32 1326507024, %v1930
      %v1946 = vor.u32 %v1944, %v1945
      %vm1947 = vcmp.lt.s32.totalorder %v1928, 1
      %vm1948 = vcmp.lt.s32.totalorder %v1928, 2
      %vm1949 = vcmp.lt.s32.totalorder %v1928, 3
      %vm1950 = vcmp.lt.s32.totalorder %v1928, 4
      %v1951 = vsel %vm1947, %v1931, %v1934
      %v1952 = vsel %vm1950, %v1940, 2102212464
      %v1953 = vsel %vm1949, %v1937, %v1952
      %v1954 = vsel %vm1948, %v1951, %v1953
      %v1955 = vsel %vm1947, %v1934, %v1937
      %v1956 = vsel %vm1950, %v1943, 920167782
      %v1957 = vsel %vm1949, %v1940, %v1956
      %v1958 = vsel %vm1948, %v1955, %v1957
      %v1959 = vsel %vm1947, %v1937, %v1940
      %v1960 = vsel %vm1950, %v1946, 1326507024
      %v1961 = vsel %vm1949, %v1943, %v1960
      %v1962 = vsel %vm1948, %v1959, %v1961
      %v1963 = vshll.u32 %v1923, 8
      %v1964 = vmul.u32.u64.compose %v1963, %v1962
      %v1965 = vextract.low.u32 %v1964
      %v1966 = vextract.high.u32 %v1964
      %v1967 = vmul.u32.u64.compose %v1963, %v1958
      %v1968 = vextract.low.u32 %v1967
      %v1969 = vextract.high.u32 %v1967
      %v1970 = vmul.u32 %v1963, %v1954
      %v1971 = vadd.s32 %v1966, %v1968
      %vm1972 = vc.u32 %v1966, %v1968
      %v1973 = vadd.s32 %v1969, 1
      %v1974 = vsel %vm1972, %v1973, %v1969
      %v1975 = vadd.s32 %v1970, %v1974
      %v1976 = vadd.s32 %v1975, 536870912
      %v1977 = vshrl.u32 %v1976, 30
      %v1978 = vshll.u32 %v1977, 30
      %v1979 = vsub.s32 %v1975, %v1978
      %vm1980 = vcmp.lt.s32.totalorder %v1979, 0
      %v1981 = vsub.s32 0, %v1979
      %v1982 = vsel %vm1980, %v1981, %v1979
      %v1983 = vclz %v1982
      %v1984 = vsub.s32 %v1983, 2
      %vm1985 = vcmp.gt.s32.totalorder 0, %v1984
      %v1986 = vsel %vm1985, 0, %v1984
      %v1987 = vsub.s32 32, %v1986
      %v1988 = vshll.u32 %v1979, %v1986
      %v1989 = vshrl.u32 %v1971, %v1987
      %v1990 = vor.u32 %v1988, %v1989
      %v1991 = vsub.s32 4294967266, %v1986
      %v1992 = vadd.s32 %v1991, 127
      %v1993 = vshll.u32 %v1992, 23
      %v1994 = vor.u32 4788187, %v1993
      %v1995 = vand.u32 2147483647, %v1994
      %v1997 = vcvt.s32.f32 %v1990
      %v1998 = vmul.f32 %v1997, %v1995
      %v1999 = vxor.u32 %v1998, 2147483648
      %v2000 = vsel %vm1917, %v1999, %v1998
      %v2001 = vsub.s32 4, %v1977
      %v2002 = vsel %vm1917, %v2001, %v1977
      %v2003 = vsel %vm1916, %v1027, %v2000
      %v2004 = vsel %vm1916, 0, %v2002
      %v2005 = vcosq.f32.pop %v2003
      %v2006 = vsinq.f32.pop %v2003
      %vm2007 = vweird.f32 %v1027
      %v2008 = vadd.s32 %v2004, 3
      %v2009 = vand.u32 %v2008, 3
      %vm2010 = vcmp.lt.s32.totalorder %v2009, 2
      %vm2011 = vcmp.eq.s32.totalorder %v2009, 0
      %v2012 = vxor.u32 %v2006, 2147483648
      %v2013 = vsel %vm2011, %v2005, %v2012
      %vm2014 = vcmp.eq.s32.totalorder %v2009, 2
      %v2015 = vxor.u32 %v2005, 2147483648
      %v2016 = vsel %vm2014, %v2015, %v2006
      %v2017 = vsel %vm2010, %v2013, %v2016
      %v2018 = vsel %vm2007, nan, %v2017
      %v2019 = vand.u32 2147483647, %v1028
      %vm2020 = vcmp.le.f32.partialorder %v2019, 0.7853982
      %vm2021 = vcmp.lt.s32.totalorder %v1028, 0
      %v2022 = vand.u32 %v1028, 2139095040
      %v2023 = vshrl.u32 %v2022, 23
      %v2024 = vsub.s32 %v2023, 127
      %v2025 = vand.u32 2147483647, %v1028
      %v2026 = vand.u32 %v2025, 8388607
      %v2027 = vor.u32 %v2026, 8388608
      %v2028 = vsub.s32 0, %v2027
      %v2029 = vadd.s32 %v2024, 1
      %vm2030 = vcmp.gt.s32.totalorder %v2029, 0
      %v2031 = vsel %vm2030, %v2029, 0
      %v2032 = vshrl.u32 %v2031, 5
      %v2033 = vand.u32 %v2031, 31
      %v2034 = vsub.s32 32, %v2033
      %v2035 = vshrl.u32 683565275, %v2034
      %v2036 = vshll.u32 683565275, %v2033
      %v2037 = vshrl.u32 2475754826, %v2034
      %v2038 = vor.u32 %v2036, %v2037
      %v2039 = vshll.u32 2475754826, %v2033
      %v2040 = vshrl.u32 2131351028, %v2034
      %v2041 = vor.u32 %v2039, %v2040
      %v2042 = vshll.u32 2131351028, %v2033
      %v2043 = vshrl.u32 2102212464, %v2034
      %v2044 = vor.u32 %v2042, %v2043
      %v2045 = vshll.u32 2102212464, %v2033
      %v2046 = vshrl.u32 920167782, %v2034
      %v2047 = vor.u32 %v2045, %v2046
      %v2048 = vshll.u32 920167782, %v2033
      %v2049 = vshrl.u32 1326507024, %v2034
      %v2050 = vor.u32 %v2048, %v2049
      %vm2051 = vcmp.lt.s32.totalorder %v2032, 1
      %vm2052 = vcmp.lt.s32.totalorder %v2032, 2
      %vm2053 = vcmp.lt.s32.totalorder %v2032, 3
      %vm2054 = vcmp.lt.s32.totalorder %v2032, 4
      %v2055 = vsel %vm2051, %v2035, %v2038
      %v2056 = vsel %vm2054, %v2044, 2102212464
      %v2057 = vsel %vm2053, %v2041, %v2056
      %v2058 = vsel %vm2052, %v2055, %v2057
      %v2059 = vsel %vm2051, %v2038, %v2041
      %v2060 = vsel %vm2054, %v2047, 920167782
      %v2061 = vsel %vm2053, %v2044, %v2060
      %v2062 = vsel %vm2052, %v2059, %v2061
      %v2063 = vsel %vm2051, %v2041, %v2044
      %v2064 = vsel %vm2054, %v2050, 1326507024
      %v2065 = vsel %vm2053, %v2047, %v2064
      %v2066 = vsel %vm2052, %v2063, %v2065
      %v2067 = vshll.u32 %v2027, 8
      %v2068 = vmul.u32.u64.compose %v2067, %v2066
      %v2069 = vextract.low.u32 %v2068
      %v2070 = vextract.high.u32 %v2068
      %v2071 = vmul.u32.u64.compose %v2067, %v2062
      %v2072 = vextract.low.u32 %v2071
      %v2073 = vextract.high.u32 %v2071
      %v2074 = vmul.u32 %v2067, %v2058
      %v2075 = vadd.s32 %v2070, %v2072
      %vm2076 = vc.u32 %v2070, %v2072
      %v2077 = vadd.s32 %v2073, 1
      %v2078 = vsel %vm2076, %v2077, %v2073
      %v2079 = vadd.s32 %v2074, %v2078
      %v2080 = vadd.s32 %v2079, 536870912
      %v2081 = vshrl.u32 %v2080, 30
      %v2082 = vshll.u32 %v2081, 30
      %v2083 = vsub.s32 %v2079, %v2082
      %vm2084 = vcmp.lt.s32.totalorder %v2083, 0
      %v2085 = vsub.s32 0, %v2083
      %v2086 = vsel %vm2084, %v2085, %v2083
      %v2087 = vclz %v2086
      %v2088 = vsub.s32 %v2087, 2
      %vm2089 = vcmp.gt.s32.totalorder 0, %v2088
      %v2090 = vsel %vm2089, 0, %v2088
      %v2091 = vsub.s32 32, %v2090
      %v2092 = vshll.u32 %v2083, %v2090
      %v2093 = vshrl.u32 %v2075, %v2091
      %v2094 = vor.u32 %v2092, %v2093
      %v2095 = vsub.s32 4294967266, %v2090
      %v2096 = vadd.s32 %v2095, 127
      %v2097 = vshll.u32 %v2096, 23
      %v2098 = vor.u32 4788187, %v2097
      %v2099 = vand.u32 2147483647, %v2098
      %v2101 = vcvt.s32.f32 %v2094
      %v2102 = vmul.f32 %v2101, %v2099
      %v2103 = vxor.u32 %v2102, 2147483648
      %v2104 = vsel %vm2021, %v2103, %v2102
      %v2105 = vsub.s32 4, %v2081
      %v2106 = vsel %vm2021, %v2105, %v2081
      %v2107 = vsel %vm2020, %v1028, %v2104
      %v2108 = vsel %vm2020, 0, %v2106
      %v2109 = vcosq.f32.pop %v2107
      %v2110 = vsinq.f32.pop %v2107
      %vm2111 = vweird.f32 %v1028
      %v2112 = vadd.s32 %v2108, 3
      %v2113 = vand.u32 %v2112, 3
      %vm2114 = vcmp.lt.s32.totalorder %v2113, 2
      %vm2115 = vcmp.eq.s32.totalorder %v2113, 0
      %v2116 = vxor.u32 %v2110, 2147483648
      %v2117 = vsel %vm2115, %v2109, %v2116
      %vm2118 = vcmp.eq.s32.totalorder %v2113, 2
      %v2119 = vxor.u32 %v2109, 2147483648
      %v2120 = vsel %vm2118, %v2119, %v2110
      %v2121 = vsel %vm2114, %v2117, %v2120
      %v2122 = vsel %vm2111, nan, %v2121
      %v2123 = vand.u32 2147483647, %v1029
      %vm2124 = vcmp.le.f32.partialorder %v2123, 0.7853982
      %vm2125 = vcmp.lt.s32.totalorder %v1029, 0
      %v2126 = vand.u32 %v1029, 2139095040
      %v2127 = vshrl.u32 %v2126, 23
      %v2128 = vsub.s32 %v2127, 127
      %v2129 = vand.u32 2147483647, %v1029
      %v2130 = vand.u32 %v2129, 8388607
      %v2131 = vor.u32 %v2130, 8388608
      %v2132 = vsub.s32 0, %v2131
      %v2133 = vadd.s32 %v2128, 1
      %vm2134 = vcmp.gt.s32.totalorder %v2133, 0
      %v2135 = vsel %vm2134, %v2133, 0
      %v2136 = vshrl.u32 %v2135, 5
      %v2137 = vand.u32 %v2135, 31
      %v2138 = vsub.s32 32, %v2137
      %v2139 = vshrl.u32 683565275, %v2138
      %v2140 = vshll.u32 683565275, %v2137
      %v2141 = vshrl.u32 2475754826, %v2138
      %v2142 = vor.u32 %v2140, %v2141
      %v2143 = vshll.u32 2475754826, %v2137
      %v2144 = vshrl.u32 2131351028, %v2138
      %v2145 = vor.u32 %v2143, %v2144
      %v2146 = vshll.u32 2131351028, %v2137
      %v2147 = vshrl.u32 2102212464, %v2138
      %v2148 = vor.u32 %v2146, %v2147
      %v2149 = vshll.u32 2102212464, %v2137
      %v2150 = vshrl.u32 920167782, %v2138
      %v2151 = vor.u32 %v2149, %v2150
      %v2152 = vshll.u32 920167782, %v2137
      %v2153 = vshrl.u32 1326507024, %v2138
      %v2154 = vor.u32 %v2152, %v2153
      %vm2155 = vcmp.lt.s32.totalorder %v2136, 1
      %vm2156 = vcmp.lt.s32.totalorder %v2136, 2
      %vm2157 = vcmp.lt.s32.totalorder %v2136, 3
      %vm2158 = vcmp.lt.s32.totalorder %v2136, 4
      %v2159 = vsel %vm2155, %v2139, %v2142
      %v2160 = vsel %vm2158, %v2148, 2102212464
      %v2161 = vsel %vm2157, %v2145, %v2160
      %v2162 = vsel %vm2156, %v2159, %v2161
      %v2163 = vsel %vm2155, %v2142, %v2145
      %v2164 = vsel %vm2158, %v2151, 920167782
      %v2165 = vsel %vm2157, %v2148, %v2164
      %v2166 = vsel %vm2156, %v2163, %v2165
      %v2167 = vsel %vm2155, %v2145, %v2148
      %v2168 = vsel %vm2158, %v2154, 1326507024
      %v2169 = vsel %vm2157, %v2151, %v2168
      %v2170 = vsel %vm2156, %v2167, %v2169
      %v2171 = vshll.u32 %v2131, 8
      %v2172 = vmul.u32.u64.compose %v2171, %v2170
      %v2173 = vextract.low.u32 %v2172
      %v2174 = vextract.high.u32 %v2172
      %v2175 = vmul.u32.u64.compose %v2171, %v2166
      %v2176 = vextract.low.u32 %v2175
      %v2177 = vextract.high.u32 %v2175
      %v2178 = vmul.u32 %v2171, %v2162
      %v2179 = vadd.s32 %v2174, %v2176
      %vm2180 = vc.u32 %v2174, %v2176
      %v2181 = vadd.s32 %v2177, 1
      %v2182 = vsel %vm2180, %v2181, %v2177
      %v2183 = vadd.s32 %v2178, %v2182
      %v2184 = vadd.s32 %v2183, 536870912
      %v2185 = vshrl.u32 %v2184, 30
      %v2186 = vshll.u32 %v2185, 30
      %v2187 = vsub.s32 %v2183, %v2186
      %vm2188 = vcmp.lt.s32.totalorder %v2187, 0
      %v2189 = vsub.s32 0, %v2187
      %v2190 = vsel %vm2188, %v2189, %v2187
      %v2191 = vclz %v2190
      %v2192 = vsub.s32 %v2191, 2
      %vm2193 = vcmp.gt.s32.totalorder 0, %v2192
      %v2194 = vsel %vm2193, 0, %v2192
      %v2195 = vsub.s32 32, %v2194
      %v2196 = vshll.u32 %v2187, %v2194
      %v2197 = vshrl.u32 %v2179, %v2195
      %v2198 = vor.u32 %v2196, %v2197
      %v2199 = vsub.s32 4294967266, %v2194
      %v2200 = vadd.s32 %v2199, 127
      %v2201 = vshll.u32 %v2200, 23
      %v2202 = vor.u32 4788187, %v2201
      %v2203 = vand.u32 2147483647, %v2202
      %v2205 = vcvt.s32.f32 %v2198
      %v2206 = vmul.f32 %v2205, %v2203
      %v2207 = vxor.u32 %v2206, 2147483648
      %v2208 = vsel %vm2125, %v2207, %v2206
      %v2209 = vsub.s32 4, %v2185
      %v2210 = vsel %vm2125, %v2209, %v2185
      %v2211 = vsel %vm2124, %v1029, %v2208
      %v2212 = vsel %vm2124, 0, %v2210
      %v2213 = vcosq.f32.pop %v2211
      %v2214 = vsinq.f32.pop %v2211
      %vm2215 = vweird.f32 %v1029
      %v2216 = vadd.s32 %v2212, 3
      %v2217 = vand.u32 %v2216, 3
      %vm2218 = vcmp.lt.s32.totalorder %v2217, 2
      %vm2219 = vcmp.eq.s32.totalorder %v2217, 0
      %v2220 = vxor.u32 %v2214, 2147483648
      %v2221 = vsel %vm2219, %v2213, %v2220
      %vm2222 = vcmp.eq.s32.totalorder %v2217, 2
      %v2223 = vxor.u32 %v2213, 2147483648
      %v2224 = vsel %vm2222, %v2223, %v2214
      %v2225 = vsel %vm2218, %v2221, %v2224
      %v2226 = vsel %vm2215, nan, %v2225
      %v2227 = vand.u32 2147483647, %v1030
      %vm2228 = vcmp.le.f32.partialorder %v2227, 0.7853982
      %vm2229 = vcmp.lt.s32.totalorder %v1030, 0
      %v2230 = vand.u32 %v1030, 2139095040
      %v2231 = vshrl.u32 %v2230, 23
      %v2232 = vsub.s32 %v2231, 127
      %v2233 = vand.u32 2147483647, %v1030
      %v2234 = vand.u32 %v2233, 8388607
      %v2235 = vor.u32 %v2234, 8388608
      %v2236 = vsub.s32 0, %v2235
      %v2237 = vadd.s32 %v2232, 1
      %vm2238 = vcmp.gt.s32.totalorder %v2237, 0
      %v2239 = vsel %vm2238, %v2237, 0
      %v2240 = vshrl.u32 %v2239, 5
      %v2241 = vand.u32 %v2239, 31
      %v2242 = vsub.s32 32, %v2241
      %v2243 = vshrl.u32 683565275, %v2242
      %v2244 = vshll.u32 683565275, %v2241
      %v2245 = vshrl.u32 2475754826, %v2242
      %v2246 = vor.u32 %v2244, %v2245
      %v2247 = vshll.u32 2475754826, %v2241
      %v2248 = vshrl.u32 2131351028, %v2242
      %v2249 = vor.u32 %v2247, %v2248
      %v2250 = vshll.u32 2131351028, %v2241
      %v2251 = vshrl.u32 2102212464, %v2242
      %v2252 = vor.u32 %v2250, %v2251
      %v2253 = vshll.u32 2102212464, %v2241
      %v2254 = vshrl.u32 920167782, %v2242
      %v2255 = vor.u32 %v2253, %v2254
      %v2256 = vshll.u32 920167782, %v2241
      %v2257 = vshrl.u32 1326507024, %v2242
      %v2258 = vor.u32 %v2256, %v2257
      %vm2259 = vcmp.lt.s32.totalorder %v2240, 1
      %vm2260 = vcmp.lt.s32.totalorder %v2240, 2
      %vm2261 = vcmp.lt.s32.totalorder %v2240, 3
      %vm2262 = vcmp.lt.s32.totalorder %v2240, 4
      %v2263 = vsel %vm2259, %v2243, %v2246
      %v2264 = vsel %vm2262, %v2252, 2102212464
      %v2265 = vsel %vm2261, %v2249, %v2264
      %v2266 = vsel %vm2260, %v2263, %v2265
      %v2267 = vsel %vm2259, %v2246, %v2249
      %v2268 = vsel %vm2262, %v2255, 920167782
      %v2269 = vsel %vm2261, %v2252, %v2268
      %v2270 = vsel %vm2260, %v2267, %v2269
      %v2271 = vsel %vm2259, %v2249, %v2252
      %v2272 = vsel %vm2262, %v2258, 1326507024
      %v2273 = vsel %vm2261, %v2255, %v2272
      %v2274 = vsel %vm2260, %v2271, %v2273
      %v2275 = vshll.u32 %v2235, 8
      %v2276 = vmul.u32.u64.compose %v2275, %v2274
      %v2277 = vextract.low.u32 %v2276
      %v2278 = vextract.high.u32 %v2276
      %v2279 = vmul.u32.u64.compose %v2275, %v2270
      %v2280 = vextract.low.u32 %v2279
      %v2281 = vextract.high.u32 %v2279
      %v2282 = vmul.u32 %v2275, %v2266
      %v2283 = vadd.s32 %v2278, %v2280
      %vm2284 = vc.u32 %v2278, %v2280
      %v2285 = vadd.s32 %v2281, 1
      %v2286 = vsel %vm2284, %v2285, %v2281
      %v2287 = vadd.s32 %v2282, %v2286
      %v2288 = vadd.s32 %v2287, 536870912
      %v2289 = vshrl.u32 %v2288, 30
      %v2290 = vshll.u32 %v2289, 30
      %v2291 = vsub.s32 %v2287, %v2290
      %vm2292 = vcmp.lt.s32.totalorder %v2291, 0
      %v2293 = vsub.s32 0, %v2291
      %v2294 = vsel %vm2292, %v2293, %v2291
      %v2295 = vclz %v2294
      %v2296 = vsub.s32 %v2295, 2
      %vm2297 = vcmp.gt.s32.totalorder 0, %v2296
      %v2298 = vsel %vm2297, 0, %v2296
      %v2299 = vsub.s32 32, %v2298
      %v2300 = vshll.u32 %v2291, %v2298
      %v2301 = vshrl.u32 %v2283, %v2299
      %v2302 = vor.u32 %v2300, %v2301
      %v2303 = vsub.s32 4294967266, %v2298
      %v2304 = vadd.s32 %v2303, 127
      %v2305 = vshll.u32 %v2304, 23
      %v2306 = vor.u32 4788187, %v2305
      %v2307 = vand.u32 2147483647, %v2306
      %v2309 = vcvt.s32.f32 %v2302
      %v2310 = vmul.f32 %v2309, %v2307
      %v2311 = vxor.u32 %v2310, 2147483648
      %v2312 = vsel %vm2229, %v2311, %v2310
      %v2313 = vsub.s32 4, %v2289
      %v2314 = vsel %vm2229, %v2313, %v2289
      %v2315 = vsel %vm2228, %v1030, %v2312
      %v2316 = vsel %vm2228, 0, %v2314
      %v2317 = vcosq.f32.pop %v2315
      %v2318 = vsinq.f32.pop %v2315
      %vm2319 = vweird.f32 %v1030
      %v2320 = vadd.s32 %v2316, 3
      %v2321 = vand.u32 %v2320, 3
      %vm2322 = vcmp.lt.s32.totalorder %v2321, 2
      %vm2323 = vcmp.eq.s32.totalorder %v2321, 0
      %v2324 = vxor.u32 %v2318, 2147483648
      %v2325 = vsel %vm2323, %v2317, %v2324
      %vm2326 = vcmp.eq.s32.totalorder %v2321, 2
      %v2327 = vxor.u32 %v2317, 2147483648
      %v2328 = vsel %vm2326, %v2327, %v2318
      %v2329 = vsel %vm2322, %v2325, %v2328
      %v2330 = vsel %vm2319, nan, %v2329
      %v2331 = vand.u32 2147483647, %v1031
      %vm2332 = vcmp.le.f32.partialorder %v2331, 0.7853982
      %vm2333 = vcmp.lt.s32.totalorder %v1031, 0
      %v2334 = vand.u32 %v1031, 2139095040
      %v2335 = vshrl.u32 %v2334, 23
      %v2336 = vsub.s32 %v2335, 127
      %v2337 = vand.u32 2147483647, %v1031
      %v2338 = vand.u32 %v2337, 8388607
      %v2339 = vor.u32 %v2338, 8388608
      %v2340 = vsub.s32 0, %v2339
      %v2341 = vadd.s32 %v2336, 1
      %vm2342 = vcmp.gt.s32.totalorder %v2341, 0
      %v2343 = vsel %vm2342, %v2341, 0
      %v2344 = vshrl.u32 %v2343, 5
      %v2345 = vand.u32 %v2343, 31
      %v2346 = vsub.s32 32, %v2345
      %v2347 = vshrl.u32 683565275, %v2346
      %v2348 = vshll.u32 683565275, %v2345
      %v2349 = vshrl.u32 2475754826, %v2346
      %v2350 = vor.u32 %v2348, %v2349
      %v2351 = vshll.u32 2475754826, %v2345
      %v2352 = vshrl.u32 2131351028, %v2346
      %v2353 = vor.u32 %v2351, %v2352
      %v2354 = vshll.u32 2131351028, %v2345
      %v2355 = vshrl.u32 2102212464, %v2346
      %v2356 = vor.u32 %v2354, %v2355
      %v2357 = vshll.u32 2102212464, %v2345
      %v2358 = vshrl.u32 920167782, %v2346
      %v2359 = vor.u32 %v2357, %v2358
      %v2360 = vshll.u32 920167782, %v2345
      %v2361 = vshrl.u32 1326507024, %v2346
      %v2362 = vor.u32 %v2360, %v2361
      %vm2363 = vcmp.lt.s32.totalorder %v2344, 1
      %vm2364 = vcmp.lt.s32.totalorder %v2344, 2
      %vm2365 = vcmp.lt.s32.totalorder %v2344, 3
      %vm2366 = vcmp.lt.s32.totalorder %v2344, 4
      %v2367 = vsel %vm2363, %v2347, %v2350
      %v2368 = vsel %vm2366, %v2356, 2102212464
      %v2369 = vsel %vm2365, %v2353, %v2368
      %v2370 = vsel %vm2364, %v2367, %v2369
      %v2371 = vsel %vm2363, %v2350, %v2353
      %v2372 = vsel %vm2366, %v2359, 920167782
      %v2373 = vsel %vm2365, %v2356, %v2372
      %v2374 = vsel %vm2364, %v2371, %v2373
      %v2375 = vsel %vm2363, %v2353, %v2356
      %v2376 = vsel %vm2366, %v2362, 1326507024
      %v2377 = vsel %vm2365, %v2359, %v2376
      %v2378 = vsel %vm2364, %v2375, %v2377
      %v2379 = vshll.u32 %v2339, 8
      %v2380 = vmul.u32.u64.compose %v2379, %v2378
      %v2381 = vextract.low.u32 %v2380
      %v2382 = vextract.high.u32 %v2380
      %v2383 = vmul.u32.u64.compose %v2379, %v2374
      %v2384 = vextract.low.u32 %v2383
      %v2385 = vextract.high.u32 %v2383
      %v2386 = vmul.u32 %v2379, %v2370
      %v2387 = vadd.s32 %v2382, %v2384
      %vm2388 = vc.u32 %v2382, %v2384
      %v2389 = vadd.s32 %v2385, 1
      %v2390 = vsel %vm2388, %v2389, %v2385
      %v2391 = vadd.s32 %v2386, %v2390
      %v2392 = vadd.s32 %v2391, 536870912
      %v2393 = vshrl.u32 %v2392, 30
      %v2394 = vshll.u32 %v2393, 30
      %v2395 = vsub.s32 %v2391, %v2394
      %vm2396 = vcmp.lt.s32.totalorder %v2395, 0
      %v2397 = vsub.s32 0, %v2395
      %v2398 = vsel %vm2396, %v2397, %v2395
      %v2399 = vclz %v2398
      %v2400 = vsub.s32 %v2399, 2
      %vm2401 = vcmp.gt.s32.totalorder 0, %v2400
      %v2402 = vsel %vm2401, 0, %v2400
      %v2403 = vsub.s32 32, %v2402
      %v2404 = vshll.u32 %v2395, %v2402
      %v2405 = vshrl.u32 %v2387, %v2403
      %v2406 = vor.u32 %v2404, %v2405
      %v2407 = vsub.s32 4294967266, %v2402
      %v2408 = vadd.s32 %v2407, 127
      %v2409 = vshll.u32 %v2408, 23
      %v2410 = vor.u32 4788187, %v2409
      %v2411 = vand.u32 2147483647, %v2410
      %v2413 = vcvt.s32.f32 %v2406
      %v2414 = vmul.f32 %v2413, %v2411
      %v2415 = vxor.u32 %v2414, 2147483648
      %v2416 = vsel %vm2333, %v2415, %v2414
      %v2417 = vsub.s32 4, %v2393
      %v2418 = vsel %vm2333, %v2417, %v2393
      %v2419 = vsel %vm2332, %v1031, %v2416
      %v2420 = vsel %vm2332, 0, %v2418
      %v2421 = vcosq.f32.pop %v2419
      %v2422 = vsinq.f32.pop %v2419
      %vm2423 = vweird.f32 %v1031
      %v2424 = vadd.s32 %v2420, 3
      %v2425 = vand.u32 %v2424, 3
      %vm2426 = vcmp.lt.s32.totalorder %v2425, 2
      %vm2427 = vcmp.eq.s32.totalorder %v2425, 0
      %v2428 = vxor.u32 %v2422, 2147483648
      %v2429 = vsel %vm2427, %v2421, %v2428
      %vm2430 = vcmp.eq.s32.totalorder %v2425, 2
      %v2431 = vxor.u32 %v2421, 2147483648
      %v2432 = vsel %vm2430, %v2431, %v2422
      %v2433 = vsel %vm2426, %v2429, %v2432
      %v2434 = vsel %vm2423, nan, %v2433
      %v2435 = vand.u32 2147483647, %v1032
      %vm2436 = vcmp.le.f32.partialorder %v2435, 0.7853982
      %vm2437 = vcmp.lt.s32.totalorder %v1032, 0
      %v2438 = vand.u32 %v1032, 2139095040
      %v2439 = vshrl.u32 %v2438, 23
      %v2440 = vsub.s32 %v2439, 127
      %v2441 = vand.u32 2147483647, %v1032
      %v2442 = vand.u32 %v2441, 8388607
      %v2443 = vor.u32 %v2442, 8388608
      %v2444 = vsub.s32 0, %v2443
      %v2445 = vadd.s32 %v2440, 1
      %vm2446 = vcmp.gt.s32.totalorder %v2445, 0
      %v2447 = vsel %vm2446, %v2445, 0
      %v2448 = vshrl.u32 %v2447, 5
      %v2449 = vand.u32 %v2447, 31
      %v2450 = vsub.s32 32, %v2449
      %v2451 = vshrl.u32 683565275, %v2450
      %v2452 = vshll.u32 683565275, %v2449
      %v2453 = vshrl.u32 2475754826, %v2450
      %v2454 = vor.u32 %v2452, %v2453
      %v2455 = vshll.u32 2475754826, %v2449
      %v2456 = vshrl.u32 2131351028, %v2450
      %v2457 = vor.u32 %v2455, %v2456
      %v2458 = vshll.u32 2131351028, %v2449
      %v2459 = vshrl.u32 2102212464, %v2450
      %v2460 = vor.u32 %v2458, %v2459
      %v2461 = vshll.u32 2102212464, %v2449
      %v2462 = vshrl.u32 920167782, %v2450
      %v2463 = vor.u32 %v2461, %v2462
      %v2464 = vshll.u32 920167782, %v2449
      %v2465 = vshrl.u32 1326507024, %v2450
      %v2466 = vor.u32 %v2464, %v2465
      %vm2467 = vcmp.lt.s32.totalorder %v2448, 1
      %vm2468 = vcmp.lt.s32.totalorder %v2448, 2
      %vm2469 = vcmp.lt.s32.totalorder %v2448, 3
      %vm2470 = vcmp.lt.s32.totalorder %v2448, 4
      %v2471 = vsel %vm2467, %v2451, %v2454
      %v2472 = vsel %vm2470, %v2460, 2102212464
      %v2473 = vsel %vm2469, %v2457, %v2472
      %v2474 = vsel %vm2468, %v2471, %v2473
      %v2475 = vsel %vm2467, %v2454, %v2457
      %v2476 = vsel %vm2470, %v2463, 920167782
      %v2477 = vsel %vm2469, %v2460, %v2476
      %v2478 = vsel %vm2468, %v2475, %v2477
      %v2479 = vsel %vm2467, %v2457, %v2460
      %v2480 = vsel %vm2470, %v2466, 1326507024
      %v2481 = vsel %vm2469, %v2463, %v2480
      %v2482 = vsel %vm2468, %v2479, %v2481
      %v2483 = vshll.u32 %v2443, 8
      %v2484 = vmul.u32.u64.compose %v2483, %v2482
      %v2485 = vextract.low.u32 %v2484
      %v2486 = vextract.high.u32 %v2484
      %v2487 = vmul.u32.u64.compose %v2483, %v2478
      %v2488 = vextract.low.u32 %v2487
      %v2489 = vextract.high.u32 %v2487
      %v2490 = vmul.u32 %v2483, %v2474
      %v2491 = vadd.s32 %v2486, %v2488
      %vm2492 = vc.u32 %v2486, %v2488
      %v2493 = vadd.s32 %v2489, 1
      %v2494 = vsel %vm2492, %v2493, %v2489
      %v2495 = vadd.s32 %v2490, %v2494
      %v2496 = vadd.s32 %v2495, 536870912
      %v2497 = vshrl.u32 %v2496, 30
      %v2498 = vshll.u32 %v2497, 30
      %v2499 = vsub.s32 %v2495, %v2498
      %vm2500 = vcmp.lt.s32.totalorder %v2499, 0
      %v2501 = vsub.s32 0, %v2499
      %v2502 = vsel %vm2500, %v2501, %v2499
      %v2503 = vclz %v2502
      %v2504 = vsub.s32 %v2503, 2
      %vm2505 = vcmp.gt.s32.totalorder 0, %v2504
      %v2506 = vsel %vm2505, 0, %v2504
      %v2507 = vsub.s32 32, %v2506
      %v2508 = vshll.u32 %v2499, %v2506
      %v2509 = vshrl.u32 %v2491, %v2507
      %v2510 = vor.u32 %v2508, %v2509
      %v2511 = vsub.s32 4294967266, %v2506
      %v2512 = vadd.s32 %v2511, 127
      %v2513 = vshll.u32 %v2512, 23
      %v2514 = vor.u32 4788187, %v2513
      %v2515 = vand.u32 2147483647, %v2514
      %v2517 = vcvt.s32.f32 %v2510
      %v2518 = vmul.f32 %v2517, %v2515
      %v2519 = vxor.u32 %v2518, 2147483648
      %v2520 = vsel %vm2437, %v2519, %v2518
      %v2521 = vsub.s32 4, %v2497
      %v2522 = vsel %vm2437, %v2521, %v2497
      %v2523 = vsel %vm2436, %v1032, %v2520
      %v2524 = vsel %vm2436, 0, %v2522
      %v2525 = vcosq.f32.pop %v2523
      %v2526 = vsinq.f32.pop %v2523
      %vm2527 = vweird.f32 %v1032
      %v2528 = vadd.s32 %v2524, 3
      %v2529 = vand.u32 %v2528, 3
      %vm2530 = vcmp.lt.s32.totalorder %v2529, 2
      %vm2531 = vcmp.eq.s32.totalorder %v2529, 0
      %v2532 = vxor.u32 %v2526, 2147483648
      %v2533 = vsel %vm2531, %v2525, %v2532
      %vm2534 = vcmp.eq.s32.totalorder %v2529, 2
      %v2535 = vxor.u32 %v2525, 2147483648
      %v2536 = vsel %vm2534, %v2535, %v2526
      %v2537 = vsel %vm2530, %v2533, %v2536
      %v2538 = vsel %vm2527, nan, %v2537
      %v2539 = vand.u32 2147483647, %v1033
      %vm2540 = vcmp.le.f32.partialorder %v2539, 0.7853982
      %vm2541 = vcmp.lt.s32.totalorder %v1033, 0
      %v2542 = vand.u32 %v1033, 2139095040
      %v2543 = vshrl.u32 %v2542, 23
      %v2544 = vsub.s32 %v2543, 127
      %v2545 = vand.u32 2147483647, %v1033
      %v2546 = vand.u32 %v2545, 8388607
      %v2547 = vor.u32 %v2546, 8388608
      %v2548 = vsub.s32 0, %v2547
      %v2549 = vadd.s32 %v2544, 1
      %vm2550 = vcmp.gt.s32.totalorder %v2549, 0
      %v2551 = vsel %vm2550, %v2549, 0
      %v2552 = vshrl.u32 %v2551, 5
      %v2553 = vand.u32 %v2551, 31
      %v2554 = vsub.s32 32, %v2553
      %v2555 = vshrl.u32 683565275, %v2554
      %v2556 = vshll.u32 683565275, %v2553
      %v2557 = vshrl.u32 2475754826, %v2554
      %v2558 = vor.u32 %v2556, %v2557
      %v2559 = vshll.u32 2475754826, %v2553
      %v2560 = vshrl.u32 2131351028, %v2554
      %v2561 = vor.u32 %v2559, %v2560
      %v2562 = vshll.u32 2131351028, %v2553
      %v2563 = vshrl.u32 2102212464, %v2554
      %v2564 = vor.u32 %v2562, %v2563
      %v2565 = vshll.u32 2102212464, %v2553
      %v2566 = vshrl.u32 920167782, %v2554
      %v2567 = vor.u32 %v2565, %v2566
      %v2568 = vshll.u32 920167782, %v2553
      %v2569 = vshrl.u32 1326507024, %v2554
      %v2570 = vor.u32 %v2568, %v2569
      %vm2571 = vcmp.lt.s32.totalorder %v2552, 1
      %vm2572 = vcmp.lt.s32.totalorder %v2552, 2
      %vm2573 = vcmp.lt.s32.totalorder %v2552, 3
      %vm2574 = vcmp.lt.s32.totalorder %v2552, 4
      %v2575 = vsel %vm2571, %v2555, %v2558
      %v2576 = vsel %vm2574, %v2564, 2102212464
      %v2577 = vsel %vm2573, %v2561, %v2576
      %v2578 = vsel %vm2572, %v2575, %v2577
      %v2579 = vsel %vm2571, %v2558, %v2561
      %v2580 = vsel %vm2574, %v2567, 920167782
      %v2581 = vsel %vm2573, %v2564, %v2580
      %v2582 = vsel %vm2572, %v2579, %v2581
      %v2583 = vsel %vm2571, %v2561, %v2564
      %v2584 = vsel %vm2574, %v2570, 1326507024
      %v2585 = vsel %vm2573, %v2567, %v2584
      %v2586 = vsel %vm2572, %v2583, %v2585
      %v2587 = vshll.u32 %v2547, 8
      %v2588 = vmul.u32.u64.compose %v2587, %v2586
      %v2589 = vextract.low.u32 %v2588
      %v2590 = vextract.high.u32 %v2588
      %v2591 = vmul.u32.u64.compose %v2587, %v2582
      %v2592 = vextract.low.u32 %v2591
      %v2593 = vextract.high.u32 %v2591
      %v2594 = vmul.u32 %v2587, %v2578
      %v2595 = vadd.s32 %v2590, %v2592
      %vm2596 = vc.u32 %v2590, %v2592
      %v2597 = vadd.s32 %v2593, 1
      %v2598 = vsel %vm2596, %v2597, %v2593
      %v2599 = vadd.s32 %v2594, %v2598
      %v2600 = vadd.s32 %v2599, 536870912
      %v2601 = vshrl.u32 %v2600, 30
      %v2602 = vshll.u32 %v2601, 30
      %v2603 = vsub.s32 %v2599, %v2602
      %vm2604 = vcmp.lt.s32.totalorder %v2603, 0
      %v2605 = vsub.s32 0, %v2603
      %v2606 = vsel %vm2604, %v2605, %v2603
      %v2607 = vclz %v2606
      %v2608 = vsub.s32 %v2607, 2
      %vm2609 = vcmp.gt.s32.totalorder 0, %v2608
      %v2610 = vsel %vm2609, 0, %v2608
      %v2611 = vsub.s32 32, %v2610
      %v2612 = vshll.u32 %v2603, %v2610
      %v2613 = vshrl.u32 %v2595, %v2611
      %v2614 = vor.u32 %v2612, %v2613
      %v2615 = vsub.s32 4294967266, %v2610
      %v2616 = vadd.s32 %v2615, 127
      %v2617 = vshll.u32 %v2616, 23
      %v2618 = vor.u32 4788187, %v2617
      %v2619 = vand.u32 2147483647, %v2618
      %v2621 = vcvt.s32.f32 %v2614
      %v2622 = vmul.f32 %v2621, %v2619
      %v2623 = vxor.u32 %v2622, 2147483648
      %v2624 = vsel %vm2541, %v2623, %v2622
      %v2625 = vsub.s32 4, %v2601
      %v2626 = vsel %vm2541, %v2625, %v2601
      %v2627 = vsel %vm2540, %v1033, %v2624
      %v2628 = vsel %vm2540, 0, %v2626
      %v2629 = vcosq.f32.pop %v2627
      %v2630 = vsinq.f32.pop %v2627
      %vm2631 = vweird.f32 %v1033
      %v2632 = vadd.s32 %v2628, 3
      %v2633 = vand.u32 %v2632, 3
      %vm2634 = vcmp.lt.s32.totalorder %v2633, 2
      %vm2635 = vcmp.eq.s32.totalorder %v2633, 0
      %v2636 = vxor.u32 %v2630, 2147483648
      %v2637 = vsel %vm2635, %v2629, %v2636
      %vm2638 = vcmp.eq.s32.totalorder %v2633, 2
      %v2639 = vxor.u32 %v2629, 2147483648
      %v2640 = vsel %vm2638, %v2639, %v2630
      %v2641 = vsel %vm2634, %v2637, %v2640
      %v2642 = vsel %vm2631, nan, %v2641
      %v2643 = vand.u32 2147483647, %v1034
      %vm2644 = vcmp.le.f32.partialorder %v2643, 0.7853982
      %vm2645 = vcmp.lt.s32.totalorder %v1034, 0
      %v2646 = vand.u32 %v1034, 2139095040
      %v2647 = vshrl.u32 %v2646, 23
      %v2648 = vsub.s32 %v2647, 127
      %v2649 = vand.u32 2147483647, %v1034
      %v2650 = vand.u32 %v2649, 8388607
      %v2651 = vor.u32 %v2650, 8388608
      %v2652 = vsub.s32 0, %v2651
      %v2653 = vadd.s32 %v2648, 1
      %vm2654 = vcmp.gt.s32.totalorder %v2653, 0
      %v2655 = vsel %vm2654, %v2653, 0
      %v2656 = vshrl.u32 %v2655, 5
      %v2657 = vand.u32 %v2655, 31
      %v2658 = vsub.s32 32, %v2657
      %v2659 = vshrl.u32 683565275, %v2658
      %v2660 = vshll.u32 683565275, %v2657
      %v2661 = vshrl.u32 2475754826, %v2658
      %v2662 = vor.u32 %v2660, %v2661
      %v2663 = vshll.u32 2475754826, %v2657
      %v2664 = vshrl.u32 2131351028, %v2658
      %v2665 = vor.u32 %v2663, %v2664
      %v2666 = vshll.u32 2131351028, %v2657
      %v2667 = vshrl.u32 2102212464, %v2658
      %v2668 = vor.u32 %v2666, %v2667
      %v2669 = vshll.u32 2102212464, %v2657
      %v2670 = vshrl.u32 920167782, %v2658
      %v2671 = vor.u32 %v2669, %v2670
      %v2672 = vshll.u32 920167782, %v2657
      %v2673 = vshrl.u32 1326507024, %v2658
      %v2674 = vor.u32 %v2672, %v2673
      %vm2675 = vcmp.lt.s32.totalorder %v2656, 1
      %vm2676 = vcmp.lt.s32.totalorder %v2656, 2
      %vm2677 = vcmp.lt.s32.totalorder %v2656, 3
      %vm2678 = vcmp.lt.s32.totalorder %v2656, 4
      %v2679 = vsel %vm2675, %v2659, %v2662
      %v2680 = vsel %vm2678, %v2668, 2102212464
      %v2681 = vsel %vm2677, %v2665, %v2680
      %v2682 = vsel %vm2676, %v2679, %v2681
      %v2683 = vsel %vm2675, %v2662, %v2665
      %v2684 = vsel %vm2678, %v2671, 920167782
      %v2685 = vsel %vm2677, %v2668, %v2684
      %v2686 = vsel %vm2676, %v2683, %v2685
      %v2687 = vsel %vm2675, %v2665, %v2668
      %v2688 = vsel %vm2678, %v2674, 1326507024
      %v2689 = vsel %vm2677, %v2671, %v2688
      %v2690 = vsel %vm2676, %v2687, %v2689
      %v2691 = vshll.u32 %v2651, 8
      %v2692 = vmul.u32.u64.compose %v2691, %v2690
      %v2693 = vextract.low.u32 %v2692
      %v2694 = vextract.high.u32 %v2692
      %v2695 = vmul.u32.u64.compose %v2691, %v2686
      %v2696 = vextract.low.u32 %v2695
      %v2697 = vextract.high.u32 %v2695
      %v2698 = vmul.u32 %v2691, %v2682
      %v2699 = vadd.s32 %v2694, %v2696
      %vm2700 = vc.u32 %v2694, %v2696
      %v2701 = vadd.s32 %v2697, 1
      %v2702 = vsel %vm2700, %v2701, %v2697
      %v2703 = vadd.s32 %v2698, %v2702
      %v2704 = vadd.s32 %v2703, 536870912
      %v2705 = vshrl.u32 %v2704, 30
      %v2706 = vshll.u32 %v2705, 30
      %v2707 = vsub.s32 %v2703, %v2706
      %vm2708 = vcmp.lt.s32.totalorder %v2707, 0
      %v2709 = vsub.s32 0, %v2707
      %v2710 = vsel %vm2708, %v2709, %v2707
      %v2711 = vclz %v2710
      %v2712 = vsub.s32 %v2711, 2
      %vm2713 = vcmp.gt.s32.totalorder 0, %v2712
      %v2714 = vsel %vm2713, 0, %v2712
      %v2715 = vsub.s32 32, %v2714
      %v2716 = vshll.u32 %v2707, %v2714
      %v2717 = vshrl.u32 %v2699, %v2715
      %v2718 = vor.u32 %v2716, %v2717
      %v2719 = vsub.s32 4294967266, %v2714
      %v2720 = vadd.s32 %v2719, 127
      %v2721 = vshll.u32 %v2720, 23
      %v2722 = vor.u32 4788187, %v2721
      %v2723 = vand.u32 2147483647, %v2722
      %v2725 = vcvt.s32.f32 %v2718
      %v2726 = vmul.f32 %v2725, %v2723
      %v2727 = vxor.u32 %v2726, 2147483648
      %v2728 = vsel %vm2645, %v2727, %v2726
      %v2729 = vsub.s32 4, %v2705
      %v2730 = vsel %vm2645, %v2729, %v2705
      %v2731 = vsel %vm2644, %v1034, %v2728
      %v2732 = vsel %vm2644, 0, %v2730
      %v2733 = vcosq.f32.pop %v2731
      %v2734 = vsinq.f32.pop %v2731
      %vm2735 = vweird.f32 %v1034
      %v2736 = vadd.s32 %v2732, 3
      %v2737 = vand.u32 %v2736, 3
      %vm2738 = vcmp.lt.s32.totalorder %v2737, 2
      %vm2739 = vcmp.eq.s32.totalorder %v2737, 0
      %v2740 = vxor.u32 %v2734, 2147483648
      %v2741 = vsel %vm2739, %v2733, %v2740
      %vm2742 = vcmp.eq.s32.totalorder %v2737, 2
      %v2743 = vxor.u32 %v2733, 2147483648
      %v2744 = vsel %vm2742, %v2743, %v2734
      %v2745 = vsel %vm2738, %v2741, %v2744
      %v2746 = vsel %vm2735, nan, %v2745
      %v2747 = vand.u32 2147483647, %v1035
      %vm2748 = vcmp.le.f32.partialorder %v2747, 0.7853982
      %vm2749 = vcmp.lt.s32.totalorder %v1035, 0
      %v2750 = vand.u32 %v1035, 2139095040
      %v2751 = vshrl.u32 %v2750, 23
      %v2752 = vsub.s32 %v2751, 127
      %v2753 = vand.u32 2147483647, %v1035
      %v2754 = vand.u32 %v2753, 8388607
      %v2755 = vor.u32 %v2754, 8388608
      %v2756 = vsub.s32 0, %v2755
      %v2757 = vadd.s32 %v2752, 1
      %vm2758 = vcmp.gt.s32.totalorder %v2757, 0
      %v2759 = vsel %vm2758, %v2757, 0
      %v2760 = vshrl.u32 %v2759, 5
      %v2761 = vand.u32 %v2759, 31
      %v2762 = vsub.s32 32, %v2761
      %v2763 = vshrl.u32 683565275, %v2762
      %v2764 = vshll.u32 683565275, %v2761
      %v2765 = vshrl.u32 2475754826, %v2762
      %v2766 = vor.u32 %v2764, %v2765
      %v2767 = vshll.u32 2475754826, %v2761
      %v2768 = vshrl.u32 2131351028, %v2762
      %v2769 = vor.u32 %v2767, %v2768
      %v2770 = vshll.u32 2131351028, %v2761
      %v2771 = vshrl.u32 2102212464, %v2762
      %v2772 = vor.u32 %v2770, %v2771
      %v2773 = vshll.u32 2102212464, %v2761
      %v2774 = vshrl.u32 920167782, %v2762
      %v2775 = vor.u32 %v2773, %v2774
      %v2776 = vshll.u32 920167782, %v2761
      %v2777 = vshrl.u32 1326507024, %v2762
      %v2778 = vor.u32 %v2776, %v2777
      %vm2779 = vcmp.lt.s32.totalorder %v2760, 1
      %vm2780 = vcmp.lt.s32.totalorder %v2760, 2
      %vm2781 = vcmp.lt.s32.totalorder %v2760, 3
      %vm2782 = vcmp.lt.s32.totalorder %v2760, 4
      %v2783 = vsel %vm2779, %v2763, %v2766
      %v2784 = vsel %vm2782, %v2772, 2102212464
      %v2785 = vsel %vm2781, %v2769, %v2784
      %v2786 = vsel %vm2780, %v2783, %v2785
      %v2787 = vsel %vm2779, %v2766, %v2769
      %v2788 = vsel %vm2782, %v2775, 920167782
      %v2789 = vsel %vm2781, %v2772, %v2788
      %v2790 = vsel %vm2780, %v2787, %v2789
      %v2791 = vsel %vm2779, %v2769, %v2772
      %v2792 = vsel %vm2782, %v2778, 1326507024
      %v2793 = vsel %vm2781, %v2775, %v2792
      %v2794 = vsel %vm2780, %v2791, %v2793
      %v2795 = vshll.u32 %v2755, 8
      %v2796 = vmul.u32.u64.compose %v2795, %v2794
      %v2797 = vextract.low.u32 %v2796
      %v2798 = vextract.high.u32 %v2796
      %v2799 = vmul.u32.u64.compose %v2795, %v2790
      %v2800 = vextract.low.u32 %v2799
      %v2801 = vextract.high.u32 %v2799
      %v2802 = vmul.u32 %v2795, %v2786
      %v2803 = vadd.s32 %v2798, %v2800
      %vm2804 = vc.u32 %v2798, %v2800
      %v2805 = vadd.s32 %v2801, 1
      %v2806 = vsel %vm2804, %v2805, %v2801
      %v2807 = vadd.s32 %v2802, %v2806
      %v2808 = vadd.s32 %v2807, 536870912
      %v2809 = vshrl.u32 %v2808, 30
      %v2810 = vshll.u32 %v2809, 30
      %v2811 = vsub.s32 %v2807, %v2810
      %vm2812 = vcmp.lt.s32.totalorder %v2811, 0
      %v2813 = vsub.s32 0, %v2811
      %v2814 = vsel %vm2812, %v2813, %v2811
      %v2815 = vclz %v2814
      %v2816 = vsub.s32 %v2815, 2
      %vm2817 = vcmp.gt.s32.totalorder 0, %v2816
      %v2818 = vsel %vm2817, 0, %v2816
      %v2819 = vsub.s32 32, %v2818
      %v2820 = vshll.u32 %v2811, %v2818
      %v2821 = vshrl.u32 %v2803, %v2819
      %v2822 = vor.u32 %v2820, %v2821
      %v2823 = vsub.s32 4294967266, %v2818
      %v2824 = vadd.s32 %v2823, 127
      %v2825 = vshll.u32 %v2824, 23
      %v2826 = vor.u32 4788187, %v2825
      %v2827 = vand.u32 2147483647, %v2826
      %v2829 = vcvt.s32.f32 %v2822
      %v2830 = vmul.f32 %v2829, %v2827
      %v2831 = vxor.u32 %v2830, 2147483648
      %v2832 = vsel %vm2749, %v2831, %v2830
      %v2833 = vsub.s32 4, %v2809
      %v2834 = vsel %vm2749, %v2833, %v2809
      %v2835 = vsel %vm2748, %v1035, %v2832
      %v2836 = vsel %vm2748, 0, %v2834
      %v2837 = vcosq.f32.pop %v2835
      %v2838 = vsinq.f32.pop %v2835
      %vm2839 = vweird.f32 %v1035
      %v2840 = vadd.s32 %v2836, 3
      %v2841 = vand.u32 %v2840, 3
      %vm2842 = vcmp.lt.s32.totalorder %v2841, 2
      %vm2843 = vcmp.eq.s32.totalorder %v2841, 0
      %v2844 = vxor.u32 %v2838, 2147483648
      %v2845 = vsel %vm2843, %v2837, %v2844
      %vm2846 = vcmp.eq.s32.totalorder %v2841, 2
      %v2847 = vxor.u32 %v2837, 2147483648
      %v2848 = vsel %vm2846, %v2847, %v2838
      %v2849 = vsel %vm2842, %v2845, %v2848
      %v2850 = vsel %vm2839, nan, %v2849
      %v2851 = vand.u32 2147483647, %v1036
      %vm2852 = vcmp.le.f32.partialorder %v2851, 0.7853982
      %vm2853 = vcmp.lt.s32.totalorder %v1036, 0
      %v2854 = vand.u32 %v1036, 2139095040
      %v2855 = vshrl.u32 %v2854, 23
      %v2856 = vsub.s32 %v2855, 127
      %v2857 = vand.u32 2147483647, %v1036
      %v2858 = vand.u32 %v2857, 8388607
      %v2859 = vor.u32 %v2858, 8388608
      %v2860 = vsub.s32 0, %v2859
      %v2861 = vadd.s32 %v2856, 1
      %vm2862 = vcmp.gt.s32.totalorder %v2861, 0
      %v2863 = vsel %vm2862, %v2861, 0
      %v2864 = vshrl.u32 %v2863, 5
      %v2865 = vand.u32 %v2863, 31
      %v2866 = vsub.s32 32, %v2865
      %v2867 = vshrl.u32 683565275, %v2866
      %v2868 = vshll.u32 683565275, %v2865
      %v2869 = vshrl.u32 2475754826, %v2866
      %v2870 = vor.u32 %v2868, %v2869
      %v2871 = vshll.u32 2475754826, %v2865
      %v2872 = vshrl.u32 2131351028, %v2866
      %v2873 = vor.u32 %v2871, %v2872
      %v2874 = vshll.u32 2131351028, %v2865
      %v2875 = vshrl.u32 2102212464, %v2866
      %v2876 = vor.u32 %v2874, %v2875
      %v2877 = vshll.u32 2102212464, %v2865
      %v2878 = vshrl.u32 920167782, %v2866
      %v2879 = vor.u32 %v2877, %v2878
      %v2880 = vshll.u32 920167782, %v2865
      %v2881 = vshrl.u32 1326507024, %v2866
      %v2882 = vor.u32 %v2880, %v2881
      %vm2883 = vcmp.lt.s32.totalorder %v2864, 1
      %vm2884 = vcmp.lt.s32.totalorder %v2864, 2
      %vm2885 = vcmp.lt.s32.totalorder %v2864, 3
      %vm2886 = vcmp.lt.s32.totalorder %v2864, 4
      %v2887 = vsel %vm2883, %v2867, %v2870
      %v2888 = vsel %vm2886, %v2876, 2102212464
      %v2889 = vsel %vm2885, %v2873, %v2888
      %v2890 = vsel %vm2884, %v2887, %v2889
      %v2891 = vsel %vm2883, %v2870, %v2873
      %v2892 = vsel %vm2886, %v2879, 920167782
      %v2893 = vsel %vm2885, %v2876, %v2892
      %v2894 = vsel %vm2884, %v2891, %v2893
      %v2895 = vsel %vm2883, %v2873, %v2876
      %v2896 = vsel %vm2886, %v2882, 1326507024
      %v2897 = vsel %vm2885, %v2879, %v2896
      %v2898 = vsel %vm2884, %v2895, %v2897
      %v2899 = vshll.u32 %v2859, 8
      %v2900 = vmul.u32.u64.compose %v2899, %v2898
      %v2901 = vextract.low.u32 %v2900
      %v2902 = vextract.high.u32 %v2900
      %v2903 = vmul.u32.u64.compose %v2899, %v2894
      %v2904 = vextract.low.u32 %v2903
      %v2905 = vextract.high.u32 %v2903
      %v2906 = vmul.u32 %v2899, %v2890
      %v2907 = vadd.s32 %v2902, %v2904
      %vm2908 = vc.u32 %v2902, %v2904
      %v2909 = vadd.s32 %v2905, 1
      %v2910 = vsel %vm2908, %v2909, %v2905
      %v2911 = vadd.s32 %v2906, %v2910
      %v2912 = vadd.s32 %v2911, 536870912
      %v2913 = vshrl.u32 %v2912, 30
      %v2914 = vshll.u32 %v2913, 30
      %v2915 = vsub.s32 %v2911, %v2914
      %vm2916 = vcmp.lt.s32.totalorder %v2915, 0
      %v2917 = vsub.s32 0, %v2915
      %v2918 = vsel %vm2916, %v2917, %v2915
      %v2919 = vclz %v2918
      %v2920 = vsub.s32 %v2919, 2
      %vm2921 = vcmp.gt.s32.totalorder 0, %v2920
      %v2922 = vsel %vm2921, 0, %v2920
      %v2923 = vsub.s32 32, %v2922
      %v2924 = vshll.u32 %v2915, %v2922
      %v2925 = vshrl.u32 %v2907, %v2923
      %v2926 = vor.u32 %v2924, %v2925
      %v2927 = vsub.s32 4294967266, %v2922
      %v2928 = vadd.s32 %v2927, 127
      %v2929 = vshll.u32 %v2928, 23
      %v2930 = vor.u32 4788187, %v2929
      %v2931 = vand.u32 2147483647, %v2930
      %v2933 = vcvt.s32.f32 %v2926
      %v2934 = vmul.f32 %v2933, %v2931
      %v2935 = vxor.u32 %v2934, 2147483648
      %v2936 = vsel %vm2853, %v2935, %v2934
      %v2937 = vsub.s32 4, %v2913
      %v2938 = vsel %vm2853, %v2937, %v2913
      %v2939 = vsel %vm2852, %v1036, %v2936
      %v2940 = vsel %vm2852, 0, %v2938
      %v2941 = vcosq.f32.pop %v2939
      %v2942 = vsinq.f32.pop %v2939
      %vm2943 = vweird.f32 %v1036
      %v2944 = vadd.s32 %v2940, 3
      %v2945 = vand.u32 %v2944, 3
      %vm2946 = vcmp.lt.s32.totalorder %v2945, 2
      %vm2947 = vcmp.eq.s32.totalorder %v2945, 0
      %v2948 = vxor.u32 %v2942, 2147483648
      %v2949 = vsel %vm2947, %v2941, %v2948
      %vm2950 = vcmp.eq.s32.totalorder %v2945, 2
      %v2951 = vxor.u32 %v2941, 2147483648
      %v2952 = vsel %vm2950, %v2951, %v2942
      %v2953 = vsel %vm2946, %v2949, %v2952
      %v2954 = vsel %vm2943, nan, %v2953
      %v2955 = vand.u32 2147483647, %v1037
      %vm2956 = vcmp.le.f32.partialorder %v2955, 0.7853982
      %vm2957 = vcmp.lt.s32.totalorder %v1037, 0
      %v2958 = vand.u32 %v1037, 2139095040
      %v2959 = vshrl.u32 %v2958, 23
      %v2960 = vsub.s32 %v2959, 127
      %v2961 = vand.u32 2147483647, %v1037
      %v2962 = vand.u32 %v2961, 8388607
      %v2963 = vor.u32 %v2962, 8388608
      %v2964 = vsub.s32 0, %v2963
      %v2965 = vadd.s32 %v2960, 1
      %vm2966 = vcmp.gt.s32.totalorder %v2965, 0
      %v2967 = vsel %vm2966, %v2965, 0
      %v2968 = vshrl.u32 %v2967, 5
      %v2969 = vand.u32 %v2967, 31
      %v2970 = vsub.s32 32, %v2969
      %v2971 = vshrl.u32 683565275, %v2970
      %v2972 = vshll.u32 683565275, %v2969
      %v2973 = vshrl.u32 2475754826, %v2970
      %v2974 = vor.u32 %v2972, %v2973
      %v2975 = vshll.u32 2475754826, %v2969
      %v2976 = vshrl.u32 2131351028, %v2970
      %v2977 = vor.u32 %v2975, %v2976
      %v2978 = vshll.u32 2131351028, %v2969
      %v2979 = vshrl.u32 2102212464, %v2970
      %v2980 = vor.u32 %v2978, %v2979
      %v2981 = vshll.u32 2102212464, %v2969
      %v2982 = vshrl.u32 920167782, %v2970
      %v2983 = vor.u32 %v2981, %v2982
      %v2984 = vshll.u32 920167782, %v2969
      %v2985 = vshrl.u32 1326507024, %v2970
      %v2986 = vor.u32 %v2984, %v2985
      %vm2987 = vcmp.lt.s32.totalorder %v2968, 1
      %vm2988 = vcmp.lt.s32.totalorder %v2968, 2
      %vm2989 = vcmp.lt.s32.totalorder %v2968, 3
      %vm2990 = vcmp.lt.s32.totalorder %v2968, 4
      %v2991 = vsel %vm2987, %v2971, %v2974
      %v2992 = vsel %vm2990, %v2980, 2102212464
      %v2993 = vsel %vm2989, %v2977, %v2992
      %v2994 = vsel %vm2988, %v2991, %v2993
      %v2995 = vsel %vm2987, %v2974, %v2977
      %v2996 = vsel %vm2990, %v2983, 920167782
      %v2997 = vsel %vm2989, %v2980, %v2996
      %v2998 = vsel %vm2988, %v2995, %v2997
      %v2999 = vsel %vm2987, %v2977, %v2980
      %v3000 = vsel %vm2990, %v2986, 1326507024
      %v3001 = vsel %vm2989, %v2983, %v3000
      %v3002 = vsel %vm2988, %v2999, %v3001
      %v3003 = vshll.u32 %v2963, 8
      %v3004 = vmul.u32.u64.compose %v3003, %v3002
      %v3005 = vextract.low.u32 %v3004
      %v3006 = vextract.high.u32 %v3004
      %v3007 = vmul.u32.u64.compose %v3003, %v2998
      %v3008 = vextract.low.u32 %v3007
      %v3009 = vextract.high.u32 %v3007
      %v3010 = vmul.u32 %v3003, %v2994
      %v3011 = vadd.s32 %v3006, %v3008
      %vm3012 = vc.u32 %v3006, %v3008
      %v3013 = vadd.s32 %v3009, 1
      %v3014 = vsel %vm3012, %v3013, %v3009
      %v3015 = vadd.s32 %v3010, %v3014
      %v3016 = vadd.s32 %v3015, 536870912
      %v3017 = vshrl.u32 %v3016, 30
      %v3018 = vshll.u32 %v3017, 30
      %v3019 = vsub.s32 %v3015, %v3018
      %vm3020 = vcmp.lt.s32.totalorder %v3019, 0
      %v3021 = vsub.s32 0, %v3019
      %v3022 = vsel %vm3020, %v3021, %v3019
      %v3023 = vclz %v3022
      %v3024 = vsub.s32 %v3023, 2
      %vm3025 = vcmp.gt.s32.totalorder 0, %v3024
      %v3026 = vsel %vm3025, 0, %v3024
      %v3027 = vsub.s32 32, %v3026
      %v3028 = vshll.u32 %v3019, %v3026
      %v3029 = vshrl.u32 %v3011, %v3027
      %v3030 = vor.u32 %v3028, %v3029
      %v3031 = vsub.s32 4294967266, %v3026
      %v3032 = vadd.s32 %v3031, 127
      %v3033 = vshll.u32 %v3032, 23
      %v3034 = vor.u32 4788187, %v3033
      %v3035 = vand.u32 2147483647, %v3034
      %v3037 = vcvt.s32.f32 %v3030
      %v3038 = vmul.f32 %v3037, %v3035
      %v3039 = vxor.u32 %v3038, 2147483648
      %v3040 = vsel %vm2957, %v3039, %v3038
      %v3041 = vsub.s32 4, %v3017
      %v3042 = vsel %vm2957, %v3041, %v3017
      %v3043 = vsel %vm2956, %v1037, %v3040
      %v3044 = vsel %vm2956, 0, %v3042
      %v3045 = vcosq.f32.pop %v3043
      %v3046 = vsinq.f32.pop %v3043
      %vm3047 = vweird.f32 %v1037
      %v3048 = vadd.s32 %v3044, 3
      %v3049 = vand.u32 %v3048, 3
      %vm3050 = vcmp.lt.s32.totalorder %v3049, 2
      %vm3051 = vcmp.eq.s32.totalorder %v3049, 0
      %v3052 = vxor.u32 %v3046, 2147483648
      %v3053 = vsel %vm3051, %v3045, %v3052
      %vm3054 = vcmp.eq.s32.totalorder %v3049, 2
      %v3055 = vxor.u32 %v3045, 2147483648
      %v3056 = vsel %vm3054, %v3055, %v3046
      %v3057 = vsel %vm3050, %v3053, %v3056
      %v3058 = vsel %vm3047, nan, %v3057
      %v3059 = vand.u32 2147483647, %v1038
      %vm3060 = vcmp.le.f32.partialorder %v3059, 0.7853982
      %vm3061 = vcmp.lt.s32.totalorder %v1038, 0
      %v3062 = vand.u32 %v1038, 2139095040
      %v3063 = vshrl.u32 %v3062, 23
      %v3064 = vsub.s32 %v3063, 127
      %v3065 = vand.u32 2147483647, %v1038
      %v3066 = vand.u32 %v3065, 8388607
      %v3067 = vor.u32 %v3066, 8388608
      %v3068 = vsub.s32 0, %v3067
      %v3069 = vadd.s32 %v3064, 1
      %vm3070 = vcmp.gt.s32.totalorder %v3069, 0
      %v3071 = vsel %vm3070, %v3069, 0
      %v3072 = vshrl.u32 %v3071, 5
      %v3073 = vand.u32 %v3071, 31
      %v3074 = vsub.s32 32, %v3073
      %v3075 = vshrl.u32 683565275, %v3074
      %v3076 = vshll.u32 683565275, %v3073
      %v3077 = vshrl.u32 2475754826, %v3074
      %v3078 = vor.u32 %v3076, %v3077
      %v3079 = vshll.u32 2475754826, %v3073
      %v3080 = vshrl.u32 2131351028, %v3074
      %v3081 = vor.u32 %v3079, %v3080
      %v3082 = vshll.u32 2131351028, %v3073
      %v3083 = vshrl.u32 2102212464, %v3074
      %v3084 = vor.u32 %v3082, %v3083
      %v3085 = vshll.u32 2102212464, %v3073
      %v3086 = vshrl.u32 920167782, %v3074
      %v3087 = vor.u32 %v3085, %v3086
      %v3088 = vshll.u32 920167782, %v3073
      %v3089 = vshrl.u32 1326507024, %v3074
      %v3090 = vor.u32 %v3088, %v3089
      %vm3091 = vcmp.lt.s32.totalorder %v3072, 1
      %vm3092 = vcmp.lt.s32.totalorder %v3072, 2
      %vm3093 = vcmp.lt.s32.totalorder %v3072, 3
      %vm3094 = vcmp.lt.s32.totalorder %v3072, 4
      %v3095 = vsel %vm3091, %v3075, %v3078
      %v3096 = vsel %vm3094, %v3084, 2102212464
      %v3097 = vsel %vm3093, %v3081, %v3096
      %v3098 = vsel %vm3092, %v3095, %v3097
      %v3099 = vsel %vm3091, %v3078, %v3081
      %v3100 = vsel %vm3094, %v3087, 920167782
      %v3101 = vsel %vm3093, %v3084, %v3100
      %v3102 = vsel %vm3092, %v3099, %v3101
      %v3103 = vsel %vm3091, %v3081, %v3084
      %v3104 = vsel %vm3094, %v3090, 1326507024
      %v3105 = vsel %vm3093, %v3087, %v3104
      %v3106 = vsel %vm3092, %v3103, %v3105
      %v3107 = vshll.u32 %v3067, 8
      %v3108 = vmul.u32.u64.compose %v3107, %v3106
      %v3109 = vextract.low.u32 %v3108
      %v3110 = vextract.high.u32 %v3108
      %v3111 = vmul.u32.u64.compose %v3107, %v3102
      %v3112 = vextract.low.u32 %v3111
      %v3113 = vextract.high.u32 %v3111
      %v3114 = vmul.u32 %v3107, %v3098
      %v3115 = vadd.s32 %v3110, %v3112
      %vm3116 = vc.u32 %v3110, %v3112
      %v3117 = vadd.s32 %v3113, 1
      %v3118 = vsel %vm3116, %v3117, %v3113
      %v3119 = vadd.s32 %v3114, %v3118
      %v3120 = vadd.s32 %v3119, 536870912
      %v3121 = vshrl.u32 %v3120, 30
      %v3122 = vshll.u32 %v3121, 30
      %v3123 = vsub.s32 %v3119, %v3122
      %vm3124 = vcmp.lt.s32.totalorder %v3123, 0
      %v3125 = vsub.s32 0, %v3123
      %v3126 = vsel %vm3124, %v3125, %v3123
      %v3127 = vclz %v3126
      %v3128 = vsub.s32 %v3127, 2
      %vm3129 = vcmp.gt.s32.totalorder 0, %v3128
      %v3130 = vsel %vm3129, 0, %v3128
      %v3131 = vsub.s32 32, %v3130
      %v3132 = vshll.u32 %v3123, %v3130
      %v3133 = vshrl.u32 %v3115, %v3131
      %v3134 = vor.u32 %v3132, %v3133
      %v3135 = vsub.s32 4294967266, %v3130
      %v3136 = vadd.s32 %v3135, 127
      %v3137 = vshll.u32 %v3136, 23
      %v3138 = vor.u32 4788187, %v3137
      %v3139 = vand.u32 2147483647, %v3138
      %v3141 = vcvt.s32.f32 %v3134
      %v3142 = vmul.f32 %v3141, %v3139
      %v3143 = vxor.u32 %v3142, 2147483648
      %v3144 = vsel %vm3061, %v3143, %v3142
      %v3145 = vsub.s32 4, %v3121
      %v3146 = vsel %vm3061, %v3145, %v3121
      %v3147 = vsel %vm3060, %v1038, %v3144
      %v3148 = vsel %vm3060, 0, %v3146
      %v3149 = vcosq.f32.pop %v3147
      %v3150 = vsinq.f32.pop %v3147
      %vm3151 = vweird.f32 %v1038
      %v3152 = vadd.s32 %v3148, 3
      %v3153 = vand.u32 %v3152, 3
      %vm3154 = vcmp.lt.s32.totalorder %v3153, 2
      %vm3155 = vcmp.eq.s32.totalorder %v3153, 0
      %v3156 = vxor.u32 %v3150, 2147483648
      %v3157 = vsel %vm3155, %v3149, %v3156
      %vm3158 = vcmp.eq.s32.totalorder %v3153, 2
      %v3159 = vxor.u32 %v3149, 2147483648
      %v3160 = vsel %vm3158, %v3159, %v3150
      %v3161 = vsel %vm3154, %v3157, %v3160
      %v3162 = vsel %vm3151, nan, %v3161
      %v3163 = vand.u32 2147483647, %v1039
      %vm3164 = vcmp.le.f32.partialorder %v3163, 0.7853982
      %vm3165 = vcmp.lt.s32.totalorder %v1039, 0
      %v3166 = vand.u32 %v1039, 2139095040
      %v3167 = vshrl.u32 %v3166, 23
      %v3168 = vsub.s32 %v3167, 127
      %v3169 = vand.u32 2147483647, %v1039
      %v3170 = vand.u32 %v3169, 8388607
      %v3171 = vor.u32 %v3170, 8388608
      %v3172 = vsub.s32 0, %v3171
      %v3173 = vadd.s32 %v3168, 1
      %vm3174 = vcmp.gt.s32.totalorder %v3173, 0
      %v3175 = vsel %vm3174, %v3173, 0
      %v3176 = vshrl.u32 %v3175, 5
      %v3177 = vand.u32 %v3175, 31
      %v3178 = vsub.s32 32, %v3177
      %v3179 = vshrl.u32 683565275, %v3178
      %v3180 = vshll.u32 683565275, %v3177
      %v3181 = vshrl.u32 2475754826, %v3178
      %v3182 = vor.u32 %v3180, %v3181
      %v3183 = vshll.u32 2475754826, %v3177
      %v3184 = vshrl.u32 2131351028, %v3178
      %v3185 = vor.u32 %v3183, %v3184
      %v3186 = vshll.u32 2131351028, %v3177
      %v3187 = vshrl.u32 2102212464, %v3178
      %v3188 = vor.u32 %v3186, %v3187
      %v3189 = vshll.u32 2102212464, %v3177
      %v3190 = vshrl.u32 920167782, %v3178
      %v3191 = vor.u32 %v3189, %v3190
      %v3192 = vshll.u32 920167782, %v3177
      %v3193 = vshrl.u32 1326507024, %v3178
      %v3194 = vor.u32 %v3192, %v3193
      %vm3195 = vcmp.lt.s32.totalorder %v3176, 1
      %vm3196 = vcmp.lt.s32.totalorder %v3176, 2
      %vm3197 = vcmp.lt.s32.totalorder %v3176, 3
      %vm3198 = vcmp.lt.s32.totalorder %v3176, 4
      %v3199 = vsel %vm3195, %v3179, %v3182
      %v3200 = vsel %vm3198, %v3188, 2102212464
      %v3201 = vsel %vm3197, %v3185, %v3200
      %v3202 = vsel %vm3196, %v3199, %v3201
      %v3203 = vsel %vm3195, %v3182, %v3185
      %v3204 = vsel %vm3198, %v3191, 920167782
      %v3205 = vsel %vm3197, %v3188, %v3204
      %v3206 = vsel %vm3196, %v3203, %v3205
      %v3207 = vsel %vm3195, %v3185, %v3188
      %v3208 = vsel %vm3198, %v3194, 1326507024
      %v3209 = vsel %vm3197, %v3191, %v3208
      %v3210 = vsel %vm3196, %v3207, %v3209
      %v3211 = vshll.u32 %v3171, 8
      %v3212 = vmul.u32.u64.compose %v3211, %v3210
      %v3213 = vextract.low.u32 %v3212
      %v3214 = vextract.high.u32 %v3212
      %v3215 = vmul.u32.u64.compose %v3211, %v3206
      %v3216 = vextract.low.u32 %v3215
      %v3217 = vextract.high.u32 %v3215
      %v3218 = vmul.u32 %v3211, %v3202
      %v3219 = vadd.s32 %v3214, %v3216
      %vm3220 = vc.u32 %v3214, %v3216
      %v3221 = vadd.s32 %v3217, 1
      %v3222 = vsel %vm3220, %v3221, %v3217
      %v3223 = vadd.s32 %v3218, %v3222
      %v3224 = vadd.s32 %v3223, 536870912
      %v3225 = vshrl.u32 %v3224, 30
      %v3226 = vshll.u32 %v3225, 30
      %v3227 = vsub.s32 %v3223, %v3226
      %vm3228 = vcmp.lt.s32.totalorder %v3227, 0
      %v3229 = vsub.s32 0, %v3227
      %v3230 = vsel %vm3228, %v3229, %v3227
      %v3231 = vclz %v3230
      %v3232 = vsub.s32 %v3231, 2
      %vm3233 = vcmp.gt.s32.totalorder 0, %v3232
      %v3234 = vsel %vm3233, 0, %v3232
      %v3235 = vsub.s32 32, %v3234
      %v3236 = vshll.u32 %v3227, %v3234
      %v3237 = vshrl.u32 %v3219, %v3235
      %v3238 = vor.u32 %v3236, %v3237
      %v3239 = vsub.s32 4294967266, %v3234
      %v3240 = vadd.s32 %v3239, 127
      %v3241 = vshll.u32 %v3240, 23
      %v3242 = vor.u32 4788187, %v3241
      %v3243 = vand.u32 2147483647, %v3242
      %v3245 = vcvt.s32.f32 %v3238
      %v3246 = vmul.f32 %v3245, %v3243
      %v3247 = vxor.u32 %v3246, 2147483648
      %v3248 = vsel %vm3165, %v3247, %v3246
      %v3249 = vsub.s32 4, %v3225
      %v3250 = vsel %vm3165, %v3249, %v3225
      %v3251 = vsel %vm3164, %v1039, %v3248
      %v3252 = vsel %vm3164, 0, %v3250
      %v3253 = vcosq.f32.pop %v3251
      %v3254 = vsinq.f32.pop %v3251
      %vm3255 = vweird.f32 %v1039
      %v3256 = vadd.s32 %v3252, 3
      %v3257 = vand.u32 %v3256, 3
      %vm3258 = vcmp.lt.s32.totalorder %v3257, 2
      %vm3259 = vcmp.eq.s32.totalorder %v3257, 0
      %v3260 = vxor.u32 %v3254, 2147483648
      %v3261 = vsel %vm3259, %v3253, %v3260
      %vm3262 = vcmp.eq.s32.totalorder %v3257, 2
      %v3263 = vxor.u32 %v3253, 2147483648
      %v3264 = vsel %vm3262, %v3263, %v3254
      %v3265 = vsel %vm3258, %v3261, %v3264
      %v3266 = vsel %vm3255, nan, %v3265
      %v3267 = vand.u32 2147483647, %v1040
      %vm3268 = vcmp.le.f32.partialorder %v3267, 0.7853982
      %vm3269 = vcmp.lt.s32.totalorder %v1040, 0
      %v3270 = vand.u32 %v1040, 2139095040
      %v3271 = vshrl.u32 %v3270, 23
      %v3272 = vsub.s32 %v3271, 127
      %v3273 = vand.u32 2147483647, %v1040
      %v3274 = vand.u32 %v3273, 8388607
      %v3275 = vor.u32 %v3274, 8388608
      %v3276 = vsub.s32 0, %v3275
      %v3277 = vadd.s32 %v3272, 1
      %vm3278 = vcmp.gt.s32.totalorder %v3277, 0
      %v3279 = vsel %vm3278, %v3277, 0
      %v3280 = vshrl.u32 %v3279, 5
      %v3281 = vand.u32 %v3279, 31
      %v3282 = vsub.s32 32, %v3281
      %v3283 = vshrl.u32 683565275, %v3282
      %v3284 = vshll.u32 683565275, %v3281
      %v3285 = vshrl.u32 2475754826, %v3282
      %v3286 = vor.u32 %v3284, %v3285
      %v3287 = vshll.u32 2475754826, %v3281
      %v3288 = vshrl.u32 2131351028, %v3282
      %v3289 = vor.u32 %v3287, %v3288
      %v3290 = vshll.u32 2131351028, %v3281
      %v3291 = vshrl.u32 2102212464, %v3282
      %v3292 = vor.u32 %v3290, %v3291
      %v3293 = vshll.u32 2102212464, %v3281
      %v3294 = vshrl.u32 920167782, %v3282
      %v3295 = vor.u32 %v3293, %v3294
      %v3296 = vshll.u32 920167782, %v3281
      %v3297 = vshrl.u32 1326507024, %v3282
      %v3298 = vor.u32 %v3296, %v3297
      %vm3299 = vcmp.lt.s32.totalorder %v3280, 1
      %vm3300 = vcmp.lt.s32.totalorder %v3280, 2
      %vm3301 = vcmp.lt.s32.totalorder %v3280, 3
      %vm3302 = vcmp.lt.s32.totalorder %v3280, 4
      %v3303 = vsel %vm3299, %v3283, %v3286
      %v3304 = vsel %vm3302, %v3292, 2102212464
      %v3305 = vsel %vm3301, %v3289, %v3304
      %v3306 = vsel %vm3300, %v3303, %v3305
      %v3307 = vsel %vm3299, %v3286, %v3289
      %v3308 = vsel %vm3302, %v3295, 920167782
      %v3309 = vsel %vm3301, %v3292, %v3308
      %v3310 = vsel %vm3300, %v3307, %v3309
      %v3311 = vsel %vm3299, %v3289, %v3292
      %v3312 = vsel %vm3302, %v3298, 1326507024
      %v3313 = vsel %vm3301, %v3295, %v3312
      %v3314 = vsel %vm3300, %v3311, %v3313
      %v3315 = vshll.u32 %v3275, 8
      %v3316 = vmul.u32.u64.compose %v3315, %v3314
      %v3317 = vextract.low.u32 %v3316
      %v3318 = vextract.high.u32 %v3316
      %v3319 = vmul.u32.u64.compose %v3315, %v3310
      %v3320 = vextract.low.u32 %v3319
      %v3321 = vextract.high.u32 %v3319
      %v3322 = vmul.u32 %v3315, %v3306
      %v3323 = vadd.s32 %v3318, %v3320
      %vm3324 = vc.u32 %v3318, %v3320
      %v3325 = vadd.s32 %v3321, 1
      %v3326 = vsel %vm3324, %v3325, %v3321
      %v3327 = vadd.s32 %v3322, %v3326
      %v3328 = vadd.s32 %v3327, 536870912
      %v3329 = vshrl.u32 %v3328, 30
      %v3330 = vshll.u32 %v3329, 30
      %v3331 = vsub.s32 %v3327, %v3330
      %vm3332 = vcmp.lt.s32.totalorder %v3331, 0
      %v3333 = vsub.s32 0, %v3331
      %v3334 = vsel %vm3332, %v3333, %v3331
      %v3335 = vclz %v3334
      %v3336 = vsub.s32 %v3335, 2
      %vm3337 = vcmp.gt.s32.totalorder 0, %v3336
      %v3338 = vsel %vm3337, 0, %v3336
      %v3339 = vsub.s32 32, %v3338
      %v3340 = vshll.u32 %v3331, %v3338
      %v3341 = vshrl.u32 %v3323, %v3339
      %v3342 = vor.u32 %v3340, %v3341
      %v3343 = vsub.s32 4294967266, %v3338
      %v3344 = vadd.s32 %v3343, 127
      %v3345 = vshll.u32 %v3344, 23
      %v3346 = vor.u32 4788187, %v3345
      %v3347 = vand.u32 2147483647, %v3346
      %v3349 = vcvt.s32.f32 %v3342
      %v3350 = vmul.f32 %v3349, %v3347
      %v3351 = vxor.u32 %v3350, 2147483648
      %v3352 = vsel %vm3269, %v3351, %v3350
      %v3353 = vsub.s32 4, %v3329
      %v3354 = vsel %vm3269, %v3353, %v3329
      %v3355 = vsel %vm3268, %v1040, %v3352
      %v3356 = vsel %vm3268, 0, %v3354
      %v3357 = vcosq.f32.pop %v3355
      %v3358 = vsinq.f32.pop %v3355
      %vm3359 = vweird.f32 %v1040
      %v3360 = vadd.s32 %v3356, 3
      %v3361 = vand.u32 %v3360, 3
      %vm3362 = vcmp.lt.s32.totalorder %v3361, 2
      %vm3363 = vcmp.eq.s32.totalorder %v3361, 0
      %v3364 = vxor.u32 %v3358, 2147483648
      %v3365 = vsel %vm3363, %v3357, %v3364
      %vm3366 = vcmp.eq.s32.totalorder %v3361, 2
      %v3367 = vxor.u32 %v3357, 2147483648
      %v3368 = vsel %vm3366, %v3367, %v3358
      %v3369 = vsel %vm3362, %v3365, %v3368
      %v3370 = vsel %vm3359, nan, %v3369
      %v3371 = vand.u32 2147483647, %v1041
      %vm3372 = vcmp.le.f32.partialorder %v3371, 0.7853982
      %vm3373 = vcmp.lt.s32.totalorder %v1041, 0
      %v3374 = vand.u32 %v1041, 2139095040
      %v3375 = vshrl.u32 %v3374, 23
      %v3376 = vsub.s32 %v3375, 127
      %v3377 = vand.u32 2147483647, %v1041
      %v3378 = vand.u32 %v3377, 8388607
      %v3379 = vor.u32 %v3378, 8388608
      %v3380 = vsub.s32 0, %v3379
      %v3381 = vadd.s32 %v3376, 1
      %vm3382 = vcmp.gt.s32.totalorder %v3381, 0
      %v3383 = vsel %vm3382, %v3381, 0
      %v3384 = vshrl.u32 %v3383, 5
      %v3385 = vand.u32 %v3383, 31
      %v3386 = vsub.s32 32, %v3385
      %v3387 = vshrl.u32 683565275, %v3386
      %v3388 = vshll.u32 683565275, %v3385
      %v3389 = vshrl.u32 2475754826, %v3386
      %v3390 = vor.u32 %v3388, %v3389
      %v3391 = vshll.u32 2475754826, %v3385
      %v3392 = vshrl.u32 2131351028, %v3386
      %v3393 = vor.u32 %v3391, %v3392
      %v3394 = vshll.u32 2131351028, %v3385
      %v3395 = vshrl.u32 2102212464, %v3386
      %v3396 = vor.u32 %v3394, %v3395
      %v3397 = vshll.u32 2102212464, %v3385
      %v3398 = vshrl.u32 920167782, %v3386
      %v3399 = vor.u32 %v3397, %v3398
      %v3400 = vshll.u32 920167782, %v3385
      %v3401 = vshrl.u32 1326507024, %v3386
      %v3402 = vor.u32 %v3400, %v3401
      %vm3403 = vcmp.lt.s32.totalorder %v3384, 1
      %vm3404 = vcmp.lt.s32.totalorder %v3384, 2
      %vm3405 = vcmp.lt.s32.totalorder %v3384, 3
      %vm3406 = vcmp.lt.s32.totalorder %v3384, 4
      %v3407 = vsel %vm3403, %v3387, %v3390
      %v3408 = vsel %vm3406, %v3396, 2102212464
      %v3409 = vsel %vm3405, %v3393, %v3408
      %v3410 = vsel %vm3404, %v3407, %v3409
      %v3411 = vsel %vm3403, %v3390, %v3393
      %v3412 = vsel %vm3406, %v3399, 920167782
      %v3413 = vsel %vm3405, %v3396, %v3412
      %v3414 = vsel %vm3404, %v3411, %v3413
      %v3415 = vsel %vm3403, %v3393, %v3396
      %v3416 = vsel %vm3406, %v3402, 1326507024
      %v3417 = vsel %vm3405, %v3399, %v3416
      %v3418 = vsel %vm3404, %v3415, %v3417
      %v3419 = vshll.u32 %v3379, 8
      %v3420 = vmul.u32.u64.compose %v3419, %v3418
      %v3421 = vextract.low.u32 %v3420
      %v3422 = vextract.high.u32 %v3420
      %v3423 = vmul.u32.u64.compose %v3419, %v3414
      %v3424 = vextract.low.u32 %v3423
      %v3425 = vextract.high.u32 %v3423
      %v3426 = vmul.u32 %v3419, %v3410
      %v3427 = vadd.s32 %v3422, %v3424
      %vm3428 = vc.u32 %v3422, %v3424
      %v3429 = vadd.s32 %v3425, 1
      %v3430 = vsel %vm3428, %v3429, %v3425
      %v3431 = vadd.s32 %v3426, %v3430
      %v3432 = vadd.s32 %v3431, 536870912
      %v3433 = vshrl.u32 %v3432, 30
      %v3434 = vshll.u32 %v3433, 30
      %v3435 = vsub.s32 %v3431, %v3434
      %vm3436 = vcmp.lt.s32.totalorder %v3435, 0
      %v3437 = vsub.s32 0, %v3435
      %v3438 = vsel %vm3436, %v3437, %v3435
      %v3439 = vclz %v3438
      %v3440 = vsub.s32 %v3439, 2
      %vm3441 = vcmp.gt.s32.totalorder 0, %v3440
      %v3442 = vsel %vm3441, 0, %v3440
      %v3443 = vsub.s32 32, %v3442
      %v3444 = vshll.u32 %v3435, %v3442
      %v3445 = vshrl.u32 %v3427, %v3443
      %v3446 = vor.u32 %v3444, %v3445
      %v3447 = vsub.s32 4294967266, %v3442
      %v3448 = vadd.s32 %v3447, 127
      %v3449 = vshll.u32 %v3448, 23
      %v3450 = vor.u32 4788187, %v3449
      %v3451 = vand.u32 2147483647, %v3450
      %v3453 = vcvt.s32.f32 %v3446
      %v3454 = vmul.f32 %v3453, %v3451
      %v3455 = vxor.u32 %v3454, 2147483648
      %v3456 = vsel %vm3373, %v3455, %v3454
      %v3457 = vsub.s32 4, %v3433
      %v3458 = vsel %vm3373, %v3457, %v3433
      %v3459 = vsel %vm3372, %v1041, %v3456
      %v3460 = vsel %vm3372, 0, %v3458
      %v3461 = vcosq.f32.pop %v3459
      %v3462 = vsinq.f32.pop %v3459
      %vm3463 = vweird.f32 %v1041
      %v3464 = vadd.s32 %v3460, 3
      %v3465 = vand.u32 %v3464, 3
      %vm3466 = vcmp.lt.s32.totalorder %v3465, 2
      %vm3467 = vcmp.eq.s32.totalorder %v3465, 0
      %v3468 = vxor.u32 %v3462, 2147483648
      %v3469 = vsel %vm3467, %v3461, %v3468
      %vm3470 = vcmp.eq.s32.totalorder %v3465, 2
      %v3471 = vxor.u32 %v3461, 2147483648
      %v3472 = vsel %vm3470, %v3471, %v3462
      %v3473 = vsel %vm3466, %v3469, %v3472
      %v3474 = vsel %vm3463, nan, %v3473
      %v3475 = vand.u32 2147483647, %v1042
      %vm3476 = vcmp.le.f32.partialorder %v3475, 0.7853982
      %vm3477 = vcmp.lt.s32.totalorder %v1042, 0
      %v3478 = vand.u32 %v1042, 2139095040
      %v3479 = vshrl.u32 %v3478, 23
      %v3480 = vsub.s32 %v3479, 127
      %v3481 = vand.u32 2147483647, %v1042
      %v3482 = vand.u32 %v3481, 8388607
      %v3483 = vor.u32 %v3482, 8388608
      %v3484 = vsub.s32 0, %v3483
      %v3485 = vadd.s32 %v3480, 1
      %vm3486 = vcmp.gt.s32.totalorder %v3485, 0
      %v3487 = vsel %vm3486, %v3485, 0
      %v3488 = vshrl.u32 %v3487, 5
      %v3489 = vand.u32 %v3487, 31
      %v3490 = vsub.s32 32, %v3489
      %v3491 = vshrl.u32 683565275, %v3490
      %v3492 = vshll.u32 683565275, %v3489
      %v3493 = vshrl.u32 2475754826, %v3490
      %v3494 = vor.u32 %v3492, %v3493
      %v3495 = vshll.u32 2475754826, %v3489
      %v3496 = vshrl.u32 2131351028, %v3490
      %v3497 = vor.u32 %v3495, %v3496
      %v3498 = vshll.u32 2131351028, %v3489
      %v3499 = vshrl.u32 2102212464, %v3490
      %v3500 = vor.u32 %v3498, %v3499
      %v3501 = vshll.u32 2102212464, %v3489
      %v3502 = vshrl.u32 920167782, %v3490
      %v3503 = vor.u32 %v3501, %v3502
      %v3504 = vshll.u32 920167782, %v3489
      %v3505 = vshrl.u32 1326507024, %v3490
      %v3506 = vor.u32 %v3504, %v3505
      %vm3507 = vcmp.lt.s32.totalorder %v3488, 1
      %vm3508 = vcmp.lt.s32.totalorder %v3488, 2
      %vm3509 = vcmp.lt.s32.totalorder %v3488, 3
      %vm3510 = vcmp.lt.s32.totalorder %v3488, 4
      %v3511 = vsel %vm3507, %v3491, %v3494
      %v3512 = vsel %vm3510, %v3500, 2102212464
      %v3513 = vsel %vm3509, %v3497, %v3512
      %v3514 = vsel %vm3508, %v3511, %v3513
      %v3515 = vsel %vm3507, %v3494, %v3497
      %v3516 = vsel %vm3510, %v3503, 920167782
      %v3517 = vsel %vm3509, %v3500, %v3516
      %v3518 = vsel %vm3508, %v3515, %v3517
      %v3519 = vsel %vm3507, %v3497, %v3500
      %v3520 = vsel %vm3510, %v3506, 1326507024
      %v3521 = vsel %vm3509, %v3503, %v3520
      %v3522 = vsel %vm3508, %v3519, %v3521
      %v3523 = vshll.u32 %v3483, 8
      %v3524 = vmul.u32.u64.compose %v3523, %v3522
      %v3525 = vextract.low.u32 %v3524
      %v3526 = vextract.high.u32 %v3524
      %v3527 = vmul.u32.u64.compose %v3523, %v3518
      %v3528 = vextract.low.u32 %v3527
      %v3529 = vextract.high.u32 %v3527
      %v3530 = vmul.u32 %v3523, %v3514
      %v3531 = vadd.s32 %v3526, %v3528
      %vm3532 = vc.u32 %v3526, %v3528
      %v3533 = vadd.s32 %v3529, 1
      %v3534 = vsel %vm3532, %v3533, %v3529
      %v3535 = vadd.s32 %v3530, %v3534
      %v3536 = vadd.s32 %v3535, 536870912
      %v3537 = vshrl.u32 %v3536, 30
      %v3538 = vshll.u32 %v3537, 30
      %v3539 = vsub.s32 %v3535, %v3538
      %vm3540 = vcmp.lt.s32.totalorder %v3539, 0
      %v3541 = vsub.s32 0, %v3539
      %v3542 = vsel %vm3540, %v3541, %v3539
      %v3543 = vclz %v3542
      %v3544 = vsub.s32 %v3543, 2
      %vm3545 = vcmp.gt.s32.totalorder 0, %v3544
      %v3546 = vsel %vm3545, 0, %v3544
      %v3547 = vsub.s32 32, %v3546
      %v3548 = vshll.u32 %v3539, %v3546
      %v3549 = vshrl.u32 %v3531, %v3547
      %v3550 = vor.u32 %v3548, %v3549
      %v3551 = vsub.s32 4294967266, %v3546
      %v3552 = vadd.s32 %v3551, 127
      %v3553 = vshll.u32 %v3552, 23
      %v3554 = vor.u32 4788187, %v3553
      %v3555 = vand.u32 2147483647, %v3554
      %v3557 = vcvt.s32.f32 %v3550
      %v3558 = vmul.f32 %v3557, %v3555
      %v3559 = vxor.u32 %v3558, 2147483648
      %v3560 = vsel %vm3477, %v3559, %v3558
      %v3561 = vsub.s32 4, %v3537
      %v3562 = vsel %vm3477, %v3561, %v3537
      %v3563 = vsel %vm3476, %v1042, %v3560
      %v3564 = vsel %vm3476, 0, %v3562
      %v3565 = vcosq.f32.pop %v3563
      %v3566 = vsinq.f32.pop %v3563
      %vm3567 = vweird.f32 %v1042
      %v3568 = vadd.s32 %v3564, 3
      %v3569 = vand.u32 %v3568, 3
      %vm3570 = vcmp.lt.s32.totalorder %v3569, 2
      %vm3571 = vcmp.eq.s32.totalorder %v3569, 0
      %v3572 = vxor.u32 %v3566, 2147483648
      %v3573 = vsel %vm3571, %v3565, %v3572
      %vm3574 = vcmp.eq.s32.totalorder %v3569, 2
      %v3575 = vxor.u32 %v3565, 2147483648
      %v3576 = vsel %vm3574, %v3575, %v3566
      %v3577 = vsel %vm3570, %v3573, %v3576
      %v3578 = vsel %vm3567, nan, %v3577
      %v3579 = vand.u32 2147483647, %v1043
      %vm3580 = vcmp.le.f32.partialorder %v3579, 0.7853982
      %vm3581 = vcmp.lt.s32.totalorder %v1043, 0
      %v3582 = vand.u32 %v1043, 2139095040
      %v3583 = vshrl.u32 %v3582, 23
      %v3584 = vsub.s32 %v3583, 127
      %v3585 = vand.u32 2147483647, %v1043
      %v3586 = vand.u32 %v3585, 8388607
      %v3587 = vor.u32 %v3586, 8388608
      %v3588 = vsub.s32 0, %v3587
      %v3589 = vadd.s32 %v3584, 1
      %vm3590 = vcmp.gt.s32.totalorder %v3589, 0
      %v3591 = vsel %vm3590, %v3589, 0
      %v3592 = vshrl.u32 %v3591, 5
      %v3593 = vand.u32 %v3591, 31
      %v3594 = vsub.s32 32, %v3593
      %v3595 = vshrl.u32 683565275, %v3594
      %v3596 = vshll.u32 683565275, %v3593
      %v3597 = vshrl.u32 2475754826, %v3594
      %v3598 = vor.u32 %v3596, %v3597
      %v3599 = vshll.u32 2475754826, %v3593
      %v3600 = vshrl.u32 2131351028, %v3594
      %v3601 = vor.u32 %v3599, %v3600
      %v3602 = vshll.u32 2131351028, %v3593
      %v3603 = vshrl.u32 2102212464, %v3594
      %v3604 = vor.u32 %v3602, %v3603
      %v3605 = vshll.u32 2102212464, %v3593
      %v3606 = vshrl.u32 920167782, %v3594
      %v3607 = vor.u32 %v3605, %v3606
      %v3608 = vshll.u32 920167782, %v3593
      %v3609 = vshrl.u32 1326507024, %v3594
      %v3610 = vor.u32 %v3608, %v3609
      %vm3611 = vcmp.lt.s32.totalorder %v3592, 1
      %vm3612 = vcmp.lt.s32.totalorder %v3592, 2
      %vm3613 = vcmp.lt.s32.totalorder %v3592, 3
      %vm3614 = vcmp.lt.s32.totalorder %v3592, 4
      %v3615 = vsel %vm3611, %v3595, %v3598
      %v3616 = vsel %vm3614, %v3604, 2102212464
      %v3617 = vsel %vm3613, %v3601, %v3616
      %v3618 = vsel %vm3612, %v3615, %v3617
      %v3619 = vsel %vm3611, %v3598, %v3601
      %v3620 = vsel %vm3614, %v3607, 920167782
      %v3621 = vsel %vm3613, %v3604, %v3620
      %v3622 = vsel %vm3612, %v3619, %v3621
      %v3623 = vsel %vm3611, %v3601, %v3604
      %v3624 = vsel %vm3614, %v3610, 1326507024
      %v3625 = vsel %vm3613, %v3607, %v3624
      %v3626 = vsel %vm3612, %v3623, %v3625
      %v3627 = vshll.u32 %v3587, 8
      %v3628 = vmul.u32.u64.compose %v3627, %v3626
      %v3629 = vextract.low.u32 %v3628
      %v3630 = vextract.high.u32 %v3628
      %v3631 = vmul.u32.u64.compose %v3627, %v3622
      %v3632 = vextract.low.u32 %v3631
      %v3633 = vextract.high.u32 %v3631
      %v3634 = vmul.u32 %v3627, %v3618
      %v3635 = vadd.s32 %v3630, %v3632
      %vm3636 = vc.u32 %v3630, %v3632
      %v3637 = vadd.s32 %v3633, 1
      %v3638 = vsel %vm3636, %v3637, %v3633
      %v3639 = vadd.s32 %v3634, %v3638
      %v3640 = vadd.s32 %v3639, 536870912
      %v3641 = vshrl.u32 %v3640, 30
      %v3642 = vshll.u32 %v3641, 30
      %v3643 = vsub.s32 %v3639, %v3642
      %vm3644 = vcmp.lt.s32.totalorder %v3643, 0
      %v3645 = vsub.s32 0, %v3643
      %v3646 = vsel %vm3644, %v3645, %v3643
      %v3647 = vclz %v3646
      %v3648 = vsub.s32 %v3647, 2
      %vm3649 = vcmp.gt.s32.totalorder 0, %v3648
      %v3650 = vsel %vm3649, 0, %v3648
      %v3651 = vsub.s32 32, %v3650
      %v3652 = vshll.u32 %v3643, %v3650
      %v3653 = vshrl.u32 %v3635, %v3651
      %v3654 = vor.u32 %v3652, %v3653
      %v3655 = vsub.s32 4294967266, %v3650
      %v3656 = vadd.s32 %v3655, 127
      %v3657 = vshll.u32 %v3656, 23
      %v3658 = vor.u32 4788187, %v3657
      %v3659 = vand.u32 2147483647, %v3658
      %v3661 = vcvt.s32.f32 %v3654
      %v3662 = vmul.f32 %v3661, %v3659
      %v3663 = vxor.u32 %v3662, 2147483648
      %v3664 = vsel %vm3581, %v3663, %v3662
      %v3665 = vsub.s32 4, %v3641
      %v3666 = vsel %vm3581, %v3665, %v3641
      %v3667 = vsel %vm3580, %v1043, %v3664
      %v3668 = vsel %vm3580, 0, %v3666
      %v3669 = vcosq.f32.pop %v3667
      %v3670 = vsinq.f32.pop %v3667
      %vm3671 = vweird.f32 %v1043
      %v3672 = vadd.s32 %v3668, 3
      %v3673 = vand.u32 %v3672, 3
      %vm3674 = vcmp.lt.s32.totalorder %v3673, 2
      %vm3675 = vcmp.eq.s32.totalorder %v3673, 0
      %v3676 = vxor.u32 %v3670, 2147483648
      %v3677 = vsel %vm3675, %v3669, %v3676
      %vm3678 = vcmp.eq.s32.totalorder %v3673, 2
      %v3679 = vxor.u32 %v3669, 2147483648
      %v3680 = vsel %vm3678, %v3679, %v3670
      %v3681 = vsel %vm3674, %v3677, %v3680
      %v3682 = vsel %vm3671, nan, %v3681
      %v3683 = vand.u32 2147483647, %v1044
      %vm3684 = vcmp.le.f32.partialorder %v3683, 0.7853982
      %vm3685 = vcmp.lt.s32.totalorder %v1044, 0
      %v3686 = vand.u32 %v1044, 2139095040
      %v3687 = vshrl.u32 %v3686, 23
      %v3688 = vsub.s32 %v3687, 127
      %v3689 = vand.u32 2147483647, %v1044
      %v3690 = vand.u32 %v3689, 8388607
      %v3691 = vor.u32 %v3690, 8388608
      %v3692 = vsub.s32 0, %v3691
      %v3693 = vadd.s32 %v3688, 1
      %vm3694 = vcmp.gt.s32.totalorder %v3693, 0
      %v3695 = vsel %vm3694, %v3693, 0
      %v3696 = vshrl.u32 %v3695, 5
      %v3697 = vand.u32 %v3695, 31
      %v3698 = vsub.s32 32, %v3697
      %v3699 = vshrl.u32 683565275, %v3698
      %v3700 = vshll.u32 683565275, %v3697
      %v3701 = vshrl.u32 2475754826, %v3698
      %v3702 = vor.u32 %v3700, %v3701
      %v3703 = vshll.u32 2475754826, %v3697
      %v3704 = vshrl.u32 2131351028, %v3698
      %v3705 = vor.u32 %v3703, %v3704
      %v3706 = vshll.u32 2131351028, %v3697
      %v3707 = vshrl.u32 2102212464, %v3698
      %v3708 = vor.u32 %v3706, %v3707
      %v3709 = vshll.u32 2102212464, %v3697
      %v3710 = vshrl.u32 920167782, %v3698
      %v3711 = vor.u32 %v3709, %v3710
      %v3712 = vshll.u32 920167782, %v3697
      %v3713 = vshrl.u32 1326507024, %v3698
      %v3714 = vor.u32 %v3712, %v3713
      %vm3715 = vcmp.lt.s32.totalorder %v3696, 1
      %vm3716 = vcmp.lt.s32.totalorder %v3696, 2
      %vm3717 = vcmp.lt.s32.totalorder %v3696, 3
      %vm3718 = vcmp.lt.s32.totalorder %v3696, 4
      %v3719 = vsel %vm3715, %v3699, %v3702
      %v3720 = vsel %vm3718, %v3708, 2102212464
      %v3721 = vsel %vm3717, %v3705, %v3720
      %v3722 = vsel %vm3716, %v3719, %v3721
      %v3723 = vsel %vm3715, %v3702, %v3705
      %v3724 = vsel %vm3718, %v3711, 920167782
      %v3725 = vsel %vm3717, %v3708, %v3724
      %v3726 = vsel %vm3716, %v3723, %v3725
      %v3727 = vsel %vm3715, %v3705, %v3708
      %v3728 = vsel %vm3718, %v3714, 1326507024
      %v3729 = vsel %vm3717, %v3711, %v3728
      %v3730 = vsel %vm3716, %v3727, %v3729
      %v3731 = vshll.u32 %v3691, 8
      %v3732 = vmul.u32.u64.compose %v3731, %v3730
      %v3733 = vextract.low.u32 %v3732
      %v3734 = vextract.high.u32 %v3732
      %v3735 = vmul.u32.u64.compose %v3731, %v3726
      %v3736 = vextract.low.u32 %v3735
      %v3737 = vextract.high.u32 %v3735
      %v3738 = vmul.u32 %v3731, %v3722
      %v3739 = vadd.s32 %v3734, %v3736
      %vm3740 = vc.u32 %v3734, %v3736
      %v3741 = vadd.s32 %v3737, 1
      %v3742 = vsel %vm3740, %v3741, %v3737
      %v3743 = vadd.s32 %v3738, %v3742
      %v3744 = vadd.s32 %v3743, 536870912
      %v3745 = vshrl.u32 %v3744, 30
      %v3746 = vshll.u32 %v3745, 30
      %v3747 = vsub.s32 %v3743, %v3746
      %vm3748 = vcmp.lt.s32.totalorder %v3747, 0
      %v3749 = vsub.s32 0, %v3747
      %v3750 = vsel %vm3748, %v3749, %v3747
      %v3751 = vclz %v3750
      %v3752 = vsub.s32 %v3751, 2
      %vm3753 = vcmp.gt.s32.totalorder 0, %v3752
      %v3754 = vsel %vm3753, 0, %v3752
      %v3755 = vsub.s32 32, %v3754
      %v3756 = vshll.u32 %v3747, %v3754
      %v3757 = vshrl.u32 %v3739, %v3755
      %v3758 = vor.u32 %v3756, %v3757
      %v3759 = vsub.s32 4294967266, %v3754
      %v3760 = vadd.s32 %v3759, 127
      %v3761 = vshll.u32 %v3760, 23
      %v3762 = vor.u32 4788187, %v3761
      %v3763 = vand.u32 2147483647, %v3762
      %v3765 = vcvt.s32.f32 %v3758
      %v3766 = vmul.f32 %v3765, %v3763
      %v3767 = vxor.u32 %v3766, 2147483648
      %v3768 = vsel %vm3685, %v3767, %v3766
      %v3769 = vsub.s32 4, %v3745
      %v3770 = vsel %vm3685, %v3769, %v3745
      %v3771 = vsel %vm3684, %v1044, %v3768
      %v3772 = vsel %vm3684, 0, %v3770
      %v3773 = vcosq.f32.pop %v3771
      %v3774 = vsinq.f32.pop %v3771
      %vm3775 = vweird.f32 %v1044
      %v3776 = vadd.s32 %v3772, 3
      %v3777 = vand.u32 %v3776, 3
      %vm3778 = vcmp.lt.s32.totalorder %v3777, 2
      %vm3779 = vcmp.eq.s32.totalorder %v3777, 0
      %v3780 = vxor.u32 %v3774, 2147483648
      %v3781 = vsel %vm3779, %v3773, %v3780
      %vm3782 = vcmp.eq.s32.totalorder %v3777, 2
      %v3783 = vxor.u32 %v3773, 2147483648
      %v3784 = vsel %vm3782, %v3783, %v3774
      %v3785 = vsel %vm3778, %v3781, %v3784
      %v3786 = vsel %vm3775, nan, %v3785
      %v3787 = vand.u32 2147483647, %v1045
      %vm3788 = vcmp.le.f32.partialorder %v3787, 0.7853982
      %vm3789 = vcmp.lt.s32.totalorder %v1045, 0
      %v3790 = vand.u32 %v1045, 2139095040
      %v3791 = vshrl.u32 %v3790, 23
      %v3792 = vsub.s32 %v3791, 127
      %v3793 = vand.u32 2147483647, %v1045
      %v3794 = vand.u32 %v3793, 8388607
      %v3795 = vor.u32 %v3794, 8388608
      %v3796 = vsub.s32 0, %v3795
      %v3797 = vadd.s32 %v3792, 1
      %vm3798 = vcmp.gt.s32.totalorder %v3797, 0
      %v3799 = vsel %vm3798, %v3797, 0
      %v3800 = vshrl.u32 %v3799, 5
      %v3801 = vand.u32 %v3799, 31
      %v3802 = vsub.s32 32, %v3801
      %v3803 = vshrl.u32 683565275, %v3802
      %v3804 = vshll.u32 683565275, %v3801
      %v3805 = vshrl.u32 2475754826, %v3802
      %v3806 = vor.u32 %v3804, %v3805
      %v3807 = vshll.u32 2475754826, %v3801
      %v3808 = vshrl.u32 2131351028, %v3802
      %v3809 = vor.u32 %v3807, %v3808
      %v3810 = vshll.u32 2131351028, %v3801
      %v3811 = vshrl.u32 2102212464, %v3802
      %v3812 = vor.u32 %v3810, %v3811
      %v3813 = vshll.u32 2102212464, %v3801
      %v3814 = vshrl.u32 920167782, %v3802
      %v3815 = vor.u32 %v3813, %v3814
      %v3816 = vshll.u32 920167782, %v3801
      %v3817 = vshrl.u32 1326507024, %v3802
      %v3818 = vor.u32 %v3816, %v3817
      %vm3819 = vcmp.lt.s32.totalorder %v3800, 1
      %vm3820 = vcmp.lt.s32.totalorder %v3800, 2
      %vm3821 = vcmp.lt.s32.totalorder %v3800, 3
      %vm3822 = vcmp.lt.s32.totalorder %v3800, 4
      %v3823 = vsel %vm3819, %v3803, %v3806
      %v3824 = vsel %vm3822, %v3812, 2102212464
      %v3825 = vsel %vm3821, %v3809, %v3824
      %v3826 = vsel %vm3820, %v3823, %v3825
      %v3827 = vsel %vm3819, %v3806, %v3809
      %v3828 = vsel %vm3822, %v3815, 920167782
      %v3829 = vsel %vm3821, %v3812, %v3828
      %v3830 = vsel %vm3820, %v3827, %v3829
      %v3831 = vsel %vm3819, %v3809, %v3812
      %v3832 = vsel %vm3822, %v3818, 1326507024
      %v3833 = vsel %vm3821, %v3815, %v3832
      %v3834 = vsel %vm3820, %v3831, %v3833
      %v3835 = vshll.u32 %v3795, 8
      %v3836 = vmul.u32.u64.compose %v3835, %v3834
      %v3837 = vextract.low.u32 %v3836
      %v3838 = vextract.high.u32 %v3836
      %v3839 = vmul.u32.u64.compose %v3835, %v3830
      %v3840 = vextract.low.u32 %v3839
      %v3841 = vextract.high.u32 %v3839
      %v3842 = vmul.u32 %v3835, %v3826
      %v3843 = vadd.s32 %v3838, %v3840
      %vm3844 = vc.u32 %v3838, %v3840
      %v3845 = vadd.s32 %v3841, 1
      %v3846 = vsel %vm3844, %v3845, %v3841
      %v3847 = vadd.s32 %v3842, %v3846
      %v3848 = vadd.s32 %v3847, 536870912
      %v3849 = vshrl.u32 %v3848, 30
      %v3850 = vshll.u32 %v3849, 30
      %v3851 = vsub.s32 %v3847, %v3850
      %vm3852 = vcmp.lt.s32.totalorder %v3851, 0
      %v3853 = vsub.s32 0, %v3851
      %v3854 = vsel %vm3852, %v3853, %v3851
      %v3855 = vclz %v3854
      %v3856 = vsub.s32 %v3855, 2
      %vm3857 = vcmp.gt.s32.totalorder 0, %v3856
      %v3858 = vsel %vm3857, 0, %v3856
      %v3859 = vsub.s32 32, %v3858
      %v3860 = vshll.u32 %v3851, %v3858
      %v3861 = vshrl.u32 %v3843, %v3859
      %v3862 = vor.u32 %v3860, %v3861
      %v3863 = vsub.s32 4294967266, %v3858
      %v3864 = vadd.s32 %v3863, 127
      %v3865 = vshll.u32 %v3864, 23
      %v3866 = vor.u32 4788187, %v3865
      %v3867 = vand.u32 2147483647, %v3866
      %v3869 = vcvt.s32.f32 %v3862
      %v3870 = vmul.f32 %v3869, %v3867
      %v3871 = vxor.u32 %v3870, 2147483648
      %v3872 = vsel %vm3789, %v3871, %v3870
      %v3873 = vsub.s32 4, %v3849
      %v3874 = vsel %vm3789, %v3873, %v3849
      %v3875 = vsel %vm3788, %v1045, %v3872
      %v3876 = vsel %vm3788, 0, %v3874
      %v3877 = vcosq.f32.pop %v3875
      %v3878 = vsinq.f32.pop %v3875
      %vm3879 = vweird.f32 %v1045
      %v3880 = vadd.s32 %v3876, 3
      %v3881 = vand.u32 %v3880, 3
      %vm3882 = vcmp.lt.s32.totalorder %v3881, 2
      %vm3883 = vcmp.eq.s32.totalorder %v3881, 0
      %v3884 = vxor.u32 %v3878, 2147483648
      %v3885 = vsel %vm3883, %v3877, %v3884
      %vm3886 = vcmp.eq.s32.totalorder %v3881, 2
      %v3887 = vxor.u32 %v3877, 2147483648
      %v3888 = vsel %vm3886, %v3887, %v3878
      %v3889 = vsel %vm3882, %v3885, %v3888
      %v3890 = vsel %vm3879, nan, %v3889
      %v3891 = vand.u32 2147483647, %v1046
      %vm3892 = vcmp.le.f32.partialorder %v3891, 0.7853982
      %vm3893 = vcmp.lt.s32.totalorder %v1046, 0
      %v3894 = vand.u32 %v1046, 2139095040
      %v3895 = vshrl.u32 %v3894, 23
      %v3896 = vsub.s32 %v3895, 127
      %v3897 = vand.u32 2147483647, %v1046
      %v3898 = vand.u32 %v3897, 8388607
      %v3899 = vor.u32 %v3898, 8388608
      %v3900 = vsub.s32 0, %v3899
      %v3901 = vadd.s32 %v3896, 1
      %vm3902 = vcmp.gt.s32.totalorder %v3901, 0
      %v3903 = vsel %vm3902, %v3901, 0
      %v3904 = vshrl.u32 %v3903, 5
      %v3905 = vand.u32 %v3903, 31
      %v3906 = vsub.s32 32, %v3905
      %v3907 = vshrl.u32 683565275, %v3906
      %v3908 = vshll.u32 683565275, %v3905
      %v3909 = vshrl.u32 2475754826, %v3906
      %v3910 = vor.u32 %v3908, %v3909
      %v3911 = vshll.u32 2475754826, %v3905
      %v3912 = vshrl.u32 2131351028, %v3906
      %v3913 = vor.u32 %v3911, %v3912
      %v3914 = vshll.u32 2131351028, %v3905
      %v3915 = vshrl.u32 2102212464, %v3906
      %v3916 = vor.u32 %v3914, %v3915
      %v3917 = vshll.u32 2102212464, %v3905
      %v3918 = vshrl.u32 920167782, %v3906
      %v3919 = vor.u32 %v3917, %v3918
      %v3920 = vshll.u32 920167782, %v3905
      %v3921 = vshrl.u32 1326507024, %v3906
      %v3922 = vor.u32 %v3920, %v3921
      %vm3923 = vcmp.lt.s32.totalorder %v3904, 1
      %vm3924 = vcmp.lt.s32.totalorder %v3904, 2
      %vm3925 = vcmp.lt.s32.totalorder %v3904, 3
      %vm3926 = vcmp.lt.s32.totalorder %v3904, 4
      %v3927 = vsel %vm3923, %v3907, %v3910
      %v3928 = vsel %vm3926, %v3916, 2102212464
      %v3929 = vsel %vm3925, %v3913, %v3928
      %v3930 = vsel %vm3924, %v3927, %v3929
      %v3931 = vsel %vm3923, %v3910, %v3913
      %v3932 = vsel %vm3926, %v3919, 920167782
      %v3933 = vsel %vm3925, %v3916, %v3932
      %v3934 = vsel %vm3924, %v3931, %v3933
      %v3935 = vsel %vm3923, %v3913, %v3916
      %v3936 = vsel %vm3926, %v3922, 1326507024
      %v3937 = vsel %vm3925, %v3919, %v3936
      %v3938 = vsel %vm3924, %v3935, %v3937
      %v3939 = vshll.u32 %v3899, 8
      %v3940 = vmul.u32.u64.compose %v3939, %v3938
      %v3941 = vextract.low.u32 %v3940
      %v3942 = vextract.high.u32 %v3940
      %v3943 = vmul.u32.u64.compose %v3939, %v3934
      %v3944 = vextract.low.u32 %v3943
      %v3945 = vextract.high.u32 %v3943
      %v3946 = vmul.u32 %v3939, %v3930
      %v3947 = vadd.s32 %v3942, %v3944
      %vm3948 = vc.u32 %v3942, %v3944
      %v3949 = vadd.s32 %v3945, 1
      %v3950 = vsel %vm3948, %v3949, %v3945
      %v3951 = vadd.s32 %v3946, %v3950
      %v3952 = vadd.s32 %v3951, 536870912
      %v3953 = vshrl.u32 %v3952, 30
      %v3954 = vshll.u32 %v3953, 30
      %v3955 = vsub.s32 %v3951, %v3954
      %vm3956 = vcmp.lt.s32.totalorder %v3955, 0
      %v3957 = vsub.s32 0, %v3955
      %v3958 = vsel %vm3956, %v3957, %v3955
      %v3959 = vclz %v3958
      %v3960 = vsub.s32 %v3959, 2
      %vm3961 = vcmp.gt.s32.totalorder 0, %v3960
      %v3962 = vsel %vm3961, 0, %v3960
      %v3963 = vsub.s32 32, %v3962
      %v3964 = vshll.u32 %v3955, %v3962
      %v3965 = vshrl.u32 %v3947, %v3963
      %v3966 = vor.u32 %v3964, %v3965
      %v3967 = vsub.s32 4294967266, %v3962
      %v3968 = vadd.s32 %v3967, 127
      %v3969 = vshll.u32 %v3968, 23
      %v3970 = vor.u32 4788187, %v3969
      %v3971 = vand.u32 2147483647, %v3970
      %v3973 = vcvt.s32.f32 %v3966
      %v3974 = vmul.f32 %v3973, %v3971
      %v3975 = vxor.u32 %v3974, 2147483648
      %v3976 = vsel %vm3893, %v3975, %v3974
      %v3977 = vsub.s32 4, %v3953
      %v3978 = vsel %vm3893, %v3977, %v3953
      %v3979 = vsel %vm3892, %v1046, %v3976
      %v3980 = vsel %vm3892, 0, %v3978
      %v3981 = vcosq.f32.pop %v3979
      %v3982 = vsinq.f32.pop %v3979
      %vm3983 = vweird.f32 %v1046
      %v3984 = vadd.s32 %v3980, 3
      %v3985 = vand.u32 %v3984, 3
      %vm3986 = vcmp.lt.s32.totalorder %v3985, 2
      %vm3987 = vcmp.eq.s32.totalorder %v3985, 0
      %v3988 = vxor.u32 %v3982, 2147483648
      %v3989 = vsel %vm3987, %v3981, %v3988
      %vm3990 = vcmp.eq.s32.totalorder %v3985, 2
      %v3991 = vxor.u32 %v3981, 2147483648
      %v3992 = vsel %vm3990, %v3991, %v3982
      %v3993 = vsel %vm3986, %v3989, %v3992
      %v3994 = vsel %vm3983, nan, %v3993
      %v3995 = vand.u32 2147483647, %v1047
      %vm3996 = vcmp.le.f32.partialorder %v3995, 0.7853982
      %vm3997 = vcmp.lt.s32.totalorder %v1047, 0
      %v3998 = vand.u32 %v1047, 2139095040
      %v3999 = vshrl.u32 %v3998, 23
      %v4000 = vsub.s32 %v3999, 127
      %v4001 = vand.u32 2147483647, %v1047
      %v4002 = vand.u32 %v4001, 8388607
      %v4003 = vor.u32 %v4002, 8388608
      %v4004 = vsub.s32 0, %v4003
      %v4005 = vadd.s32 %v4000, 1
      %vm4006 = vcmp.gt.s32.totalorder %v4005, 0
      %v4007 = vsel %vm4006, %v4005, 0
      %v4008 = vshrl.u32 %v4007, 5
      %v4009 = vand.u32 %v4007, 31
      %v4010 = vsub.s32 32, %v4009
      %v4011 = vshrl.u32 683565275, %v4010
      %v4012 = vshll.u32 683565275, %v4009
      %v4013 = vshrl.u32 2475754826, %v4010
      %v4014 = vor.u32 %v4012, %v4013
      %v4015 = vshll.u32 2475754826, %v4009
      %v4016 = vshrl.u32 2131351028, %v4010
      %v4017 = vor.u32 %v4015, %v4016
      %v4018 = vshll.u32 2131351028, %v4009
      %v4019 = vshrl.u32 2102212464, %v4010
      %v4020 = vor.u32 %v4018, %v4019
      %v4021 = vshll.u32 2102212464, %v4009
      %v4022 = vshrl.u32 920167782, %v4010
      %v4023 = vor.u32 %v4021, %v4022
      %v4024 = vshll.u32 920167782, %v4009
      %v4025 = vshrl.u32 1326507024, %v4010
      %v4026 = vor.u32 %v4024, %v4025
      %vm4027 = vcmp.lt.s32.totalorder %v4008, 1
      %vm4028 = vcmp.lt.s32.totalorder %v4008, 2
      %vm4029 = vcmp.lt.s32.totalorder %v4008, 3
      %vm4030 = vcmp.lt.s32.totalorder %v4008, 4
      %v4031 = vsel %vm4027, %v4011, %v4014
      %v4032 = vsel %vm4030, %v4020, 2102212464
      %v4033 = vsel %vm4029, %v4017, %v4032
      %v4034 = vsel %vm4028, %v4031, %v4033
      %v4035 = vsel %vm4027, %v4014, %v4017
      %v4036 = vsel %vm4030, %v4023, 920167782
      %v4037 = vsel %vm4029, %v4020, %v4036
      %v4038 = vsel %vm4028, %v4035, %v4037
      %v4039 = vsel %vm4027, %v4017, %v4020
      %v4040 = vsel %vm4030, %v4026, 1326507024
      %v4041 = vsel %vm4029, %v4023, %v4040
      %v4042 = vsel %vm4028, %v4039, %v4041
      %v4043 = vshll.u32 %v4003, 8
      %v4044 = vmul.u32.u64.compose %v4043, %v4042
      %v4045 = vextract.low.u32 %v4044
      %v4046 = vextract.high.u32 %v4044
      %v4047 = vmul.u32.u64.compose %v4043, %v4038
      %v4048 = vextract.low.u32 %v4047
      %v4049 = vextract.high.u32 %v4047
      %v4050 = vmul.u32 %v4043, %v4034
      %v4051 = vadd.s32 %v4046, %v4048
      %vm4052 = vc.u32 %v4046, %v4048
      %v4053 = vadd.s32 %v4049, 1
      %v4054 = vsel %vm4052, %v4053, %v4049
      %v4055 = vadd.s32 %v4050, %v4054
      %v4056 = vadd.s32 %v4055, 536870912
      %v4057 = vshrl.u32 %v4056, 30
      %v4058 = vshll.u32 %v4057, 30
      %v4059 = vsub.s32 %v4055, %v4058
      %vm4060 = vcmp.lt.s32.totalorder %v4059, 0
      %v4061 = vsub.s32 0, %v4059
      %v4062 = vsel %vm4060, %v4061, %v4059
      %v4063 = vclz %v4062
      %v4064 = vsub.s32 %v4063, 2
      %vm4065 = vcmp.gt.s32.totalorder 0, %v4064
      %v4066 = vsel %vm4065, 0, %v4064
      %v4067 = vsub.s32 32, %v4066
      %v4068 = vshll.u32 %v4059, %v4066
      %v4069 = vshrl.u32 %v4051, %v4067
      %v4070 = vor.u32 %v4068, %v4069
      %v4071 = vsub.s32 4294967266, %v4066
      %v4072 = vadd.s32 %v4071, 127
      %v4073 = vshll.u32 %v4072, 23
      %v4074 = vor.u32 4788187, %v4073
      %v4075 = vand.u32 2147483647, %v4074
      %v4077 = vcvt.s32.f32 %v4070
      %v4078 = vmul.f32 %v4077, %v4075
      %v4079 = vxor.u32 %v4078, 2147483648
      %v4080 = vsel %vm3997, %v4079, %v4078
      %v4081 = vsub.s32 4, %v4057
      %v4082 = vsel %vm3997, %v4081, %v4057
      %v4083 = vsel %vm3996, %v1047, %v4080
      %v4084 = vsel %vm3996, 0, %v4082
      %v4085 = vcosq.f32.pop %v4083
      %v4086 = vsinq.f32.pop %v4083
      %vm4087 = vweird.f32 %v1047
      %v4088 = vadd.s32 %v4084, 3
      %v4089 = vand.u32 %v4088, 3
      %vm4090 = vcmp.lt.s32.totalorder %v4089, 2
      %vm4091 = vcmp.eq.s32.totalorder %v4089, 0
      %v4092 = vxor.u32 %v4086, 2147483648
      %v4093 = vsel %vm4091, %v4085, %v4092
      %vm4094 = vcmp.eq.s32.totalorder %v4089, 2
      %v4095 = vxor.u32 %v4085, 2147483648
      %v4096 = vsel %vm4094, %v4095, %v4086
      %v4097 = vsel %vm4090, %v4093, %v4096
      %v4098 = vsel %vm4087, nan, %v4097
      %v4099 = vand.u32 2147483647, %v1048
      %vm4100 = vcmp.le.f32.partialorder %v4099, 0.7853982
      %vm4101 = vcmp.lt.s32.totalorder %v1048, 0
      %v4102 = vand.u32 %v1048, 2139095040
      %v4103 = vshrl.u32 %v4102, 23
      %v4104 = vsub.s32 %v4103, 127
      %v4105 = vand.u32 2147483647, %v1048
      %v4106 = vand.u32 %v4105, 8388607
      %v4107 = vor.u32 %v4106, 8388608
      %v4108 = vsub.s32 0, %v4107
      %v4109 = vadd.s32 %v4104, 1
      %vm4110 = vcmp.gt.s32.totalorder %v4109, 0
      %v4111 = vsel %vm4110, %v4109, 0
      %v4112 = vshrl.u32 %v4111, 5
      %v4113 = vand.u32 %v4111, 31
      %v4114 = vsub.s32 32, %v4113
      %v4115 = vshrl.u32 683565275, %v4114
      %v4116 = vshll.u32 683565275, %v4113
      %v4117 = vshrl.u32 2475754826, %v4114
      %v4118 = vor.u32 %v4116, %v4117
      %v4119 = vshll.u32 2475754826, %v4113
      %v4120 = vshrl.u32 2131351028, %v4114
      %v4121 = vor.u32 %v4119, %v4120
      %v4122 = vshll.u32 2131351028, %v4113
      %v4123 = vshrl.u32 2102212464, %v4114
      %v4124 = vor.u32 %v4122, %v4123
      %v4125 = vshll.u32 2102212464, %v4113
      %v4126 = vshrl.u32 920167782, %v4114
      %v4127 = vor.u32 %v4125, %v4126
      %v4128 = vshll.u32 920167782, %v4113
      %v4129 = vshrl.u32 1326507024, %v4114
      %v4130 = vor.u32 %v4128, %v4129
      %vm4131 = vcmp.lt.s32.totalorder %v4112, 1
      %vm4132 = vcmp.lt.s32.totalorder %v4112, 2
      %vm4133 = vcmp.lt.s32.totalorder %v4112, 3
      %vm4134 = vcmp.lt.s32.totalorder %v4112, 4
      %v4135 = vsel %vm4131, %v4115, %v4118
      %v4136 = vsel %vm4134, %v4124, 2102212464
      %v4137 = vsel %vm4133, %v4121, %v4136
      %v4138 = vsel %vm4132, %v4135, %v4137
      %v4139 = vsel %vm4131, %v4118, %v4121
      %v4140 = vsel %vm4134, %v4127, 920167782
      %v4141 = vsel %vm4133, %v4124, %v4140
      %v4142 = vsel %vm4132, %v4139, %v4141
      %v4143 = vsel %vm4131, %v4121, %v4124
      %v4144 = vsel %vm4134, %v4130, 1326507024
      %v4145 = vsel %vm4133, %v4127, %v4144
      %v4146 = vsel %vm4132, %v4143, %v4145
      %v4147 = vshll.u32 %v4107, 8
      %v4148 = vmul.u32.u64.compose %v4147, %v4146
      %v4149 = vextract.low.u32 %v4148
      %v4150 = vextract.high.u32 %v4148
      %v4151 = vmul.u32.u64.compose %v4147, %v4142
      %v4152 = vextract.low.u32 %v4151
      %v4153 = vextract.high.u32 %v4151
      %v4154 = vmul.u32 %v4147, %v4138
      %v4155 = vadd.s32 %v4150, %v4152
      %vm4156 = vc.u32 %v4150, %v4152
      %v4157 = vadd.s32 %v4153, 1
      %v4158 = vsel %vm4156, %v4157, %v4153
      %v4159 = vadd.s32 %v4154, %v4158
      %v4160 = vadd.s32 %v4159, 536870912
      %v4161 = vshrl.u32 %v4160, 30
      %v4162 = vshll.u32 %v4161, 30
      %v4163 = vsub.s32 %v4159, %v4162
      %vm4164 = vcmp.lt.s32.totalorder %v4163, 0
      %v4165 = vsub.s32 0, %v4163
      %v4166 = vsel %vm4164, %v4165, %v4163
      %v4167 = vclz %v4166
      %v4168 = vsub.s32 %v4167, 2
      %vm4169 = vcmp.gt.s32.totalorder 0, %v4168
      %v4170 = vsel %vm4169, 0, %v4168
      %v4171 = vsub.s32 32, %v4170
      %v4172 = vshll.u32 %v4163, %v4170
      %v4173 = vshrl.u32 %v4155, %v4171
      %v4174 = vor.u32 %v4172, %v4173
      %v4175 = vsub.s32 4294967266, %v4170
      %v4176 = vadd.s32 %v4175, 127
      %v4177 = vshll.u32 %v4176, 23
      %v4178 = vor.u32 4788187, %v4177
      %v4179 = vand.u32 2147483647, %v4178
      %v4181 = vcvt.s32.f32 %v4174
      %v4182 = vmul.f32 %v4181, %v4179
      %v4183 = vxor.u32 %v4182, 2147483648
      %v4184 = vsel %vm4101, %v4183, %v4182
      %v4185 = vsub.s32 4, %v4161
      %v4186 = vsel %vm4101, %v4185, %v4161
      %v4187 = vsel %vm4100, %v1048, %v4184
      %v4188 = vsel %vm4100, 0, %v4186
      %v4189 = vcosq.f32.pop %v4187
      %v4190 = vsinq.f32.pop %v4187
      %vm4191 = vweird.f32 %v1048
      %v4192 = vadd.s32 %v4188, 3
      %v4193 = vand.u32 %v4192, 3
      %vm4194 = vcmp.lt.s32.totalorder %v4193, 2
      %vm4195 = vcmp.eq.s32.totalorder %v4193, 0
      %v4196 = vxor.u32 %v4190, 2147483648
      %v4197 = vsel %vm4195, %v4189, %v4196
      %vm4198 = vcmp.eq.s32.totalorder %v4193, 2
      %v4199 = vxor.u32 %v4189, 2147483648
      %v4200 = vsel %vm4198, %v4199, %v4190
      %v4201 = vsel %vm4194, %v4197, %v4200
      %v4202 = vsel %vm4191, nan, %v4201
      %v4203 = vand.u32 2147483647, %v1049
      %vm4204 = vcmp.le.f32.partialorder %v4203, 0.7853982
      %vm4205 = vcmp.lt.s32.totalorder %v1049, 0
      %v4206 = vand.u32 %v1049, 2139095040
      %v4207 = vshrl.u32 %v4206, 23
      %v4208 = vsub.s32 %v4207, 127
      %v4209 = vand.u32 2147483647, %v1049
      %v4210 = vand.u32 %v4209, 8388607
      %v4211 = vor.u32 %v4210, 8388608
      %v4212 = vsub.s32 0, %v4211
      %v4213 = vadd.s32 %v4208, 1
      %vm4214 = vcmp.gt.s32.totalorder %v4213, 0
      %v4215 = vsel %vm4214, %v4213, 0
      %v4216 = vshrl.u32 %v4215, 5
      %v4217 = vand.u32 %v4215, 31
      %v4218 = vsub.s32 32, %v4217
      %v4219 = vshrl.u32 683565275, %v4218
      %v4220 = vshll.u32 683565275, %v4217
      %v4221 = vshrl.u32 2475754826, %v4218
      %v4222 = vor.u32 %v4220, %v4221
      %v4223 = vshll.u32 2475754826, %v4217
      %v4224 = vshrl.u32 2131351028, %v4218
      %v4225 = vor.u32 %v4223, %v4224
      %v4226 = vshll.u32 2131351028, %v4217
      %v4227 = vshrl.u32 2102212464, %v4218
      %v4228 = vor.u32 %v4226, %v4227
      %v4229 = vshll.u32 2102212464, %v4217
      %v4230 = vshrl.u32 920167782, %v4218
      %v4231 = vor.u32 %v4229, %v4230
      %v4232 = vshll.u32 920167782, %v4217
      %v4233 = vshrl.u32 1326507024, %v4218
      %v4234 = vor.u32 %v4232, %v4233
      %vm4235 = vcmp.lt.s32.totalorder %v4216, 1
      %vm4236 = vcmp.lt.s32.totalorder %v4216, 2
      %vm4237 = vcmp.lt.s32.totalorder %v4216, 3
      %vm4238 = vcmp.lt.s32.totalorder %v4216, 4
      %v4239 = vsel %vm4235, %v4219, %v4222
      %v4240 = vsel %vm4238, %v4228, 2102212464
      %v4241 = vsel %vm4237, %v4225, %v4240
      %v4242 = vsel %vm4236, %v4239, %v4241
      %v4243 = vsel %vm4235, %v4222, %v4225
      %v4244 = vsel %vm4238, %v4231, 920167782
      %v4245 = vsel %vm4237, %v4228, %v4244
      %v4246 = vsel %vm4236, %v4243, %v4245
      %v4247 = vsel %vm4235, %v4225, %v4228
      %v4248 = vsel %vm4238, %v4234, 1326507024
      %v4249 = vsel %vm4237, %v4231, %v4248
      %v4250 = vsel %vm4236, %v4247, %v4249
      %v4251 = vshll.u32 %v4211, 8
      %v4252 = vmul.u32.u64.compose %v4251, %v4250
      %v4253 = vextract.low.u32 %v4252
      %v4254 = vextract.high.u32 %v4252
      %v4255 = vmul.u32.u64.compose %v4251, %v4246
      %v4256 = vextract.low.u32 %v4255
      %v4257 = vextract.high.u32 %v4255
      %v4258 = vmul.u32 %v4251, %v4242
      %v4259 = vadd.s32 %v4254, %v4256
      %vm4260 = vc.u32 %v4254, %v4256
      %v4261 = vadd.s32 %v4257, 1
      %v4262 = vsel %vm4260, %v4261, %v4257
      %v4263 = vadd.s32 %v4258, %v4262
      %v4264 = vadd.s32 %v4263, 536870912
      %v4265 = vshrl.u32 %v4264, 30
      %v4266 = vshll.u32 %v4265, 30
      %v4267 = vsub.s32 %v4263, %v4266
      %vm4268 = vcmp.lt.s32.totalorder %v4267, 0
      %v4269 = vsub.s32 0, %v4267
      %v4270 = vsel %vm4268, %v4269, %v4267
      %v4271 = vclz %v4270
      %v4272 = vsub.s32 %v4271, 2
      %vm4273 = vcmp.gt.s32.totalorder 0, %v4272
      %v4274 = vsel %vm4273, 0, %v4272
      %v4275 = vsub.s32 32, %v4274
      %v4276 = vshll.u32 %v4267, %v4274
      %v4277 = vshrl.u32 %v4259, %v4275
      %v4278 = vor.u32 %v4276, %v4277
      %v4279 = vsub.s32 4294967266, %v4274
      %v4280 = vadd.s32 %v4279, 127
      %v4281 = vshll.u32 %v4280, 23
      %v4282 = vor.u32 4788187, %v4281
      %v4283 = vand.u32 2147483647, %v4282
      %v4285 = vcvt.s32.f32 %v4278
      %v4286 = vmul.f32 %v4285, %v4283
      %v4287 = vxor.u32 %v4286, 2147483648
      %v4288 = vsel %vm4205, %v4287, %v4286
      %v4289 = vsub.s32 4, %v4265
      %v4290 = vsel %vm4205, %v4289, %v4265
      %v4291 = vsel %vm4204, %v1049, %v4288
      %v4292 = vsel %vm4204, 0, %v4290
      %v4293 = vcosq.f32.pop %v4291
      %v4294 = vsinq.f32.pop %v4291
      %vm4295 = vweird.f32 %v1049
      %v4296 = vadd.s32 %v4292, 3
      %v4297 = vand.u32 %v4296, 3
      %vm4298 = vcmp.lt.s32.totalorder %v4297, 2
      %vm4299 = vcmp.eq.s32.totalorder %v4297, 0
      %v4300 = vxor.u32 %v4294, 2147483648
      %v4301 = vsel %vm4299, %v4293, %v4300
      %vm4302 = vcmp.eq.s32.totalorder %v4297, 2
      %v4303 = vxor.u32 %v4293, 2147483648
      %v4304 = vsel %vm4302, %v4303, %v4294
      %v4305 = vsel %vm4298, %v4301, %v4304
      %v4306 = vsel %vm4295, nan, %v4305
      %v4307 = vand.u32 2147483647, %v1050
      %vm4308 = vcmp.le.f32.partialorder %v4307, 0.7853982
      %vm4309 = vcmp.lt.s32.totalorder %v1050, 0
      %v4310 = vand.u32 %v1050, 2139095040
      %v4311 = vshrl.u32 %v4310, 23
      %v4312 = vsub.s32 %v4311, 127
      %v4313 = vand.u32 2147483647, %v1050
      %v4314 = vand.u32 %v4313, 8388607
      %v4315 = vor.u32 %v4314, 8388608
      %v4316 = vsub.s32 0, %v4315
      %v4317 = vadd.s32 %v4312, 1
      %vm4318 = vcmp.gt.s32.totalorder %v4317, 0
      %v4319 = vsel %vm4318, %v4317, 0
      %v4320 = vshrl.u32 %v4319, 5
      %v4321 = vand.u32 %v4319, 31
      %v4322 = vsub.s32 32, %v4321
      %v4323 = vshrl.u32 683565275, %v4322
      %v4324 = vshll.u32 683565275, %v4321
      %v4325 = vshrl.u32 2475754826, %v4322
      %v4326 = vor.u32 %v4324, %v4325
      %v4327 = vshll.u32 2475754826, %v4321
      %v4328 = vshrl.u32 2131351028, %v4322
      %v4329 = vor.u32 %v4327, %v4328
      %v4330 = vshll.u32 2131351028, %v4321
      %v4331 = vshrl.u32 2102212464, %v4322
      %v4332 = vor.u32 %v4330, %v4331
      %v4333 = vshll.u32 2102212464, %v4321
      %v4334 = vshrl.u32 920167782, %v4322
      %v4335 = vor.u32 %v4333, %v4334
      %v4336 = vshll.u32 920167782, %v4321
      %v4337 = vshrl.u32 1326507024, %v4322
      %v4338 = vor.u32 %v4336, %v4337
      %vm4339 = vcmp.lt.s32.totalorder %v4320, 1
      %vm4340 = vcmp.lt.s32.totalorder %v4320, 2
      %vm4341 = vcmp.lt.s32.totalorder %v4320, 3
      %vm4342 = vcmp.lt.s32.totalorder %v4320, 4
      %v4343 = vsel %vm4339, %v4323, %v4326
      %v4344 = vsel %vm4342, %v4332, 2102212464
      %v4345 = vsel %vm4341, %v4329, %v4344
      %v4346 = vsel %vm4340, %v4343, %v4345
      %v4347 = vsel %vm4339, %v4326, %v4329
      %v4348 = vsel %vm4342, %v4335, 920167782
      %v4349 = vsel %vm4341, %v4332, %v4348
      %v4350 = vsel %vm4340, %v4347, %v4349
      %v4351 = vsel %vm4339, %v4329, %v4332
      %v4352 = vsel %vm4342, %v4338, 1326507024
      %v4353 = vsel %vm4341, %v4335, %v4352
      %v4354 = vsel %vm4340, %v4351, %v4353
      %v4355 = vshll.u32 %v4315, 8
      %v4356 = vmul.u32.u64.compose %v4355, %v4354
      %v4357 = vextract.low.u32 %v4356
      %v4358 = vextract.high.u32 %v4356
      %v4359 = vmul.u32.u64.compose %v4355, %v4350
      %v4360 = vextract.low.u32 %v4359
      %v4361 = vextract.high.u32 %v4359
      %v4362 = vmul.u32 %v4355, %v4346
      %v4363 = vadd.s32 %v4358, %v4360
      %vm4364 = vc.u32 %v4358, %v4360
      %v4365 = vadd.s32 %v4361, 1
      %v4366 = vsel %vm4364, %v4365, %v4361
      %v4367 = vadd.s32 %v4362, %v4366
      %v4368 = vadd.s32 %v4367, 536870912
      %v4369 = vshrl.u32 %v4368, 30
      %v4370 = vshll.u32 %v4369, 30
      %v4371 = vsub.s32 %v4367, %v4370
      %vm4372 = vcmp.lt.s32.totalorder %v4371, 0
      %v4373 = vsub.s32 0, %v4371
      %v4374 = vsel %vm4372, %v4373, %v4371
      %v4375 = vclz %v4374
      %v4376 = vsub.s32 %v4375, 2
      %vm4377 = vcmp.gt.s32.totalorder 0, %v4376
      %v4378 = vsel %vm4377, 0, %v4376
      %v4379 = vsub.s32 32, %v4378
      %v4380 = vshll.u32 %v4371, %v4378
      %v4381 = vshrl.u32 %v4363, %v4379
      %v4382 = vor.u32 %v4380, %v4381
      %v4383 = vsub.s32 4294967266, %v4378
      %v4384 = vadd.s32 %v4383, 127
      %v4385 = vshll.u32 %v4384, 23
      %v4386 = vor.u32 4788187, %v4385
      %v4387 = vand.u32 2147483647, %v4386
      %v4389 = vcvt.s32.f32 %v4382
      %v4390 = vmul.f32 %v4389, %v4387
      %v4391 = vxor.u32 %v4390, 2147483648
      %v4392 = vsel %vm4309, %v4391, %v4390
      %v4393 = vsub.s32 4, %v4369
      %v4394 = vsel %vm4309, %v4393, %v4369
      %v4395 = vsel %vm4308, %v1050, %v4392
      %v4396 = vsel %vm4308, 0, %v4394
      %v4397 = vcosq.f32.pop %v4395
      %v4398 = vsinq.f32.pop %v4395
      %vm4399 = vweird.f32 %v1050
      %v4400 = vadd.s32 %v4396, 3
      %v4401 = vand.u32 %v4400, 3
      %vm4402 = vcmp.lt.s32.totalorder %v4401, 2
      %vm4403 = vcmp.eq.s32.totalorder %v4401, 0
      %v4404 = vxor.u32 %v4398, 2147483648
      %v4405 = vsel %vm4403, %v4397, %v4404
      %vm4406 = vcmp.eq.s32.totalorder %v4401, 2
      %v4407 = vxor.u32 %v4397, 2147483648
      %v4408 = vsel %vm4406, %v4407, %v4398
      %v4409 = vsel %vm4402, %v4405, %v4408
      %v4410 = vsel %vm4399, nan, %v4409
      %v4411 = vand.u32 2147483647, %v1051
      %vm4412 = vcmp.le.f32.partialorder %v4411, 0.7853982
      %vm4413 = vcmp.lt.s32.totalorder %v1051, 0
      %v4414 = vand.u32 %v1051, 2139095040
      %v4415 = vshrl.u32 %v4414, 23
      %v4416 = vsub.s32 %v4415, 127
      %v4417 = vand.u32 2147483647, %v1051
      %v4418 = vand.u32 %v4417, 8388607
      %v4419 = vor.u32 %v4418, 8388608
      %v4420 = vsub.s32 0, %v4419
      %v4421 = vadd.s32 %v4416, 1
      %vm4422 = vcmp.gt.s32.totalorder %v4421, 0
      %v4423 = vsel %vm4422, %v4421, 0
      %v4424 = vshrl.u32 %v4423, 5
      %v4425 = vand.u32 %v4423, 31
      %v4426 = vsub.s32 32, %v4425
      %v4427 = vshrl.u32 683565275, %v4426
      %v4428 = vshll.u32 683565275, %v4425
      %v4429 = vshrl.u32 2475754826, %v4426
      %v4430 = vor.u32 %v4428, %v4429
      %v4431 = vshll.u32 2475754826, %v4425
      %v4432 = vshrl.u32 2131351028, %v4426
      %v4433 = vor.u32 %v4431, %v4432
      %v4434 = vshll.u32 2131351028, %v4425
      %v4435 = vshrl.u32 2102212464, %v4426
      %v4436 = vor.u32 %v4434, %v4435
      %v4437 = vshll.u32 2102212464, %v4425
      %v4438 = vshrl.u32 920167782, %v4426
      %v4439 = vor.u32 %v4437, %v4438
      %v4440 = vshll.u32 920167782, %v4425
      %v4441 = vshrl.u32 1326507024, %v4426
      %v4442 = vor.u32 %v4440, %v4441
      %vm4443 = vcmp.lt.s32.totalorder %v4424, 1
      %vm4444 = vcmp.lt.s32.totalorder %v4424, 2
      %vm4445 = vcmp.lt.s32.totalorder %v4424, 3
      %vm4446 = vcmp.lt.s32.totalorder %v4424, 4
      %v4447 = vsel %vm4443, %v4427, %v4430
      %v4448 = vsel %vm4446, %v4436, 2102212464
      %v4449 = vsel %vm4445, %v4433, %v4448
      %v4450 = vsel %vm4444, %v4447, %v4449
      %v4451 = vsel %vm4443, %v4430, %v4433
      %v4452 = vsel %vm4446, %v4439, 920167782
      %v4453 = vsel %vm4445, %v4436, %v4452
      %v4454 = vsel %vm4444, %v4451, %v4453
      %v4455 = vsel %vm4443, %v4433, %v4436
      %v4456 = vsel %vm4446, %v4442, 1326507024
      %v4457 = vsel %vm4445, %v4439, %v4456
      %v4458 = vsel %vm4444, %v4455, %v4457
      %v4459 = vshll.u32 %v4419, 8
      %v4460 = vmul.u32.u64.compose %v4459, %v4458
      %v4461 = vextract.low.u32 %v4460
      %v4462 = vextract.high.u32 %v4460
      %v4463 = vmul.u32.u64.compose %v4459, %v4454
      %v4464 = vextract.low.u32 %v4463
      %v4465 = vextract.high.u32 %v4463
      %v4466 = vmul.u32 %v4459, %v4450
      %v4467 = vadd.s32 %v4462, %v4464
      %vm4468 = vc.u32 %v4462, %v4464
      %v4469 = vadd.s32 %v4465, 1
      %v4470 = vsel %vm4468, %v4469, %v4465
      %v4471 = vadd.s32 %v4466, %v4470
      %v4472 = vadd.s32 %v4471, 536870912
      %v4473 = vshrl.u32 %v4472, 30
      %v4474 = vshll.u32 %v4473, 30
      %v4475 = vsub.s32 %v4471, %v4474
      %vm4476 = vcmp.lt.s32.totalorder %v4475, 0
      %v4477 = vsub.s32 0, %v4475
      %v4478 = vsel %vm4476, %v4477, %v4475
      %v4479 = vclz %v4478
      %v4480 = vsub.s32 %v4479, 2
      %vm4481 = vcmp.gt.s32.totalorder 0, %v4480
      %v4482 = vsel %vm4481, 0, %v4480
      %v4483 = vsub.s32 32, %v4482
      %v4484 = vshll.u32 %v4475, %v4482
      %v4485 = vshrl.u32 %v4467, %v4483
      %v4486 = vor.u32 %v4484, %v4485
      %v4487 = vsub.s32 4294967266, %v4482
      %v4488 = vadd.s32 %v4487, 127
      %v4489 = vshll.u32 %v4488, 23
      %v4490 = vor.u32 4788187, %v4489
      %v4491 = vand.u32 2147483647, %v4490
      %v4493 = vcvt.s32.f32 %v4486
      %v4494 = vmul.f32 %v4493, %v4491
      %v4495 = vxor.u32 %v4494, 2147483648
      %v4496 = vsel %vm4413, %v4495, %v4494
      %v4497 = vsub.s32 4, %v4473
      %v4498 = vsel %vm4413, %v4497, %v4473
      %v4499 = vsel %vm4412, %v1051, %v4496
      %v4500 = vsel %vm4412, 0, %v4498
      %v4501 = vcosq.f32.pop %v4499
      %v4502 = vsinq.f32.pop %v4499
      %vm4503 = vweird.f32 %v1051
      %v4504 = vadd.s32 %v4500, 3
      %v4505 = vand.u32 %v4504, 3
      %vm4506 = vcmp.lt.s32.totalorder %v4505, 2
      %vm4507 = vcmp.eq.s32.totalorder %v4505, 0
      %v4508 = vxor.u32 %v4502, 2147483648
      %v4509 = vsel %vm4507, %v4501, %v4508
      %vm4510 = vcmp.eq.s32.totalorder %v4505, 2
      %v4511 = vxor.u32 %v4501, 2147483648
      %v4512 = vsel %vm4510, %v4511, %v4502
      %v4513 = vsel %vm4506, %v4509, %v4512
      %v4514 = vsel %vm4503, nan, %v4513
      %v4515 = vand.u32 2147483647, %v1052
      %vm4516 = vcmp.le.f32.partialorder %v4515, 0.7853982
      %vm4517 = vcmp.lt.s32.totalorder %v1052, 0
      %v4518 = vand.u32 %v1052, 2139095040
      %v4519 = vshrl.u32 %v4518, 23
      %v4520 = vsub.s32 %v4519, 127
      %v4521 = vand.u32 2147483647, %v1052
      %v4522 = vand.u32 %v4521, 8388607
      %v4523 = vor.u32 %v4522, 8388608
      %v4524 = vsub.s32 0, %v4523
      %v4525 = vadd.s32 %v4520, 1
      %vm4526 = vcmp.gt.s32.totalorder %v4525, 0
      %v4527 = vsel %vm4526, %v4525, 0
      %v4528 = vshrl.u32 %v4527, 5
      %v4529 = vand.u32 %v4527, 31
      %v4530 = vsub.s32 32, %v4529
      %v4531 = vshrl.u32 683565275, %v4530
      %v4532 = vshll.u32 683565275, %v4529
      %v4533 = vshrl.u32 2475754826, %v4530
      %v4534 = vor.u32 %v4532, %v4533
      %v4535 = vshll.u32 2475754826, %v4529
      %v4536 = vshrl.u32 2131351028, %v4530
      %v4537 = vor.u32 %v4535, %v4536
      %v4538 = vshll.u32 2131351028, %v4529
      %v4539 = vshrl.u32 2102212464, %v4530
      %v4540 = vor.u32 %v4538, %v4539
      %v4541 = vshll.u32 2102212464, %v4529
      %v4542 = vshrl.u32 920167782, %v4530
      %v4543 = vor.u32 %v4541, %v4542
      %v4544 = vshll.u32 920167782, %v4529
      %v4545 = vshrl.u32 1326507024, %v4530
      %v4546 = vor.u32 %v4544, %v4545
      %vm4547 = vcmp.lt.s32.totalorder %v4528, 1
      %vm4548 = vcmp.lt.s32.totalorder %v4528, 2
      %vm4549 = vcmp.lt.s32.totalorder %v4528, 3
      %vm4550 = vcmp.lt.s32.totalorder %v4528, 4
      %v4551 = vsel %vm4547, %v4531, %v4534
      %v4552 = vsel %vm4550, %v4540, 2102212464
      %v4553 = vsel %vm4549, %v4537, %v4552
      %v4554 = vsel %vm4548, %v4551, %v4553
      %v4555 = vsel %vm4547, %v4534, %v4537
      %v4556 = vsel %vm4550, %v4543, 920167782
      %v4557 = vsel %vm4549, %v4540, %v4556
      %v4558 = vsel %vm4548, %v4555, %v4557
      %v4559 = vsel %vm4547, %v4537, %v4540
      %v4560 = vsel %vm4550, %v4546, 1326507024
      %v4561 = vsel %vm4549, %v4543, %v4560
      %v4562 = vsel %vm4548, %v4559, %v4561
      %v4563 = vshll.u32 %v4523, 8
      %v4564 = vmul.u32.u64.compose %v4563, %v4562
      %v4565 = vextract.low.u32 %v4564
      %v4566 = vextract.high.u32 %v4564
      %v4567 = vmul.u32.u64.compose %v4563, %v4558
      %v4568 = vextract.low.u32 %v4567
      %v4569 = vextract.high.u32 %v4567
      %v4570 = vmul.u32 %v4563, %v4554
      %v4571 = vadd.s32 %v4566, %v4568
      %vm4572 = vc.u32 %v4566, %v4568
      %v4573 = vadd.s32 %v4569, 1
      %v4574 = vsel %vm4572, %v4573, %v4569
      %v4575 = vadd.s32 %v4570, %v4574
      %v4576 = vadd.s32 %v4575, 536870912
      %v4577 = vshrl.u32 %v4576, 30
      %v4578 = vshll.u32 %v4577, 30
      %v4579 = vsub.s32 %v4575, %v4578
      %vm4580 = vcmp.lt.s32.totalorder %v4579, 0
      %v4581 = vsub.s32 0, %v4579
      %v4582 = vsel %vm4580, %v4581, %v4579
      %v4583 = vclz %v4582
      %v4584 = vsub.s32 %v4583, 2
      %vm4585 = vcmp.gt.s32.totalorder 0, %v4584
      %v4586 = vsel %vm4585, 0, %v4584
      %v4587 = vsub.s32 32, %v4586
      %v4588 = vshll.u32 %v4579, %v4586
      %v4589 = vshrl.u32 %v4571, %v4587
      %v4590 = vor.u32 %v4588, %v4589
      %v4591 = vsub.s32 4294967266, %v4586
      %v4592 = vadd.s32 %v4591, 127
      %v4593 = vshll.u32 %v4592, 23
      %v4594 = vor.u32 4788187, %v4593
      %v4595 = vand.u32 2147483647, %v4594
      %v4597 = vcvt.s32.f32 %v4590
      %v4598 = vmul.f32 %v4597, %v4595
      %v4599 = vxor.u32 %v4598, 2147483648
      %v4600 = vsel %vm4517, %v4599, %v4598
      %v4601 = vsub.s32 4, %v4577
      %v4602 = vsel %vm4517, %v4601, %v4577
      %v4603 = vsel %vm4516, %v1052, %v4600
      %v4604 = vsel %vm4516, 0, %v4602
      %v4605 = vcosq.f32.pop %v4603
      %v4606 = vsinq.f32.pop %v4603
      %vm4607 = vweird.f32 %v1052
      %v4608 = vadd.s32 %v4604, 3
      %v4609 = vand.u32 %v4608, 3
      %vm4610 = vcmp.lt.s32.totalorder %v4609, 2
      %vm4611 = vcmp.eq.s32.totalorder %v4609, 0
      %v4612 = vxor.u32 %v4606, 2147483648
      %v4613 = vsel %vm4611, %v4605, %v4612
      %vm4614 = vcmp.eq.s32.totalorder %v4609, 2
      %v4615 = vxor.u32 %v4605, 2147483648
      %v4616 = vsel %vm4614, %v4615, %v4606
      %v4617 = vsel %vm4610, %v4613, %v4616
      %v4618 = vsel %vm4607, nan, %v4617
      %v4619 = vand.u32 2147483647, %v1053
      %vm4620 = vcmp.le.f32.partialorder %v4619, 0.7853982
      %vm4621 = vcmp.lt.s32.totalorder %v1053, 0
      %v4622 = vand.u32 %v1053, 2139095040
      %v4623 = vshrl.u32 %v4622, 23
      %v4624 = vsub.s32 %v4623, 127
      %v4625 = vand.u32 2147483647, %v1053
      %v4626 = vand.u32 %v4625, 8388607
      %v4627 = vor.u32 %v4626, 8388608
      %v4628 = vsub.s32 0, %v4627
      %v4629 = vadd.s32 %v4624, 1
      %vm4630 = vcmp.gt.s32.totalorder %v4629, 0
      %v4631 = vsel %vm4630, %v4629, 0
      %v4632 = vshrl.u32 %v4631, 5
      %v4633 = vand.u32 %v4631, 31
      %v4634 = vsub.s32 32, %v4633
      %v4635 = vshrl.u32 683565275, %v4634
      %v4636 = vshll.u32 683565275, %v4633
      %v4637 = vshrl.u32 2475754826, %v4634
      %v4638 = vor.u32 %v4636, %v4637
      %v4639 = vshll.u32 2475754826, %v4633
      %v4640 = vshrl.u32 2131351028, %v4634
      %v4641 = vor.u32 %v4639, %v4640
      %v4642 = vshll.u32 2131351028, %v4633
      %v4643 = vshrl.u32 2102212464, %v4634
      %v4644 = vor.u32 %v4642, %v4643
      %v4645 = vshll.u32 2102212464, %v4633
      %v4646 = vshrl.u32 920167782, %v4634
      %v4647 = vor.u32 %v4645, %v4646
      %v4648 = vshll.u32 920167782, %v4633
      %v4649 = vshrl.u32 1326507024, %v4634
      %v4650 = vor.u32 %v4648, %v4649
      %vm4651 = vcmp.lt.s32.totalorder %v4632, 1
      %vm4652 = vcmp.lt.s32.totalorder %v4632, 2
      %vm4653 = vcmp.lt.s32.totalorder %v4632, 3
      %vm4654 = vcmp.lt.s32.totalorder %v4632, 4
      %v4655 = vsel %vm4651, %v4635, %v4638
      %v4656 = vsel %vm4654, %v4644, 2102212464
      %v4657 = vsel %vm4653, %v4641, %v4656
      %v4658 = vsel %vm4652, %v4655, %v4657
      %v4659 = vsel %vm4651, %v4638, %v4641
      %v4660 = vsel %vm4654, %v4647, 920167782
      %v4661 = vsel %vm4653, %v4644, %v4660
      %v4662 = vsel %vm4652, %v4659, %v4661
      %v4663 = vsel %vm4651, %v4641, %v4644
      %v4664 = vsel %vm4654, %v4650, 1326507024
      %v4665 = vsel %vm4653, %v4647, %v4664
      %v4666 = vsel %vm4652, %v4663, %v4665
      %v4667 = vshll.u32 %v4627, 8
      %v4668 = vmul.u32.u64.compose %v4667, %v4666
      %v4669 = vextract.low.u32 %v4668
      %v4670 = vextract.high.u32 %v4668
      %v4671 = vmul.u32.u64.compose %v4667, %v4662
      %v4672 = vextract.low.u32 %v4671
      %v4673 = vextract.high.u32 %v4671
      %v4674 = vmul.u32 %v4667, %v4658
      %v4675 = vadd.s32 %v4670, %v4672
      %vm4676 = vc.u32 %v4670, %v4672
      %v4677 = vadd.s32 %v4673, 1
      %v4678 = vsel %vm4676, %v4677, %v4673
      %v4679 = vadd.s32 %v4674, %v4678
      %v4680 = vadd.s32 %v4679, 536870912
      %v4681 = vshrl.u32 %v4680, 30
      %v4682 = vshll.u32 %v4681, 30
      %v4683 = vsub.s32 %v4679, %v4682
      %vm4684 = vcmp.lt.s32.totalorder %v4683, 0
      %v4685 = vsub.s32 0, %v4683
      %v4686 = vsel %vm4684, %v4685, %v4683
      %v4687 = vclz %v4686
      %v4688 = vsub.s32 %v4687, 2
      %vm4689 = vcmp.gt.s32.totalorder 0, %v4688
      %v4690 = vsel %vm4689, 0, %v4688
      %v4691 = vsub.s32 32, %v4690
      %v4692 = vshll.u32 %v4683, %v4690
      %v4693 = vshrl.u32 %v4675, %v4691
      %v4694 = vor.u32 %v4692, %v4693
      %v4695 = vsub.s32 4294967266, %v4690
      %v4696 = vadd.s32 %v4695, 127
      %v4697 = vshll.u32 %v4696, 23
      %v4698 = vor.u32 4788187, %v4697
      %v4699 = vand.u32 2147483647, %v4698
      %v4701 = vcvt.s32.f32 %v4694
      %v4702 = vmul.f32 %v4701, %v4699
      %v4703 = vxor.u32 %v4702, 2147483648
      %v4704 = vsel %vm4621, %v4703, %v4702
      %v4705 = vsub.s32 4, %v4681
      %v4706 = vsel %vm4621, %v4705, %v4681
      %v4707 = vsel %vm4620, %v1053, %v4704
      %v4708 = vsel %vm4620, 0, %v4706
      %v4709 = vcosq.f32.pop %v4707
      %v4710 = vsinq.f32.pop %v4707
      %vm4711 = vweird.f32 %v1053
      %v4712 = vadd.s32 %v4708, 3
      %v4713 = vand.u32 %v4712, 3
      %vm4714 = vcmp.lt.s32.totalorder %v4713, 2
      %vm4715 = vcmp.eq.s32.totalorder %v4713, 0
      %v4716 = vxor.u32 %v4710, 2147483648
      %v4717 = vsel %vm4715, %v4709, %v4716
      %vm4718 = vcmp.eq.s32.totalorder %v4713, 2
      %v4719 = vxor.u32 %v4709, 2147483648
      %v4720 = vsel %vm4718, %v4719, %v4710
      %v4721 = vsel %vm4714, %v4717, %v4720
      %v4722 = vsel %vm4711, nan, %v4721
      %v4723 = vand.u32 2147483647, %v1054
      %vm4724 = vcmp.le.f32.partialorder %v4723, 0.7853982
      %vm4725 = vcmp.lt.s32.totalorder %v1054, 0
      %v4726 = vand.u32 %v1054, 2139095040
      %v4727 = vshrl.u32 %v4726, 23
      %v4728 = vsub.s32 %v4727, 127
      %v4729 = vand.u32 2147483647, %v1054
      %v4730 = vand.u32 %v4729, 8388607
      %v4731 = vor.u32 %v4730, 8388608
      %v4732 = vsub.s32 0, %v4731
      %v4733 = vadd.s32 %v4728, 1
      %vm4734 = vcmp.gt.s32.totalorder %v4733, 0
      %v4735 = vsel %vm4734, %v4733, 0
      %v4736 = vshrl.u32 %v4735, 5
      %v4737 = vand.u32 %v4735, 31
      %v4738 = vsub.s32 32, %v4737
      %v4739 = vshrl.u32 683565275, %v4738
      %v4740 = vshll.u32 683565275, %v4737
      %v4741 = vshrl.u32 2475754826, %v4738
      %v4742 = vor.u32 %v4740, %v4741
      %v4743 = vshll.u32 2475754826, %v4737
      %v4744 = vshrl.u32 2131351028, %v4738
      %v4745 = vor.u32 %v4743, %v4744
      %v4746 = vshll.u32 2131351028, %v4737
      %v4747 = vshrl.u32 2102212464, %v4738
      %v4748 = vor.u32 %v4746, %v4747
      %v4749 = vshll.u32 2102212464, %v4737
      %v4750 = vshrl.u32 920167782, %v4738
      %v4751 = vor.u32 %v4749, %v4750
      %v4752 = vshll.u32 920167782, %v4737
      %v4753 = vshrl.u32 1326507024, %v4738
      %v4754 = vor.u32 %v4752, %v4753
      %vm4755 = vcmp.lt.s32.totalorder %v4736, 1
      %vm4756 = vcmp.lt.s32.totalorder %v4736, 2
      %vm4757 = vcmp.lt.s32.totalorder %v4736, 3
      %vm4758 = vcmp.lt.s32.totalorder %v4736, 4
      %v4759 = vsel %vm4755, %v4739, %v4742
      %v4760 = vsel %vm4758, %v4748, 2102212464
      %v4761 = vsel %vm4757, %v4745, %v4760
      %v4762 = vsel %vm4756, %v4759, %v4761
      %v4763 = vsel %vm4755, %v4742, %v4745
      %v4764 = vsel %vm4758, %v4751, 920167782
      %v4765 = vsel %vm4757, %v4748, %v4764
      %v4766 = vsel %vm4756, %v4763, %v4765
      %v4767 = vsel %vm4755, %v4745, %v4748
      %v4768 = vsel %vm4758, %v4754, 1326507024
      %v4769 = vsel %vm4757, %v4751, %v4768
      %v4770 = vsel %vm4756, %v4767, %v4769
      %v4771 = vshll.u32 %v4731, 8
      %v4772 = vmul.u32.u64.compose %v4771, %v4770
      %v4773 = vextract.low.u32 %v4772
      %v4774 = vextract.high.u32 %v4772
      %v4775 = vmul.u32.u64.compose %v4771, %v4766
      %v4776 = vextract.low.u32 %v4775
      %v4777 = vextract.high.u32 %v4775
      %v4778 = vmul.u32 %v4771, %v4762
      %v4779 = vadd.s32 %v4774, %v4776
      %vm4780 = vc.u32 %v4774, %v4776
      %v4781 = vadd.s32 %v4777, 1
      %v4782 = vsel %vm4780, %v4781, %v4777
      %v4783 = vadd.s32 %v4778, %v4782
      %v4784 = vadd.s32 %v4783, 536870912
      %v4785 = vshrl.u32 %v4784, 30
      %v4786 = vshll.u32 %v4785, 30
      %v4787 = vsub.s32 %v4783, %v4786
      %vm4788 = vcmp.lt.s32.totalorder %v4787, 0
      %v4789 = vsub.s32 0, %v4787
      %v4790 = vsel %vm4788, %v4789, %v4787
      %v4791 = vclz %v4790
      %v4792 = vsub.s32 %v4791, 2
      %vm4793 = vcmp.gt.s32.totalorder 0, %v4792
      %v4794 = vsel %vm4793, 0, %v4792
      %v4795 = vsub.s32 32, %v4794
      %v4796 = vshll.u32 %v4787, %v4794
      %v4797 = vshrl.u32 %v4779, %v4795
      %v4798 = vor.u32 %v4796, %v4797
      %v4799 = vsub.s32 4294967266, %v4794
      %v4800 = vadd.s32 %v4799, 127
      %v4801 = vshll.u32 %v4800, 23
      %v4802 = vor.u32 4788187, %v4801
      %v4803 = vand.u32 2147483647, %v4802
      %v4805 = vcvt.s32.f32 %v4798
      %v4806 = vmul.f32 %v4805, %v4803
      %v4807 = vxor.u32 %v4806, 2147483648
      %v4808 = vsel %vm4725, %v4807, %v4806
      %v4809 = vsub.s32 4, %v4785
      %v4810 = vsel %vm4725, %v4809, %v4785
      %v4811 = vsel %vm4724, %v1054, %v4808
      %v4812 = vsel %vm4724, 0, %v4810
      %v4813 = vcosq.f32.pop %v4811
      %v4814 = vsinq.f32.pop %v4811
      %vm4815 = vweird.f32 %v1054
      %v4816 = vadd.s32 %v4812, 3
      %v4817 = vand.u32 %v4816, 3
      %vm4818 = vcmp.lt.s32.totalorder %v4817, 2
      %vm4819 = vcmp.eq.s32.totalorder %v4817, 0
      %v4820 = vxor.u32 %v4814, 2147483648
      %v4821 = vsel %vm4819, %v4813, %v4820
      %vm4822 = vcmp.eq.s32.totalorder %v4817, 2
      %v4823 = vxor.u32 %v4813, 2147483648
      %v4824 = vsel %vm4822, %v4823, %v4814
      %v4825 = vsel %vm4818, %v4821, %v4824
      %v4826 = vsel %vm4815, nan, %v4825
      %v4827 = vand.u32 2147483647, %v1055
      %vm4828 = vcmp.le.f32.partialorder %v4827, 0.7853982
      %vm4829 = vcmp.lt.s32.totalorder %v1055, 0
      %v4830 = vand.u32 %v1055, 2139095040
      %v4831 = vshrl.u32 %v4830, 23
      %v4832 = vsub.s32 %v4831, 127
      %v4833 = vand.u32 2147483647, %v1055
      %v4834 = vand.u32 %v4833, 8388607
      %v4835 = vor.u32 %v4834, 8388608
      %v4836 = vsub.s32 0, %v4835
      %v4837 = vadd.s32 %v4832, 1
      %vm4838 = vcmp.gt.s32.totalorder %v4837, 0
      %v4839 = vsel %vm4838, %v4837, 0
      %v4840 = vshrl.u32 %v4839, 5
      %v4841 = vand.u32 %v4839, 31
      %v4842 = vsub.s32 32, %v4841
      %v4843 = vshrl.u32 683565275, %v4842
      %v4844 = vshll.u32 683565275, %v4841
      %v4845 = vshrl.u32 2475754826, %v4842
      %v4846 = vor.u32 %v4844, %v4845
      %v4847 = vshll.u32 2475754826, %v4841
      %v4848 = vshrl.u32 2131351028, %v4842
      %v4849 = vor.u32 %v4847, %v4848
      %v4850 = vshll.u32 2131351028, %v4841
      %v4851 = vshrl.u32 2102212464, %v4842
      %v4852 = vor.u32 %v4850, %v4851
      %v4853 = vshll.u32 2102212464, %v4841
      %v4854 = vshrl.u32 920167782, %v4842
      %v4855 = vor.u32 %v4853, %v4854
      %v4856 = vshll.u32 920167782, %v4841
      %v4857 = vshrl.u32 1326507024, %v4842
      %v4858 = vor.u32 %v4856, %v4857
      %vm4859 = vcmp.lt.s32.totalorder %v4840, 1
      %vm4860 = vcmp.lt.s32.totalorder %v4840, 2
      %vm4861 = vcmp.lt.s32.totalorder %v4840, 3
      %vm4862 = vcmp.lt.s32.totalorder %v4840, 4
      %v4863 = vsel %vm4859, %v4843, %v4846
      %v4864 = vsel %vm4862, %v4852, 2102212464
      %v4865 = vsel %vm4861, %v4849, %v4864
      %v4866 = vsel %vm4860, %v4863, %v4865
      %v4867 = vsel %vm4859, %v4846, %v4849
      %v4868 = vsel %vm4862, %v4855, 920167782
      %v4869 = vsel %vm4861, %v4852, %v4868
      %v4870 = vsel %vm4860, %v4867, %v4869
      %v4871 = vsel %vm4859, %v4849, %v4852
      %v4872 = vsel %vm4862, %v4858, 1326507024
      %v4873 = vsel %vm4861, %v4855, %v4872
      %v4874 = vsel %vm4860, %v4871, %v4873
      %v4875 = vshll.u32 %v4835, 8
      %v4876 = vmul.u32.u64.compose %v4875, %v4874
      %v4877 = vextract.low.u32 %v4876
      %v4878 = vextract.high.u32 %v4876
      %v4879 = vmul.u32.u64.compose %v4875, %v4870
      %v4880 = vextract.low.u32 %v4879
      %v4881 = vextract.high.u32 %v4879
      %v4882 = vmul.u32 %v4875, %v4866
      %v4883 = vadd.s32 %v4878, %v4880
      %vm4884 = vc.u32 %v4878, %v4880
      %v4885 = vadd.s32 %v4881, 1
      %v4886 = vsel %vm4884, %v4885, %v4881
      %v4887 = vadd.s32 %v4882, %v4886
      %v4888 = vadd.s32 %v4887, 536870912
      %v4889 = vshrl.u32 %v4888, 30
      %v4890 = vshll.u32 %v4889, 30
      %v4891 = vsub.s32 %v4887, %v4890
      %vm4892 = vcmp.lt.s32.totalorder %v4891, 0
      %v4893 = vsub.s32 0, %v4891
      %v4894 = vsel %vm4892, %v4893, %v4891
      %v4895 = vclz %v4894
      %v4896 = vsub.s32 %v4895, 2
      %vm4897 = vcmp.gt.s32.totalorder 0, %v4896
      %v4898 = vsel %vm4897, 0, %v4896
      %v4899 = vsub.s32 32, %v4898
      %v4900 = vshll.u32 %v4891, %v4898
      %v4901 = vshrl.u32 %v4883, %v4899
      %v4902 = vor.u32 %v4900, %v4901
      %v4903 = vsub.s32 4294967266, %v4898
      %v4904 = vadd.s32 %v4903, 127
      %v4905 = vshll.u32 %v4904, 23
      %v4906 = vor.u32 4788187, %v4905
      %v4907 = vand.u32 2147483647, %v4906
      %v4909 = vcvt.s32.f32 %v4902
      %v4910 = vmul.f32 %v4909, %v4907
      %v4911 = vxor.u32 %v4910, 2147483648
      %v4912 = vsel %vm4829, %v4911, %v4910
      %v4913 = vsub.s32 4, %v4889
      %v4914 = vsel %vm4829, %v4913, %v4889
      %v4915 = vsel %vm4828, %v1055, %v4912
      %v4916 = vsel %vm4828, 0, %v4914
      %v4917 = vcosq.f32.pop %v4915
      %v4918 = vsinq.f32.pop %v4915
      %vm4919 = vweird.f32 %v1055
      %v4920 = vadd.s32 %v4916, 3
      %v4921 = vand.u32 %v4920, 3
      %vm4922 = vcmp.lt.s32.totalorder %v4921, 2
      %vm4923 = vcmp.eq.s32.totalorder %v4921, 0
      %v4924 = vxor.u32 %v4918, 2147483648
      %v4925 = vsel %vm4923, %v4917, %v4924
      %vm4926 = vcmp.eq.s32.totalorder %v4921, 2
      %v4927 = vxor.u32 %v4917, 2147483648
      %v4928 = vsel %vm4926, %v4927, %v4918
      %v4929 = vsel %vm4922, %v4925, %v4928
      %v4930 = vsel %vm4919, nan, %v4929
      %v4931 = vand.u32 2147483647, %v1056
      %vm4932 = vcmp.le.f32.partialorder %v4931, 0.7853982
      %vm4933 = vcmp.lt.s32.totalorder %v1056, 0
      %v4934 = vand.u32 %v1056, 2139095040
      %v4935 = vshrl.u32 %v4934, 23
      %v4936 = vsub.s32 %v4935, 127
      %v4937 = vand.u32 2147483647, %v1056
      %v4938 = vand.u32 %v4937, 8388607
      %v4939 = vor.u32 %v4938, 8388608
      %v4940 = vsub.s32 0, %v4939
      %v4941 = vadd.s32 %v4936, 1
      %vm4942 = vcmp.gt.s32.totalorder %v4941, 0
      %v4943 = vsel %vm4942, %v4941, 0
      %v4944 = vshrl.u32 %v4943, 5
      %v4945 = vand.u32 %v4943, 31
      %v4946 = vsub.s32 32, %v4945
      %v4947 = vshrl.u32 683565275, %v4946
      %v4948 = vshll.u32 683565275, %v4945
      %v4949 = vshrl.u32 2475754826, %v4946
      %v4950 = vor.u32 %v4948, %v4949
      %v4951 = vshll.u32 2475754826, %v4945
      %v4952 = vshrl.u32 2131351028, %v4946
      %v4953 = vor.u32 %v4951, %v4952
      %v4954 = vshll.u32 2131351028, %v4945
      %v4955 = vshrl.u32 2102212464, %v4946
      %v4956 = vor.u32 %v4954, %v4955
      %v4957 = vshll.u32 2102212464, %v4945
      %v4958 = vshrl.u32 920167782, %v4946
      %v4959 = vor.u32 %v4957, %v4958
      %v4960 = vshll.u32 920167782, %v4945
      %v4961 = vshrl.u32 1326507024, %v4946
      %v4962 = vor.u32 %v4960, %v4961
      %vm4963 = vcmp.lt.s32.totalorder %v4944, 1
      %vm4964 = vcmp.lt.s32.totalorder %v4944, 2
      %vm4965 = vcmp.lt.s32.totalorder %v4944, 3
      %vm4966 = vcmp.lt.s32.totalorder %v4944, 4
      %v4967 = vsel %vm4963, %v4947, %v4950
      %v4968 = vsel %vm4966, %v4956, 2102212464
      %v4969 = vsel %vm4965, %v4953, %v4968
      %v4970 = vsel %vm4964, %v4967, %v4969
      %v4971 = vsel %vm4963, %v4950, %v4953
      %v4972 = vsel %vm4966, %v4959, 920167782
      %v4973 = vsel %vm4965, %v4956, %v4972
      %v4974 = vsel %vm4964, %v4971, %v4973
      %v4975 = vsel %vm4963, %v4953, %v4956
      %v4976 = vsel %vm4966, %v4962, 1326507024
      %v4977 = vsel %vm4965, %v4959, %v4976
      %v4978 = vsel %vm4964, %v4975, %v4977
      %v4979 = vshll.u32 %v4939, 8
      %v4980 = vmul.u32.u64.compose %v4979, %v4978
      %v4981 = vextract.low.u32 %v4980
      %v4982 = vextract.high.u32 %v4980
      %v4983 = vmul.u32.u64.compose %v4979, %v4974
      %v4984 = vextract.low.u32 %v4983
      %v4985 = vextract.high.u32 %v4983
      %v4986 = vmul.u32 %v4979, %v4970
      %v4987 = vadd.s32 %v4982, %v4984
      %vm4988 = vc.u32 %v4982, %v4984
      %v4989 = vadd.s32 %v4985, 1
      %v4990 = vsel %vm4988, %v4989, %v4985
      %v4991 = vadd.s32 %v4986, %v4990
      %v4992 = vadd.s32 %v4991, 536870912
      %v4993 = vshrl.u32 %v4992, 30
      %v4994 = vshll.u32 %v4993, 30
      %v4995 = vsub.s32 %v4991, %v4994
      %vm4996 = vcmp.lt.s32.totalorder %v4995, 0
      %v4997 = vsub.s32 0, %v4995
      %v4998 = vsel %vm4996, %v4997, %v4995
      %v4999 = vclz %v4998
      %v5000 = vsub.s32 %v4999, 2
      %vm5001 = vcmp.gt.s32.totalorder 0, %v5000
      %v5002 = vsel %vm5001, 0, %v5000
      %v5003 = vsub.s32 32, %v5002
      %v5004 = vshll.u32 %v4995, %v5002
      %v5005 = vshrl.u32 %v4987, %v5003
      %v5006 = vor.u32 %v5004, %v5005
      %v5007 = vsub.s32 4294967266, %v5002
      %v5008 = vadd.s32 %v5007, 127
      %v5009 = vshll.u32 %v5008, 23
      %v5010 = vor.u32 4788187, %v5009
      %v5011 = vand.u32 2147483647, %v5010
      %v5013 = vcvt.s32.f32 %v5006
      %v5014 = vmul.f32 %v5013, %v5011
      %v5015 = vxor.u32 %v5014, 2147483648
      %v5016 = vsel %vm4933, %v5015, %v5014
      %v5017 = vsub.s32 4, %v4993
      %v5018 = vsel %vm4933, %v5017, %v4993
      %v5019 = vsel %vm4932, %v1056, %v5016
      %v5020 = vsel %vm4932, 0, %v5018
      %v5021 = vcosq.f32.pop %v5019
      %v5022 = vsinq.f32.pop %v5019
      %vm5023 = vweird.f32 %v1056
      %v5024 = vadd.s32 %v5020, 3
      %v5025 = vand.u32 %v5024, 3
      %vm5026 = vcmp.lt.s32.totalorder %v5025, 2
      %vm5027 = vcmp.eq.s32.totalorder %v5025, 0
      %v5028 = vxor.u32 %v5022, 2147483648
      %v5029 = vsel %vm5027, %v5021, %v5028
      %vm5030 = vcmp.eq.s32.totalorder %v5025, 2
      %v5031 = vxor.u32 %v5021, 2147483648
      %v5032 = vsel %vm5030, %v5031, %v5022
      %v5033 = vsel %vm5026, %v5029, %v5032
      %v5034 = vsel %vm5023, nan, %v5033
      %v5035 = vand.u32 2147483647, %v1057
      %vm5036 = vcmp.le.f32.partialorder %v5035, 0.7853982
      %vm5037 = vcmp.lt.s32.totalorder %v1057, 0
      %v5038 = vand.u32 %v1057, 2139095040
      %v5039 = vshrl.u32 %v5038, 23
      %v5040 = vsub.s32 %v5039, 127
      %v5041 = vand.u32 2147483647, %v1057
      %v5042 = vand.u32 %v5041, 8388607
      %v5043 = vor.u32 %v5042, 8388608
      %v5044 = vsub.s32 0, %v5043
      %v5045 = vadd.s32 %v5040, 1
      %vm5046 = vcmp.gt.s32.totalorder %v5045, 0
      %v5047 = vsel %vm5046, %v5045, 0
      %v5048 = vshrl.u32 %v5047, 5
      %v5049 = vand.u32 %v5047, 31
      %v5050 = vsub.s32 32, %v5049
      %v5051 = vshrl.u32 683565275, %v5050
      %v5052 = vshll.u32 683565275, %v5049
      %v5053 = vshrl.u32 2475754826, %v5050
      %v5054 = vor.u32 %v5052, %v5053
      %v5055 = vshll.u32 2475754826, %v5049
      %v5056 = vshrl.u32 2131351028, %v5050
      %v5057 = vor.u32 %v5055, %v5056
      %v5058 = vshll.u32 2131351028, %v5049
      %v5059 = vshrl.u32 2102212464, %v5050
      %v5060 = vor.u32 %v5058, %v5059
      %v5061 = vshll.u32 2102212464, %v5049
      %v5062 = vshrl.u32 920167782, %v5050
      %v5063 = vor.u32 %v5061, %v5062
      %v5064 = vshll.u32 920167782, %v5049
      %v5065 = vshrl.u32 1326507024, %v5050
      %v5066 = vor.u32 %v5064, %v5065
      %vm5067 = vcmp.lt.s32.totalorder %v5048, 1
      %vm5068 = vcmp.lt.s32.totalorder %v5048, 2
      %vm5069 = vcmp.lt.s32.totalorder %v5048, 3
      %vm5070 = vcmp.lt.s32.totalorder %v5048, 4
      %v5071 = vsel %vm5067, %v5051, %v5054
      %v5072 = vsel %vm5070, %v5060, 2102212464
      %v5073 = vsel %vm5069, %v5057, %v5072
      %v5074 = vsel %vm5068, %v5071, %v5073
      %v5075 = vsel %vm5067, %v5054, %v5057
      %v5076 = vsel %vm5070, %v5063, 920167782
      %v5077 = vsel %vm5069, %v5060, %v5076
      %v5078 = vsel %vm5068, %v5075, %v5077
      %v5079 = vsel %vm5067, %v5057, %v5060
      %v5080 = vsel %vm5070, %v5066, 1326507024
      %v5081 = vsel %vm5069, %v5063, %v5080
      %v5082 = vsel %vm5068, %v5079, %v5081
      %v5083 = vshll.u32 %v5043, 8
      %v5084 = vmul.u32.u64.compose %v5083, %v5082
      %v5085 = vextract.low.u32 %v5084
      %v5086 = vextract.high.u32 %v5084
      %v5087 = vmul.u32.u64.compose %v5083, %v5078
      %v5088 = vextract.low.u32 %v5087
      %v5089 = vextract.high.u32 %v5087
      %v5090 = vmul.u32 %v5083, %v5074
      %v5091 = vadd.s32 %v5086, %v5088
      %vm5092 = vc.u32 %v5086, %v5088
      %v5093 = vadd.s32 %v5089, 1
      %v5094 = vsel %vm5092, %v5093, %v5089
      %v5095 = vadd.s32 %v5090, %v5094
      %v5096 = vadd.s32 %v5095, 536870912
      %v5097 = vshrl.u32 %v5096, 30
      %v5098 = vshll.u32 %v5097, 30
      %v5099 = vsub.s32 %v5095, %v5098
      %vm5100 = vcmp.lt.s32.totalorder %v5099, 0
      %v5101 = vsub.s32 0, %v5099
      %v5102 = vsel %vm5100, %v5101, %v5099
      %v5103 = vclz %v5102
      %v5104 = vsub.s32 %v5103, 2
      %vm5105 = vcmp.gt.s32.totalorder 0, %v5104
      %v5106 = vsel %vm5105, 0, %v5104
      %v5107 = vsub.s32 32, %v5106
      %v5108 = vshll.u32 %v5099, %v5106
      %v5109 = vshrl.u32 %v5091, %v5107
      %v5110 = vor.u32 %v5108, %v5109
      %v5111 = vsub.s32 4294967266, %v5106
      %v5112 = vadd.s32 %v5111, 127
      %v5113 = vshll.u32 %v5112, 23
      %v5114 = vor.u32 4788187, %v5113
      %v5115 = vand.u32 2147483647, %v5114
      %v5117 = vcvt.s32.f32 %v5110
      %v5118 = vmul.f32 %v5117, %v5115
      %v5119 = vxor.u32 %v5118, 2147483648
      %v5120 = vsel %vm5037, %v5119, %v5118
      %v5121 = vsub.s32 4, %v5097
      %v5122 = vsel %vm5037, %v5121, %v5097
      %v5123 = vsel %vm5036, %v1057, %v5120
      %v5124 = vsel %vm5036, 0, %v5122
      %v5125 = vcosq.f32.pop %v5123
      %v5126 = vsinq.f32.pop %v5123
      %vm5127 = vweird.f32 %v1057
      %v5128 = vadd.s32 %v5124, 3
      %v5129 = vand.u32 %v5128, 3
      %vm5130 = vcmp.lt.s32.totalorder %v5129, 2
      %vm5131 = vcmp.eq.s32.totalorder %v5129, 0
      %v5132 = vxor.u32 %v5126, 2147483648
      %v5133 = vsel %vm5131, %v5125, %v5132
      %vm5134 = vcmp.eq.s32.totalorder %v5129, 2
      %v5135 = vxor.u32 %v5125, 2147483648
      %v5136 = vsel %vm5134, %v5135, %v5126
      %v5137 = vsel %vm5130, %v5133, %v5136
      %v5138 = vsel %vm5127, nan, %v5137
      %v5139 = vand.u32 2147483647, %v1058
      %vm5140 = vcmp.le.f32.partialorder %v5139, 0.7853982
      %vm5141 = vcmp.lt.s32.totalorder %v1058, 0
      %v5142 = vand.u32 %v1058, 2139095040
      %v5143 = vshrl.u32 %v5142, 23
      %v5144 = vsub.s32 %v5143, 127
      %v5145 = vand.u32 2147483647, %v1058
      %v5146 = vand.u32 %v5145, 8388607
      %v5147 = vor.u32 %v5146, 8388608
      %v5148 = vsub.s32 0, %v5147
      %v5149 = vadd.s32 %v5144, 1
      %vm5150 = vcmp.gt.s32.totalorder %v5149, 0
      %v5151 = vsel %vm5150, %v5149, 0
      %v5152 = vshrl.u32 %v5151, 5
      %v5153 = vand.u32 %v5151, 31
      %v5154 = vsub.s32 32, %v5153
      %v5155 = vshrl.u32 683565275, %v5154
      %v5156 = vshll.u32 683565275, %v5153
      %v5157 = vshrl.u32 2475754826, %v5154
      %v5158 = vor.u32 %v5156, %v5157
      %v5159 = vshll.u32 2475754826, %v5153
      %v5160 = vshrl.u32 2131351028, %v5154
      %v5161 = vor.u32 %v5159, %v5160
      %v5162 = vshll.u32 2131351028, %v5153
      %v5163 = vshrl.u32 2102212464, %v5154
      %v5164 = vor.u32 %v5162, %v5163
      %v5165 = vshll.u32 2102212464, %v5153
      %v5166 = vshrl.u32 920167782, %v5154
      %v5167 = vor.u32 %v5165, %v5166
      %v5168 = vshll.u32 920167782, %v5153
      %v5169 = vshrl.u32 1326507024, %v5154
      %v5170 = vor.u32 %v5168, %v5169
      %vm5171 = vcmp.lt.s32.totalorder %v5152, 1
      %vm5172 = vcmp.lt.s32.totalorder %v5152, 2
      %vm5173 = vcmp.lt.s32.totalorder %v5152, 3
      %vm5174 = vcmp.lt.s32.totalorder %v5152, 4
      %v5175 = vsel %vm5171, %v5155, %v5158
      %v5176 = vsel %vm5174, %v5164, 2102212464
      %v5177 = vsel %vm5173, %v5161, %v5176
      %v5178 = vsel %vm5172, %v5175, %v5177
      %v5179 = vsel %vm5171, %v5158, %v5161
      %v5180 = vsel %vm5174, %v5167, 920167782
      %v5181 = vsel %vm5173, %v5164, %v5180
      %v5182 = vsel %vm5172, %v5179, %v5181
      %v5183 = vsel %vm5171, %v5161, %v5164
      %v5184 = vsel %vm5174, %v5170, 1326507024
      %v5185 = vsel %vm5173, %v5167, %v5184
      %v5186 = vsel %vm5172, %v5183, %v5185
      %v5187 = vshll.u32 %v5147, 8
      %v5188 = vmul.u32.u64.compose %v5187, %v5186
      %v5189 = vextract.low.u32 %v5188
      %v5190 = vextract.high.u32 %v5188
      %v5191 = vmul.u32.u64.compose %v5187, %v5182
      %v5192 = vextract.low.u32 %v5191
      %v5193 = vextract.high.u32 %v5191
      %v5194 = vmul.u32 %v5187, %v5178
      %v5195 = vadd.s32 %v5190, %v5192
      %vm5196 = vc.u32 %v5190, %v5192
      %v5197 = vadd.s32 %v5193, 1
      %v5198 = vsel %vm5196, %v5197, %v5193
      %v5199 = vadd.s32 %v5194, %v5198
      %v5200 = vadd.s32 %v5199, 536870912
      %v5201 = vshrl.u32 %v5200, 30
      %v5202 = vshll.u32 %v5201, 30
      %v5203 = vsub.s32 %v5199, %v5202
      %vm5204 = vcmp.lt.s32.totalorder %v5203, 0
      %v5205 = vsub.s32 0, %v5203
      %v5206 = vsel %vm5204, %v5205, %v5203
      %v5207 = vclz %v5206
      %v5208 = vsub.s32 %v5207, 2
      %vm5209 = vcmp.gt.s32.totalorder 0, %v5208
      %v5210 = vsel %vm5209, 0, %v5208
      %v5211 = vsub.s32 32, %v5210
      %v5212 = vshll.u32 %v5203, %v5210
      %v5213 = vshrl.u32 %v5195, %v5211
      %v5214 = vor.u32 %v5212, %v5213
      %v5215 = vsub.s32 4294967266, %v5210
      %v5216 = vadd.s32 %v5215, 127
      %v5217 = vshll.u32 %v5216, 23
      %v5218 = vor.u32 4788187, %v5217
      %v5219 = vand.u32 2147483647, %v5218
      %v5221 = vcvt.s32.f32 %v5214
      %v5222 = vmul.f32 %v5221, %v5219
      %v5223 = vxor.u32 %v5222, 2147483648
      %v5224 = vsel %vm5141, %v5223, %v5222
      %v5225 = vsub.s32 4, %v5201
      %v5226 = vsel %vm5141, %v5225, %v5201
      %v5227 = vsel %vm5140, %v1058, %v5224
      %v5228 = vsel %vm5140, 0, %v5226
      %v5229 = vcosq.f32.pop %v5227
      %v5230 = vsinq.f32.pop %v5227
      %vm5231 = vweird.f32 %v1058
      %v5232 = vadd.s32 %v5228, 3
      %v5233 = vand.u32 %v5232, 3
      %vm5234 = vcmp.lt.s32.totalorder %v5233, 2
      %vm5235 = vcmp.eq.s32.totalorder %v5233, 0
      %v5236 = vxor.u32 %v5230, 2147483648
      %v5237 = vsel %vm5235, %v5229, %v5236
      %vm5238 = vcmp.eq.s32.totalorder %v5233, 2
      %v5239 = vxor.u32 %v5229, 2147483648
      %v5240 = vsel %vm5238, %v5239, %v5230
      %v5241 = vsel %vm5234, %v5237, %v5240
      %v5242 = vsel %vm5231, nan, %v5241
      %v5243 = vand.u32 2147483647, %v1059
      %vm5244 = vcmp.le.f32.partialorder %v5243, 0.7853982
      %vm5245 = vcmp.lt.s32.totalorder %v1059, 0
      %v5246 = vand.u32 %v1059, 2139095040
      %v5247 = vshrl.u32 %v5246, 23
      %v5248 = vsub.s32 %v5247, 127
      %v5249 = vand.u32 2147483647, %v1059
      %v5250 = vand.u32 %v5249, 8388607
      %v5251 = vor.u32 %v5250, 8388608
      %v5252 = vsub.s32 0, %v5251
      %v5253 = vadd.s32 %v5248, 1
      %vm5254 = vcmp.gt.s32.totalorder %v5253, 0
      %v5255 = vsel %vm5254, %v5253, 0
      %v5256 = vshrl.u32 %v5255, 5
      %v5257 = vand.u32 %v5255, 31
      %v5258 = vsub.s32 32, %v5257
      %v5259 = vshrl.u32 683565275, %v5258
      %v5260 = vshll.u32 683565275, %v5257
      %v5261 = vshrl.u32 2475754826, %v5258
      %v5262 = vor.u32 %v5260, %v5261
      %v5263 = vshll.u32 2475754826, %v5257
      %v5264 = vshrl.u32 2131351028, %v5258
      %v5265 = vor.u32 %v5263, %v5264
      %v5266 = vshll.u32 2131351028, %v5257
      %v5267 = vshrl.u32 2102212464, %v5258
      %v5268 = vor.u32 %v5266, %v5267
      %v5269 = vshll.u32 2102212464, %v5257
      %v5270 = vshrl.u32 920167782, %v5258
      %v5271 = vor.u32 %v5269, %v5270
      %v5272 = vshll.u32 920167782, %v5257
      %v5273 = vshrl.u32 1326507024, %v5258
      %v5274 = vor.u32 %v5272, %v5273
      %vm5275 = vcmp.lt.s32.totalorder %v5256, 1
      %vm5276 = vcmp.lt.s32.totalorder %v5256, 2
      %vm5277 = vcmp.lt.s32.totalorder %v5256, 3
      %vm5278 = vcmp.lt.s32.totalorder %v5256, 4
      %v5279 = vsel %vm5275, %v5259, %v5262
      %v5280 = vsel %vm5278, %v5268, 2102212464
      %v5281 = vsel %vm5277, %v5265, %v5280
      %v5282 = vsel %vm5276, %v5279, %v5281
      %v5283 = vsel %vm5275, %v5262, %v5265
      %v5284 = vsel %vm5278, %v5271, 920167782
      %v5285 = vsel %vm5277, %v5268, %v5284
      %v5286 = vsel %vm5276, %v5283, %v5285
      %v5287 = vsel %vm5275, %v5265, %v5268
      %v5288 = vsel %vm5278, %v5274, 1326507024
      %v5289 = vsel %vm5277, %v5271, %v5288
      %v5290 = vsel %vm5276, %v5287, %v5289
      %v5291 = vshll.u32 %v5251, 8
      %v5292 = vmul.u32.u64.compose %v5291, %v5290
      %v5293 = vextract.low.u32 %v5292
      %v5294 = vextract.high.u32 %v5292
      %v5295 = vmul.u32.u64.compose %v5291, %v5286
      %v5296 = vextract.low.u32 %v5295
      %v5297 = vextract.high.u32 %v5295
      %v5298 = vmul.u32 %v5291, %v5282
      %v5299 = vadd.s32 %v5294, %v5296
      %vm5300 = vc.u32 %v5294, %v5296
      %v5301 = vadd.s32 %v5297, 1
      %v5302 = vsel %vm5300, %v5301, %v5297
      %v5303 = vadd.s32 %v5298, %v5302
      %v5304 = vadd.s32 %v5303, 536870912
      %v5305 = vshrl.u32 %v5304, 30
      %v5306 = vshll.u32 %v5305, 30
      %v5307 = vsub.s32 %v5303, %v5306
      %vm5308 = vcmp.lt.s32.totalorder %v5307, 0
      %v5309 = vsub.s32 0, %v5307
      %v5310 = vsel %vm5308, %v5309, %v5307
      %v5311 = vclz %v5310
      %v5312 = vsub.s32 %v5311, 2
      %vm5313 = vcmp.gt.s32.totalorder 0, %v5312
      %v5314 = vsel %vm5313, 0, %v5312
      %v5315 = vsub.s32 32, %v5314
      %v5316 = vshll.u32 %v5307, %v5314
      %v5317 = vshrl.u32 %v5299, %v5315
      %v5318 = vor.u32 %v5316, %v5317
      %v5319 = vsub.s32 4294967266, %v5314
      %v5320 = vadd.s32 %v5319, 127
      %v5321 = vshll.u32 %v5320, 23
      %v5322 = vor.u32 4788187, %v5321
      %v5323 = vand.u32 2147483647, %v5322
      %v5325 = vcvt.s32.f32 %v5318
      %v5326 = vmul.f32 %v5325, %v5323
      %v5327 = vxor.u32 %v5326, 2147483648
      %v5328 = vsel %vm5245, %v5327, %v5326
      %v5329 = vsub.s32 4, %v5305
      %v5330 = vsel %vm5245, %v5329, %v5305
      %v5331 = vsel %vm5244, %v1059, %v5328
      %v5332 = vsel %vm5244, 0, %v5330
      %v5333 = vcosq.f32.pop %v5331
      %v5334 = vsinq.f32.pop %v5331
      %vm5335 = vweird.f32 %v1059
      %v5336 = vadd.s32 %v5332, 3
      %v5337 = vand.u32 %v5336, 3
      %vm5338 = vcmp.lt.s32.totalorder %v5337, 2
      %vm5339 = vcmp.eq.s32.totalorder %v5337, 0
      %v5340 = vxor.u32 %v5334, 2147483648
      %v5341 = vsel %vm5339, %v5333, %v5340
      %vm5342 = vcmp.eq.s32.totalorder %v5337, 2
      %v5343 = vxor.u32 %v5333, 2147483648
      %v5344 = vsel %vm5342, %v5343, %v5334
      %v5345 = vsel %vm5338, %v5341, %v5344
      %v5346 = vsel %vm5335, nan, %v5345
      %v5347 = vand.u32 2147483647, %v1060
      %vm5348 = vcmp.le.f32.partialorder %v5347, 0.7853982
      %vm5349 = vcmp.lt.s32.totalorder %v1060, 0
      %v5350 = vand.u32 %v1060, 2139095040
      %v5351 = vshrl.u32 %v5350, 23
      %v5352 = vsub.s32 %v5351, 127
      %v5353 = vand.u32 2147483647, %v1060
      %v5354 = vand.u32 %v5353, 8388607
      %v5355 = vor.u32 %v5354, 8388608
      %v5356 = vsub.s32 0, %v5355
      %v5357 = vadd.s32 %v5352, 1
      %vm5358 = vcmp.gt.s32.totalorder %v5357, 0
      %v5359 = vsel %vm5358, %v5357, 0
      %v5360 = vshrl.u32 %v5359, 5
      %v5361 = vand.u32 %v5359, 31
      %v5362 = vsub.s32 32, %v5361
      %v5363 = vshrl.u32 683565275, %v5362
      %v5364 = vshll.u32 683565275, %v5361
      %v5365 = vshrl.u32 2475754826, %v5362
      %v5366 = vor.u32 %v5364, %v5365
      %v5367 = vshll.u32 2475754826, %v5361
      %v5368 = vshrl.u32 2131351028, %v5362
      %v5369 = vor.u32 %v5367, %v5368
      %v5370 = vshll.u32 2131351028, %v5361
      %v5371 = vshrl.u32 2102212464, %v5362
      %v5372 = vor.u32 %v5370, %v5371
      %v5373 = vshll.u32 2102212464, %v5361
      %v5374 = vshrl.u32 920167782, %v5362
      %v5375 = vor.u32 %v5373, %v5374
      %v5376 = vshll.u32 920167782, %v5361
      %v5377 = vshrl.u32 1326507024, %v5362
      %v5378 = vor.u32 %v5376, %v5377
      %vm5379 = vcmp.lt.s32.totalorder %v5360, 1
      %vm5380 = vcmp.lt.s32.totalorder %v5360, 2
      %vm5381 = vcmp.lt.s32.totalorder %v5360, 3
      %vm5382 = vcmp.lt.s32.totalorder %v5360, 4
      %v5383 = vsel %vm5379, %v5363, %v5366
      %v5384 = vsel %vm5382, %v5372, 2102212464
      %v5385 = vsel %vm5381, %v5369, %v5384
      %v5386 = vsel %vm5380, %v5383, %v5385
      %v5387 = vsel %vm5379, %v5366, %v5369
      %v5388 = vsel %vm5382, %v5375, 920167782
      %v5389 = vsel %vm5381, %v5372, %v5388
      %v5390 = vsel %vm5380, %v5387, %v5389
      %v5391 = vsel %vm5379, %v5369, %v5372
      %v5392 = vsel %vm5382, %v5378, 1326507024
      %v5393 = vsel %vm5381, %v5375, %v5392
      %v5394 = vsel %vm5380, %v5391, %v5393
      %v5395 = vshll.u32 %v5355, 8
      %v5396 = vmul.u32.u64.compose %v5395, %v5394
      %v5397 = vextract.low.u32 %v5396
      %v5398 = vextract.high.u32 %v5396
      %v5399 = vmul.u32.u64.compose %v5395, %v5390
      %v5400 = vextract.low.u32 %v5399
      %v5401 = vextract.high.u32 %v5399
      %v5402 = vmul.u32 %v5395, %v5386
      %v5403 = vadd.s32 %v5398, %v5400
      %vm5404 = vc.u32 %v5398, %v5400
      %v5405 = vadd.s32 %v5401, 1
      %v5406 = vsel %vm5404, %v5405, %v5401
      %v5407 = vadd.s32 %v5402, %v5406
      %v5408 = vadd.s32 %v5407, 536870912
      %v5409 = vshrl.u32 %v5408, 30
      %v5410 = vshll.u32 %v5409, 30
      %v5411 = vsub.s32 %v5407, %v5410
      %vm5412 = vcmp.lt.s32.totalorder %v5411, 0
      %v5413 = vsub.s32 0, %v5411
      %v5414 = vsel %vm5412, %v5413, %v5411
      %v5415 = vclz %v5414
      %v5416 = vsub.s32 %v5415, 2
      %vm5417 = vcmp.gt.s32.totalorder 0, %v5416
      %v5418 = vsel %vm5417, 0, %v5416
      %v5419 = vsub.s32 32, %v5418
      %v5420 = vshll.u32 %v5411, %v5418
      %v5421 = vshrl.u32 %v5403, %v5419
      %v5422 = vor.u32 %v5420, %v5421
      %v5423 = vsub.s32 4294967266, %v5418
      %v5424 = vadd.s32 %v5423, 127
      %v5425 = vshll.u32 %v5424, 23
      %v5426 = vor.u32 4788187, %v5425
      %v5427 = vand.u32 2147483647, %v5426
      %v5429 = vcvt.s32.f32 %v5422
      %v5430 = vmul.f32 %v5429, %v5427
      %v5431 = vxor.u32 %v5430, 2147483648
      %v5432 = vsel %vm5349, %v5431, %v5430
      %v5433 = vsub.s32 4, %v5409
      %v5434 = vsel %vm5349, %v5433, %v5409
      %v5435 = vsel %vm5348, %v1060, %v5432
      %v5436 = vsel %vm5348, 0, %v5434
      %v5437 = vcosq.f32.pop %v5435
      %v5438 = vsinq.f32.pop %v5435
      %vm5439 = vweird.f32 %v1060
      %v5440 = vadd.s32 %v5436, 3
      %v5441 = vand.u32 %v5440, 3
      %vm5442 = vcmp.lt.s32.totalorder %v5441, 2
      %vm5443 = vcmp.eq.s32.totalorder %v5441, 0
      %v5444 = vxor.u32 %v5438, 2147483648
      %v5445 = vsel %vm5443, %v5437, %v5444
      %vm5446 = vcmp.eq.s32.totalorder %v5441, 2
      %v5447 = vxor.u32 %v5437, 2147483648
      %v5448 = vsel %vm5446, %v5447, %v5438
      %v5449 = vsel %vm5442, %v5445, %v5448
      %v5450 = vsel %vm5439, nan, %v5449
      %v5451 = vand.u32 2147483647, %v1061
      %vm5452 = vcmp.le.f32.partialorder %v5451, 0.7853982
      %vm5453 = vcmp.lt.s32.totalorder %v1061, 0
      %v5454 = vand.u32 %v1061, 2139095040
      %v5455 = vshrl.u32 %v5454, 23
      %v5456 = vsub.s32 %v5455, 127
      %v5457 = vand.u32 2147483647, %v1061
      %v5458 = vand.u32 %v5457, 8388607
      %v5459 = vor.u32 %v5458, 8388608
      %v5460 = vsub.s32 0, %v5459
      %v5461 = vadd.s32 %v5456, 1
      %vm5462 = vcmp.gt.s32.totalorder %v5461, 0
      %v5463 = vsel %vm5462, %v5461, 0
      %v5464 = vshrl.u32 %v5463, 5
      %v5465 = vand.u32 %v5463, 31
      %v5466 = vsub.s32 32, %v5465
      %v5467 = vshrl.u32 683565275, %v5466
      %v5468 = vshll.u32 683565275, %v5465
      %v5469 = vshrl.u32 2475754826, %v5466
      %v5470 = vor.u32 %v5468, %v5469
      %v5471 = vshll.u32 2475754826, %v5465
      %v5472 = vshrl.u32 2131351028, %v5466
      %v5473 = vor.u32 %v5471, %v5472
      %v5474 = vshll.u32 2131351028, %v5465
      %v5475 = vshrl.u32 2102212464, %v5466
      %v5476 = vor.u32 %v5474, %v5475
      %v5477 = vshll.u32 2102212464, %v5465
      %v5478 = vshrl.u32 920167782, %v5466
      %v5479 = vor.u32 %v5477, %v5478
      %v5480 = vshll.u32 920167782, %v5465
      %v5481 = vshrl.u32 1326507024, %v5466
      %v5482 = vor.u32 %v5480, %v5481
      %vm5483 = vcmp.lt.s32.totalorder %v5464, 1
      %vm5484 = vcmp.lt.s32.totalorder %v5464, 2
      %vm5485 = vcmp.lt.s32.totalorder %v5464, 3
      %vm5486 = vcmp.lt.s32.totalorder %v5464, 4
      %v5487 = vsel %vm5483, %v5467, %v5470
      %v5488 = vsel %vm5486, %v5476, 2102212464
      %v5489 = vsel %vm5485, %v5473, %v5488
      %v5490 = vsel %vm5484, %v5487, %v5489
      %v5491 = vsel %vm5483, %v5470, %v5473
      %v5492 = vsel %vm5486, %v5479, 920167782
      %v5493 = vsel %vm5485, %v5476, %v5492
      %v5494 = vsel %vm5484, %v5491, %v5493
      %v5495 = vsel %vm5483, %v5473, %v5476
      %v5496 = vsel %vm5486, %v5482, 1326507024
      %v5497 = vsel %vm5485, %v5479, %v5496
      %v5498 = vsel %vm5484, %v5495, %v5497
      %v5499 = vshll.u32 %v5459, 8
      %v5500 = vmul.u32.u64.compose %v5499, %v5498
      %v5501 = vextract.low.u32 %v5500
      %v5502 = vextract.high.u32 %v5500
      %v5503 = vmul.u32.u64.compose %v5499, %v5494
      %v5504 = vextract.low.u32 %v5503
      %v5505 = vextract.high.u32 %v5503
      %v5506 = vmul.u32 %v5499, %v5490
      %v5507 = vadd.s32 %v5502, %v5504
      %vm5508 = vc.u32 %v5502, %v5504
      %v5509 = vadd.s32 %v5505, 1
      %v5510 = vsel %vm5508, %v5509, %v5505
      %v5511 = vadd.s32 %v5506, %v5510
      %v5512 = vadd.s32 %v5511, 536870912
      %v5513 = vshrl.u32 %v5512, 30
      %v5514 = vshll.u32 %v5513, 30
      %v5515 = vsub.s32 %v5511, %v5514
      %vm5516 = vcmp.lt.s32.totalorder %v5515, 0
      %v5517 = vsub.s32 0, %v5515
      %v5518 = vsel %vm5516, %v5517, %v5515
      %v5519 = vclz %v5518
      %v5520 = vsub.s32 %v5519, 2
      %vm5521 = vcmp.gt.s32.totalorder 0, %v5520
      %v5522 = vsel %vm5521, 0, %v5520
      %v5523 = vsub.s32 32, %v5522
      %v5524 = vshll.u32 %v5515, %v5522
      %v5525 = vshrl.u32 %v5507, %v5523
      %v5526 = vor.u32 %v5524, %v5525
      %v5527 = vsub.s32 4294967266, %v5522
      %v5528 = vadd.s32 %v5527, 127
      %v5529 = vshll.u32 %v5528, 23
      %v5530 = vor.u32 4788187, %v5529
      %v5531 = vand.u32 2147483647, %v5530
      %v5533 = vcvt.s32.f32 %v5526
      %v5534 = vmul.f32 %v5533, %v5531
      %v5535 = vxor.u32 %v5534, 2147483648
      %v5536 = vsel %vm5453, %v5535, %v5534
      %v5537 = vsub.s32 4, %v5513
      %v5538 = vsel %vm5453, %v5537, %v5513
      %v5539 = vsel %vm5452, %v1061, %v5536
      %v5540 = vsel %vm5452, 0, %v5538
      %v5541 = vcosq.f32.pop %v5539
      %v5542 = vsinq.f32.pop %v5539
      %vm5543 = vweird.f32 %v1061
      %v5544 = vadd.s32 %v5540, 3
      %v5545 = vand.u32 %v5544, 3
      %vm5546 = vcmp.lt.s32.totalorder %v5545, 2
      %vm5547 = vcmp.eq.s32.totalorder %v5545, 0
      %v5548 = vxor.u32 %v5542, 2147483648
      %v5549 = vsel %vm5547, %v5541, %v5548
      %vm5550 = vcmp.eq.s32.totalorder %v5545, 2
      %v5551 = vxor.u32 %v5541, 2147483648
      %v5552 = vsel %vm5550, %v5551, %v5542
      %v5553 = vsel %vm5546, %v5549, %v5552
      %v5554 = vsel %vm5543, nan, %v5553
      %v5555 = vand.u32 2147483647, %v1062
      %vm5556 = vcmp.le.f32.partialorder %v5555, 0.7853982
      %vm5557 = vcmp.lt.s32.totalorder %v1062, 0
      %v5558 = vand.u32 %v1062, 2139095040
      %v5559 = vshrl.u32 %v5558, 23
      %v5560 = vsub.s32 %v5559, 127
      %v5561 = vand.u32 2147483647, %v1062
      %v5562 = vand.u32 %v5561, 8388607
      %v5563 = vor.u32 %v5562, 8388608
      %v5564 = vsub.s32 0, %v5563
      %v5565 = vadd.s32 %v5560, 1
      %vm5566 = vcmp.gt.s32.totalorder %v5565, 0
      %v5567 = vsel %vm5566, %v5565, 0
      %v5568 = vshrl.u32 %v5567, 5
      %v5569 = vand.u32 %v5567, 31
      %v5570 = vsub.s32 32, %v5569
      %v5571 = vshrl.u32 683565275, %v5570
      %v5572 = vshll.u32 683565275, %v5569
      %v5573 = vshrl.u32 2475754826, %v5570
      %v5574 = vor.u32 %v5572, %v5573
      %v5575 = vshll.u32 2475754826, %v5569
      %v5576 = vshrl.u32 2131351028, %v5570
      %v5577 = vor.u32 %v5575, %v5576
      %v5578 = vshll.u32 2131351028, %v5569
      %v5579 = vshrl.u32 2102212464, %v5570
      %v5580 = vor.u32 %v5578, %v5579
      %v5581 = vshll.u32 2102212464, %v5569
      %v5582 = vshrl.u32 920167782, %v5570
      %v5583 = vor.u32 %v5581, %v5582
      %v5584 = vshll.u32 920167782, %v5569
      %v5585 = vshrl.u32 1326507024, %v5570
      %v5586 = vor.u32 %v5584, %v5585
      %vm5587 = vcmp.lt.s32.totalorder %v5568, 1
      %vm5588 = vcmp.lt.s32.totalorder %v5568, 2
      %vm5589 = vcmp.lt.s32.totalorder %v5568, 3
      %vm5590 = vcmp.lt.s32.totalorder %v5568, 4
      %v5591 = vsel %vm5587, %v5571, %v5574
      %v5592 = vsel %vm5590, %v5580, 2102212464
      %v5593 = vsel %vm5589, %v5577, %v5592
      %v5594 = vsel %vm5588, %v5591, %v5593
      %v5595 = vsel %vm5587, %v5574, %v5577
      %v5596 = vsel %vm5590, %v5583, 920167782
      %v5597 = vsel %vm5589, %v5580, %v5596
      %v5598 = vsel %vm5588, %v5595, %v5597
      %v5599 = vsel %vm5587, %v5577, %v5580
      %v5600 = vsel %vm5590, %v5586, 1326507024
      %v5601 = vsel %vm5589, %v5583, %v5600
      %v5602 = vsel %vm5588, %v5599, %v5601
      %v5603 = vshll.u32 %v5563, 8
      %v5604 = vmul.u32.u64.compose %v5603, %v5602
      %v5605 = vextract.low.u32 %v5604
      %v5606 = vextract.high.u32 %v5604
      %v5607 = vmul.u32.u64.compose %v5603, %v5598
      %v5608 = vextract.low.u32 %v5607
      %v5609 = vextract.high.u32 %v5607
      %v5610 = vmul.u32 %v5603, %v5594
      %v5611 = vadd.s32 %v5606, %v5608
      %vm5612 = vc.u32 %v5606, %v5608
      %v5613 = vadd.s32 %v5609, 1
      %v5614 = vsel %vm5612, %v5613, %v5609
      %v5615 = vadd.s32 %v5610, %v5614
      %v5616 = vadd.s32 %v5615, 536870912
      %v5617 = vshrl.u32 %v5616, 30
      %v5618 = vshll.u32 %v5617, 30
      %v5619 = vsub.s32 %v5615, %v5618
      %vm5620 = vcmp.lt.s32.totalorder %v5619, 0
      %v5621 = vsub.s32 0, %v5619
      %v5622 = vsel %vm5620, %v5621, %v5619
      %v5623 = vclz %v5622
      %v5624 = vsub.s32 %v5623, 2
      %vm5625 = vcmp.gt.s32.totalorder 0, %v5624
      %v5626 = vsel %vm5625, 0, %v5624
      %v5627 = vsub.s32 32, %v5626
      %v5628 = vshll.u32 %v5619, %v5626
      %v5629 = vshrl.u32 %v5611, %v5627
      %v5630 = vor.u32 %v5628, %v5629
      %v5631 = vsub.s32 4294967266, %v5626
      %v5632 = vadd.s32 %v5631, 127
      %v5633 = vshll.u32 %v5632, 23
      %v5634 = vor.u32 4788187, %v5633
      %v5635 = vand.u32 2147483647, %v5634
      %v5637 = vcvt.s32.f32 %v5630
      %v5638 = vmul.f32 %v5637, %v5635
      %v5639 = vxor.u32 %v5638, 2147483648
      %v5640 = vsel %vm5557, %v5639, %v5638
      %v5641 = vsub.s32 4, %v5617
      %v5642 = vsel %vm5557, %v5641, %v5617
      %v5643 = vsel %vm5556, %v1062, %v5640
      %v5644 = vsel %vm5556, 0, %v5642
      %v5645 = vcosq.f32.pop %v5643
      %v5646 = vsinq.f32.pop %v5643
      %vm5647 = vweird.f32 %v1062
      %v5648 = vadd.s32 %v5644, 3
      %v5649 = vand.u32 %v5648, 3
      %vm5650 = vcmp.lt.s32.totalorder %v5649, 2
      %vm5651 = vcmp.eq.s32.totalorder %v5649, 0
      %v5652 = vxor.u32 %v5646, 2147483648
      %v5653 = vsel %vm5651, %v5645, %v5652
      %vm5654 = vcmp.eq.s32.totalorder %v5649, 2
      %v5655 = vxor.u32 %v5645, 2147483648
      %v5656 = vsel %vm5654, %v5655, %v5646
      %v5657 = vsel %vm5650, %v5653, %v5656
      %v5658 = vsel %vm5647, nan, %v5657
      %v5659 = vand.u32 2147483647, %v1063
      %vm5660 = vcmp.le.f32.partialorder %v5659, 0.7853982
      %vm5661 = vcmp.lt.s32.totalorder %v1063, 0
      %v5662 = vand.u32 %v1063, 2139095040
      %v5663 = vshrl.u32 %v5662, 23
      %v5664 = vsub.s32 %v5663, 127
      %v5665 = vand.u32 2147483647, %v1063
      %v5666 = vand.u32 %v5665, 8388607
      %v5667 = vor.u32 %v5666, 8388608
      %v5668 = vsub.s32 0, %v5667
      %v5669 = vadd.s32 %v5664, 1
      %vm5670 = vcmp.gt.s32.totalorder %v5669, 0
      %v5671 = vsel %vm5670, %v5669, 0
      %v5672 = vshrl.u32 %v5671, 5
      %v5673 = vand.u32 %v5671, 31
      %v5674 = vsub.s32 32, %v5673
      %v5675 = vshrl.u32 683565275, %v5674
      %v5676 = vshll.u32 683565275, %v5673
      %v5677 = vshrl.u32 2475754826, %v5674
      %v5678 = vor.u32 %v5676, %v5677
      %v5679 = vshll.u32 2475754826, %v5673
      %v5680 = vshrl.u32 2131351028, %v5674
      %v5681 = vor.u32 %v5679, %v5680
      %v5682 = vshll.u32 2131351028, %v5673
      %v5683 = vshrl.u32 2102212464, %v5674
      %v5684 = vor.u32 %v5682, %v5683
      %v5685 = vshll.u32 2102212464, %v5673
      %v5686 = vshrl.u32 920167782, %v5674
      %v5687 = vor.u32 %v5685, %v5686
      %v5688 = vshll.u32 920167782, %v5673
      %v5689 = vshrl.u32 1326507024, %v5674
      %v5690 = vor.u32 %v5688, %v5689
      %vm5691 = vcmp.lt.s32.totalorder %v5672, 1
      %vm5692 = vcmp.lt.s32.totalorder %v5672, 2
      %vm5693 = vcmp.lt.s32.totalorder %v5672, 3
      %vm5694 = vcmp.lt.s32.totalorder %v5672, 4
      %v5695 = vsel %vm5691, %v5675, %v5678
      %v5696 = vsel %vm5694, %v5684, 2102212464
      %v5697 = vsel %vm5693, %v5681, %v5696
      %v5698 = vsel %vm5692, %v5695, %v5697
      %v5699 = vsel %vm5691, %v5678, %v5681
      %v5700 = vsel %vm5694, %v5687, 920167782
      %v5701 = vsel %vm5693, %v5684, %v5700
      %v5702 = vsel %vm5692, %v5699, %v5701
      %v5703 = vsel %vm5691, %v5681, %v5684
      %v5704 = vsel %vm5694, %v5690, 1326507024
      %v5705 = vsel %vm5693, %v5687, %v5704
      %v5706 = vsel %vm5692, %v5703, %v5705
      %v5707 = vshll.u32 %v5667, 8
      %v5708 = vmul.u32.u64.compose %v5707, %v5706
      %v5709 = vextract.low.u32 %v5708
      %v5710 = vextract.high.u32 %v5708
      %v5711 = vmul.u32.u64.compose %v5707, %v5702
      %v5712 = vextract.low.u32 %v5711
      %v5713 = vextract.high.u32 %v5711
      %v5714 = vmul.u32 %v5707, %v5698
      %v5715 = vadd.s32 %v5710, %v5712
      %vm5716 = vc.u32 %v5710, %v5712
      %v5717 = vadd.s32 %v5713, 1
      %v5718 = vsel %vm5716, %v5717, %v5713
      %v5719 = vadd.s32 %v5714, %v5718
      %v5720 = vadd.s32 %v5719, 536870912
      %v5721 = vshrl.u32 %v5720, 30
      %v5722 = vshll.u32 %v5721, 30
      %v5723 = vsub.s32 %v5719, %v5722
      %vm5724 = vcmp.lt.s32.totalorder %v5723, 0
      %v5725 = vsub.s32 0, %v5723
      %v5726 = vsel %vm5724, %v5725, %v5723
      %v5727 = vclz %v5726
      %v5728 = vsub.s32 %v5727, 2
      %vm5729 = vcmp.gt.s32.totalorder 0, %v5728
      %v5730 = vsel %vm5729, 0, %v5728
      %v5731 = vsub.s32 32, %v5730
      %v5732 = vshll.u32 %v5723, %v5730
      %v5733 = vshrl.u32 %v5715, %v5731
      %v5734 = vor.u32 %v5732, %v5733
      %v5735 = vsub.s32 4294967266, %v5730
      %v5736 = vadd.s32 %v5735, 127
      %v5737 = vshll.u32 %v5736, 23
      %v5738 = vor.u32 4788187, %v5737
      %v5739 = vand.u32 2147483647, %v5738
      %v5741 = vcvt.s32.f32 %v5734
      %v5742 = vmul.f32 %v5741, %v5739
      %v5743 = vxor.u32 %v5742, 2147483648
      %v5744 = vsel %vm5661, %v5743, %v5742
      %v5745 = vsub.s32 4, %v5721
      %v5746 = vsel %vm5661, %v5745, %v5721
      %v5747 = vsel %vm5660, %v1063, %v5744
      %v5748 = vsel %vm5660, 0, %v5746
      %v5749 = vcosq.f32.pop %v5747
      %v5750 = vsinq.f32.pop %v5747
      %vm5751 = vweird.f32 %v1063
      %v5752 = vadd.s32 %v5748, 3
      %v5753 = vand.u32 %v5752, 3
      %vm5754 = vcmp.lt.s32.totalorder %v5753, 2
      %vm5755 = vcmp.eq.s32.totalorder %v5753, 0
      %v5756 = vxor.u32 %v5750, 2147483648
      %v5757 = vsel %vm5755, %v5749, %v5756
      %vm5758 = vcmp.eq.s32.totalorder %v5753, 2
      %v5759 = vxor.u32 %v5749, 2147483648
      %v5760 = vsel %vm5758, %v5759, %v5750
      %v5761 = vsel %vm5754, %v5757, %v5760
      %v5762 = vsel %vm5751, nan, %v5761
      %v5763 = vand.u32 2147483647, %v1064
      %vm5764 = vcmp.le.f32.partialorder %v5763, 0.7853982
      %vm5765 = vcmp.lt.s32.totalorder %v1064, 0
      %v5766 = vand.u32 %v1064, 2139095040
      %v5767 = vshrl.u32 %v5766, 23
      %v5768 = vsub.s32 %v5767, 127
      %v5769 = vand.u32 2147483647, %v1064
      %v5770 = vand.u32 %v5769, 8388607
      %v5771 = vor.u32 %v5770, 8388608
      %v5772 = vsub.s32 0, %v5771
      %v5773 = vadd.s32 %v5768, 1
      %vm5774 = vcmp.gt.s32.totalorder %v5773, 0
      %v5775 = vsel %vm5774, %v5773, 0
      %v5776 = vshrl.u32 %v5775, 5
      %v5777 = vand.u32 %v5775, 31
      %v5778 = vsub.s32 32, %v5777
      %v5779 = vshrl.u32 683565275, %v5778
      %v5780 = vshll.u32 683565275, %v5777
      %v5781 = vshrl.u32 2475754826, %v5778
      %v5782 = vor.u32 %v5780, %v5781
      %v5783 = vshll.u32 2475754826, %v5777
      %v5784 = vshrl.u32 2131351028, %v5778
      %v5785 = vor.u32 %v5783, %v5784
      %v5786 = vshll.u32 2131351028, %v5777
      %v5787 = vshrl.u32 2102212464, %v5778
      %v5788 = vor.u32 %v5786, %v5787
      %v5789 = vshll.u32 2102212464, %v5777
      %v5790 = vshrl.u32 920167782, %v5778
      %v5791 = vor.u32 %v5789, %v5790
      %v5792 = vshll.u32 920167782, %v5777
      %v5793 = vshrl.u32 1326507024, %v5778
      %v5794 = vor.u32 %v5792, %v5793
      %vm5795 = vcmp.lt.s32.totalorder %v5776, 1
      %vm5796 = vcmp.lt.s32.totalorder %v5776, 2
      %vm5797 = vcmp.lt.s32.totalorder %v5776, 3
      %vm5798 = vcmp.lt.s32.totalorder %v5776, 4
      %v5799 = vsel %vm5795, %v5779, %v5782
      %v5800 = vsel %vm5798, %v5788, 2102212464
      %v5801 = vsel %vm5797, %v5785, %v5800
      %v5802 = vsel %vm5796, %v5799, %v5801
      %v5803 = vsel %vm5795, %v5782, %v5785
      %v5804 = vsel %vm5798, %v5791, 920167782
      %v5805 = vsel %vm5797, %v5788, %v5804
      %v5806 = vsel %vm5796, %v5803, %v5805
      %v5807 = vsel %vm5795, %v5785, %v5788
      %v5808 = vsel %vm5798, %v5794, 1326507024
      %v5809 = vsel %vm5797, %v5791, %v5808
      %v5810 = vsel %vm5796, %v5807, %v5809
      %v5811 = vshll.u32 %v5771, 8
      %v5812 = vmul.u32.u64.compose %v5811, %v5810
      %v5813 = vextract.low.u32 %v5812
      %v5814 = vextract.high.u32 %v5812
      %v5815 = vmul.u32.u64.compose %v5811, %v5806
      %v5816 = vextract.low.u32 %v5815
      %v5817 = vextract.high.u32 %v5815
      %v5818 = vmul.u32 %v5811, %v5802
      %v5819 = vadd.s32 %v5814, %v5816
      %vm5820 = vc.u32 %v5814, %v5816
      %v5821 = vadd.s32 %v5817, 1
      %v5822 = vsel %vm5820, %v5821, %v5817
      %v5823 = vadd.s32 %v5818, %v5822
      %v5824 = vadd.s32 %v5823, 536870912
      %v5825 = vshrl.u32 %v5824, 30
      %v5826 = vshll.u32 %v5825, 30
      %v5827 = vsub.s32 %v5823, %v5826
      %vm5828 = vcmp.lt.s32.totalorder %v5827, 0
      %v5829 = vsub.s32 0, %v5827
      %v5830 = vsel %vm5828, %v5829, %v5827
      %v5831 = vclz %v5830
      %v5832 = vsub.s32 %v5831, 2
      %vm5833 = vcmp.gt.s32.totalorder 0, %v5832
      %v5834 = vsel %vm5833, 0, %v5832
      %v5835 = vsub.s32 32, %v5834
      %v5836 = vshll.u32 %v5827, %v5834
      %v5837 = vshrl.u32 %v5819, %v5835
      %v5838 = vor.u32 %v5836, %v5837
      %v5839 = vsub.s32 4294967266, %v5834
      %v5840 = vadd.s32 %v5839, 127
      %v5841 = vshll.u32 %v5840, 23
      %v5842 = vor.u32 4788187, %v5841
      %v5843 = vand.u32 2147483647, %v5842
      %v5845 = vcvt.s32.f32 %v5838
      %v5846 = vmul.f32 %v5845, %v5843
      %v5847 = vxor.u32 %v5846, 2147483648
      %v5848 = vsel %vm5765, %v5847, %v5846
      %v5849 = vsub.s32 4, %v5825
      %v5850 = vsel %vm5765, %v5849, %v5825
      %v5851 = vsel %vm5764, %v1064, %v5848
      %v5852 = vsel %vm5764, 0, %v5850
      %v5853 = vcosq.f32.pop %v5851
      %v5854 = vsinq.f32.pop %v5851
      %vm5855 = vweird.f32 %v1064
      %v5856 = vadd.s32 %v5852, 3
      %v5857 = vand.u32 %v5856, 3
      %vm5858 = vcmp.lt.s32.totalorder %v5857, 2
      %vm5859 = vcmp.eq.s32.totalorder %v5857, 0
      %v5860 = vxor.u32 %v5854, 2147483648
      %v5861 = vsel %vm5859, %v5853, %v5860
      %vm5862 = vcmp.eq.s32.totalorder %v5857, 2
      %v5863 = vxor.u32 %v5853, 2147483648
      %v5864 = vsel %vm5862, %v5863, %v5854
      %v5865 = vsel %vm5858, %v5861, %v5864
      %v5866 = vsel %vm5855, nan, %v5865
      %v5867 = vand.u32 2147483647, %v1065
      %vm5868 = vcmp.le.f32.partialorder %v5867, 0.7853982
      %vm5869 = vcmp.lt.s32.totalorder %v1065, 0
      %v5870 = vand.u32 %v1065, 2139095040
      %v5871 = vshrl.u32 %v5870, 23
      %v5872 = vsub.s32 %v5871, 127
      %v5873 = vand.u32 2147483647, %v1065
      %v5874 = vand.u32 %v5873, 8388607
      %v5875 = vor.u32 %v5874, 8388608
      %v5876 = vsub.s32 0, %v5875
      %v5877 = vadd.s32 %v5872, 1
      %vm5878 = vcmp.gt.s32.totalorder %v5877, 0
      %v5879 = vsel %vm5878, %v5877, 0
      %v5880 = vshrl.u32 %v5879, 5
      %v5881 = vand.u32 %v5879, 31
      %v5882 = vsub.s32 32, %v5881
      %v5883 = vshrl.u32 683565275, %v5882
      %v5884 = vshll.u32 683565275, %v5881
      %v5885 = vshrl.u32 2475754826, %v5882
      %v5886 = vor.u32 %v5884, %v5885
      %v5887 = vshll.u32 2475754826, %v5881
      %v5888 = vshrl.u32 2131351028, %v5882
      %v5889 = vor.u32 %v5887, %v5888
      %v5890 = vshll.u32 2131351028, %v5881
      %v5891 = vshrl.u32 2102212464, %v5882
      %v5892 = vor.u32 %v5890, %v5891
      %v5893 = vshll.u32 2102212464, %v5881
      %v5894 = vshrl.u32 920167782, %v5882
      %v5895 = vor.u32 %v5893, %v5894
      %v5896 = vshll.u32 920167782, %v5881
      %v5897 = vshrl.u32 1326507024, %v5882
      %v5898 = vor.u32 %v5896, %v5897
      %vm5899 = vcmp.lt.s32.totalorder %v5880, 1
      %vm5900 = vcmp.lt.s32.totalorder %v5880, 2
      %vm5901 = vcmp.lt.s32.totalorder %v5880, 3
      %vm5902 = vcmp.lt.s32.totalorder %v5880, 4
      %v5903 = vsel %vm5899, %v5883, %v5886
      %v5904 = vsel %vm5902, %v5892, 2102212464
      %v5905 = vsel %vm5901, %v5889, %v5904
      %v5906 = vsel %vm5900, %v5903, %v5905
      %v5907 = vsel %vm5899, %v5886, %v5889
      %v5908 = vsel %vm5902, %v5895, 920167782
      %v5909 = vsel %vm5901, %v5892, %v5908
      %v5910 = vsel %vm5900, %v5907, %v5909
      %v5911 = vsel %vm5899, %v5889, %v5892
      %v5912 = vsel %vm5902, %v5898, 1326507024
      %v5913 = vsel %vm5901, %v5895, %v5912
      %v5914 = vsel %vm5900, %v5911, %v5913
      %v5915 = vshll.u32 %v5875, 8
      %v5916 = vmul.u32.u64.compose %v5915, %v5914
      %v5917 = vextract.low.u32 %v5916
      %v5918 = vextract.high.u32 %v5916
      %v5919 = vmul.u32.u64.compose %v5915, %v5910
      %v5920 = vextract.low.u32 %v5919
      %v5921 = vextract.high.u32 %v5919
      %v5922 = vmul.u32 %v5915, %v5906
      %v5923 = vadd.s32 %v5918, %v5920
      %vm5924 = vc.u32 %v5918, %v5920
      %v5925 = vadd.s32 %v5921, 1
      %v5926 = vsel %vm5924, %v5925, %v5921
      %v5927 = vadd.s32 %v5922, %v5926
      %v5928 = vadd.s32 %v5927, 536870912
      %v5929 = vshrl.u32 %v5928, 30
      %v5930 = vshll.u32 %v5929, 30
      %v5931 = vsub.s32 %v5927, %v5930
      %vm5932 = vcmp.lt.s32.totalorder %v5931, 0
      %v5933 = vsub.s32 0, %v5931
      %v5934 = vsel %vm5932, %v5933, %v5931
      %v5935 = vclz %v5934
      %v5936 = vsub.s32 %v5935, 2
      %vm5937 = vcmp.gt.s32.totalorder 0, %v5936
      %v5938 = vsel %vm5937, 0, %v5936
      %v5939 = vsub.s32 32, %v5938
      %v5940 = vshll.u32 %v5931, %v5938
      %v5941 = vshrl.u32 %v5923, %v5939
      %v5942 = vor.u32 %v5940, %v5941
      %v5943 = vsub.s32 4294967266, %v5938
      %v5944 = vadd.s32 %v5943, 127
      %v5945 = vshll.u32 %v5944, 23
      %v5946 = vor.u32 4788187, %v5945
      %v5947 = vand.u32 2147483647, %v5946
      %v5949 = vcvt.s32.f32 %v5942
      %v5950 = vmul.f32 %v5949, %v5947
      %v5951 = vxor.u32 %v5950, 2147483648
      %v5952 = vsel %vm5869, %v5951, %v5950
      %v5953 = vsub.s32 4, %v5929
      %v5954 = vsel %vm5869, %v5953, %v5929
      %v5955 = vsel %vm5868, %v1065, %v5952
      %v5956 = vsel %vm5868, 0, %v5954
      %v5957 = vcosq.f32.pop %v5955
      %v5958 = vsinq.f32.pop %v5955
      %vm5959 = vweird.f32 %v1065
      %v5960 = vadd.s32 %v5956, 3
      %v5961 = vand.u32 %v5960, 3
      %vm5962 = vcmp.lt.s32.totalorder %v5961, 2
      %vm5963 = vcmp.eq.s32.totalorder %v5961, 0
      %v5964 = vxor.u32 %v5958, 2147483648
      %v5965 = vsel %vm5963, %v5957, %v5964
      %vm5966 = vcmp.eq.s32.totalorder %v5961, 2
      %v5967 = vxor.u32 %v5957, 2147483648
      %v5968 = vsel %vm5966, %v5967, %v5958
      %v5969 = vsel %vm5962, %v5965, %v5968
      %v5970 = vsel %vm5959, nan, %v5969
      %v5971 = vand.u32 2147483647, %v1066
      %vm5972 = vcmp.le.f32.partialorder %v5971, 0.7853982
      %vm5973 = vcmp.lt.s32.totalorder %v1066, 0
      %v5974 = vand.u32 %v1066, 2139095040
      %v5975 = vshrl.u32 %v5974, 23
      %v5976 = vsub.s32 %v5975, 127
      %v5977 = vand.u32 2147483647, %v1066
      %v5978 = vand.u32 %v5977, 8388607
      %v5979 = vor.u32 %v5978, 8388608
      %v5980 = vsub.s32 0, %v5979
      %v5981 = vadd.s32 %v5976, 1
      %vm5982 = vcmp.gt.s32.totalorder %v5981, 0
      %v5983 = vsel %vm5982, %v5981, 0
      %v5984 = vshrl.u32 %v5983, 5
      %v5985 = vand.u32 %v5983, 31
      %v5986 = vsub.s32 32, %v5985
      %v5987 = vshrl.u32 683565275, %v5986
      %v5988 = vshll.u32 683565275, %v5985
      %v5989 = vshrl.u32 2475754826, %v5986
      %v5990 = vor.u32 %v5988, %v5989
      %v5991 = vshll.u32 2475754826, %v5985
      %v5992 = vshrl.u32 2131351028, %v5986
      %v5993 = vor.u32 %v5991, %v5992
      %v5994 = vshll.u32 2131351028, %v5985
      %v5995 = vshrl.u32 2102212464, %v5986
      %v5996 = vor.u32 %v5994, %v5995
      %v5997 = vshll.u32 2102212464, %v5985
      %v5998 = vshrl.u32 920167782, %v5986
      %v5999 = vor.u32 %v5997, %v5998
      %v6000 = vshll.u32 920167782, %v5985
      %v6001 = vshrl.u32 1326507024, %v5986
      %v6002 = vor.u32 %v6000, %v6001
      %vm6003 = vcmp.lt.s32.totalorder %v5984, 1
      %vm6004 = vcmp.lt.s32.totalorder %v5984, 2
      %vm6005 = vcmp.lt.s32.totalorder %v5984, 3
      %vm6006 = vcmp.lt.s32.totalorder %v5984, 4
      %v6007 = vsel %vm6003, %v5987, %v5990
      %v6008 = vsel %vm6006, %v5996, 2102212464
      %v6009 = vsel %vm6005, %v5993, %v6008
      %v6010 = vsel %vm6004, %v6007, %v6009
      %v6011 = vsel %vm6003, %v5990, %v5993
      %v6012 = vsel %vm6006, %v5999, 920167782
      %v6013 = vsel %vm6005, %v5996, %v6012
      %v6014 = vsel %vm6004, %v6011, %v6013
      %v6015 = vsel %vm6003, %v5993, %v5996
      %v6016 = vsel %vm6006, %v6002, 1326507024
      %v6017 = vsel %vm6005, %v5999, %v6016
      %v6018 = vsel %vm6004, %v6015, %v6017
      %v6019 = vshll.u32 %v5979, 8
      %v6020 = vmul.u32.u64.compose %v6019, %v6018
      %v6021 = vextract.low.u32 %v6020
      %v6022 = vextract.high.u32 %v6020
      %v6023 = vmul.u32.u64.compose %v6019, %v6014
      %v6024 = vextract.low.u32 %v6023
      %v6025 = vextract.high.u32 %v6023
      %v6026 = vmul.u32 %v6019, %v6010
      %v6027 = vadd.s32 %v6022, %v6024
      %vm6028 = vc.u32 %v6022, %v6024
      %v6029 = vadd.s32 %v6025, 1
      %v6030 = vsel %vm6028, %v6029, %v6025
      %v6031 = vadd.s32 %v6026, %v6030
      %v6032 = vadd.s32 %v6031, 536870912
      %v6033 = vshrl.u32 %v6032, 30
      %v6034 = vshll.u32 %v6033, 30
      %v6035 = vsub.s32 %v6031, %v6034
      %vm6036 = vcmp.lt.s32.totalorder %v6035, 0
      %v6037 = vsub.s32 0, %v6035
      %v6038 = vsel %vm6036, %v6037, %v6035
      %v6039 = vclz %v6038
      %v6040 = vsub.s32 %v6039, 2
      %vm6041 = vcmp.gt.s32.totalorder 0, %v6040
      %v6042 = vsel %vm6041, 0, %v6040
      %v6043 = vsub.s32 32, %v6042
      %v6044 = vshll.u32 %v6035, %v6042
      %v6045 = vshrl.u32 %v6027, %v6043
      %v6046 = vor.u32 %v6044, %v6045
      %v6047 = vsub.s32 4294967266, %v6042
      %v6048 = vadd.s32 %v6047, 127
      %v6049 = vshll.u32 %v6048, 23
      %v6050 = vor.u32 4788187, %v6049
      %v6051 = vand.u32 2147483647, %v6050
      %v6053 = vcvt.s32.f32 %v6046
      %v6054 = vmul.f32 %v6053, %v6051
      %v6055 = vxor.u32 %v6054, 2147483648
      %v6056 = vsel %vm5973, %v6055, %v6054
      %v6057 = vsub.s32 4, %v6033
      %v6058 = vsel %vm5973, %v6057, %v6033
      %v6059 = vsel %vm5972, %v1066, %v6056
      %v6060 = vsel %vm5972, 0, %v6058
      %v6061 = vcosq.f32.pop %v6059
      %v6062 = vsinq.f32.pop %v6059
      %vm6063 = vweird.f32 %v1066
      %v6064 = vadd.s32 %v6060, 3
      %v6065 = vand.u32 %v6064, 3
      %vm6066 = vcmp.lt.s32.totalorder %v6065, 2
      %vm6067 = vcmp.eq.s32.totalorder %v6065, 0
      %v6068 = vxor.u32 %v6062, 2147483648
      %v6069 = vsel %vm6067, %v6061, %v6068
      %vm6070 = vcmp.eq.s32.totalorder %v6065, 2
      %v6071 = vxor.u32 %v6061, 2147483648
      %v6072 = vsel %vm6070, %v6071, %v6062
      %v6073 = vsel %vm6066, %v6069, %v6072
      %v6074 = vsel %vm6063, nan, %v6073
      %v6075 = vand.u32 2147483647, %v1067
      %vm6076 = vcmp.le.f32.partialorder %v6075, 0.7853982
      %vm6077 = vcmp.lt.s32.totalorder %v1067, 0
      %v6078 = vand.u32 %v1067, 2139095040
      %v6079 = vshrl.u32 %v6078, 23
      %v6080 = vsub.s32 %v6079, 127
      %v6081 = vand.u32 2147483647, %v1067
      %v6082 = vand.u32 %v6081, 8388607
      %v6083 = vor.u32 %v6082, 8388608
      %v6084 = vsub.s32 0, %v6083
      %v6085 = vadd.s32 %v6080, 1
      %vm6086 = vcmp.gt.s32.totalorder %v6085, 0
      %v6087 = vsel %vm6086, %v6085, 0
      %v6088 = vshrl.u32 %v6087, 5
      %v6089 = vand.u32 %v6087, 31
      %v6090 = vsub.s32 32, %v6089
      %v6091 = vshrl.u32 683565275, %v6090
      %v6092 = vshll.u32 683565275, %v6089
      %v6093 = vshrl.u32 2475754826, %v6090
      %v6094 = vor.u32 %v6092, %v6093
      %v6095 = vshll.u32 2475754826, %v6089
      %v6096 = vshrl.u32 2131351028, %v6090
      %v6097 = vor.u32 %v6095, %v6096
      %v6098 = vshll.u32 2131351028, %v6089
      %v6099 = vshrl.u32 2102212464, %v6090
      %v6100 = vor.u32 %v6098, %v6099
      %v6101 = vshll.u32 2102212464, %v6089
      %v6102 = vshrl.u32 920167782, %v6090
      %v6103 = vor.u32 %v6101, %v6102
      %v6104 = vshll.u32 920167782, %v6089
      %v6105 = vshrl.u32 1326507024, %v6090
      %v6106 = vor.u32 %v6104, %v6105
      %vm6107 = vcmp.lt.s32.totalorder %v6088, 1
      %vm6108 = vcmp.lt.s32.totalorder %v6088, 2
      %vm6109 = vcmp.lt.s32.totalorder %v6088, 3
      %vm6110 = vcmp.lt.s32.totalorder %v6088, 4
      %v6111 = vsel %vm6107, %v6091, %v6094
      %v6112 = vsel %vm6110, %v6100, 2102212464
      %v6113 = vsel %vm6109, %v6097, %v6112
      %v6114 = vsel %vm6108, %v6111, %v6113
      %v6115 = vsel %vm6107, %v6094, %v6097
      %v6116 = vsel %vm6110, %v6103, 920167782
      %v6117 = vsel %vm6109, %v6100, %v6116
      %v6118 = vsel %vm6108, %v6115, %v6117
      %v6119 = vsel %vm6107, %v6097, %v6100
      %v6120 = vsel %vm6110, %v6106, 1326507024
      %v6121 = vsel %vm6109, %v6103, %v6120
      %v6122 = vsel %vm6108, %v6119, %v6121
      %v6123 = vshll.u32 %v6083, 8
      %v6124 = vmul.u32.u64.compose %v6123, %v6122
      %v6125 = vextract.low.u32 %v6124
      %v6126 = vextract.high.u32 %v6124
      %v6127 = vmul.u32.u64.compose %v6123, %v6118
      %v6128 = vextract.low.u32 %v6127
      %v6129 = vextract.high.u32 %v6127
      %v6130 = vmul.u32 %v6123, %v6114
      %v6131 = vadd.s32 %v6126, %v6128
      %vm6132 = vc.u32 %v6126, %v6128
      %v6133 = vadd.s32 %v6129, 1
      %v6134 = vsel %vm6132, %v6133, %v6129
      %v6135 = vadd.s32 %v6130, %v6134
      %v6136 = vadd.s32 %v6135, 536870912
      %v6137 = vshrl.u32 %v6136, 30
      %v6138 = vshll.u32 %v6137, 30
      %v6139 = vsub.s32 %v6135, %v6138
      %vm6140 = vcmp.lt.s32.totalorder %v6139, 0
      %v6141 = vsub.s32 0, %v6139
      %v6142 = vsel %vm6140, %v6141, %v6139
      %v6143 = vclz %v6142
      %v6144 = vsub.s32 %v6143, 2
      %vm6145 = vcmp.gt.s32.totalorder 0, %v6144
      %v6146 = vsel %vm6145, 0, %v6144
      %v6147 = vsub.s32 32, %v6146
      %v6148 = vshll.u32 %v6139, %v6146
      %v6149 = vshrl.u32 %v6131, %v6147
      %v6150 = vor.u32 %v6148, %v6149
      %v6151 = vsub.s32 4294967266, %v6146
      %v6152 = vadd.s32 %v6151, 127
      %v6153 = vshll.u32 %v6152, 23
      %v6154 = vor.u32 4788187, %v6153
      %v6155 = vand.u32 2147483647, %v6154
      %v6157 = vcvt.s32.f32 %v6150
      %v6158 = vmul.f32 %v6157, %v6155
      %v6159 = vxor.u32 %v6158, 2147483648
      %v6160 = vsel %vm6077, %v6159, %v6158
      %v6161 = vsub.s32 4, %v6137
      %v6162 = vsel %vm6077, %v6161, %v6137
      %v6163 = vsel %vm6076, %v1067, %v6160
      %v6164 = vsel %vm6076, 0, %v6162
      %v6165 = vcosq.f32.pop %v6163
      %v6166 = vsinq.f32.pop %v6163
      %vm6167 = vweird.f32 %v1067
      %v6168 = vadd.s32 %v6164, 3
      %v6169 = vand.u32 %v6168, 3
      %vm6170 = vcmp.lt.s32.totalorder %v6169, 2
      %vm6171 = vcmp.eq.s32.totalorder %v6169, 0
      %v6172 = vxor.u32 %v6166, 2147483648
      %v6173 = vsel %vm6171, %v6165, %v6172
      %vm6174 = vcmp.eq.s32.totalorder %v6169, 2
      %v6175 = vxor.u32 %v6165, 2147483648
      %v6176 = vsel %vm6174, %v6175, %v6166
      %v6177 = vsel %vm6170, %v6173, %v6176
      %v6178 = vsel %vm6167, nan, %v6177
      %v6179 = vand.u32 2147483647, %v1068
      %vm6180 = vcmp.le.f32.partialorder %v6179, 0.7853982
      %vm6181 = vcmp.lt.s32.totalorder %v1068, 0
      %v6182 = vand.u32 %v1068, 2139095040
      %v6183 = vshrl.u32 %v6182, 23
      %v6184 = vsub.s32 %v6183, 127
      %v6185 = vand.u32 2147483647, %v1068
      %v6186 = vand.u32 %v6185, 8388607
      %v6187 = vor.u32 %v6186, 8388608
      %v6188 = vsub.s32 0, %v6187
      %v6189 = vadd.s32 %v6184, 1
      %vm6190 = vcmp.gt.s32.totalorder %v6189, 0
      %v6191 = vsel %vm6190, %v6189, 0
      %v6192 = vshrl.u32 %v6191, 5
      %v6193 = vand.u32 %v6191, 31
      %v6194 = vsub.s32 32, %v6193
      %v6195 = vshrl.u32 683565275, %v6194
      %v6196 = vshll.u32 683565275, %v6193
      %v6197 = vshrl.u32 2475754826, %v6194
      %v6198 = vor.u32 %v6196, %v6197
      %v6199 = vshll.u32 2475754826, %v6193
      %v6200 = vshrl.u32 2131351028, %v6194
      %v6201 = vor.u32 %v6199, %v6200
      %v6202 = vshll.u32 2131351028, %v6193
      %v6203 = vshrl.u32 2102212464, %v6194
      %v6204 = vor.u32 %v6202, %v6203
      %v6205 = vshll.u32 2102212464, %v6193
      %v6206 = vshrl.u32 920167782, %v6194
      %v6207 = vor.u32 %v6205, %v6206
      %v6208 = vshll.u32 920167782, %v6193
      %v6209 = vshrl.u32 1326507024, %v6194
      %v6210 = vor.u32 %v6208, %v6209
      %vm6211 = vcmp.lt.s32.totalorder %v6192, 1
      %vm6212 = vcmp.lt.s32.totalorder %v6192, 2
      %vm6213 = vcmp.lt.s32.totalorder %v6192, 3
      %vm6214 = vcmp.lt.s32.totalorder %v6192, 4
      %v6215 = vsel %vm6211, %v6195, %v6198
      %v6216 = vsel %vm6214, %v6204, 2102212464
      %v6217 = vsel %vm6213, %v6201, %v6216
      %v6218 = vsel %vm6212, %v6215, %v6217
      %v6219 = vsel %vm6211, %v6198, %v6201
      %v6220 = vsel %vm6214, %v6207, 920167782
      %v6221 = vsel %vm6213, %v6204, %v6220
      %v6222 = vsel %vm6212, %v6219, %v6221
      %v6223 = vsel %vm6211, %v6201, %v6204
      %v6224 = vsel %vm6214, %v6210, 1326507024
      %v6225 = vsel %vm6213, %v6207, %v6224
      %v6226 = vsel %vm6212, %v6223, %v6225
      %v6227 = vshll.u32 %v6187, 8
      %v6228 = vmul.u32.u64.compose %v6227, %v6226
      %v6229 = vextract.low.u32 %v6228
      %v6230 = vextract.high.u32 %v6228
      %v6231 = vmul.u32.u64.compose %v6227, %v6222
      %v6232 = vextract.low.u32 %v6231
      %v6233 = vextract.high.u32 %v6231
      %v6234 = vmul.u32 %v6227, %v6218
      %v6235 = vadd.s32 %v6230, %v6232
      %vm6236 = vc.u32 %v6230, %v6232
      %v6237 = vadd.s32 %v6233, 1
      %v6238 = vsel %vm6236, %v6237, %v6233
      %v6239 = vadd.s32 %v6234, %v6238
      %v6240 = vadd.s32 %v6239, 536870912
      %v6241 = vshrl.u32 %v6240, 30
      %v6242 = vshll.u32 %v6241, 30
      %v6243 = vsub.s32 %v6239, %v6242
      %vm6244 = vcmp.lt.s32.totalorder %v6243, 0
      %v6245 = vsub.s32 0, %v6243
      %v6246 = vsel %vm6244, %v6245, %v6243
      %v6247 = vclz %v6246
      %v6248 = vsub.s32 %v6247, 2
      %vm6249 = vcmp.gt.s32.totalorder 0, %v6248
      %v6250 = vsel %vm6249, 0, %v6248
      %v6251 = vsub.s32 32, %v6250
      %v6252 = vshll.u32 %v6243, %v6250
      %v6253 = vshrl.u32 %v6235, %v6251
      %v6254 = vor.u32 %v6252, %v6253
      %v6255 = vsub.s32 4294967266, %v6250
      %v6256 = vadd.s32 %v6255, 127
      %v6257 = vshll.u32 %v6256, 23
      %v6258 = vor.u32 4788187, %v6257
      %v6259 = vand.u32 2147483647, %v6258
      %v6261 = vcvt.s32.f32 %v6254
      %v6262 = vmul.f32 %v6261, %v6259
      %v6263 = vxor.u32 %v6262, 2147483648
      %v6264 = vsel %vm6181, %v6263, %v6262
      %v6265 = vsub.s32 4, %v6241
      %v6266 = vsel %vm6181, %v6265, %v6241
      %v6267 = vsel %vm6180, %v1068, %v6264
      %v6268 = vsel %vm6180, 0, %v6266
      %v6269 = vcosq.f32.pop %v6267
      %v6270 = vsinq.f32.pop %v6267
      %vm6271 = vweird.f32 %v1068
      %v6272 = vadd.s32 %v6268, 3
      %v6273 = vand.u32 %v6272, 3
      %vm6274 = vcmp.lt.s32.totalorder %v6273, 2
      %vm6275 = vcmp.eq.s32.totalorder %v6273, 0
      %v6276 = vxor.u32 %v6270, 2147483648
      %v6277 = vsel %vm6275, %v6269, %v6276
      %vm6278 = vcmp.eq.s32.totalorder %v6273, 2
      %v6279 = vxor.u32 %v6269, 2147483648
      %v6280 = vsel %vm6278, %v6279, %v6270
      %v6281 = vsel %vm6274, %v6277, %v6280
      %v6282 = vsel %vm6271, nan, %v6281
      %v6283 = vand.u32 2147483647, %v1069
      %vm6284 = vcmp.le.f32.partialorder %v6283, 0.7853982
      %vm6285 = vcmp.lt.s32.totalorder %v1069, 0
      %v6286 = vand.u32 %v1069, 2139095040
      %v6287 = vshrl.u32 %v6286, 23
      %v6288 = vsub.s32 %v6287, 127
      %v6289 = vand.u32 2147483647, %v1069
      %v6290 = vand.u32 %v6289, 8388607
      %v6291 = vor.u32 %v6290, 8388608
      %v6292 = vsub.s32 0, %v6291
      %v6293 = vadd.s32 %v6288, 1
      %vm6294 = vcmp.gt.s32.totalorder %v6293, 0
      %v6295 = vsel %vm6294, %v6293, 0
      %v6296 = vshrl.u32 %v6295, 5
      %v6297 = vand.u32 %v6295, 31
      %v6298 = vsub.s32 32, %v6297
      %v6299 = vshrl.u32 683565275, %v6298
      %v6300 = vshll.u32 683565275, %v6297
      %v6301 = vshrl.u32 2475754826, %v6298
      %v6302 = vor.u32 %v6300, %v6301
      %v6303 = vshll.u32 2475754826, %v6297
      %v6304 = vshrl.u32 2131351028, %v6298
      %v6305 = vor.u32 %v6303, %v6304
      %v6306 = vshll.u32 2131351028, %v6297
      %v6307 = vshrl.u32 2102212464, %v6298
      %v6308 = vor.u32 %v6306, %v6307
      %v6309 = vshll.u32 2102212464, %v6297
      %v6310 = vshrl.u32 920167782, %v6298
      %v6311 = vor.u32 %v6309, %v6310
      %v6312 = vshll.u32 920167782, %v6297
      %v6313 = vshrl.u32 1326507024, %v6298
      %v6314 = vor.u32 %v6312, %v6313
      %vm6315 = vcmp.lt.s32.totalorder %v6296, 1
      %vm6316 = vcmp.lt.s32.totalorder %v6296, 2
      %vm6317 = vcmp.lt.s32.totalorder %v6296, 3
      %vm6318 = vcmp.lt.s32.totalorder %v6296, 4
      %v6319 = vsel %vm6315, %v6299, %v6302
      %v6320 = vsel %vm6318, %v6308, 2102212464
      %v6321 = vsel %vm6317, %v6305, %v6320
      %v6322 = vsel %vm6316, %v6319, %v6321
      %v6323 = vsel %vm6315, %v6302, %v6305
      %v6324 = vsel %vm6318, %v6311, 920167782
      %v6325 = vsel %vm6317, %v6308, %v6324
      %v6326 = vsel %vm6316, %v6323, %v6325
      %v6327 = vsel %vm6315, %v6305, %v6308
      %v6328 = vsel %vm6318, %v6314, 1326507024
      %v6329 = vsel %vm6317, %v6311, %v6328
      %v6330 = vsel %vm6316, %v6327, %v6329
      %v6331 = vshll.u32 %v6291, 8
      %v6332 = vmul.u32.u64.compose %v6331, %v6330
      %v6333 = vextract.low.u32 %v6332
      %v6334 = vextract.high.u32 %v6332
      %v6335 = vmul.u32.u64.compose %v6331, %v6326
      %v6336 = vextract.low.u32 %v6335
      %v6337 = vextract.high.u32 %v6335
      %v6338 = vmul.u32 %v6331, %v6322
      %v6339 = vadd.s32 %v6334, %v6336
      %vm6340 = vc.u32 %v6334, %v6336
      %v6341 = vadd.s32 %v6337, 1
      %v6342 = vsel %vm6340, %v6341, %v6337
      %v6343 = vadd.s32 %v6338, %v6342
      %v6344 = vadd.s32 %v6343, 536870912
      %v6345 = vshrl.u32 %v6344, 30
      %v6346 = vshll.u32 %v6345, 30
      %v6347 = vsub.s32 %v6343, %v6346
      %vm6348 = vcmp.lt.s32.totalorder %v6347, 0
      %v6349 = vsub.s32 0, %v6347
      %v6350 = vsel %vm6348, %v6349, %v6347
      %v6351 = vclz %v6350
      %v6352 = vsub.s32 %v6351, 2
      %vm6353 = vcmp.gt.s32.totalorder 0, %v6352
      %v6354 = vsel %vm6353, 0, %v6352
      %v6355 = vsub.s32 32, %v6354
      %v6356 = vshll.u32 %v6347, %v6354
      %v6357 = vshrl.u32 %v6339, %v6355
      %v6358 = vor.u32 %v6356, %v6357
      %v6359 = vsub.s32 4294967266, %v6354
      %v6360 = vadd.s32 %v6359, 127
      %v6361 = vshll.u32 %v6360, 23
      %v6362 = vor.u32 4788187, %v6361
      %v6363 = vand.u32 2147483647, %v6362
      %v6365 = vcvt.s32.f32 %v6358
      %v6366 = vmul.f32 %v6365, %v6363
      %v6367 = vxor.u32 %v6366, 2147483648
      %v6368 = vsel %vm6285, %v6367, %v6366
      %v6369 = vsub.s32 4, %v6345
      %v6370 = vsel %vm6285, %v6369, %v6345
      %v6371 = vsel %vm6284, %v1069, %v6368
      %v6372 = vsel %vm6284, 0, %v6370
      %v6373 = vcosq.f32.pop %v6371
      %v6374 = vsinq.f32.pop %v6371
      %vm6375 = vweird.f32 %v1069
      %v6376 = vadd.s32 %v6372, 3
      %v6377 = vand.u32 %v6376, 3
      %vm6378 = vcmp.lt.s32.totalorder %v6377, 2
      %vm6379 = vcmp.eq.s32.totalorder %v6377, 0
      %v6380 = vxor.u32 %v6374, 2147483648
      %v6381 = vsel %vm6379, %v6373, %v6380
      %vm6382 = vcmp.eq.s32.totalorder %v6377, 2
      %v6383 = vxor.u32 %v6373, 2147483648
      %v6384 = vsel %vm6382, %v6383, %v6374
      %v6385 = vsel %vm6378, %v6381, %v6384
      %v6386 = vsel %vm6375, nan, %v6385
      %v6387 = vand.u32 2147483647, %v1070
      %vm6388 = vcmp.le.f32.partialorder %v6387, 0.7853982
      %vm6389 = vcmp.lt.s32.totalorder %v1070, 0
      %v6390 = vand.u32 %v1070, 2139095040
      %v6391 = vshrl.u32 %v6390, 23
      %v6392 = vsub.s32 %v6391, 127
      %v6393 = vand.u32 2147483647, %v1070
      %v6394 = vand.u32 %v6393, 8388607
      %v6395 = vor.u32 %v6394, 8388608
      %v6396 = vsub.s32 0, %v6395
      %v6397 = vadd.s32 %v6392, 1
      %vm6398 = vcmp.gt.s32.totalorder %v6397, 0
      %v6399 = vsel %vm6398, %v6397, 0
      %v6400 = vshrl.u32 %v6399, 5
      %v6401 = vand.u32 %v6399, 31
      %v6402 = vsub.s32 32, %v6401
      %v6403 = vshrl.u32 683565275, %v6402
      %v6404 = vshll.u32 683565275, %v6401
      %v6405 = vshrl.u32 2475754826, %v6402
      %v6406 = vor.u32 %v6404, %v6405
      %v6407 = vshll.u32 2475754826, %v6401
      %v6408 = vshrl.u32 2131351028, %v6402
      %v6409 = vor.u32 %v6407, %v6408
      %v6410 = vshll.u32 2131351028, %v6401
      %v6411 = vshrl.u32 2102212464, %v6402
      %v6412 = vor.u32 %v6410, %v6411
      %v6413 = vshll.u32 2102212464, %v6401
      %v6414 = vshrl.u32 920167782, %v6402
      %v6415 = vor.u32 %v6413, %v6414
      %v6416 = vshll.u32 920167782, %v6401
      %v6417 = vshrl.u32 1326507024, %v6402
      %v6418 = vor.u32 %v6416, %v6417
      %vm6419 = vcmp.lt.s32.totalorder %v6400, 1
      %vm6420 = vcmp.lt.s32.totalorder %v6400, 2
      %vm6421 = vcmp.lt.s32.totalorder %v6400, 3
      %vm6422 = vcmp.lt.s32.totalorder %v6400, 4
      %v6423 = vsel %vm6419, %v6403, %v6406
      %v6424 = vsel %vm6422, %v6412, 2102212464
      %v6425 = vsel %vm6421, %v6409, %v6424
      %v6426 = vsel %vm6420, %v6423, %v6425
      %v6427 = vsel %vm6419, %v6406, %v6409
      %v6428 = vsel %vm6422, %v6415, 920167782
      %v6429 = vsel %vm6421, %v6412, %v6428
      %v6430 = vsel %vm6420, %v6427, %v6429
      %v6431 = vsel %vm6419, %v6409, %v6412
      %v6432 = vsel %vm6422, %v6418, 1326507024
      %v6433 = vsel %vm6421, %v6415, %v6432
      %v6434 = vsel %vm6420, %v6431, %v6433
      %v6435 = vshll.u32 %v6395, 8
      %v6436 = vmul.u32.u64.compose %v6435, %v6434
      %v6437 = vextract.low.u32 %v6436
      %v6438 = vextract.high.u32 %v6436
      %v6439 = vmul.u32.u64.compose %v6435, %v6430
      %v6440 = vextract.low.u32 %v6439
      %v6441 = vextract.high.u32 %v6439
      %v6442 = vmul.u32 %v6435, %v6426
      %v6443 = vadd.s32 %v6438, %v6440
      %vm6444 = vc.u32 %v6438, %v6440
      %v6445 = vadd.s32 %v6441, 1
      %v6446 = vsel %vm6444, %v6445, %v6441
      %v6447 = vadd.s32 %v6442, %v6446
      %v6448 = vadd.s32 %v6447, 536870912
      %v6449 = vshrl.u32 %v6448, 30
      %v6450 = vshll.u32 %v6449, 30
      %v6451 = vsub.s32 %v6447, %v6450
      %vm6452 = vcmp.lt.s32.totalorder %v6451, 0
      %v6453 = vsub.s32 0, %v6451
      %v6454 = vsel %vm6452, %v6453, %v6451
      %v6455 = vclz %v6454
      %v6456 = vsub.s32 %v6455, 2
      %vm6457 = vcmp.gt.s32.totalorder 0, %v6456
      %v6458 = vsel %vm6457, 0, %v6456
      %v6459 = vsub.s32 32, %v6458
      %v6460 = vshll.u32 %v6451, %v6458
      %v6461 = vshrl.u32 %v6443, %v6459
      %v6462 = vor.u32 %v6460, %v6461
      %v6463 = vsub.s32 4294967266, %v6458
      %v6464 = vadd.s32 %v6463, 127
      %v6465 = vshll.u32 %v6464, 23
      %v6466 = vor.u32 4788187, %v6465
      %v6467 = vand.u32 2147483647, %v6466
      %v6469 = vcvt.s32.f32 %v6462
      %v6470 = vmul.f32 %v6469, %v6467
      %v6471 = vxor.u32 %v6470, 2147483648
      %v6472 = vsel %vm6389, %v6471, %v6470
      %v6473 = vsub.s32 4, %v6449
      %v6474 = vsel %vm6389, %v6473, %v6449
      %v6475 = vsel %vm6388, %v1070, %v6472
      %v6476 = vsel %vm6388, 0, %v6474
      %v6477 = vcosq.f32.pop %v6475
      %v6478 = vsinq.f32.pop %v6475
      %vm6479 = vweird.f32 %v1070
      %v6480 = vadd.s32 %v6476, 3
      %v6481 = vand.u32 %v6480, 3
      %vm6482 = vcmp.lt.s32.totalorder %v6481, 2
      %vm6483 = vcmp.eq.s32.totalorder %v6481, 0
      %v6484 = vxor.u32 %v6478, 2147483648
      %v6485 = vsel %vm6483, %v6477, %v6484
      %vm6486 = vcmp.eq.s32.totalorder %v6481, 2
      %v6487 = vxor.u32 %v6477, 2147483648
      %v6488 = vsel %vm6486, %v6487, %v6478
      %v6489 = vsel %vm6482, %v6485, %v6488
      %v6490 = vsel %vm6479, nan, %v6489
      %v6491 = vand.u32 2147483647, %v1071
      %vm6492 = vcmp.le.f32.partialorder %v6491, 0.7853982
      %vm6493 = vcmp.lt.s32.totalorder %v1071, 0
      %v6494 = vand.u32 %v1071, 2139095040
      %v6495 = vshrl.u32 %v6494, 23
      %v6496 = vsub.s32 %v6495, 127
      %v6497 = vand.u32 2147483647, %v1071
      %v6498 = vand.u32 %v6497, 8388607
      %v6499 = vor.u32 %v6498, 8388608
      %v6500 = vsub.s32 0, %v6499
      %v6501 = vadd.s32 %v6496, 1
      %vm6502 = vcmp.gt.s32.totalorder %v6501, 0
      %v6503 = vsel %vm6502, %v6501, 0
      %v6504 = vshrl.u32 %v6503, 5
      %v6505 = vand.u32 %v6503, 31
      %v6506 = vsub.s32 32, %v6505
      %v6507 = vshrl.u32 683565275, %v6506
      %v6508 = vshll.u32 683565275, %v6505
      %v6509 = vshrl.u32 2475754826, %v6506
      %v6510 = vor.u32 %v6508, %v6509
      %v6511 = vshll.u32 2475754826, %v6505
      %v6512 = vshrl.u32 2131351028, %v6506
      %v6513 = vor.u32 %v6511, %v6512
      %v6514 = vshll.u32 2131351028, %v6505
      %v6515 = vshrl.u32 2102212464, %v6506
      %v6516 = vor.u32 %v6514, %v6515
      %v6517 = vshll.u32 2102212464, %v6505
      %v6518 = vshrl.u32 920167782, %v6506
      %v6519 = vor.u32 %v6517, %v6518
      %v6520 = vshll.u32 920167782, %v6505
      %v6521 = vshrl.u32 1326507024, %v6506
      %v6522 = vor.u32 %v6520, %v6521
      %vm6523 = vcmp.lt.s32.totalorder %v6504, 1
      %vm6524 = vcmp.lt.s32.totalorder %v6504, 2
      %vm6525 = vcmp.lt.s32.totalorder %v6504, 3
      %vm6526 = vcmp.lt.s32.totalorder %v6504, 4
      %v6527 = vsel %vm6523, %v6507, %v6510
      %v6528 = vsel %vm6526, %v6516, 2102212464
      %v6529 = vsel %vm6525, %v6513, %v6528
      %v6530 = vsel %vm6524, %v6527, %v6529
      %v6531 = vsel %vm6523, %v6510, %v6513
      %v6532 = vsel %vm6526, %v6519, 920167782
      %v6533 = vsel %vm6525, %v6516, %v6532
      %v6534 = vsel %vm6524, %v6531, %v6533
      %v6535 = vsel %vm6523, %v6513, %v6516
      %v6536 = vsel %vm6526, %v6522, 1326507024
      %v6537 = vsel %vm6525, %v6519, %v6536
      %v6538 = vsel %vm6524, %v6535, %v6537
      %v6539 = vshll.u32 %v6499, 8
      %v6540 = vmul.u32.u64.compose %v6539, %v6538
      %v6541 = vextract.low.u32 %v6540
      %v6542 = vextract.high.u32 %v6540
      %v6543 = vmul.u32.u64.compose %v6539, %v6534
      %v6544 = vextract.low.u32 %v6543
      %v6545 = vextract.high.u32 %v6543
      %v6546 = vmul.u32 %v6539, %v6530
      %v6547 = vadd.s32 %v6542, %v6544
      %vm6548 = vc.u32 %v6542, %v6544
      %v6549 = vadd.s32 %v6545, 1
      %v6550 = vsel %vm6548, %v6549, %v6545
      %v6551 = vadd.s32 %v6546, %v6550
      %v6552 = vadd.s32 %v6551, 536870912
      %v6553 = vshrl.u32 %v6552, 30
      %v6554 = vshll.u32 %v6553, 30
      %v6555 = vsub.s32 %v6551, %v6554
      %vm6556 = vcmp.lt.s32.totalorder %v6555, 0
      %v6557 = vsub.s32 0, %v6555
      %v6558 = vsel %vm6556, %v6557, %v6555
      %v6559 = vclz %v6558
      %v6560 = vsub.s32 %v6559, 2
      %vm6561 = vcmp.gt.s32.totalorder 0, %v6560
      %v6562 = vsel %vm6561, 0, %v6560
      %v6563 = vsub.s32 32, %v6562
      %v6564 = vshll.u32 %v6555, %v6562
      %v6565 = vshrl.u32 %v6547, %v6563
      %v6566 = vor.u32 %v6564, %v6565
      %v6567 = vsub.s32 4294967266, %v6562
      %v6568 = vadd.s32 %v6567, 127
      %v6569 = vshll.u32 %v6568, 23
      %v6570 = vor.u32 4788187, %v6569
      %v6571 = vand.u32 2147483647, %v6570
      %v6573 = vcvt.s32.f32 %v6566
      %v6574 = vmul.f32 %v6573, %v6571
      %v6575 = vxor.u32 %v6574, 2147483648
      %v6576 = vsel %vm6493, %v6575, %v6574
      %v6577 = vsub.s32 4, %v6553
      %v6578 = vsel %vm6493, %v6577, %v6553
      %v6579 = vsel %vm6492, %v1071, %v6576
      %v6580 = vsel %vm6492, 0, %v6578
      %v6581 = vcosq.f32.pop %v6579
      %v6582 = vsinq.f32.pop %v6579
      %vm6583 = vweird.f32 %v1071
      %v6584 = vadd.s32 %v6580, 3
      %v6585 = vand.u32 %v6584, 3
      %vm6586 = vcmp.lt.s32.totalorder %v6585, 2
      %vm6587 = vcmp.eq.s32.totalorder %v6585, 0
      %v6588 = vxor.u32 %v6582, 2147483648
      %v6589 = vsel %vm6587, %v6581, %v6588
      %vm6590 = vcmp.eq.s32.totalorder %v6585, 2
      %v6591 = vxor.u32 %v6581, 2147483648
      %v6592 = vsel %vm6590, %v6591, %v6582
      %v6593 = vsel %vm6586, %v6589, %v6592
      %v6594 = vsel %vm6583, nan, %v6593
      %v6595 = vand.u32 2147483647, %v1072
      %vm6596 = vcmp.le.f32.partialorder %v6595, 0.7853982
      %vm6597 = vcmp.lt.s32.totalorder %v1072, 0
      %v6598 = vand.u32 %v1072, 2139095040
      %v6599 = vshrl.u32 %v6598, 23
      %v6600 = vsub.s32 %v6599, 127
      %v6601 = vand.u32 2147483647, %v1072
      %v6602 = vand.u32 %v6601, 8388607
      %v6603 = vor.u32 %v6602, 8388608
      %v6604 = vsub.s32 0, %v6603
      %v6605 = vadd.s32 %v6600, 1
      %vm6606 = vcmp.gt.s32.totalorder %v6605, 0
      %v6607 = vsel %vm6606, %v6605, 0
      %v6608 = vshrl.u32 %v6607, 5
      %v6609 = vand.u32 %v6607, 31
      %v6610 = vsub.s32 32, %v6609
      %v6611 = vshrl.u32 683565275, %v6610
      %v6612 = vshll.u32 683565275, %v6609
      %v6613 = vshrl.u32 2475754826, %v6610
      %v6614 = vor.u32 %v6612, %v6613
      %v6615 = vshll.u32 2475754826, %v6609
      %v6616 = vshrl.u32 2131351028, %v6610
      %v6617 = vor.u32 %v6615, %v6616
      %v6618 = vshll.u32 2131351028, %v6609
      %v6619 = vshrl.u32 2102212464, %v6610
      %v6620 = vor.u32 %v6618, %v6619
      %v6621 = vshll.u32 2102212464, %v6609
      %v6622 = vshrl.u32 920167782, %v6610
      %v6623 = vor.u32 %v6621, %v6622
      %v6624 = vshll.u32 920167782, %v6609
      %v6625 = vshrl.u32 1326507024, %v6610
      %v6626 = vor.u32 %v6624, %v6625
      %vm6627 = vcmp.lt.s32.totalorder %v6608, 1
      %vm6628 = vcmp.lt.s32.totalorder %v6608, 2
      %vm6629 = vcmp.lt.s32.totalorder %v6608, 3
      %vm6630 = vcmp.lt.s32.totalorder %v6608, 4
      %v6631 = vsel %vm6627, %v6611, %v6614
      %v6632 = vsel %vm6630, %v6620, 2102212464
      %v6633 = vsel %vm6629, %v6617, %v6632
      %v6634 = vsel %vm6628, %v6631, %v6633
      %v6635 = vsel %vm6627, %v6614, %v6617
      %v6636 = vsel %vm6630, %v6623, 920167782
      %v6637 = vsel %vm6629, %v6620, %v6636
      %v6638 = vsel %vm6628, %v6635, %v6637
      %v6639 = vsel %vm6627, %v6617, %v6620
      %v6640 = vsel %vm6630, %v6626, 1326507024
      %v6641 = vsel %vm6629, %v6623, %v6640
      %v6642 = vsel %vm6628, %v6639, %v6641
      %v6643 = vshll.u32 %v6603, 8
      %v6644 = vmul.u32.u64.compose %v6643, %v6642
      %v6645 = vextract.low.u32 %v6644
      %v6646 = vextract.high.u32 %v6644
      %v6647 = vmul.u32.u64.compose %v6643, %v6638
      %v6648 = vextract.low.u32 %v6647
      %v6649 = vextract.high.u32 %v6647
      %v6650 = vmul.u32 %v6643, %v6634
      %v6651 = vadd.s32 %v6646, %v6648
      %vm6652 = vc.u32 %v6646, %v6648
      %v6653 = vadd.s32 %v6649, 1
      %v6654 = vsel %vm6652, %v6653, %v6649
      %v6655 = vadd.s32 %v6650, %v6654
      %v6656 = vadd.s32 %v6655, 536870912
      %v6657 = vshrl.u32 %v6656, 30
      %v6658 = vshll.u32 %v6657, 30
      %v6659 = vsub.s32 %v6655, %v6658
      %vm6660 = vcmp.lt.s32.totalorder %v6659, 0
      %v6661 = vsub.s32 0, %v6659
      %v6662 = vsel %vm6660, %v6661, %v6659
      %v6663 = vclz %v6662
      %v6664 = vsub.s32 %v6663, 2
      %vm6665 = vcmp.gt.s32.totalorder 0, %v6664
      %v6666 = vsel %vm6665, 0, %v6664
      %v6667 = vsub.s32 32, %v6666
      %v6668 = vshll.u32 %v6659, %v6666
      %v6669 = vshrl.u32 %v6651, %v6667
      %v6670 = vor.u32 %v6668, %v6669
      %v6671 = vsub.s32 4294967266, %v6666
      %v6672 = vadd.s32 %v6671, 127
      %v6673 = vshll.u32 %v6672, 23
      %v6674 = vor.u32 4788187, %v6673
      %v6675 = vand.u32 2147483647, %v6674
      %v6677 = vcvt.s32.f32 %v6670
      %v6678 = vmul.f32 %v6677, %v6675
      %v6679 = vxor.u32 %v6678, 2147483648
      %v6680 = vsel %vm6597, %v6679, %v6678
      %v6681 = vsub.s32 4, %v6657
      %v6682 = vsel %vm6597, %v6681, %v6657
      %v6683 = vsel %vm6596, %v1072, %v6680
      %v6684 = vsel %vm6596, 0, %v6682
      %v6685 = vcosq.f32.pop %v6683
      %v6686 = vsinq.f32.pop %v6683
      %vm6687 = vweird.f32 %v1072
      %v6688 = vadd.s32 %v6684, 3
      %v6689 = vand.u32 %v6688, 3
      %vm6690 = vcmp.lt.s32.totalorder %v6689, 2
      %vm6691 = vcmp.eq.s32.totalorder %v6689, 0
      %v6692 = vxor.u32 %v6686, 2147483648
      %v6693 = vsel %vm6691, %v6685, %v6692
      %vm6694 = vcmp.eq.s32.totalorder %v6689, 2
      %v6695 = vxor.u32 %v6685, 2147483648
      %v6696 = vsel %vm6694, %v6695, %v6686
      %v6697 = vsel %vm6690, %v6693, %v6696
      %v6698 = vsel %vm6687, nan, %v6697
      %v6699 = vand.u32 2147483647, %v1073
      %vm6700 = vcmp.le.f32.partialorder %v6699, 0.7853982
      %vm6701 = vcmp.lt.s32.totalorder %v1073, 0
      %v6702 = vand.u32 %v1073, 2139095040
      %v6703 = vshrl.u32 %v6702, 23
      %v6704 = vsub.s32 %v6703, 127
      %v6705 = vand.u32 2147483647, %v1073
      %v6706 = vand.u32 %v6705, 8388607
      %v6707 = vor.u32 %v6706, 8388608
      %v6708 = vsub.s32 0, %v6707
      %v6709 = vadd.s32 %v6704, 1
      %vm6710 = vcmp.gt.s32.totalorder %v6709, 0
      %v6711 = vsel %vm6710, %v6709, 0
      %v6712 = vshrl.u32 %v6711, 5
      %v6713 = vand.u32 %v6711, 31
      %v6714 = vsub.s32 32, %v6713
      %v6715 = vshrl.u32 683565275, %v6714
      %v6716 = vshll.u32 683565275, %v6713
      %v6717 = vshrl.u32 2475754826, %v6714
      %v6718 = vor.u32 %v6716, %v6717
      %v6719 = vshll.u32 2475754826, %v6713
      %v6720 = vshrl.u32 2131351028, %v6714
      %v6721 = vor.u32 %v6719, %v6720
      %v6722 = vshll.u32 2131351028, %v6713
      %v6723 = vshrl.u32 2102212464, %v6714
      %v6724 = vor.u32 %v6722, %v6723
      %v6725 = vshll.u32 2102212464, %v6713
      %v6726 = vshrl.u32 920167782, %v6714
      %v6727 = vor.u32 %v6725, %v6726
      %v6728 = vshll.u32 920167782, %v6713
      %v6729 = vshrl.u32 1326507024, %v6714
      %v6730 = vor.u32 %v6728, %v6729
      %vm6731 = vcmp.lt.s32.totalorder %v6712, 1
      %vm6732 = vcmp.lt.s32.totalorder %v6712, 2
      %vm6733 = vcmp.lt.s32.totalorder %v6712, 3
      %vm6734 = vcmp.lt.s32.totalorder %v6712, 4
      %v6735 = vsel %vm6731, %v6715, %v6718
      %v6736 = vsel %vm6734, %v6724, 2102212464
      %v6737 = vsel %vm6733, %v6721, %v6736
      %v6738 = vsel %vm6732, %v6735, %v6737
      %v6739 = vsel %vm6731, %v6718, %v6721
      %v6740 = vsel %vm6734, %v6727, 920167782
      %v6741 = vsel %vm6733, %v6724, %v6740
      %v6742 = vsel %vm6732, %v6739, %v6741
      %v6743 = vsel %vm6731, %v6721, %v6724
      %v6744 = vsel %vm6734, %v6730, 1326507024
      %v6745 = vsel %vm6733, %v6727, %v6744
      %v6746 = vsel %vm6732, %v6743, %v6745
      %v6747 = vshll.u32 %v6707, 8
      %v6748 = vmul.u32.u64.compose %v6747, %v6746
      %v6749 = vextract.low.u32 %v6748
      %v6750 = vextract.high.u32 %v6748
      %v6751 = vmul.u32.u64.compose %v6747, %v6742
      %v6752 = vextract.low.u32 %v6751
      %v6753 = vextract.high.u32 %v6751
      %v6754 = vmul.u32 %v6747, %v6738
      %v6755 = vadd.s32 %v6750, %v6752
      %vm6756 = vc.u32 %v6750, %v6752
      %v6757 = vadd.s32 %v6753, 1
      %v6758 = vsel %vm6756, %v6757, %v6753
      %v6759 = vadd.s32 %v6754, %v6758
      %v6760 = vadd.s32 %v6759, 536870912
      %v6761 = vshrl.u32 %v6760, 30
      %v6762 = vshll.u32 %v6761, 30
      %v6763 = vsub.s32 %v6759, %v6762
      %vm6764 = vcmp.lt.s32.totalorder %v6763, 0
      %v6765 = vsub.s32 0, %v6763
      %v6766 = vsel %vm6764, %v6765, %v6763
      %v6767 = vclz %v6766
      %v6768 = vsub.s32 %v6767, 2
      %vm6769 = vcmp.gt.s32.totalorder 0, %v6768
      %v6770 = vsel %vm6769, 0, %v6768
      %v6771 = vsub.s32 32, %v6770
      %v6772 = vshll.u32 %v6763, %v6770
      %v6773 = vshrl.u32 %v6755, %v6771
      %v6774 = vor.u32 %v6772, %v6773
      %v6775 = vsub.s32 4294967266, %v6770
      %v6776 = vadd.s32 %v6775, 127
      %v6777 = vshll.u32 %v6776, 23
      %v6778 = vor.u32 4788187, %v6777
      %v6779 = vand.u32 2147483647, %v6778
      %v6781 = vcvt.s32.f32 %v6774
      %v6782 = vmul.f32 %v6781, %v6779
      %v6783 = vxor.u32 %v6782, 2147483648
      %v6784 = vsel %vm6701, %v6783, %v6782
      %v6785 = vsub.s32 4, %v6761
      %v6786 = vsel %vm6701, %v6785, %v6761
      %v6787 = vsel %vm6700, %v1073, %v6784
      %v6788 = vsel %vm6700, 0, %v6786
      %v6789 = vcosq.f32.pop %v6787
      %v6790 = vsinq.f32.pop %v6787
      %vm6791 = vweird.f32 %v1073
      %v6792 = vadd.s32 %v6788, 3
      %v6793 = vand.u32 %v6792, 3
      %vm6794 = vcmp.lt.s32.totalorder %v6793, 2
      %vm6795 = vcmp.eq.s32.totalorder %v6793, 0
      %v6796 = vxor.u32 %v6790, 2147483648
      %v6797 = vsel %vm6795, %v6789, %v6796
      %vm6798 = vcmp.eq.s32.totalorder %v6793, 2
      %v6799 = vxor.u32 %v6789, 2147483648
      %v6800 = vsel %vm6798, %v6799, %v6790
      %v6801 = vsel %vm6794, %v6797, %v6800
      %v6802 = vsel %vm6791, nan, %v6801
      %v6803 = vand.u32 2147483647, %v1074
      %vm6804 = vcmp.le.f32.partialorder %v6803, 0.7853982
      %vm6805 = vcmp.lt.s32.totalorder %v1074, 0
      %v6806 = vand.u32 %v1074, 2139095040
      %v6807 = vshrl.u32 %v6806, 23
      %v6808 = vsub.s32 %v6807, 127
      %v6809 = vand.u32 2147483647, %v1074
      %v6810 = vand.u32 %v6809, 8388607
      %v6811 = vor.u32 %v6810, 8388608
      %v6812 = vsub.s32 0, %v6811
      %v6813 = vadd.s32 %v6808, 1
      %vm6814 = vcmp.gt.s32.totalorder %v6813, 0
      %v6815 = vsel %vm6814, %v6813, 0
      %v6816 = vshrl.u32 %v6815, 5
      %v6817 = vand.u32 %v6815, 31
      %v6818 = vsub.s32 32, %v6817
      %v6819 = vshrl.u32 683565275, %v6818
      %v6820 = vshll.u32 683565275, %v6817
      %v6821 = vshrl.u32 2475754826, %v6818
      %v6822 = vor.u32 %v6820, %v6821
      %v6823 = vshll.u32 2475754826, %v6817
      %v6824 = vshrl.u32 2131351028, %v6818
      %v6825 = vor.u32 %v6823, %v6824
      %v6826 = vshll.u32 2131351028, %v6817
      %v6827 = vshrl.u32 2102212464, %v6818
      %v6828 = vor.u32 %v6826, %v6827
      %v6829 = vshll.u32 2102212464, %v6817
      %v6830 = vshrl.u32 920167782, %v6818
      %v6831 = vor.u32 %v6829, %v6830
      %v6832 = vshll.u32 920167782, %v6817
      %v6833 = vshrl.u32 1326507024, %v6818
      %v6834 = vor.u32 %v6832, %v6833
      %vm6835 = vcmp.lt.s32.totalorder %v6816, 1
      %vm6836 = vcmp.lt.s32.totalorder %v6816, 2
      %vm6837 = vcmp.lt.s32.totalorder %v6816, 3
      %vm6838 = vcmp.lt.s32.totalorder %v6816, 4
      %v6839 = vsel %vm6835, %v6819, %v6822
      %v6840 = vsel %vm6838, %v6828, 2102212464
      %v6841 = vsel %vm6837, %v6825, %v6840
      %v6842 = vsel %vm6836, %v6839, %v6841
      %v6843 = vsel %vm6835, %v6822, %v6825
      %v6844 = vsel %vm6838, %v6831, 920167782
      %v6845 = vsel %vm6837, %v6828, %v6844
      %v6846 = vsel %vm6836, %v6843, %v6845
      %v6847 = vsel %vm6835, %v6825, %v6828
      %v6848 = vsel %vm6838, %v6834, 1326507024
      %v6849 = vsel %vm6837, %v6831, %v6848
      %v6850 = vsel %vm6836, %v6847, %v6849
      %v6851 = vshll.u32 %v6811, 8
      %v6852 = vmul.u32.u64.compose %v6851, %v6850
      %v6853 = vextract.low.u32 %v6852
      %v6854 = vextract.high.u32 %v6852
      %v6855 = vmul.u32.u64.compose %v6851, %v6846
      %v6856 = vextract.low.u32 %v6855
      %v6857 = vextract.high.u32 %v6855
      %v6858 = vmul.u32 %v6851, %v6842
      %v6859 = vadd.s32 %v6854, %v6856
      %vm6860 = vc.u32 %v6854, %v6856
      %v6861 = vadd.s32 %v6857, 1
      %v6862 = vsel %vm6860, %v6861, %v6857
      %v6863 = vadd.s32 %v6858, %v6862
      %v6864 = vadd.s32 %v6863, 536870912
      %v6865 = vshrl.u32 %v6864, 30
      %v6866 = vshll.u32 %v6865, 30
      %v6867 = vsub.s32 %v6863, %v6866
      %vm6868 = vcmp.lt.s32.totalorder %v6867, 0
      %v6869 = vsub.s32 0, %v6867
      %v6870 = vsel %vm6868, %v6869, %v6867
      %v6871 = vclz %v6870
      %v6872 = vsub.s32 %v6871, 2
      %vm6873 = vcmp.gt.s32.totalorder 0, %v6872
      %v6874 = vsel %vm6873, 0, %v6872
      %v6875 = vsub.s32 32, %v6874
      %v6876 = vshll.u32 %v6867, %v6874
      %v6877 = vshrl.u32 %v6859, %v6875
      %v6878 = vor.u32 %v6876, %v6877
      %v6879 = vsub.s32 4294967266, %v6874
      %v6880 = vadd.s32 %v6879, 127
      %v6881 = vshll.u32 %v6880, 23
      %v6882 = vor.u32 4788187, %v6881
      %v6883 = vand.u32 2147483647, %v6882
      %v6885 = vcvt.s32.f32 %v6878
      %v6886 = vmul.f32 %v6885, %v6883
      %v6887 = vxor.u32 %v6886, 2147483648
      %v6888 = vsel %vm6805, %v6887, %v6886
      %v6889 = vsub.s32 4, %v6865
      %v6890 = vsel %vm6805, %v6889, %v6865
      %v6891 = vsel %vm6804, %v1074, %v6888
      %v6892 = vsel %vm6804, 0, %v6890
      %v6893 = vcosq.f32.pop %v6891
      %v6894 = vsinq.f32.pop %v6891
      %vm6895 = vweird.f32 %v1074
      %v6896 = vadd.s32 %v6892, 3
      %v6897 = vand.u32 %v6896, 3
      %vm6898 = vcmp.lt.s32.totalorder %v6897, 2
      %vm6899 = vcmp.eq.s32.totalorder %v6897, 0
      %v6900 = vxor.u32 %v6894, 2147483648
      %v6901 = vsel %vm6899, %v6893, %v6900
      %vm6902 = vcmp.eq.s32.totalorder %v6897, 2
      %v6903 = vxor.u32 %v6893, 2147483648
      %v6904 = vsel %vm6902, %v6903, %v6894
      %v6905 = vsel %vm6898, %v6901, %v6904
      %v6906 = vsel %vm6895, nan, %v6905
      %v6907 = vand.u32 2147483647, %v1075
      %vm6908 = vcmp.le.f32.partialorder %v6907, 0.7853982
      %vm6909 = vcmp.lt.s32.totalorder %v1075, 0
      %v6910 = vand.u32 %v1075, 2139095040
      %v6911 = vshrl.u32 %v6910, 23
      %v6912 = vsub.s32 %v6911, 127
      %v6913 = vand.u32 2147483647, %v1075
      %v6914 = vand.u32 %v6913, 8388607
      %v6915 = vor.u32 %v6914, 8388608
      %v6916 = vsub.s32 0, %v6915
      %v6917 = vadd.s32 %v6912, 1
      %vm6918 = vcmp.gt.s32.totalorder %v6917, 0
      %v6919 = vsel %vm6918, %v6917, 0
      %v6920 = vshrl.u32 %v6919, 5
      %v6921 = vand.u32 %v6919, 31
      %v6922 = vsub.s32 32, %v6921
      %v6923 = vshrl.u32 683565275, %v6922
      %v6924 = vshll.u32 683565275, %v6921
      %v6925 = vshrl.u32 2475754826, %v6922
      %v6926 = vor.u32 %v6924, %v6925
      %v6927 = vshll.u32 2475754826, %v6921
      %v6928 = vshrl.u32 2131351028, %v6922
      %v6929 = vor.u32 %v6927, %v6928
      %v6930 = vshll.u32 2131351028, %v6921
      %v6931 = vshrl.u32 2102212464, %v6922
      %v6932 = vor.u32 %v6930, %v6931
      %v6933 = vshll.u32 2102212464, %v6921
      %v6934 = vshrl.u32 920167782, %v6922
      %v6935 = vor.u32 %v6933, %v6934
      %v6936 = vshll.u32 920167782, %v6921
      %v6937 = vshrl.u32 1326507024, %v6922
      %v6938 = vor.u32 %v6936, %v6937
      %vm6939 = vcmp.lt.s32.totalorder %v6920, 1
      %vm6940 = vcmp.lt.s32.totalorder %v6920, 2
      %vm6941 = vcmp.lt.s32.totalorder %v6920, 3
      %vm6942 = vcmp.lt.s32.totalorder %v6920, 4
      %v6943 = vsel %vm6939, %v6923, %v6926
      %v6944 = vsel %vm6942, %v6932, 2102212464
      %v6945 = vsel %vm6941, %v6929, %v6944
      %v6946 = vsel %vm6940, %v6943, %v6945
      %v6947 = vsel %vm6939, %v6926, %v6929
      %v6948 = vsel %vm6942, %v6935, 920167782
      %v6949 = vsel %vm6941, %v6932, %v6948
      %v6950 = vsel %vm6940, %v6947, %v6949
      %v6951 = vsel %vm6939, %v6929, %v6932
      %v6952 = vsel %vm6942, %v6938, 1326507024
      %v6953 = vsel %vm6941, %v6935, %v6952
      %v6954 = vsel %vm6940, %v6951, %v6953
      %v6955 = vshll.u32 %v6915, 8
      %v6956 = vmul.u32.u64.compose %v6955, %v6954
      %v6957 = vextract.low.u32 %v6956
      %v6958 = vextract.high.u32 %v6956
      %v6959 = vmul.u32.u64.compose %v6955, %v6950
      %v6960 = vextract.low.u32 %v6959
      %v6961 = vextract.high.u32 %v6959
      %v6962 = vmul.u32 %v6955, %v6946
      %v6963 = vadd.s32 %v6958, %v6960
      %vm6964 = vc.u32 %v6958, %v6960
      %v6965 = vadd.s32 %v6961, 1
      %v6966 = vsel %vm6964, %v6965, %v6961
      %v6967 = vadd.s32 %v6962, %v6966
      %v6968 = vadd.s32 %v6967, 536870912
      %v6969 = vshrl.u32 %v6968, 30
      %v6970 = vshll.u32 %v6969, 30
      %v6971 = vsub.s32 %v6967, %v6970
      %vm6972 = vcmp.lt.s32.totalorder %v6971, 0
      %v6973 = vsub.s32 0, %v6971
      %v6974 = vsel %vm6972, %v6973, %v6971
      %v6975 = vclz %v6974
      %v6976 = vsub.s32 %v6975, 2
      %vm6977 = vcmp.gt.s32.totalorder 0, %v6976
      %v6978 = vsel %vm6977, 0, %v6976
      %v6979 = vsub.s32 32, %v6978
      %v6980 = vshll.u32 %v6971, %v6978
      %v6981 = vshrl.u32 %v6963, %v6979
      %v6982 = vor.u32 %v6980, %v6981
      %v6983 = vsub.s32 4294967266, %v6978
      %v6984 = vadd.s32 %v6983, 127
      %v6985 = vshll.u32 %v6984, 23
      %v6986 = vor.u32 4788187, %v6985
      %v6987 = vand.u32 2147483647, %v6986
      %v6989 = vcvt.s32.f32 %v6982
      %v6990 = vmul.f32 %v6989, %v6987
      %v6991 = vxor.u32 %v6990, 2147483648
      %v6992 = vsel %vm6909, %v6991, %v6990
      %v6993 = vsub.s32 4, %v6969
      %v6994 = vsel %vm6909, %v6993, %v6969
      %v6995 = vsel %vm6908, %v1075, %v6992
      %v6996 = vsel %vm6908, 0, %v6994
      %v6997 = vcosq.f32.pop %v6995
      %v6998 = vsinq.f32.pop %v6995
      %vm6999 = vweird.f32 %v1075
      %v7000 = vadd.s32 %v6996, 3
      %v7001 = vand.u32 %v7000, 3
      %vm7002 = vcmp.lt.s32.totalorder %v7001, 2
      %vm7003 = vcmp.eq.s32.totalorder %v7001, 0
      %v7004 = vxor.u32 %v6998, 2147483648
      %v7005 = vsel %vm7003, %v6997, %v7004
      %vm7006 = vcmp.eq.s32.totalorder %v7001, 2
      %v7007 = vxor.u32 %v6997, 2147483648
      %v7008 = vsel %vm7006, %v7007, %v6998
      %v7009 = vsel %vm7002, %v7005, %v7008
      %v7010 = vsel %vm6999, nan, %v7009
      %v7011 = vand.u32 2147483647, %v1076
      %vm7012 = vcmp.le.f32.partialorder %v7011, 0.7853982
      %vm7013 = vcmp.lt.s32.totalorder %v1076, 0
      %v7014 = vand.u32 %v1076, 2139095040
      %v7015 = vshrl.u32 %v7014, 23
      %v7016 = vsub.s32 %v7015, 127
      %v7017 = vand.u32 2147483647, %v1076
      %v7018 = vand.u32 %v7017, 8388607
      %v7019 = vor.u32 %v7018, 8388608
      %v7020 = vsub.s32 0, %v7019
      %v7021 = vadd.s32 %v7016, 1
      %vm7022 = vcmp.gt.s32.totalorder %v7021, 0
      %v7023 = vsel %vm7022, %v7021, 0
      %v7024 = vshrl.u32 %v7023, 5
      %v7025 = vand.u32 %v7023, 31
      %v7026 = vsub.s32 32, %v7025
      %v7027 = vshrl.u32 683565275, %v7026
      %v7028 = vshll.u32 683565275, %v7025
      %v7029 = vshrl.u32 2475754826, %v7026
      %v7030 = vor.u32 %v7028, %v7029
      %v7031 = vshll.u32 2475754826, %v7025
      %v7032 = vshrl.u32 2131351028, %v7026
      %v7033 = vor.u32 %v7031, %v7032
      %v7034 = vshll.u32 2131351028, %v7025
      %v7035 = vshrl.u32 2102212464, %v7026
      %v7036 = vor.u32 %v7034, %v7035
      %v7037 = vshll.u32 2102212464, %v7025
      %v7038 = vshrl.u32 920167782, %v7026
      %v7039 = vor.u32 %v7037, %v7038
      %v7040 = vshll.u32 920167782, %v7025
      %v7041 = vshrl.u32 1326507024, %v7026
      %v7042 = vor.u32 %v7040, %v7041
      %vm7043 = vcmp.lt.s32.totalorder %v7024, 1
      %vm7044 = vcmp.lt.s32.totalorder %v7024, 2
      %vm7045 = vcmp.lt.s32.totalorder %v7024, 3
      %vm7046 = vcmp.lt.s32.totalorder %v7024, 4
      %v7047 = vsel %vm7043, %v7027, %v7030
      %v7048 = vsel %vm7046, %v7036, 2102212464
      %v7049 = vsel %vm7045, %v7033, %v7048
      %v7050 = vsel %vm7044, %v7047, %v7049
      %v7051 = vsel %vm7043, %v7030, %v7033
      %v7052 = vsel %vm7046, %v7039, 920167782
      %v7053 = vsel %vm7045, %v7036, %v7052
      %v7054 = vsel %vm7044, %v7051, %v7053
      %v7055 = vsel %vm7043, %v7033, %v7036
      %v7056 = vsel %vm7046, %v7042, 1326507024
      %v7057 = vsel %vm7045, %v7039, %v7056
      %v7058 = vsel %vm7044, %v7055, %v7057
      %v7059 = vshll.u32 %v7019, 8
      %v7060 = vmul.u32.u64.compose %v7059, %v7058
      %v7061 = vextract.low.u32 %v7060
      %v7062 = vextract.high.u32 %v7060
      %v7063 = vmul.u32.u64.compose %v7059, %v7054
      %v7064 = vextract.low.u32 %v7063
      %v7065 = vextract.high.u32 %v7063
      %v7066 = vmul.u32 %v7059, %v7050
      %v7067 = vadd.s32 %v7062, %v7064
      %vm7068 = vc.u32 %v7062, %v7064
      %v7069 = vadd.s32 %v7065, 1
      %v7070 = vsel %vm7068, %v7069, %v7065
      %v7071 = vadd.s32 %v7066, %v7070
      %v7072 = vadd.s32 %v7071, 536870912
      %v7073 = vshrl.u32 %v7072, 30
      %v7074 = vshll.u32 %v7073, 30
      %v7075 = vsub.s32 %v7071, %v7074
      %vm7076 = vcmp.lt.s32.totalorder %v7075, 0
      %v7077 = vsub.s32 0, %v7075
      %v7078 = vsel %vm7076, %v7077, %v7075
      %v7079 = vclz %v7078
      %v7080 = vsub.s32 %v7079, 2
      %vm7081 = vcmp.gt.s32.totalorder 0, %v7080
      %v7082 = vsel %vm7081, 0, %v7080
      %v7083 = vsub.s32 32, %v7082
      %v7084 = vshll.u32 %v7075, %v7082
      %v7085 = vshrl.u32 %v7067, %v7083
      %v7086 = vor.u32 %v7084, %v7085
      %v7087 = vsub.s32 4294967266, %v7082
      %v7088 = vadd.s32 %v7087, 127
      %v7089 = vshll.u32 %v7088, 23
      %v7090 = vor.u32 4788187, %v7089
      %v7091 = vand.u32 2147483647, %v7090
      %v7093 = vcvt.s32.f32 %v7086
      %v7094 = vmul.f32 %v7093, %v7091
      %v7095 = vxor.u32 %v7094, 2147483648
      %v7096 = vsel %vm7013, %v7095, %v7094
      %v7097 = vsub.s32 4, %v7073
      %v7098 = vsel %vm7013, %v7097, %v7073
      %v7099 = vsel %vm7012, %v1076, %v7096
      %v7100 = vsel %vm7012, 0, %v7098
      %v7101 = vcosq.f32.pop %v7099
      %v7102 = vsinq.f32.pop %v7099
      %vm7103 = vweird.f32 %v1076
      %v7104 = vadd.s32 %v7100, 3
      %v7105 = vand.u32 %v7104, 3
      %vm7106 = vcmp.lt.s32.totalorder %v7105, 2
      %vm7107 = vcmp.eq.s32.totalorder %v7105, 0
      %v7108 = vxor.u32 %v7102, 2147483648
      %v7109 = vsel %vm7107, %v7101, %v7108
      %vm7110 = vcmp.eq.s32.totalorder %v7105, 2
      %v7111 = vxor.u32 %v7101, 2147483648
      %v7112 = vsel %vm7110, %v7111, %v7102
      %v7113 = vsel %vm7106, %v7109, %v7112
      %v7114 = vsel %vm7103, nan, %v7113
      %v7115 = vand.u32 2147483647, %v1077
      %vm7116 = vcmp.le.f32.partialorder %v7115, 0.7853982
      %vm7117 = vcmp.lt.s32.totalorder %v1077, 0
      %v7118 = vand.u32 %v1077, 2139095040
      %v7119 = vshrl.u32 %v7118, 23
      %v7120 = vsub.s32 %v7119, 127
      %v7121 = vand.u32 2147483647, %v1077
      %v7122 = vand.u32 %v7121, 8388607
      %v7123 = vor.u32 %v7122, 8388608
      %v7124 = vsub.s32 0, %v7123
      %v7125 = vadd.s32 %v7120, 1
      %vm7126 = vcmp.gt.s32.totalorder %v7125, 0
      %v7127 = vsel %vm7126, %v7125, 0
      %v7128 = vshrl.u32 %v7127, 5
      %v7129 = vand.u32 %v7127, 31
      %v7130 = vsub.s32 32, %v7129
      %v7131 = vshrl.u32 683565275, %v7130
      %v7132 = vshll.u32 683565275, %v7129
      %v7133 = vshrl.u32 2475754826, %v7130
      %v7134 = vor.u32 %v7132, %v7133
      %v7135 = vshll.u32 2475754826, %v7129
      %v7136 = vshrl.u32 2131351028, %v7130
      %v7137 = vor.u32 %v7135, %v7136
      %v7138 = vshll.u32 2131351028, %v7129
      %v7139 = vshrl.u32 2102212464, %v7130
      %v7140 = vor.u32 %v7138, %v7139
      %v7141 = vshll.u32 2102212464, %v7129
      %v7142 = vshrl.u32 920167782, %v7130
      %v7143 = vor.u32 %v7141, %v7142
      %v7144 = vshll.u32 920167782, %v7129
      %v7145 = vshrl.u32 1326507024, %v7130
      %v7146 = vor.u32 %v7144, %v7145
      %vm7147 = vcmp.lt.s32.totalorder %v7128, 1
      %vm7148 = vcmp.lt.s32.totalorder %v7128, 2
      %vm7149 = vcmp.lt.s32.totalorder %v7128, 3
      %vm7150 = vcmp.lt.s32.totalorder %v7128, 4
      %v7151 = vsel %vm7147, %v7131, %v7134
      %v7152 = vsel %vm7150, %v7140, 2102212464
      %v7153 = vsel %vm7149, %v7137, %v7152
      %v7154 = vsel %vm7148, %v7151, %v7153
      %v7155 = vsel %vm7147, %v7134, %v7137
      %v7156 = vsel %vm7150, %v7143, 920167782
      %v7157 = vsel %vm7149, %v7140, %v7156
      %v7158 = vsel %vm7148, %v7155, %v7157
      %v7159 = vsel %vm7147, %v7137, %v7140
      %v7160 = vsel %vm7150, %v7146, 1326507024
      %v7161 = vsel %vm7149, %v7143, %v7160
      %v7162 = vsel %vm7148, %v7159, %v7161
      %v7163 = vshll.u32 %v7123, 8
      %v7164 = vmul.u32.u64.compose %v7163, %v7162
      %v7165 = vextract.low.u32 %v7164
      %v7166 = vextract.high.u32 %v7164
      %v7167 = vmul.u32.u64.compose %v7163, %v7158
      %v7168 = vextract.low.u32 %v7167
      %v7169 = vextract.high.u32 %v7167
      %v7170 = vmul.u32 %v7163, %v7154
      %v7171 = vadd.s32 %v7166, %v7168
      %vm7172 = vc.u32 %v7166, %v7168
      %v7173 = vadd.s32 %v7169, 1
      %v7174 = vsel %vm7172, %v7173, %v7169
      %v7175 = vadd.s32 %v7170, %v7174
      %v7176 = vadd.s32 %v7175, 536870912
      %v7177 = vshrl.u32 %v7176, 30
      %v7178 = vshll.u32 %v7177, 30
      %v7179 = vsub.s32 %v7175, %v7178
      %vm7180 = vcmp.lt.s32.totalorder %v7179, 0
      %v7181 = vsub.s32 0, %v7179
      %v7182 = vsel %vm7180, %v7181, %v7179
      %v7183 = vclz %v7182
      %v7184 = vsub.s32 %v7183, 2
      %vm7185 = vcmp.gt.s32.totalorder 0, %v7184
      %v7186 = vsel %vm7185, 0, %v7184
      %v7187 = vsub.s32 32, %v7186
      %v7188 = vshll.u32 %v7179, %v7186
      %v7189 = vshrl.u32 %v7171, %v7187
      %v7190 = vor.u32 %v7188, %v7189
      %v7191 = vsub.s32 4294967266, %v7186
      %v7192 = vadd.s32 %v7191, 127
      %v7193 = vshll.u32 %v7192, 23
      %v7194 = vor.u32 4788187, %v7193
      %v7195 = vand.u32 2147483647, %v7194
      %v7197 = vcvt.s32.f32 %v7190
      %v7198 = vmul.f32 %v7197, %v7195
      %v7199 = vxor.u32 %v7198, 2147483648
      %v7200 = vsel %vm7117, %v7199, %v7198
      %v7201 = vsub.s32 4, %v7177
      %v7202 = vsel %vm7117, %v7201, %v7177
      %v7203 = vsel %vm7116, %v1077, %v7200
      %v7204 = vsel %vm7116, 0, %v7202
      %v7205 = vcosq.f32.pop %v7203
      %v7206 = vsinq.f32.pop %v7203
      %vm7207 = vweird.f32 %v1077
      %v7208 = vadd.s32 %v7204, 3
      %v7209 = vand.u32 %v7208, 3
      %vm7210 = vcmp.lt.s32.totalorder %v7209, 2
      %vm7211 = vcmp.eq.s32.totalorder %v7209, 0
      %v7212 = vxor.u32 %v7206, 2147483648
      %v7213 = vsel %vm7211, %v7205, %v7212
      %vm7214 = vcmp.eq.s32.totalorder %v7209, 2
      %v7215 = vxor.u32 %v7205, 2147483648
      %v7216 = vsel %vm7214, %v7215, %v7206
      %v7217 = vsel %vm7210, %v7213, %v7216
      %v7218 = vsel %vm7207, nan, %v7217
      %v7219 = vand.u32 2147483647, %v1078
      %vm7220 = vcmp.le.f32.partialorder %v7219, 0.7853982
      %vm7221 = vcmp.lt.s32.totalorder %v1078, 0
      %v7222 = vand.u32 %v1078, 2139095040
      %v7223 = vshrl.u32 %v7222, 23
      %v7224 = vsub.s32 %v7223, 127
      %v7225 = vand.u32 2147483647, %v1078
      %v7226 = vand.u32 %v7225, 8388607
      %v7227 = vor.u32 %v7226, 8388608
      %v7228 = vsub.s32 0, %v7227
      %v7229 = vadd.s32 %v7224, 1
      %vm7230 = vcmp.gt.s32.totalorder %v7229, 0
      %v7231 = vsel %vm7230, %v7229, 0
      %v7232 = vshrl.u32 %v7231, 5
      %v7233 = vand.u32 %v7231, 31
      %v7234 = vsub.s32 32, %v7233
      %v7235 = vshrl.u32 683565275, %v7234
      %v7236 = vshll.u32 683565275, %v7233
      %v7237 = vshrl.u32 2475754826, %v7234
      %v7238 = vor.u32 %v7236, %v7237
      %v7239 = vshll.u32 2475754826, %v7233
      %v7240 = vshrl.u32 2131351028, %v7234
      %v7241 = vor.u32 %v7239, %v7240
      %v7242 = vshll.u32 2131351028, %v7233
      %v7243 = vshrl.u32 2102212464, %v7234
      %v7244 = vor.u32 %v7242, %v7243
      %v7245 = vshll.u32 2102212464, %v7233
      %v7246 = vshrl.u32 920167782, %v7234
      %v7247 = vor.u32 %v7245, %v7246
      %v7248 = vshll.u32 920167782, %v7233
      %v7249 = vshrl.u32 1326507024, %v7234
      %v7250 = vor.u32 %v7248, %v7249
      %vm7251 = vcmp.lt.s32.totalorder %v7232, 1
      %vm7252 = vcmp.lt.s32.totalorder %v7232, 2
      %vm7253 = vcmp.lt.s32.totalorder %v7232, 3
      %vm7254 = vcmp.lt.s32.totalorder %v7232, 4
      %v7255 = vsel %vm7251, %v7235, %v7238
      %v7256 = vsel %vm7254, %v7244, 2102212464
      %v7257 = vsel %vm7253, %v7241, %v7256
      %v7258 = vsel %vm7252, %v7255, %v7257
      %v7259 = vsel %vm7251, %v7238, %v7241
      %v7260 = vsel %vm7254, %v7247, 920167782
      %v7261 = vsel %vm7253, %v7244, %v7260
      %v7262 = vsel %vm7252, %v7259, %v7261
      %v7263 = vsel %vm7251, %v7241, %v7244
      %v7264 = vsel %vm7254, %v7250, 1326507024
      %v7265 = vsel %vm7253, %v7247, %v7264
      %v7266 = vsel %vm7252, %v7263, %v7265
      %v7267 = vshll.u32 %v7227, 8
      %v7268 = vmul.u32.u64.compose %v7267, %v7266
      %v7269 = vextract.low.u32 %v7268
      %v7270 = vextract.high.u32 %v7268
      %v7271 = vmul.u32.u64.compose %v7267, %v7262
      %v7272 = vextract.low.u32 %v7271
      %v7273 = vextract.high.u32 %v7271
      %v7274 = vmul.u32 %v7267, %v7258
      %v7275 = vadd.s32 %v7270, %v7272
      %vm7276 = vc.u32 %v7270, %v7272
      %v7277 = vadd.s32 %v7273, 1
      %v7278 = vsel %vm7276, %v7277, %v7273
      %v7279 = vadd.s32 %v7274, %v7278
      %v7280 = vadd.s32 %v7279, 536870912
      %v7281 = vshrl.u32 %v7280, 30
      %v7282 = vshll.u32 %v7281, 30
      %v7283 = vsub.s32 %v7279, %v7282
      %vm7284 = vcmp.lt.s32.totalorder %v7283, 0
      %v7285 = vsub.s32 0, %v7283
      %v7286 = vsel %vm7284, %v7285, %v7283
      %v7287 = vclz %v7286
      %v7288 = vsub.s32 %v7287, 2
      %vm7289 = vcmp.gt.s32.totalorder 0, %v7288
      %v7290 = vsel %vm7289, 0, %v7288
      %v7291 = vsub.s32 32, %v7290
      %v7292 = vshll.u32 %v7283, %v7290
      %v7293 = vshrl.u32 %v7275, %v7291
      %v7294 = vor.u32 %v7292, %v7293
      %v7295 = vsub.s32 4294967266, %v7290
      %v7296 = vadd.s32 %v7295, 127
      %v7297 = vshll.u32 %v7296, 23
      %v7298 = vor.u32 4788187, %v7297
      %v7299 = vand.u32 2147483647, %v7298
      %v7301 = vcvt.s32.f32 %v7294
      %v7302 = vmul.f32 %v7301, %v7299
      %v7303 = vxor.u32 %v7302, 2147483648
      %v7304 = vsel %vm7221, %v7303, %v7302
      %v7305 = vsub.s32 4, %v7281
      %v7306 = vsel %vm7221, %v7305, %v7281
      %v7307 = vsel %vm7220, %v1078, %v7304
      %v7308 = vsel %vm7220, 0, %v7306
      %v7309 = vcosq.f32.pop %v7307
      %v7310 = vsinq.f32.pop %v7307
      %vm7311 = vweird.f32 %v1078
      %v7312 = vadd.s32 %v7308, 3
      %v7313 = vand.u32 %v7312, 3
      %vm7314 = vcmp.lt.s32.totalorder %v7313, 2
      %vm7315 = vcmp.eq.s32.totalorder %v7313, 0
      %v7316 = vxor.u32 %v7310, 2147483648
      %v7317 = vsel %vm7315, %v7309, %v7316
      %vm7318 = vcmp.eq.s32.totalorder %v7313, 2
      %v7319 = vxor.u32 %v7309, 2147483648
      %v7320 = vsel %vm7318, %v7319, %v7310
      %v7321 = vsel %vm7314, %v7317, %v7320
      %v7322 = vsel %vm7311, nan, %v7321
      %v7323 = vand.u32 2147483647, %v1079
      %vm7324 = vcmp.le.f32.partialorder %v7323, 0.7853982
      %vm7325 = vcmp.lt.s32.totalorder %v1079, 0
      %v7326 = vand.u32 %v1079, 2139095040
      %v7327 = vshrl.u32 %v7326, 23
      %v7328 = vsub.s32 %v7327, 127
      %v7329 = vand.u32 2147483647, %v1079
      %v7330 = vand.u32 %v7329, 8388607
      %v7331 = vor.u32 %v7330, 8388608
      %v7332 = vsub.s32 0, %v7331
      %v7333 = vadd.s32 %v7328, 1
      %vm7334 = vcmp.gt.s32.totalorder %v7333, 0
      %v7335 = vsel %vm7334, %v7333, 0
      %v7336 = vshrl.u32 %v7335, 5
      %v7337 = vand.u32 %v7335, 31
      %v7338 = vsub.s32 32, %v7337
      %v7339 = vshrl.u32 683565275, %v7338
      %v7340 = vshll.u32 683565275, %v7337
      %v7341 = vshrl.u32 2475754826, %v7338
      %v7342 = vor.u32 %v7340, %v7341
      %v7343 = vshll.u32 2475754826, %v7337
      %v7344 = vshrl.u32 2131351028, %v7338
      %v7345 = vor.u32 %v7343, %v7344
      %v7346 = vshll.u32 2131351028, %v7337
      %v7347 = vshrl.u32 2102212464, %v7338
      %v7348 = vor.u32 %v7346, %v7347
      %v7349 = vshll.u32 2102212464, %v7337
      %v7350 = vshrl.u32 920167782, %v7338
      %v7351 = vor.u32 %v7349, %v7350
      %v7352 = vshll.u32 920167782, %v7337
      %v7353 = vshrl.u32 1326507024, %v7338
      %v7354 = vor.u32 %v7352, %v7353
      %vm7355 = vcmp.lt.s32.totalorder %v7336, 1
      %vm7356 = vcmp.lt.s32.totalorder %v7336, 2
      %vm7357 = vcmp.lt.s32.totalorder %v7336, 3
      %vm7358 = vcmp.lt.s32.totalorder %v7336, 4
      %v7359 = vsel %vm7355, %v7339, %v7342
      %v7360 = vsel %vm7358, %v7348, 2102212464
      %v7361 = vsel %vm7357, %v7345, %v7360
      %v7362 = vsel %vm7356, %v7359, %v7361
      %v7363 = vsel %vm7355, %v7342, %v7345
      %v7364 = vsel %vm7358, %v7351, 920167782
      %v7365 = vsel %vm7357, %v7348, %v7364
      %v7366 = vsel %vm7356, %v7363, %v7365
      %v7367 = vsel %vm7355, %v7345, %v7348
      %v7368 = vsel %vm7358, %v7354, 1326507024
      %v7369 = vsel %vm7357, %v7351, %v7368
      %v7370 = vsel %vm7356, %v7367, %v7369
      %v7371 = vshll.u32 %v7331, 8
      %v7372 = vmul.u32.u64.compose %v7371, %v7370
      %v7373 = vextract.low.u32 %v7372
      %v7374 = vextract.high.u32 %v7372
      %v7375 = vmul.u32.u64.compose %v7371, %v7366
      %v7376 = vextract.low.u32 %v7375
      %v7377 = vextract.high.u32 %v7375
      %v7378 = vmul.u32 %v7371, %v7362
      %v7379 = vadd.s32 %v7374, %v7376
      %vm7380 = vc.u32 %v7374, %v7376
      %v7381 = vadd.s32 %v7377, 1
      %v7382 = vsel %vm7380, %v7381, %v7377
      %v7383 = vadd.s32 %v7378, %v7382
      %v7384 = vadd.s32 %v7383, 536870912
      %v7385 = vshrl.u32 %v7384, 30
      %v7386 = vshll.u32 %v7385, 30
      %v7387 = vsub.s32 %v7383, %v7386
      %vm7388 = vcmp.lt.s32.totalorder %v7387, 0
      %v7389 = vsub.s32 0, %v7387
      %v7390 = vsel %vm7388, %v7389, %v7387
      %v7391 = vclz %v7390
      %v7392 = vsub.s32 %v7391, 2
      %vm7393 = vcmp.gt.s32.totalorder 0, %v7392
      %v7394 = vsel %vm7393, 0, %v7392
      %v7395 = vsub.s32 32, %v7394
      %v7396 = vshll.u32 %v7387, %v7394
      %v7397 = vshrl.u32 %v7379, %v7395
      %v7398 = vor.u32 %v7396, %v7397
      %v7399 = vsub.s32 4294967266, %v7394
      %v7400 = vadd.s32 %v7399, 127
      %v7401 = vshll.u32 %v7400, 23
      %v7402 = vor.u32 4788187, %v7401
      %v7403 = vand.u32 2147483647, %v7402
      %v7405 = vcvt.s32.f32 %v7398
      %v7406 = vmul.f32 %v7405, %v7403
      %v7407 = vxor.u32 %v7406, 2147483648
      %v7408 = vsel %vm7325, %v7407, %v7406
      %v7409 = vsub.s32 4, %v7385
      %v7410 = vsel %vm7325, %v7409, %v7385
      %v7411 = vsel %vm7324, %v1079, %v7408
      %v7412 = vsel %vm7324, 0, %v7410
      %v7413 = vcosq.f32.pop %v7411
      %v7414 = vsinq.f32.pop %v7411
      %vm7415 = vweird.f32 %v1079
      %v7416 = vadd.s32 %v7412, 3
      %v7417 = vand.u32 %v7416, 3
      %vm7418 = vcmp.lt.s32.totalorder %v7417, 2
      %vm7419 = vcmp.eq.s32.totalorder %v7417, 0
      %v7420 = vxor.u32 %v7414, 2147483648
      %v7421 = vsel %vm7419, %v7413, %v7420
      %vm7422 = vcmp.eq.s32.totalorder %v7417, 2
      %v7423 = vxor.u32 %v7413, 2147483648
      %v7424 = vsel %vm7422, %v7423, %v7414
      %v7425 = vsel %vm7418, %v7421, %v7424
      %v7426 = vsel %vm7415, nan, %v7425
      %v7427 = vand.u32 2147483647, %v1080
      %vm7428 = vcmp.le.f32.partialorder %v7427, 0.7853982
      %vm7429 = vcmp.lt.s32.totalorder %v1080, 0
      %v7430 = vand.u32 %v1080, 2139095040
      %v7431 = vshrl.u32 %v7430, 23
      %v7432 = vsub.s32 %v7431, 127
      %v7433 = vand.u32 2147483647, %v1080
      %v7434 = vand.u32 %v7433, 8388607
      %v7435 = vor.u32 %v7434, 8388608
      %v7436 = vsub.s32 0, %v7435
      %v7437 = vadd.s32 %v7432, 1
      %vm7438 = vcmp.gt.s32.totalorder %v7437, 0
      %v7439 = vsel %vm7438, %v7437, 0
      %v7440 = vshrl.u32 %v7439, 5
      %v7441 = vand.u32 %v7439, 31
      %v7442 = vsub.s32 32, %v7441
      %v7443 = vshrl.u32 683565275, %v7442
      %v7444 = vshll.u32 683565275, %v7441
      %v7445 = vshrl.u32 2475754826, %v7442
      %v7446 = vor.u32 %v7444, %v7445
      %v7447 = vshll.u32 2475754826, %v7441
      %v7448 = vshrl.u32 2131351028, %v7442
      %v7449 = vor.u32 %v7447, %v7448
      %v7450 = vshll.u32 2131351028, %v7441
      %v7451 = vshrl.u32 2102212464, %v7442
      %v7452 = vor.u32 %v7450, %v7451
      %v7453 = vshll.u32 2102212464, %v7441
      %v7454 = vshrl.u32 920167782, %v7442
      %v7455 = vor.u32 %v7453, %v7454
      %v7456 = vshll.u32 920167782, %v7441
      %v7457 = vshrl.u32 1326507024, %v7442
      %v7458 = vor.u32 %v7456, %v7457
      %vm7459 = vcmp.lt.s32.totalorder %v7440, 1
      %vm7460 = vcmp.lt.s32.totalorder %v7440, 2
      %vm7461 = vcmp.lt.s32.totalorder %v7440, 3
      %vm7462 = vcmp.lt.s32.totalorder %v7440, 4
      %v7463 = vsel %vm7459, %v7443, %v7446
      %v7464 = vsel %vm7462, %v7452, 2102212464
      %v7465 = vsel %vm7461, %v7449, %v7464
      %v7466 = vsel %vm7460, %v7463, %v7465
      %v7467 = vsel %vm7459, %v7446, %v7449
      %v7468 = vsel %vm7462, %v7455, 920167782
      %v7469 = vsel %vm7461, %v7452, %v7468
      %v7470 = vsel %vm7460, %v7467, %v7469
      %v7471 = vsel %vm7459, %v7449, %v7452
      %v7472 = vsel %vm7462, %v7458, 1326507024
      %v7473 = vsel %vm7461, %v7455, %v7472
      %v7474 = vsel %vm7460, %v7471, %v7473
      %v7475 = vshll.u32 %v7435, 8
      %v7476 = vmul.u32.u64.compose %v7475, %v7474
      %v7477 = vextract.low.u32 %v7476
      %v7478 = vextract.high.u32 %v7476
      %v7479 = vmul.u32.u64.compose %v7475, %v7470
      %v7480 = vextract.low.u32 %v7479
      %v7481 = vextract.high.u32 %v7479
      %v7482 = vmul.u32 %v7475, %v7466
      %v7483 = vadd.s32 %v7478, %v7480
      %vm7484 = vc.u32 %v7478, %v7480
      %v7485 = vadd.s32 %v7481, 1
      %v7486 = vsel %vm7484, %v7485, %v7481
      %v7487 = vadd.s32 %v7482, %v7486
      %v7488 = vadd.s32 %v7487, 536870912
      %v7489 = vshrl.u32 %v7488, 30
      %v7490 = vshll.u32 %v7489, 30
      %v7491 = vsub.s32 %v7487, %v7490
      %vm7492 = vcmp.lt.s32.totalorder %v7491, 0
      %v7493 = vsub.s32 0, %v7491
      %v7494 = vsel %vm7492, %v7493, %v7491
      %v7495 = vclz %v7494
      %v7496 = vsub.s32 %v7495, 2
      %vm7497 = vcmp.gt.s32.totalorder 0, %v7496
      %v7498 = vsel %vm7497, 0, %v7496
      %v7499 = vsub.s32 32, %v7498
      %v7500 = vshll.u32 %v7491, %v7498
      %v7501 = vshrl.u32 %v7483, %v7499
      %v7502 = vor.u32 %v7500, %v7501
      %v7503 = vsub.s32 4294967266, %v7498
      %v7504 = vadd.s32 %v7503, 127
      %v7505 = vshll.u32 %v7504, 23
      %v7506 = vor.u32 4788187, %v7505
      %v7507 = vand.u32 2147483647, %v7506
      %v7509 = vcvt.s32.f32 %v7502
      %v7510 = vmul.f32 %v7509, %v7507
      %v7511 = vxor.u32 %v7510, 2147483648
      %v7512 = vsel %vm7429, %v7511, %v7510
      %v7513 = vsub.s32 4, %v7489
      %v7514 = vsel %vm7429, %v7513, %v7489
      %v7515 = vsel %vm7428, %v1080, %v7512
      %v7516 = vsel %vm7428, 0, %v7514
      %v7517 = vcosq.f32.pop %v7515
      %v7518 = vsinq.f32.pop %v7515
      %vm7519 = vweird.f32 %v1080
      %v7520 = vadd.s32 %v7516, 3
      %v7521 = vand.u32 %v7520, 3
      %vm7522 = vcmp.lt.s32.totalorder %v7521, 2
      %vm7523 = vcmp.eq.s32.totalorder %v7521, 0
      %v7524 = vxor.u32 %v7518, 2147483648
      %v7525 = vsel %vm7523, %v7517, %v7524
      %vm7526 = vcmp.eq.s32.totalorder %v7521, 2
      %v7527 = vxor.u32 %v7517, 2147483648
      %v7528 = vsel %vm7526, %v7527, %v7518
      %v7529 = vsel %vm7522, %v7525, %v7528
      %v7530 = vsel %vm7519, nan, %v7529
      %v7531 = vand.u32 2147483647, %v1081
      %vm7532 = vcmp.le.f32.partialorder %v7531, 0.7853982
      %vm7533 = vcmp.lt.s32.totalorder %v1081, 0
      %v7534 = vand.u32 %v1081, 2139095040
      %v7535 = vshrl.u32 %v7534, 23
      %v7536 = vsub.s32 %v7535, 127
      %v7537 = vand.u32 2147483647, %v1081
      %v7538 = vand.u32 %v7537, 8388607
      %v7539 = vor.u32 %v7538, 8388608
      %v7540 = vsub.s32 0, %v7539
      %v7541 = vadd.s32 %v7536, 1
      %vm7542 = vcmp.gt.s32.totalorder %v7541, 0
      %v7543 = vsel %vm7542, %v7541, 0
      %v7544 = vshrl.u32 %v7543, 5
      %v7545 = vand.u32 %v7543, 31
      %v7546 = vsub.s32 32, %v7545
      %v7547 = vshrl.u32 683565275, %v7546
      %v7548 = vshll.u32 683565275, %v7545
      %v7549 = vshrl.u32 2475754826, %v7546
      %v7550 = vor.u32 %v7548, %v7549
      %v7551 = vshll.u32 2475754826, %v7545
      %v7552 = vshrl.u32 2131351028, %v7546
      %v7553 = vor.u32 %v7551, %v7552
      %v7554 = vshll.u32 2131351028, %v7545
      %v7555 = vshrl.u32 2102212464, %v7546
      %v7556 = vor.u32 %v7554, %v7555
      %v7557 = vshll.u32 2102212464, %v7545
      %v7558 = vshrl.u32 920167782, %v7546
      %v7559 = vor.u32 %v7557, %v7558
      %v7560 = vshll.u32 920167782, %v7545
      %v7561 = vshrl.u32 1326507024, %v7546
      %v7562 = vor.u32 %v7560, %v7561
      %vm7563 = vcmp.lt.s32.totalorder %v7544, 1
      %vm7564 = vcmp.lt.s32.totalorder %v7544, 2
      %vm7565 = vcmp.lt.s32.totalorder %v7544, 3
      %vm7566 = vcmp.lt.s32.totalorder %v7544, 4
      %v7567 = vsel %vm7563, %v7547, %v7550
      %v7568 = vsel %vm7566, %v7556, 2102212464
      %v7569 = vsel %vm7565, %v7553, %v7568
      %v7570 = vsel %vm7564, %v7567, %v7569
      %v7571 = vsel %vm7563, %v7550, %v7553
      %v7572 = vsel %vm7566, %v7559, 920167782
      %v7573 = vsel %vm7565, %v7556, %v7572
      %v7574 = vsel %vm7564, %v7571, %v7573
      %v7575 = vsel %vm7563, %v7553, %v7556
      %v7576 = vsel %vm7566, %v7562, 1326507024
      %v7577 = vsel %vm7565, %v7559, %v7576
      %v7578 = vsel %vm7564, %v7575, %v7577
      %v7579 = vshll.u32 %v7539, 8
      %v7580 = vmul.u32.u64.compose %v7579, %v7578
      %v7581 = vextract.low.u32 %v7580
      %v7582 = vextract.high.u32 %v7580
      %v7583 = vmul.u32.u64.compose %v7579, %v7574
      %v7584 = vextract.low.u32 %v7583
      %v7585 = vextract.high.u32 %v7583
      %v7586 = vmul.u32 %v7579, %v7570
      %v7587 = vadd.s32 %v7582, %v7584
      %vm7588 = vc.u32 %v7582, %v7584
      %v7589 = vadd.s32 %v7585, 1
      %v7590 = vsel %vm7588, %v7589, %v7585
      %v7591 = vadd.s32 %v7586, %v7590
      %v7592 = vadd.s32 %v7591, 536870912
      %v7593 = vshrl.u32 %v7592, 30
      %v7594 = vshll.u32 %v7593, 30
      %v7595 = vsub.s32 %v7591, %v7594
      %vm7596 = vcmp.lt.s32.totalorder %v7595, 0
      %v7597 = vsub.s32 0, %v7595
      %v7598 = vsel %vm7596, %v7597, %v7595
      %v7599 = vclz %v7598
      %v7600 = vsub.s32 %v7599, 2
      %vm7601 = vcmp.gt.s32.totalorder 0, %v7600
      %v7602 = vsel %vm7601, 0, %v7600
      %v7603 = vsub.s32 32, %v7602
      %v7604 = vshll.u32 %v7595, %v7602
      %v7605 = vshrl.u32 %v7587, %v7603
      %v7606 = vor.u32 %v7604, %v7605
      %v7607 = vsub.s32 4294967266, %v7602
      %v7608 = vadd.s32 %v7607, 127
      %v7609 = vshll.u32 %v7608, 23
      %v7610 = vor.u32 4788187, %v7609
      %v7611 = vand.u32 2147483647, %v7610
      %v7613 = vcvt.s32.f32 %v7606
      %v7614 = vmul.f32 %v7613, %v7611
      %v7615 = vxor.u32 %v7614, 2147483648
      %v7616 = vsel %vm7533, %v7615, %v7614
      %v7617 = vsub.s32 4, %v7593
      %v7618 = vsel %vm7533, %v7617, %v7593
      %v7619 = vsel %vm7532, %v1081, %v7616
      %v7620 = vsel %vm7532, 0, %v7618
      %v7621 = vcosq.f32.pop %v7619
      %v7622 = vsinq.f32.pop %v7619
      %vm7623 = vweird.f32 %v1081
      %v7624 = vadd.s32 %v7620, 3
      %v7625 = vand.u32 %v7624, 3
      %vm7626 = vcmp.lt.s32.totalorder %v7625, 2
      %vm7627 = vcmp.eq.s32.totalorder %v7625, 0
      %v7628 = vxor.u32 %v7622, 2147483648
      %v7629 = vsel %vm7627, %v7621, %v7628
      %vm7630 = vcmp.eq.s32.totalorder %v7625, 2
      %v7631 = vxor.u32 %v7621, 2147483648
      %v7632 = vsel %vm7630, %v7631, %v7622
      %v7633 = vsel %vm7626, %v7629, %v7632
      %v7634 = vsel %vm7623, nan, %v7633
      %v7635 = vand.u32 2147483647, %v1082
      %vm7636 = vcmp.le.f32.partialorder %v7635, 0.7853982
      %vm7637 = vcmp.lt.s32.totalorder %v1082, 0
      %v7638 = vand.u32 %v1082, 2139095040
      %v7639 = vshrl.u32 %v7638, 23
      %v7640 = vsub.s32 %v7639, 127
      %v7641 = vand.u32 2147483647, %v1082
      %v7642 = vand.u32 %v7641, 8388607
      %v7643 = vor.u32 %v7642, 8388608
      %v7644 = vsub.s32 0, %v7643
      %v7645 = vadd.s32 %v7640, 1
      %vm7646 = vcmp.gt.s32.totalorder %v7645, 0
      %v7647 = vsel %vm7646, %v7645, 0
      %v7648 = vshrl.u32 %v7647, 5
      %v7649 = vand.u32 %v7647, 31
      %v7650 = vsub.s32 32, %v7649
      %v7651 = vshrl.u32 683565275, %v7650
      %v7652 = vshll.u32 683565275, %v7649
      %v7653 = vshrl.u32 2475754826, %v7650
      %v7654 = vor.u32 %v7652, %v7653
      %v7655 = vshll.u32 2475754826, %v7649
      %v7656 = vshrl.u32 2131351028, %v7650
      %v7657 = vor.u32 %v7655, %v7656
      %v7658 = vshll.u32 2131351028, %v7649
      %v7659 = vshrl.u32 2102212464, %v7650
      %v7660 = vor.u32 %v7658, %v7659
      %v7661 = vshll.u32 2102212464, %v7649
      %v7662 = vshrl.u32 920167782, %v7650
      %v7663 = vor.u32 %v7661, %v7662
      %v7664 = vshll.u32 920167782, %v7649
      %v7665 = vshrl.u32 1326507024, %v7650
      %v7666 = vor.u32 %v7664, %v7665
      %vm7667 = vcmp.lt.s32.totalorder %v7648, 1
      %vm7668 = vcmp.lt.s32.totalorder %v7648, 2
      %vm7669 = vcmp.lt.s32.totalorder %v7648, 3
      %vm7670 = vcmp.lt.s32.totalorder %v7648, 4
      %v7671 = vsel %vm7667, %v7651, %v7654
      %v7672 = vsel %vm7670, %v7660, 2102212464
      %v7673 = vsel %vm7669, %v7657, %v7672
      %v7674 = vsel %vm7668, %v7671, %v7673
      %v7675 = vsel %vm7667, %v7654, %v7657
      %v7676 = vsel %vm7670, %v7663, 920167782
      %v7677 = vsel %vm7669, %v7660, %v7676
      %v7678 = vsel %vm7668, %v7675, %v7677
      %v7679 = vsel %vm7667, %v7657, %v7660
      %v7680 = vsel %vm7670, %v7666, 1326507024
      %v7681 = vsel %vm7669, %v7663, %v7680
      %v7682 = vsel %vm7668, %v7679, %v7681
      %v7683 = vshll.u32 %v7643, 8
      %v7684 = vmul.u32.u64.compose %v7683, %v7682
      %v7685 = vextract.low.u32 %v7684
      %v7686 = vextract.high.u32 %v7684
      %v7687 = vmul.u32.u64.compose %v7683, %v7678
      %v7688 = vextract.low.u32 %v7687
      %v7689 = vextract.high.u32 %v7687
      %v7690 = vmul.u32 %v7683, %v7674
      %v7691 = vadd.s32 %v7686, %v7688
      %vm7692 = vc.u32 %v7686, %v7688
      %v7693 = vadd.s32 %v7689, 1
      %v7694 = vsel %vm7692, %v7693, %v7689
      %v7695 = vadd.s32 %v7690, %v7694
      %v7696 = vadd.s32 %v7695, 536870912
      %v7697 = vshrl.u32 %v7696, 30
      %v7698 = vshll.u32 %v7697, 30
      %v7699 = vsub.s32 %v7695, %v7698
      %vm7700 = vcmp.lt.s32.totalorder %v7699, 0
      %v7701 = vsub.s32 0, %v7699
      %v7702 = vsel %vm7700, %v7701, %v7699
      %v7703 = vclz %v7702
      %v7704 = vsub.s32 %v7703, 2
      %vm7705 = vcmp.gt.s32.totalorder 0, %v7704
      %v7706 = vsel %vm7705, 0, %v7704
      %v7707 = vsub.s32 32, %v7706
      %v7708 = vshll.u32 %v7699, %v7706
      %v7709 = vshrl.u32 %v7691, %v7707
      %v7710 = vor.u32 %v7708, %v7709
      %v7711 = vsub.s32 4294967266, %v7706
      %v7712 = vadd.s32 %v7711, 127
      %v7713 = vshll.u32 %v7712, 23
      %v7714 = vor.u32 4788187, %v7713
      %v7715 = vand.u32 2147483647, %v7714
      %v7717 = vcvt.s32.f32 %v7710
      %v7718 = vmul.f32 %v7717, %v7715
      %v7719 = vxor.u32 %v7718, 2147483648
      %v7720 = vsel %vm7637, %v7719, %v7718
      %v7721 = vsub.s32 4, %v7697
      %v7722 = vsel %vm7637, %v7721, %v7697
      %v7723 = vsel %vm7636, %v1082, %v7720
      %v7724 = vsel %vm7636, 0, %v7722
      %v7725 = vcosq.f32.pop %v7723
      %v7726 = vsinq.f32.pop %v7723
      %vm7727 = vweird.f32 %v1082
      %v7728 = vadd.s32 %v7724, 3
      %v7729 = vand.u32 %v7728, 3
      %vm7730 = vcmp.lt.s32.totalorder %v7729, 2
      %vm7731 = vcmp.eq.s32.totalorder %v7729, 0
      %v7732 = vxor.u32 %v7726, 2147483648
      %v7733 = vsel %vm7731, %v7725, %v7732
      %vm7734 = vcmp.eq.s32.totalorder %v7729, 2
      %v7735 = vxor.u32 %v7725, 2147483648
      %v7736 = vsel %vm7734, %v7735, %v7726
      %v7737 = vsel %vm7730, %v7733, %v7736
      %v7738 = vsel %vm7727, nan, %v7737
      %7739 = vst.msk [vmem:[%s172] sm:$0xff] %vm249, %v1186
      %7740 = vst.msk [vmem:[%s172 + $0x8] sm:$0xff] %vm249, %v1290
      %7741 = vst.msk [vmem:[%s172 + $0x10] sm:$0xff] %vm249, %v1394
      %7742 = vst.msk [vmem:[%s172 + $0x18] sm:$0xff] %vm249, %v1498
      %7743 = vst.msk [vmem:[%s172 + $0x20] sm:$0xff] %vm249, %v1602
      %7744 = vst.msk [vmem:[%s172 + $0x28] sm:$0xff] %vm249, %v1706
      %7745 = vst.msk [vmem:[%s172 + $0x30] sm:$0xff] %vm249, %v1810
      %7746 = vst.msk [vmem:[%s172 + $0x38] sm:$0xff] %vm249, %v1914
      %7747 = vst.msk [vmem:[%s172 + $0x40] sm:$0xff] %vm249, %v2018
      %7748 = vst.msk [vmem:[%s172 + $0x48] sm:$0xff] %vm249, %v2122
      %7749 = vst.msk [vmem:[%s172 + $0x50] sm:$0xff] %vm249, %v2226
      %7750 = vst.msk [vmem:[%s172 + $0x58] sm:$0xff] %vm249, %v2330
      %7751 = vst.msk [vmem:[%s172 + $0x60] sm:$0xff] %vm249, %v2434
      %7752 = vst.msk [vmem:[%s172 + $0x68] sm:$0xff] %vm249, %v2538
      %7753 = vst.msk [vmem:[%s172 + $0x70] sm:$0xff] %vm249, %v2642
      %7754 = vst.msk [vmem:[%s172 + $0x78] sm:$0xff] %vm249, %v2746
      %7755 = vst.msk [vmem:[%s172 + $0x80] sm:$0xff] %vm249, %v2850
      %7756 = vst.msk [vmem:[%s172 + $0x88] sm:$0xff] %vm249, %v2954
      %7757 = vst.msk [vmem:[%s172 + $0x90] sm:$0xff] %vm249, %v3058
      %7758 = vst.msk [vmem:[%s172 + $0x98] sm:$0xff] %vm249, %v3162
      %7759 = vst.msk [vmem:[%s172 + $0xa0] sm:$0xff] %vm249, %v3266
      %7760 = vst.msk [vmem:[%s172 + $0xa8] sm:$0xff] %vm249, %v3370
      %7761 = vst.msk [vmem:[%s172 + $0xb0] sm:$0xff] %vm249, %v3474
      %7762 = vst.msk [vmem:[%s172 + $0xb8] sm:$0xff] %vm249, %v3578
      %7763 = vst.msk [vmem:[%s172 + $0xc0] sm:$0xff] %vm249, %v3682
      %7764 = vst.msk [vmem:[%s172 + $0xc8] sm:$0xff] %vm249, %v3786
      %7765 = vst.msk [vmem:[%s172 + $0xd0] sm:$0xff] %vm249, %v3890
      %7766 = vst.msk [vmem:[%s172 + $0xd8] sm:$0xff] %vm249, %v3994
      %7767 = vst.msk [vmem:[%s172 + $0xe0] sm:$0xff] %vm249, %v4098
      %7768 = vst.msk [vmem:[%s172 + $0xe8] sm:$0xff] %vm249, %v4202
      %7769 = vst.msk [vmem:[%s172 + $0xf0] sm:$0xff] %vm249, %v4306
      %7770 = vst.msk [vmem:[%s172 + $0xf8] sm:$0xff] %vm249, %v4410
      %7771 = vst.msk [vmem:[%s172 + $0x100] sm:$0xff] %vm249, %v4514
      %7772 = vst.msk [vmem:[%s172 + $0x108] sm:$0xff] %vm249, %v4618
      %7773 = vst.msk [vmem:[%s172 + $0x110] sm:$0xff] %vm249, %v4722
      %7774 = vst.msk [vmem:[%s172 + $0x118] sm:$0xff] %vm249, %v4826
      %7775 = vst.msk [vmem:[%s172 + $0x120] sm:$0xff] %vm249, %v4930
      %7776 = vst.msk [vmem:[%s172 + $0x128] sm:$0xff] %vm249, %v5034
      %7777 = vst.msk [vmem:[%s172 + $0x130] sm:$0xff] %vm249, %v5138
      %7778 = vst.msk [vmem:[%s172 + $0x138] sm:$0xff] %vm249, %v5242
      %7779 = vst.msk [vmem:[%s172 + $0x140] sm:$0xff] %vm249, %v5346
      %7780 = vst.msk [vmem:[%s172 + $0x148] sm:$0xff] %vm249, %v5450
      %7781 = vst.msk [vmem:[%s172 + $0x150] sm:$0xff] %vm249, %v5554
      %7782 = vst.msk [vmem:[%s172 + $0x158] sm:$0xff] %vm249, %v5658
      %7783 = vst.msk [vmem:[%s172 + $0x160] sm:$0xff] %vm249, %v5762
      %7784 = vst.msk [vmem:[%s172 + $0x168] sm:$0xff] %vm249, %v5866
      %7785 = vst.msk [vmem:[%s172 + $0x170] sm:$0xff] %vm249, %v5970
      %7786 = vst.msk [vmem:[%s172 + $0x178] sm:$0xff] %vm249, %v6074
      %7787 = vst.msk [vmem:[%s172 + $0x180] sm:$0xff] %vm249, %v6178
      %7788 = vst.msk [vmem:[%s172 + $0x188] sm:$0xff] %vm249, %v6282
      %7789 = vst.msk [vmem:[%s172 + $0x190] sm:$0xff] %vm249, %v6386
      %7790 = vst.msk [vmem:[%s172 + $0x198] sm:$0xff] %vm249, %v6490
      %7791 = vst.msk [vmem:[%s172 + $0x1a0] sm:$0xff] %vm249, %v6594
      %7792 = vst.msk [vmem:[%s172 + $0x1a8] sm:$0xff] %vm249, %v6698
      %7793 = vst.msk [vmem:[%s172 + $0x1b0] sm:$0xff] %vm249, %v6802
      %7794 = vst.msk [vmem:[%s172 + $0x1b8] sm:$0xff] %vm249, %v6906
      %7795 = vst.msk [vmem:[%s172 + $0x1c0] sm:$0xff] %vm249, %v7010
      %7796 = vst.msk [vmem:[%s172 + $0x1c8] sm:$0xff] %vm249, %v7114
      %7797 = vst.msk [vmem:[%s172 + $0x1d0] sm:$0xff] %vm249, %v7218
      %7798 = vst.msk [vmem:[%s172 + $0x1d8] sm:$0xff] %vm249, %v7322
      %7799 = vst.msk [vmem:[%s172 + $0x1e0] sm:$0xff] %vm249, %v7426
      %7800 = vst.msk [vmem:[%s172 + $0x1e8] sm:$0xff] %vm249, %v7530
      %7801 = vst.msk [vmem:[%s172 + $0x1f0] sm:$0xff] %vm249, %v7634
      %7802 = vst.msk [vmem:[%s172 + $0x1f8] sm:$0xff] %vm249, %v7738
      %s7803 = smul.u32 64, %s14
      %p7804 = scmp.lt.s32.totalorder %s7803, 255
      %s7805 = scalar_select %p7804, %s7803, 255
      %s7806 = smul.addr %s7805, 8
      %s7807 = scalar_lea.vmem %s3, %s7806
      // Predicated region
      $region33: #{tpu_custom_call.1} parent=31 // pred_check
        %p7808 = pneg %p100
      $region34: #{tpu_custom_call.1} parent=31 // pred_check_branch
        %7810 = sbr.rel (%p7808) target = $region36
      $region35: #{tpu_custom_call.1} parent=31 // pred_region
        %s7811 = smul.u32 64, %s14
      $region36: #{tpu_custom_call.1} parent=31 // pred_fallthru
        _
    $region32: #{tpu_custom_call.1} parent=5 // pred_fallthru
      _
    %p7812 = scmp.le.s32.totalorder 2, %s9
    // Predicated region
    $region37: #{tpu_custom_call.1} parent=5 // pred_check
      %p7813 = pneg %p7812
    $region38: #{tpu_custom_call.1} parent=5 // pred_check_branch
      %7815 = sbr.rel (%p7813) target = $region40
    $region39: #{tpu_custom_call.1} parent=5 // pred_region
      %s7816 = ssub.s32 %s9, 2
      // Predicated region
      $region41: #{tpu_custom_call.1} parent=39 // pred_check
        %p7817 = pneg %p106
      $region42: #{tpu_custom_call.1} parent=39 // pred_check_branch
        %7819 = sbr.rel (%p7817) target = $region44
      $region43: #{tpu_custom_call.1} parent=39 // pred_region
        %s7820 = smul.u32 64, %s15
        %p7821 = scmp.lt.s32.totalorder %s7820, 255
        %s7822 = scalar_select %p7821, %s7820, 255
        %s7823 = smul.addr %s7822, 8
        %s7824 = scalar_lea.vmem %s3, %s7823
      $region44: #{tpu_custom_call.1} parent=39 // pred_fallthru
        _
    $region40: #{tpu_custom_call.1} parent=5 // pred_fallthru
      _
  $region6: #{tpu_custom_call.1} parent=0 // loop_footer
    %s13 = sadd.s32 1, %s9
  $region7: #{tpu_custom_call.1} parent=0 // loop_footer_branch
    %8 = sbr.rel target = $region3
  $region8: #{tpu_custom_call.1} parent=0 // loop_exit
    _

</llo_original>
